<compile_context>
chip_gen: v6e
topology: v6e:2x2x1
jax: 0.10.0
libtpu: 0.0.40
codegen_flags: <defaults>
</compile_context>

<pallas_src>
import functools

import jax
import jax.numpy as jnp
from jax.experimental import pallas as pl
from jax.experimental.pallas import tpu as pltpu


# bf16 MXU operands for the per-step recurrent matmul (v6e/v7x native width).
# Switch to jnp.float32 if strict f32 parity with the PyTorch reference is
# required.
CHAIN_MATMUL_DTYPE = jnp.bfloat16


# ---------------------------------------------------------------------------
# Fused Pallas kernel: 2-layer x 2-pass LSTM wavefront + out_lin, grid=(1,)
# ---------------------------------------------------------------------------
def _fused_kernel(x_ref, wih0_ref, bias_ref, wc_ref, wout_ref, bout_ref,
                  out_ref, add_s, *, T, Bp, H, Opad):
    """
    x_ref    : (T*Bp, D)       time-major, batch-padded, flattened input
    wih0_ref : (D, 8H)   f32   Wih0^T scattered into gate-interleaved columns
                               [i0 i1 f0 f1 g0 g1 o0 o1] (layer-1 cols zero)
    bias_ref : (1, 8H)   f32   [b0_i b1_i b0_f b1_f ...], b = b_ih + b_hh
    wc_ref   : (2H, 8H)  bf16  fused recurrent weight [[Whh0, Wih1],[0, Whh1]]
                               (same interleaved column order)
    wout_ref : (2H, Opad) f32  out_lin^T, layer-0 rows zeroed, lane-padded
    bout_ref : (1, Opad)  f32
    out_ref  : (T*Bp, Opad)    pass-2 top-layer outputs, already projected
    add_s    : ((2T+1)*Bp, 8H) hoisted per-timestep additive gate terms
    """
    TB = T * Bp
    G = 8 * H            # fused gate width
    H2 = 2 * H           # fused state width: [layer0 | layer1]

    # ---- One-time prologue (all off the serial chain); weight/bias loads and
    # broadcasts hoisted so the unrolled loop bodies stay small.
    bias = bias_ref[...]                                        # (1, G)
    wc = wc_ref[...]                                            # (2H, G)
    woutT = wout_ref[...]                                       # (2H, Opad)
    bout_b = jnp.broadcast_to(bout_ref[...], (Bp, Opad))

    # Hoisted input projection: ONE MXU matmul for all T timesteps of one
    # pass; the time-doubled (two-pass) sequence reuses it.  A trailing
    # bias-only row block feeds the final, layer-1-only wavefront step.
    half = jnp.dot(x_ref[...], wih0_ref[...],
                   preferred_element_type=jnp.float32) + bias   # (TB, G)
    add_s[pl.ds(0, TB), :] = half
    add_s[pl.ds(TB, TB), :] = half
    add_s[pl.ds(2 * TB, Bp), :] = jnp.broadcast_to(bias, (Bp, G))

    def sigmoid(v):
        # exp (EUP) + approximate reciprocal (EUP vrcp): no full-precision
        # f32 divide sitting on the serial dependency chain.
        return pl.reciprocal(1.0 + jnp.exp(-v), approx=True)

    def fused_step(s, z, c):
        """Wavefront step s: layer-0 @ time s fused with layer-1 @ time s-1.

        z = [h0(s-1) | h1(s-2)],  c = [c0(s-1) | c1(s-2)]   (Bp, 2H) f32.
        """
        row = pl.multiple_of(s * Bp, Bp)                        # sublane-aligned
        zw = jnp.dot(z.astype(wc.dtype), wc,
                     preferred_element_type=jnp.float32)        # (Bp, G)
        gates = add_s[pl.ds(row, Bp), :] + zw
        # Gate-interleaved layout -> each slice covers both layers at once.
        i = sigmoid(gates[:, 0 * H2:1 * H2])
        f = sigmoid(gates[:, 1 * H2:2 * H2])
        g = jnp.tanh(gates[:, 2 * H2:3 * H2])
        o = sigmoid(gates[:, 3 * H2:4 * H2])
        c_new = f * c + i * g
        z_new = o * jnp.tanh(c_new)
        return z_new, c_new

    # ---- Step 0: only layer-0 (time 0) is valid; zero the layer-1 half so
    # step 1 sees h1(-1) = c1(-1) = 0.
    zeros2 = jnp.zeros((Bp, H2), jnp.float32)
    z, c = fused_step(0, zeros2, zeros2)
    keep_l0 = (jax.lax.broadcasted_iota(jnp.int32, (Bp, H2), 1) < H
               ).astype(jnp.float32)
    z = z * keep_l0
    c = c * keep_l0

    # ---- Steps 1..T: pass-1 wavefront.  Pass-1 layer-1 hidden states are
    # never stored; only the final (h, c) matters and it rides in the carry.
    def body_a(s, carry):
        return fused_step(s, *carry)

    z, c = jax.lax.fori_loop(1, T + 1, body_a, (z, c), unroll=True)

    # ---- Steps T+1..2T: pass-2 wavefront.  Layer-1 hidden @ time s-1 is the
    # model output at position s-1-T; its out_lin projection is fused here
    # (independent of the recurrence, so off the critical chain) and stored
    # lane-dense (Opad = multiple of 128) straight into out_ref.  The layer-0
    # rows of woutT are zero, so feeding the full z is exact.
    def body_b(s, carry):
        z, c = fused_step(s, *carry)
        orow = pl.multiple_of((s - (T + 1)) * Bp, Bp)
        out_ref[pl.ds(orow, Bp), :] = (
            jnp.dot(z, woutT, preferred_element_type=jnp.float32) + bout_b)
        return z, c

    jax.lax.fori_loop(T + 1, 2 * T + 1, body_b, (z, c), unroll=True)


# ---------------------------------------------------------------------------
# Params (PyTorch-style init) + fused-operand preparation at init time
# ---------------------------------------------------------------------------
def init_params(key, input_size, hidden_size, output_size, num_layers=2):
    """PyTorch uniform(-k, k) init, k = 1/sqrt(hidden_size); all fused-kernel
    operands (interleaved Wih0, combined Wc, folded biases, lane-padded
    out_lin) are pre-built here so the forward pass does zero weight prep."""
    assert num_layers == 2, "kernel is specialized to num_layers=2"
    H, D, O = hidden_size, input_size, output_size
    k = 1.0 / float(H) ** 0.5

    def u(key, shape):
        return jax.random.uniform(key, shape, jnp.float32, -k, k)

    keys = jax.random.split(key, 4 * num_layers + 4)
    raw = []
    for l in range(num_layers):
        d_in = D if l == 0 else H
        raw.append((u(keys[4 * l + 0], (4 * H, d_in)),   # w_ih  (4H, d_in)
                    u(keys[4 * l + 1], (4 * H, H)),      # w_hh  (4H, H)
                    u(keys[4 * l + 2], (4 * H,)),        # b_ih
                    u(keys[4 * l + 3], (4 * H,))))       # b_hh
    out_w = u(keys[-4], (O, H))
    out_b = u(keys[-3], (O,))
    # lin_hi exists in the PyTorch module but is UNUSED in forward; kept only
    # for parameter fidelity.
    lin_hi_w = u(keys[-2], (D, H))
    lin_hi_b = u(keys[-1], (D,))

    (w_ih0, w_hh0, b_ih0, b_hh0), (w_ih1, w_hh1, b_ih1, b_hh1) = raw

    def gates_t(w):  # (4H, X) -> 4 transposed (X, H) gate blocks, order i,f,g,o
        return [jnp.transpose(w[g * H:(g + 1) * H, :]) for g in range(4)]

    ih0, hh0 = gates_t(w_ih0), gates_t(w_hh0)
    ih1, hh1 = gates_t(w_ih1), gates_t(w_hh1)
    zHH = jnp.zeros((H, H), jnp.float32)
    zDH = jnp.zeros((D, H), jnp.float32)

    # Fused recurrent weight, gate-interleaved columns [i0 i1 f0 f1 g0 g1 o0 o1]:
    #   rows 0..H-1   (h0): layer-0 recurrent gates + layer-1 input gates
    #   rows H..2H-1  (h1): zeros               + layer-1 recurrent gates
    wc = jnp.concatenate([
        jnp.concatenate([hh0[0], ih1[0], hh0[1], ih1[1],
                         hh0[2], ih1[2], hh0[3], ih1[3]], axis=1),
        jnp.concatenate([zHH, hh1[0], zHH, hh1[1],
                         zHH, hh1[2], zHH, hh1[3]], axis=1)], axis=0)  # (2H,8H)

    # Layer-0 input projection scattered into the same interleaved columns.
    wih0_il = jnp.concatenate([ih0[0], zDH, ih0[1], zDH,
                               ih0[2], zDH, ih0[3], zDH], axis=1)      # (D, 8H)

    b0, b1 = b_ih0 + b_hh0, b_ih1 + b_hh1
    bias_il = jnp.concatenate(
        [b0[0 * H:1 * H], b1[0 * H:1 * H], b0[1 * H:2 * H], b1[1 * H:2 * H],
         b0[2 * H:3 * H], b1[2 * H:3 * H], b0[3 * H:4 * H], b1[3 * H:4 * H]]
    ).reshape(1, 8 * H)

    # out_lin: transposed, rows laid out for [h0 | h1] with the h0 half zeroed
    # (out_lin only reads the top layer), columns zero-padded to a lane-dense
    # multiple of 128 so the kernel's output stores are unmasked.
    Opad = ((O + 127) // 128) * 128
    wout_pad = jnp.zeros((2 * H, Opad), jnp.float32)
    wout_pad = wout_pad.at[H:, :O].set(jnp.transpose(out_w))
    bout_pad = jnp.zeros((1, Opad), jnp.float32).at[:, :O].set(out_b)

    return {
        "wc": wc.astype(CHAIN_MATMUL_DTYPE),
        "wih0_il": wih0_il,
        "bias_il": bias_il,
        "out_w_pad": wout_pad,
        "out_b_pad": bout_pad,
        # Raw (PyTorch-layout) params kept for fidelity / size derivation.
        "out_w": out_w, "out_b": out_b,
        "lin_hi_w": lin_hi_w, "lin_hi_b": lin_hi_b,
    }


def circular_mesh_lstm_forward(edges, params):
    """edges: (B, C_in, E)  ->  (B, output_size, E)."""
    B, D, E = edges.shape
    T = E
    wc, wih0_il, bias_il = params["wc"], params["wih0_il"], params["bias_il"]
    wout_pad, bout_pad = params["out_w_pad"], params["out_b_pad"]
    H = wc.shape[0] // 2
    Opad = wout_pad.shape[1]
    O = params["out_w"].shape[0]
    Bp = ((B + 7) // 8) * 8                  # pad batch to a sublane multiple

    # (B, D, E) -> time-major (T, B, D) -> pad batch -> flatten to (T*Bp, D).
    x = jnp.transpose(edges, (2, 0, 1)).astype(jnp.float32)
    x = jnp.pad(x, ((0, 0), (0, Bp - B), (0, 0)))
    x_flat = x.reshape(T * Bp, D)

    # Advisory cost estimate (rough) for XLA's scheduler.
    steps = 2 * T + 1
    mm_flops = (2 * T * Bp * D * 8 * H            # hoisted input projection
                + steps * 2 * Bp * 2 * H * 8 * H  # fused wavefront matmuls
                + T * 2 * Bp * 2 * H * Opad)      # fused out_lin projection
    transcendentals = steps * Bp * 16 * H
    bytes_accessed = 4 * (x_flat.size + wih0_il.size + bias_il.size
                          + wout_pad.size + bout_pad.size + T * Bp * Opad) \
        + wc.size * wc.dtype.itemsize

    kern = functools.partial(_fused_kernel, T=T, Bp=Bp, H=H, Opad=Opad)
    out_flat = pl.pallas_call(
        kern,
        grid=(1,),
        in_specs=[
            pl.BlockSpec((T * Bp, D), lambda i: (0, 0)),        # x
            pl.BlockSpec((D, 8 * H), lambda i: (0, 0)),         # wih0_il
            pl.BlockSpec((1, 8 * H), lambda i: (0, 0)),         # bias_il
            pl.BlockSpec((2 * H, 8 * H), lambda i: (0, 0)),     # wc (bf16)
            pl.BlockSpec((2 * H, Opad), lambda i: (0, 0)),      # out_w_pad
            pl.BlockSpec((1, Opad), lambda i: (0, 0)),          # out_b_pad
        ],
        out_specs=pl.BlockSpec((T * Bp, Opad), lambda i: (0, 0)),
        out_shape=jax.ShapeDtypeStruct((T * Bp, Opad), jnp.float32),
        scratch_shapes=[
            pltpu.VMEM(((2 * T + 1) * Bp, 8 * H), jnp.float32),  # add_s
        ],
        compiler_params=pltpu.CompilerParams(
            dimension_semantics=("arbitrary",)),
        cost_estimate=pl.CostEstimate(flops=mm_flops,
                                      transcendentals=transcendentals,
                                      bytes_accessed=bytes_accessed),
    )(x_flat, wih0_il, bias_il, wc, wout_pad, bout_pad)

    # Drop batch padding and the lane padding of the output columns.
    out = out_flat.reshape(T, Bp, Opad)[:, :B, :O]   # (T, B, O)
    return jnp.transpose(out, (1, 2, 0))             # == permute(0,2,1) -> (B,O,E)


if __name__ == "__main__":
    B, C_IN, E = 2, 4, 16          # batch, input_size (edge features), #edges
    HIDDEN, OUT = 32, 4
    key = jax.random.PRNGKey(0)
    k_param, k_x = jax.random.split(key)

    params = init_params(k_param, C_IN, HIDDEN, OUT, num_layers=2)
    edges = jax.random.normal(k_x, (B, C_IN, E), jnp.float32)

    out = jax.jit(circular_mesh_lstm_forward)(edges, params)
    out = jax.block_until_ready(out)
    assert out.shape == (B, OUT, E), out.shape
    assert bool(jnp.all(jnp.isfinite(out)))
    print("KERNEL_OK")
</pallas_src>

<mosaic_0001>
module attributes {stable_mosaic.version = 11 : i64} {
  func.func @_fused_kernel(%arg0: i32, %arg1: memref<128x4xf32, #tpu.memory_space<vmem>>, %arg2: memref<4x256xf32, #tpu.memory_space<vmem>>, %arg3: memref<1x256xf32, #tpu.memory_space<vmem>>, %arg4: memref<64x256xbf16, #tpu.memory_space<vmem>>, %arg5: memref<64x128xf32, #tpu.memory_space<vmem>>, %arg6: memref<1x128xf32, #tpu.memory_space<vmem>>, %arg7: memref<128x128xf32, #tpu.memory_space<vmem>>, %arg8: memref<264x256xf32, #tpu.memory_space<vmem>>) attributes {dimension_semantics = [#tpu.dimension_semantics<arbitrary>], iteration_bounds = array<i64: 1>, scalar_prefetch = 0 : i64, scratch_operands = 1 : i64, tpu.core_type = #tpu.core_type<tc>, window_params = [{pipeline_mode = #tpu.pipeline_mode<synchronous>, transform_indices = @transform_0, window_bounds = array<i64: 128, 4>}, {pipeline_mode = #tpu.pipeline_mode<synchronous>, transform_indices = @transform_1, window_bounds = array<i64: 4, 256>}, {pipeline_mode = #tpu.pipeline_mode<synchronous>, transform_indices = @transform_2, window_bounds = array<i64: 1, 256>}, {pipeline_mode = #tpu.pipeline_mode<synchronous>, transform_indices = @transform_3, window_bounds = array<i64: 64, 256>}, {pipeline_mode = #tpu.pipeline_mode<synchronous>, transform_indices = @transform_4, window_bounds = array<i64: 64, 128>}, {pipeline_mode = #tpu.pipeline_mode<synchronous>, transform_indices = @transform_5, window_bounds = array<i64: 1, 128>}, {pipeline_mode = #tpu.pipeline_mode<synchronous>, transform_indices = @transform_6, window_bounds = array<i64: 128, 128>}]} {
    %c0 = arith.constant 0 : index
    %c0_0 = arith.constant 0 : index
    %0 = vector.load %arg3[%c0, %c0_0] : memref<1x256xf32, #tpu.memory_space<vmem>>, vector<1x256xf32>
    %c0_1 = arith.constant 0 : index
    %c0_2 = arith.constant 0 : index
    %1 = vector.load %arg4[%c0_1, %c0_2] : memref<64x256xbf16, #tpu.memory_space<vmem>>, vector<64x256xbf16>
    %c0_3 = arith.constant 0 : index
    %c0_4 = arith.constant 0 : index
    %2 = vector.load %arg5[%c0_3, %c0_4] : memref<64x128xf32, #tpu.memory_space<vmem>>, vector<64x128xf32>
    %c0_5 = arith.constant 0 : index
    %c0_6 = arith.constant 0 : index
    %3 = vector.load %arg6[%c0_5, %c0_6] : memref<1x128xf32, #tpu.memory_space<vmem>>, vector<1x128xf32>
    %4 = vector.shape_cast %3 : vector<1x128xf32> to vector<1x128xf32>
    %5 = vector.broadcast %4 : vector<1x128xf32> to vector<8x128xf32>
    %c0_7 = arith.constant 0 : index
    %c0_8 = arith.constant 0 : index
    %6 = vector.load %arg1[%c0_7, %c0_8] : memref<128x4xf32, #tpu.memory_space<vmem>>, vector<128x4xf32>
    %c0_9 = arith.constant 0 : index
    %c0_10 = arith.constant 0 : index
    %7 = vector.load %arg2[%c0_9, %c0_10] : memref<4x256xf32, #tpu.memory_space<vmem>>, vector<4x256xf32>
    %cst = arith.constant dense<0.000000e+00> : vector<128x256xf32>
    %8 = tpu.matmul %6, %7, %cst {dimension_numbers = #tpu.dot_dimension_numbers<[1], [0], [0], [1], [0, 0, 1, 1], [], []>} : vector<128x4xf32>, vector<4x256xf32>, vector<128x256xf32> -> vector<128x256xf32>
    %9 = vector.broadcast %0 : vector<1x256xf32> to vector<128x256xf32>
    %10 = arith.addf %8, %9 : vector<128x256xf32>
    %c0_11 = arith.constant 0 : index
    %c0_12 = arith.constant 0 : index
    %11 = vector.load %arg8[%c0_11, %c0_12] : memref<264x256xf32, #tpu.memory_space<vmem>>, vector<128x256xf32>
    tpu.vector_store %arg8[%c0_11, %c0_12], %10 {strides = array<i32>} : memref<264x256xf32, #tpu.memory_space<vmem>>, vector<128x256xf32>,
    %c128 = arith.constant 128 : index
    %c0_13 = arith.constant 0 : index
    %12 = vector.load %arg8[%c128, %c0_13] : memref<264x256xf32, #tpu.memory_space<vmem>>, vector<128x256xf32>
    tpu.vector_store %arg8[%c128, %c0_13], %10 {strides = array<i32>} : memref<264x256xf32, #tpu.memory_space<vmem>>, vector<128x256xf32>,
    %13 = vector.shape_cast %0 : vector<1x256xf32> to vector<1x256xf32>
    %14 = vector.broadcast %13 : vector<1x256xf32> to vector<8x256xf32>
    %c256 = arith.constant 256 : index
    %c0_14 = arith.constant 0 : index
    %15 = vector.load %arg8[%c256, %c0_14] : memref<264x256xf32, #tpu.memory_space<vmem>>, vector<8x256xf32>
    tpu.vector_store %arg8[%c256, %c0_14], %14 {strides = array<i32>} : memref<264x256xf32, #tpu.memory_space<vmem>>, vector<8x256xf32>,
    %cst_15 = arith.constant 0.000000e+00 : f32
    %16 = vector.broadcast %cst_15 : f32 to vector<8x64xf32>
    %c0_i32 = arith.constant 0 : i32
    %17 = tpu.assume_multiple %c0_i32, 8 : i32
    %18 = arith.truncf %16 : vector<8x64xf32> to vector<8x64xbf16>
    %cst_16 = arith.constant dense<0.000000e+00> : vector<8x256xf32>
    %19 = tpu.matmul %18, %1, %cst_16 {dimension_numbers = #tpu.dot_dimension_numbers<[1], [0], [0], [1], [0, 0, 1, 1], [], []>} : vector<8x64xbf16>, vector<64x256xbf16>, vector<8x256xf32> -> vector<8x256xf32>
    %20 = arith.index_cast %17 : i32 to index
    %c0_17 = arith.constant 0 : index
    %21 = vector.load %arg8[%20, %c0_17] : memref<264x256xf32, #tpu.memory_space<vmem>>, vector<8x256xf32>
    %22 = arith.addf %21, %19 : vector<8x256xf32>
    %23 = vector.extract_strided_slice %22 {offsets = [0, 0], sizes = [8, 64], strides = [1, 1]} : vector<8x256xf32> to vector<8x64xf32>
    %cst_18 = arith.constant 0.000000e+00 : f32
    %24 = vector.broadcast %cst_18 : f32 to vector<8x64xf32>
    %25 = arith.subf %24, %23 : vector<8x64xf32>
    %26 = math.exp %25 : vector<8x64xf32>
    %cst_19 = arith.constant 1.000000e+00 : f32
    %27 = vector.broadcast %cst_19 : f32 to vector<8x64xf32>
    %28 = arith.addf %27, %26 : vector<8x64xf32>
    %29 = tpu.reciprocal %28 {approx = true} : vector<8x64xf32> -> vector<8x64xf32>
    %30 = vector.extract_strided_slice %22 {offsets = [0, 64], sizes = [8, 64], strides = [1, 1]} : vector<8x256xf32> to vector<8x64xf32>
    %cst_20 = arith.constant 0.000000e+00 : f32
    %31 = vector.broadcast %cst_20 : f32 to vector<8x64xf32>
    %32 = arith.subf %31, %30 : vector<8x64xf32>
    %33 = math.exp %32 : vector<8x64xf32>
    %cst_21 = arith.constant 1.000000e+00 : f32
    %34 = vector.broadcast %cst_21 : f32 to vector<8x64xf32>
    %35 = arith.addf %34, %33 : vector<8x64xf32>
    %36 = tpu.reciprocal %35 {approx = true} : vector<8x64xf32> -> vector<8x64xf32>
    %37 = vector.extract_strided_slice %22 {offsets = [0, 128], sizes = [8, 64], strides = [1, 1]} : vector<8x256xf32> to vector<8x64xf32>
    %38 = math.tanh %37 : vector<8x64xf32>
    %39 = vector.extract_strided_slice %22 {offsets = [0, 192], sizes = [8, 64], strides = [1, 1]} : vector<8x256xf32> to vector<8x64xf32>
    %cst_22 = arith.constant 0.000000e+00 : f32
    %40 = vector.broadcast %cst_22 : f32 to vector<8x64xf32>
    %41 = arith.subf %40, %39 : vector<8x64xf32>
    %42 = math.exp %41 : vector<8x64xf32>
    %cst_23 = arith.constant 1.000000e+00 : f32
    %43 = vector.broadcast %cst_23 : f32 to vector<8x64xf32>
    %44 = arith.addf %43, %42 : vector<8x64xf32>
    %45 = tpu.reciprocal %44 {approx = true} : vector<8x64xf32> -> vector<8x64xf32>
    %46 = arith.mulf %36, %16 : vector<8x64xf32>
    %47 = arith.mulf %29, %38 : vector<8x64xf32>
    %48 = arith.addf %46, %47 : vector<8x64xf32>
    %49 = math.tanh %48 : vector<8x64xf32>
    %50 = arith.mulf %45, %49 : vector<8x64xf32>
    %51 = tpu.iota {dimensions = array<i32: 1>} : vector<8x64xi32>
    %c32_i32 = arith.constant 32 : i32
    %52 = vector.broadcast %c32_i32 : i32 to vector<8x64xi32>
    %53 = arith.cmpi slt, %51, %52 : vector<8x64xi32>
    %54 = arith.extui %53 : vector<8x64xi1> to vector<8x64xi32>
    %55 = arith.sitofp %54 : vector<8x64xi32> to vector<8x64xf32>
    %56 = arith.mulf %50, %55 : vector<8x64xf32>
    %57 = arith.mulf %48, %55 : vector<8x64xf32>
    %c1_i32 = arith.constant 1 : i32
    %c8_i32 = arith.constant 8 : i32
    %58 = arith.muli %c1_i32, %c8_i32 : i32
    %59 = tpu.assume_multiple %58, 8 : i32
    %60 = arith.truncf %56 : vector<8x64xf32> to vector<8x64xbf16>
    %cst_24 = arith.constant dense<0.000000e+00> : vector<8x256xf32>
    %61 = tpu.matmul %60, %1, %cst_24 {dimension_numbers = #tpu.dot_dimension_numbers<[1], [0], [0], [1], [0, 0, 1, 1], [], []>} : vector<8x64xbf16>, vector<64x256xbf16>, vector<8x256xf32> -> vector<8x256xf32>
    %62 = arith.index_cast %59 : i32 to index
    %c0_25 = arith.constant 0 : index
    %63 = vector.load %arg8[%62, %c0_25] : memref<264x256xf32, #tpu.memory_space<vmem>>, vector<8x256xf32>
    %64 = arith.addf %63, %61 : vector<8x256xf32>
    %65 = vector.extract_strided_slice %64 {offsets = [0, 0], sizes = [8, 64], strides = [1, 1]} : vector<8x256xf32> to vector<8x64xf32>
    %cst_26 = arith.constant 0.000000e+00 : f32
    %66 = vector.broadcast %cst_26 : f32 to vector<8x64xf32>
    %67 = arith.subf %66, %65 : vector<8x64xf32>
    %68 = math.exp %67 : vector<8x64xf32>
    %cst_27 = arith.constant 1.000000e+00 : f32
    %69 = vector.broadcast %cst_27 : f32 to vector<8x64xf32>
    %70 = arith.addf %69, %68 : vector<8x64xf32>
    %71 = tpu.reciprocal %70 {approx = true} : vector<8x64xf32> -> vector<8x64xf32>
    %72 = vector.extract_strided_slice %64 {offsets = [0, 64], sizes = [8, 64], strides = [1, 1]} : vector<8x256xf32> to vector<8x64xf32>
    %cst_28 = arith.constant 0.000000e+00 : f32
    %73 = vector.broadcast %cst_28 : f32 to vector<8x64xf32>
    %74 = arith.subf %73, %72 : vector<8x64xf32>
    %75 = math.exp %74 : vector<8x64xf32>
    %cst_29 = arith.constant 1.000000e+00 : f32
    %76 = vector.broadcast %cst_29 : f32 to vector<8x64xf32>
    %77 = arith.addf %76, %75 : vector<8x64xf32>
    %78 = tpu.reciprocal %77 {approx = true} : vector<8x64xf32> -> vector<8x64xf32>
    %79 = vector.extract_strided_slice %64 {offsets = [0, 128], sizes = [8, 64], strides = [1, 1]} : vector<8x256xf32> to vector<8x64xf32>
    %80 = math.tanh %79 : vector<8x64xf32>
    %81 = vector.extract_strided_slice %64 {offsets = [0, 192], sizes = [8, 64], strides = [1, 1]} : vector<8x256xf32> to vector<8x64xf32>
    %cst_30 = arith.constant 0.000000e+00 : f32
    %82 = vector.broadcast %cst_30 : f32 to vector<8x64xf32>
    %83 = arith.subf %82, %81 : vector<8x64xf32>
    %84 = math.exp %83 : vector<8x64xf32>
    %cst_31 = arith.constant 1.000000e+00 : f32
    %85 = vector.broadcast %cst_31 : f32 to vector<8x64xf32>
    %86 = arith.addf %85, %84 : vector<8x64xf32>
    %87 = tpu.reciprocal %86 {approx = true} : vector<8x64xf32> -> vector<8x64xf32>
    %88 = arith.mulf %78, %57 : vector<8x64xf32>
    %89 = arith.mulf %71, %80 : vector<8x64xf32>
    %90 = arith.addf %88, %89 : vector<8x64xf32>
    %91 = math.tanh %90 : vector<8x64xf32>
    %92 = arith.mulf %87, %91 : vector<8x64xf32>
    %c2_i32 = arith.constant 2 : i32
    %c8_i32_32 = arith.constant 8 : i32
    %93 = arith.muli %c2_i32, %c8_i32_32 : i32
    %94 = tpu.assume_multiple %93, 8 : i32
    %95 = arith.truncf %92 : vector<8x64xf32> to vector<8x64xbf16>
    %cst_33 = arith.constant dense<0.000000e+00> : vector<8x256xf32>
    %96 = tpu.matmul %95, %1, %cst_33 {dimension_numbers = #tpu.dot_dimension_numbers<[1], [0], [0], [1], [0, 0, 1, 1], [], []>} : vector<8x64xbf16>, vector<64x256xbf16>, vector<8x256xf32> -> vector<8x256xf32>
    %97 = arith.index_cast %94 : i32 to index
    %c0_34 = arith.constant 0 : index
    %98 = vector.load %arg8[%97, %c0_34] : memref<264x256xf32, #tpu.memory_space<vmem>>, vector<8x256xf32>
    %99 = arith.addf %98, %96 : vector<8x256xf32>
    %100 = vector.extract_strided_slice %99 {offsets = [0, 0], sizes = [8, 64], strides = [1, 1]} : vector<8x256xf32> to vector<8x64xf32>
    %cst_35 = arith.constant 0.000000e+00 : f32
    %101 = vector.broadcast %cst_35 : f32 to vector<8x64xf32>
    %102 = arith.subf %101, %100 : vector<8x64xf32>
    %103 = math.exp %102 : vector<8x64xf32>
    %cst_36 = arith.constant 1.000000e+00 : f32
    %104 = vector.broadcast %cst_36 : f32 to vector<8x64xf32>
    %105 = arith.addf %104, %103 : vector<8x64xf32>
    %106 = tpu.reciprocal %105 {approx = true} : vector<8x64xf32> -> vector<8x64xf32>
    %107 = vector.extract_strided_slice %99 {offsets = [0, 64], sizes = [8, 64], strides = [1, 1]} : vector<8x256xf32> to vector<8x64xf32>
    %cst_37 = arith.constant 0.000000e+00 : f32
    %108 = vector.broadcast %cst_37 : f32 to vector<8x64xf32>
    %109 = arith.subf %108, %107 : vector<8x64xf32>
    %110 = math.exp %109 : vector<8x64xf32>
    %cst_38 = arith.constant 1.000000e+00 : f32
    %111 = vector.broadcast %cst_38 : f32 to vector<8x64xf32>
    %112 = arith.addf %111, %110 : vector<8x64xf32>
    %113 = tpu.reciprocal %112 {approx = true} : vector<8x64xf32> -> vector<8x64xf32>
    %114 = vector.extract_strided_slice %99 {offsets = [0, 128], sizes = [8, 64], strides = [1, 1]} : vector<8x256xf32> to vector<8x64xf32>
    %115 = math.tanh %114 : vector<8x64xf32>
    %116 = vector.extract_strided_slice %99 {offsets = [0, 192], sizes = [8, 64], strides = [1, 1]} : vector<8x256xf32> to vector<8x64xf32>
    %cst_39 = arith.constant 0.000000e+00 : f32
    %117 = vector.broadcast %cst_39 : f32 to vector<8x64xf32>
    %118 = arith.subf %117, %116 : vector<8x64xf32>
    %119 = math.exp %118 : vector<8x64xf32>
    %cst_40 = arith.constant 1.000000e+00 : f32
    %120 = vector.broadcast %cst_40 : f32 to vector<8x64xf32>
    %121 = arith.addf %120, %119 : vector<8x64xf32>
    %122 = tpu.reciprocal %121 {approx = true} : vector<8x64xf32> -> vector<8x64xf32>
    %123 = arith.mulf %113, %90 : vector<8x64xf32>
    %124 = arith.mulf %106, %115 : vector<8x64xf32>
    %125 = arith.addf %123, %124 : vector<8x64xf32>
    %126 = math.tanh %125 : vector<8x64xf32>
    %127 = arith.mulf %122, %126 : vector<8x64xf32>
    %c3_i32 = arith.constant 3 : i32
    %c8_i32_41 = arith.constant 8 : i32
    %128 = arith.muli %c3_i32, %c8_i32_41 : i32
    %129 = tpu.assume_multiple %128, 8 : i32
    %130 = arith.truncf %127 : vector<8x64xf32> to vector<8x64xbf16>
    %cst_42 = arith.constant dense<0.000000e+00> : vector<8x256xf32>
    %131 = tpu.matmul %130, %1, %cst_42 {dimension_numbers = #tpu.dot_dimension_numbers<[1], [0], [0], [1], [0, 0, 1, 1], [], []>} : vector<8x64xbf16>, vector<64x256xbf16>, vector<8x256xf32> -> vector<8x256xf32>
    %132 = arith.index_cast %129 : i32 to index
    %c0_43 = arith.constant 0 : index
    %133 = vector.load %arg8[%132, %c0_43] : memref<264x256xf32, #tpu.memory_space<vmem>>, vector<8x256xf32>
    %134 = arith.addf %133, %131 : vector<8x256xf32>
    %135 = vector.extract_strided_slice %134 {offsets = [0, 0], sizes = [8, 64], strides = [1, 1]} : vector<8x256xf32> to vector<8x64xf32>
    %cst_44 = arith.constant 0.000000e+00 : f32
    %136 = vector.broadcast %cst_44 : f32 to vector<8x64xf32>
    %137 = arith.subf %136, %135 : vector<8x64xf32>
    %138 = math.exp %137 : vector<8x64xf32>
    %cst_45 = arith.constant 1.000000e+00 : f32
    %139 = vector.broadcast %cst_45 : f32 to vector<8x64xf32>
    %140 = arith.addf %139, %138 : vector<8x64xf32>
    %141 = tpu.reciprocal %140 {approx = true} : vector<8x64xf32> -> vector<8x64xf32>
    %142 = vector.extract_strided_slice %134 {offsets = [0, 64], sizes = [8, 64], strides = [1, 1]} : vector<8x256xf32> to vector<8x64xf32>
    %cst_46 = arith.constant 0.000000e+00 : f32
    %143 = vector.broadcast %cst_46 : f32 to vector<8x64xf32>
    %144 = arith.subf %143, %142 : vector<8x64xf32>
    %145 = math.exp %144 : vector<8x64xf32>
    %cst_47 = arith.constant 1.000000e+00 : f32
    %146 = vector.broadcast %cst_47 : f32 to vector<8x64xf32>
    %147 = arith.addf %146, %145 : vector<8x64xf32>
    %148 = tpu.reciprocal %147 {approx = true} : vector<8x64xf32> -> vector<8x64xf32>
    %149 = vector.extract_strided_slice %134 {offsets = [0, 128], sizes = [8, 64], strides = [1, 1]} : vector<8x256xf32> to vector<8x64xf32>
    %150 = math.tanh %149 : vector<8x64xf32>
    %151 = vector.extract_strided_slice %134 {offsets = [0, 192], sizes = [8, 64], strides = [1, 1]} : vector<8x256xf32> to vector<8x64xf32>
    %cst_48 = arith.constant 0.000000e+00 : f32
    %152 = vector.broadcast %cst_48 : f32 to vector<8x64xf32>
    %153 = arith.subf %152, %151 : vector<8x64xf32>
    %154 = math.exp %153 : vector<8x64xf32>
    %cst_49 = arith.constant 1.000000e+00 : f32
    %155 = vector.broadcast %cst_49 : f32 to vector<8x64xf32>
    %156 = arith.addf %155, %154 : vector<8x64xf32>
    %157 = tpu.reciprocal %156 {approx = true} : vector<8x64xf32> -> vector<8x64xf32>
    %158 = arith.mulf %148, %125 : vector<8x64xf32>
    %159 = arith.mulf %141, %150 : vector<8x64xf32>
    %160 = arith.addf %158, %159 : vector<8x64xf32>
    %161 = math.tanh %160 : vector<8x64xf32>
    %162 = arith.mulf %157, %161 : vector<8x64xf32>
    %c4_i32 = arith.constant 4 : i32
    %c8_i32_50 = arith.constant 8 : i32
    %163 = arith.muli %c4_i32, %c8_i32_50 : i32
    %164 = tpu.assume_multiple %163, 8 : i32
    %165 = arith.truncf %162 : vector<8x64xf32> to vector<8x64xbf16>
    %cst_51 = arith.constant dense<0.000000e+00> : vector<8x256xf32>
    %166 = tpu.matmul %165, %1, %cst_51 {dimension_numbers = #tpu.dot_dimension_numbers<[1], [0], [0], [1], [0, 0, 1, 1], [], []>} : vector<8x64xbf16>, vector<64x256xbf16>, vector<8x256xf32> -> vector<8x256xf32>
    %167 = arith.index_cast %164 : i32 to index
    %c0_52 = arith.constant 0 : index
    %168 = vector.load %arg8[%167, %c0_52] : memref<264x256xf32, #tpu.memory_space<vmem>>, vector<8x256xf32>
    %169 = arith.addf %168, %166 : vector<8x256xf32>
    %170 = vector.extract_strided_slice %169 {offsets = [0, 0], sizes = [8, 64], strides = [1, 1]} : vector<8x256xf32> to vector<8x64xf32>
    %cst_53 = arith.constant 0.000000e+00 : f32
    %171 = vector.broadcast %cst_53 : f32 to vector<8x64xf32>
    %172 = arith.subf %171, %170 : vector<8x64xf32>
    %173 = math.exp %172 : vector<8x64xf32>
    %cst_54 = arith.constant 1.000000e+00 : f32
    %174 = vector.broadcast %cst_54 : f32 to vector<8x64xf32>
    %175 = arith.addf %174, %173 : vector<8x64xf32>
    %176 = tpu.reciprocal %175 {approx = true} : vector<8x64xf32> -> vector<8x64xf32>
    %177 = vector.extract_strided_slice %169 {offsets = [0, 64], sizes = [8, 64], strides = [1, 1]} : vector<8x256xf32> to vector<8x64xf32>
    %cst_55 = arith.constant 0.000000e+00 : f32
    %178 = vector.broadcast %cst_55 : f32 to vector<8x64xf32>
    %179 = arith.subf %178, %177 : vector<8x64xf32>
    %180 = math.exp %179 : vector<8x64xf32>
    %cst_56 = arith.constant 1.000000e+00 : f32
    %181 = vector.broadcast %cst_56 : f32 to vector<8x64xf32>
    %182 = arith.addf %181, %180 : vector<8x64xf32>
    %183 = tpu.reciprocal %182 {approx = true} : vector<8x64xf32> -> vector<8x64xf32>
    %184 = vector.extract_strided_slice %169 {offsets = [0, 128], sizes = [8, 64], strides = [1, 1]} : vector<8x256xf32> to vector<8x64xf32>
    %185 = math.tanh %184 : vector<8x64xf32>
    %186 = vector.extract_strided_slice %169 {offsets = [0, 192], sizes = [8, 64], strides = [1, 1]} : vector<8x256xf32> to vector<8x64xf32>
    %cst_57 = arith.constant 0.000000e+00 : f32
    %187 = vector.broadcast %cst_57 : f32 to vector<8x64xf32>
    %188 = arith.subf %187, %186 : vector<8x64xf32>
    %189 = math.exp %188 : vector<8x64xf32>
    %cst_58 = arith.constant 1.000000e+00 : f32
    %190 = vector.broadcast %cst_58 : f32 to vector<8x64xf32>
    %191 = arith.addf %190, %189 : vector<8x64xf32>
    %192 = tpu.reciprocal %191 {approx = true} : vector<8x64xf32> -> vector<8x64xf32>
    %193 = arith.mulf %183, %160 : vector<8x64xf32>
    %194 = arith.mulf %176, %185 : vector<8x64xf32>
    %195 = arith.addf %193, %194 : vector<8x64xf32>
    %196 = math.tanh %195 : vector<8x64xf32>
    %197 = arith.mulf %192, %196 : vector<8x64xf32>
    %c5_i32 = arith.constant 5 : i32
    %c8_i32_59 = arith.constant 8 : i32
    %198 = arith.muli %c5_i32, %c8_i32_59 : i32
    %199 = tpu.assume_multiple %198, 8 : i32
    %200 = arith.truncf %197 : vector<8x64xf32> to vector<8x64xbf16>
    %cst_60 = arith.constant dense<0.000000e+00> : vector<8x256xf32>
    %201 = tpu.matmul %200, %1, %cst_60 {dimension_numbers = #tpu.dot_dimension_numbers<[1], [0], [0], [1], [0, 0, 1, 1], [], []>} : vector<8x64xbf16>, vector<64x256xbf16>, vector<8x256xf32> -> vector<8x256xf32>
    %202 = arith.index_cast %199 : i32 to index
    %c0_61 = arith.constant 0 : index
    %203 = vector.load %arg8[%202, %c0_61] : memref<264x256xf32, #tpu.memory_space<vmem>>, vector<8x256xf32>
    %204 = arith.addf %203, %201 : vector<8x256xf32>
    %205 = vector.extract_strided_slice %204 {offsets = [0, 0], sizes = [8, 64], strides = [1, 1]} : vector<8x256xf32> to vector<8x64xf32>
    %cst_62 = arith.constant 0.000000e+00 : f32
    %206 = vector.broadcast %cst_62 : f32 to vector<8x64xf32>
    %207 = arith.subf %206, %205 : vector<8x64xf32>
    %208 = math.exp %207 : vector<8x64xf32>
    %cst_63 = arith.constant 1.000000e+00 : f32
    %209 = vector.broadcast %cst_63 : f32 to vector<8x64xf32>
    %210 = arith.addf %209, %208 : vector<8x64xf32>
    %211 = tpu.reciprocal %210 {approx = true} : vector<8x64xf32> -> vector<8x64xf32>
    %212 = vector.extract_strided_slice %204 {offsets = [0, 64], sizes = [8, 64], strides = [1, 1]} : vector<8x256xf32> to vector<8x64xf32>
    %cst_64 = arith.constant 0.000000e+00 : f32
    %213 = vector.broadcast %cst_64 : f32 to vector<8x64xf32>
    %214 = arith.subf %213, %212 : vector<8x64xf32>
    %215 = math.exp %214 : vector<8x64xf32>
    %cst_65 = arith.constant 1.000000e+00 : f32
    %216 = vector.broadcast %cst_65 : f32 to vector<8x64xf32>
    %217 = arith.addf %216, %215 : vector<8x64xf32>
    %218 = tpu.reciprocal %217 {approx = true} : vector<8x64xf32> -> vector<8x64xf32>
    %219 = vector.extract_strided_slice %204 {offsets = [0, 128], sizes = [8, 64], strides = [1, 1]} : vector<8x256xf32> to vector<8x64xf32>
    %220 = math.tanh %219 : vector<8x64xf32>
    %221 = vector.extract_strided_slice %204 {offsets = [0, 192], sizes = [8, 64], strides = [1, 1]} : vector<8x256xf32> to vector<8x64xf32>
    %cst_66 = arith.constant 0.000000e+00 : f32
    %222 = vector.broadcast %cst_66 : f32 to vector<8x64xf32>
    %223 = arith.subf %222, %221 : vector<8x64xf32>
    %224 = math.exp %223 : vector<8x64xf32>
    %cst_67 = arith.constant 1.000000e+00 : f32
    %225 = vector.broadcast %cst_67 : f32 to vector<8x64xf32>
    %226 = arith.addf %225, %224 : vector<8x64xf32>
    %227 = tpu.reciprocal %226 {approx = true} : vector<8x64xf32> -> vector<8x64xf32>
    %228 = arith.mulf %218, %195 : vector<8x64xf32>
    %229 = arith.mulf %211, %220 : vector<8x64xf32>
    %230 = arith.addf %228, %229 : vector<8x64xf32>
    %231 = math.tanh %230 : vector<8x64xf32>
    %232 = arith.mulf %227, %231 : vector<8x64xf32>
    %c6_i32 = arith.constant 6 : i32
    %c8_i32_68 = arith.constant 8 : i32
    %233 = arith.muli %c6_i32, %c8_i32_68 : i32
    %234 = tpu.assume_multiple %233, 8 : i32
    %235 = arith.truncf %232 : vector<8x64xf32> to vector<8x64xbf16>
    %cst_69 = arith.constant dense<0.000000e+00> : vector<8x256xf32>
    %236 = tpu.matmul %235, %1, %cst_69 {dimension_numbers = #tpu.dot_dimension_numbers<[1], [0], [0], [1], [0, 0, 1, 1], [], []>} : vector<8x64xbf16>, vector<64x256xbf16>, vector<8x256xf32> -> vector<8x256xf32>
    %237 = arith.index_cast %234 : i32 to index
    %c0_70 = arith.constant 0 : index
    %238 = vector.load %arg8[%237, %c0_70] : memref<264x256xf32, #tpu.memory_space<vmem>>, vector<8x256xf32>
    %239 = arith.addf %238, %236 : vector<8x256xf32>
    %240 = vector.extract_strided_slice %239 {offsets = [0, 0], sizes = [8, 64], strides = [1, 1]} : vector<8x256xf32> to vector<8x64xf32>
    %cst_71 = arith.constant 0.000000e+00 : f32
    %241 = vector.broadcast %cst_71 : f32 to vector<8x64xf32>
    %242 = arith.subf %241, %240 : vector<8x64xf32>
    %243 = math.exp %242 : vector<8x64xf32>
    %cst_72 = arith.constant 1.000000e+00 : f32
    %244 = vector.broadcast %cst_72 : f32 to vector<8x64xf32>
    %245 = arith.addf %244, %243 : vector<8x64xf32>
    %246 = tpu.reciprocal %245 {approx = true} : vector<8x64xf32> -> vector<8x64xf32>
    %247 = vector.extract_strided_slice %239 {offsets = [0, 64], sizes = [8, 64], strides = [1, 1]} : vector<8x256xf32> to vector<8x64xf32>
    %cst_73 = arith.constant 0.000000e+00 : f32
    %248 = vector.broadcast %cst_73 : f32 to vector<8x64xf32>
    %249 = arith.subf %248, %247 : vector<8x64xf32>
    %250 = math.exp %249 : vector<8x64xf32>
    %cst_74 = arith.constant 1.000000e+00 : f32
    %251 = vector.broadcast %cst_74 : f32 to vector<8x64xf32>
    %252 = arith.addf %251, %250 : vector<8x64xf32>
    %253 = tpu.reciprocal %252 {approx = true} : vector<8x64xf32> -> vector<8x64xf32>
    %254 = vector.extract_strided_slice %239 {offsets = [0, 128], sizes = [8, 64], strides = [1, 1]} : vector<8x256xf32> to vector<8x64xf32>
    %255 = math.tanh %254 : vector<8x64xf32>
    %256 = vector.extract_strided_slice %239 {offsets = [0, 192], sizes = [8, 64], strides = [1, 1]} : vector<8x256xf32> to vector<8x64xf32>
    %cst_75 = arith.constant 0.000000e+00 : f32
    %257 = vector.broadcast %cst_75 : f32 to vector<8x64xf32>
    %258 = arith.subf %257, %256 : vector<8x64xf32>
    %259 = math.exp %258 : vector<8x64xf32>
    %cst_76 = arith.constant 1.000000e+00 : f32
    %260 = vector.broadcast %cst_76 : f32 to vector<8x64xf32>
    %261 = arith.addf %260, %259 : vector<8x64xf32>
    %262 = tpu.reciprocal %261 {approx = true} : vector<8x64xf32> -> vector<8x64xf32>
    %263 = arith.mulf %253, %230 : vector<8x64xf32>
    %264 = arith.mulf %246, %255 : vector<8x64xf32>
    %265 = arith.addf %263, %264 : vector<8x64xf32>
    %266 = math.tanh %265 : vector<8x64xf32>
    %267 = arith.mulf %262, %266 : vector<8x64xf32>
    %c7_i32 = arith.constant 7 : i32
    %c8_i32_77 = arith.constant 8 : i32
    %268 = arith.muli %c7_i32, %c8_i32_77 : i32
    %269 = tpu.assume_multiple %268, 8 : i32
    %270 = arith.truncf %267 : vector<8x64xf32> to vector<8x64xbf16>
    %cst_78 = arith.constant dense<0.000000e+00> : vector<8x256xf32>
    %271 = tpu.matmul %270, %1, %cst_78 {dimension_numbers = #tpu.dot_dimension_numbers<[1], [0], [0], [1], [0, 0, 1, 1], [], []>} : vector<8x64xbf16>, vector<64x256xbf16>, vector<8x256xf32> -> vector<8x256xf32>
    %272 = arith.index_cast %269 : i32 to index
    %c0_79 = arith.constant 0 : index
    %273 = vector.load %arg8[%272, %c0_79] : memref<264x256xf32, #tpu.memory_space<vmem>>, vector<8x256xf32>
    %274 = arith.addf %273, %271 : vector<8x256xf32>
    %275 = vector.extract_strided_slice %274 {offsets = [0, 0], sizes = [8, 64], strides = [1, 1]} : vector<8x256xf32> to vector<8x64xf32>
    %cst_80 = arith.constant 0.000000e+00 : f32
    %276 = vector.broadcast %cst_80 : f32 to vector<8x64xf32>
    %277 = arith.subf %276, %275 : vector<8x64xf32>
    %278 = math.exp %277 : vector<8x64xf32>
    %cst_81 = arith.constant 1.000000e+00 : f32
    %279 = vector.broadcast %cst_81 : f32 to vector<8x64xf32>
    %280 = arith.addf %279, %278 : vector<8x64xf32>
    %281 = tpu.reciprocal %280 {approx = true} : vector<8x64xf32> -> vector<8x64xf32>
    %282 = vector.extract_strided_slice %274 {offsets = [0, 64], sizes = [8, 64], strides = [1, 1]} : vector<8x256xf32> to vector<8x64xf32>
    %cst_82 = arith.constant 0.000000e+00 : f32
    %283 = vector.broadcast %cst_82 : f32 to vector<8x64xf32>
    %284 = arith.subf %283, %282 : vector<8x64xf32>
    %285 = math.exp %284 : vector<8x64xf32>
    %cst_83 = arith.constant 1.000000e+00 : f32
    %286 = vector.broadcast %cst_83 : f32 to vector<8x64xf32>
    %287 = arith.addf %286, %285 : vector<8x64xf32>
    %288 = tpu.reciprocal %287 {approx = true} : vector<8x64xf32> -> vector<8x64xf32>
    %289 = vector.extract_strided_slice %274 {offsets = [0, 128], sizes = [8, 64], strides = [1, 1]} : vector<8x256xf32> to vector<8x64xf32>
    %290 = math.tanh %289 : vector<8x64xf32>
    %291 = vector.extract_strided_slice %274 {offsets = [0, 192], sizes = [8, 64], strides = [1, 1]} : vector<8x256xf32> to vector<8x64xf32>
    %cst_84 = arith.constant 0.000000e+00 : f32
    %292 = vector.broadcast %cst_84 : f32 to vector<8x64xf32>
    %293 = arith.subf %292, %291 : vector<8x64xf32>
    %294 = math.exp %293 : vector<8x64xf32>
    %cst_85 = arith.constant 1.000000e+00 : f32
    %295 = vector.broadcast %cst_85 : f32 to vector<8x64xf32>
    %296 = arith.addf %295, %294 : vector<8x64xf32>
    %297 = tpu.reciprocal %296 {approx = true} : vector<8x64xf32> -> vector<8x64xf32>
    %298 = arith.mulf %288, %265 : vector<8x64xf32>
    %299 = arith.mulf %281, %290 : vector<8x64xf32>
    %300 = arith.addf %298, %299 : vector<8x64xf32>
    %301 = math.tanh %300 : vector<8x64xf32>
    %302 = arith.mulf %297, %301 : vector<8x64xf32>
    %c8_i32_86 = arith.constant 8 : i32
    %c8_i32_87 = arith.constant 8 : i32
    %303 = arith.muli %c8_i32_86, %c8_i32_87 : i32
    %304 = tpu.assume_multiple %303, 8 : i32
    %305 = arith.truncf %302 : vector<8x64xf32> to vector<8x64xbf16>
    %cst_88 = arith.constant dense<0.000000e+00> : vector<8x256xf32>
    %306 = tpu.matmul %305, %1, %cst_88 {dimension_numbers = #tpu.dot_dimension_numbers<[1], [0], [0], [1], [0, 0, 1, 1], [], []>} : vector<8x64xbf16>, vector<64x256xbf16>, vector<8x256xf32> -> vector<8x256xf32>
    %307 = arith.index_cast %304 : i32 to index
    %c0_89 = arith.constant 0 : index
    %308 = vector.load %arg8[%307, %c0_89] : memref<264x256xf32, #tpu.memory_space<vmem>>, vector<8x256xf32>
    %309 = arith.addf %308, %306 : vector<8x256xf32>
    %310 = vector.extract_strided_slice %309 {offsets = [0, 0], sizes = [8, 64], strides = [1, 1]} : vector<8x256xf32> to vector<8x64xf32>
    %cst_90 = arith.constant 0.000000e+00 : f32
    %311 = vector.broadcast %cst_90 : f32 to vector<8x64xf32>
    %312 = arith.subf %311, %310 : vector<8x64xf32>
    %313 = math.exp %312 : vector<8x64xf32>
    %cst_91 = arith.constant 1.000000e+00 : f32
    %314 = vector.broadcast %cst_91 : f32 to vector<8x64xf32>
    %315 = arith.addf %314, %313 : vector<8x64xf32>
    %316 = tpu.reciprocal %315 {approx = true} : vector<8x64xf32> -> vector<8x64xf32>
    %317 = vector.extract_strided_slice %309 {offsets = [0, 64], sizes = [8, 64], strides = [1, 1]} : vector<8x256xf32> to vector<8x64xf32>
    %cst_92 = arith.constant 0.000000e+00 : f32
    %318 = vector.broadcast %cst_92 : f32 to vector<8x64xf32>
    %319 = arith.subf %318, %317 : vector<8x64xf32>
    %320 = math.exp %319 : vector<8x64xf32>
    %cst_93 = arith.constant 1.000000e+00 : f32
    %321 = vector.broadcast %cst_93 : f32 to vector<8x64xf32>
    %322 = arith.addf %321, %320 : vector<8x64xf32>
    %323 = tpu.reciprocal %322 {approx = true} : vector<8x64xf32> -> vector<8x64xf32>
    %324 = vector.extract_strided_slice %309 {offsets = [0, 128], sizes = [8, 64], strides = [1, 1]} : vector<8x256xf32> to vector<8x64xf32>
    %325 = math.tanh %324 : vector<8x64xf32>
    %326 = vector.extract_strided_slice %309 {offsets = [0, 192], sizes = [8, 64], strides = [1, 1]} : vector<8x256xf32> to vector<8x64xf32>
    %cst_94 = arith.constant 0.000000e+00 : f32
    %327 = vector.broadcast %cst_94 : f32 to vector<8x64xf32>
    %328 = arith.subf %327, %326 : vector<8x64xf32>
    %329 = math.exp %328 : vector<8x64xf32>
    %cst_95 = arith.constant 1.000000e+00 : f32
    %330 = vector.broadcast %cst_95 : f32 to vector<8x64xf32>
    %331 = arith.addf %330, %329 : vector<8x64xf32>
    %332 = tpu.reciprocal %331 {approx = true} : vector<8x64xf32> -> vector<8x64xf32>
    %333 = arith.mulf %323, %300 : vector<8x64xf32>
    %334 = arith.mulf %316, %325 : vector<8x64xf32>
    %335 = arith.addf %333, %334 : vector<8x64xf32>
    %336 = math.tanh %335 : vector<8x64xf32>
    %337 = arith.mulf %332, %336 : vector<8x64xf32>
    %c9_i32 = arith.constant 9 : i32
    %c8_i32_96 = arith.constant 8 : i32
    %338 = arith.muli %c9_i32, %c8_i32_96 : i32
    %339 = tpu.assume_multiple %338, 8 : i32
    %340 = arith.truncf %337 : vector<8x64xf32> to vector<8x64xbf16>
    %cst_97 = arith.constant dense<0.000000e+00> : vector<8x256xf32>
    %341 = tpu.matmul %340, %1, %cst_97 {dimension_numbers = #tpu.dot_dimension_numbers<[1], [0], [0], [1], [0, 0, 1, 1], [], []>} : vector<8x64xbf16>, vector<64x256xbf16>, vector<8x256xf32> -> vector<8x256xf32>
    %342 = arith.index_cast %339 : i32 to index
    %c0_98 = arith.constant 0 : index
    %343 = vector.load %arg8[%342, %c0_98] : memref<264x256xf32, #tpu.memory_space<vmem>>, vector<8x256xf32>
    %344 = arith.addf %343, %341 : vector<8x256xf32>
    %345 = vector.extract_strided_slice %344 {offsets = [0, 0], sizes = [8, 64], strides = [1, 1]} : vector<8x256xf32> to vector<8x64xf32>
    %cst_99 = arith.constant 0.000000e+00 : f32
    %346 = vector.broadcast %cst_99 : f32 to vector<8x64xf32>
    %347 = arith.subf %346, %345 : vector<8x64xf32>
    %348 = math.exp %347 : vector<8x64xf32>
    %cst_100 = arith.constant 1.000000e+00 : f32
    %349 = vector.broadcast %cst_100 : f32 to vector<8x64xf32>
    %350 = arith.addf %349, %348 : vector<8x64xf32>
    %351 = tpu.reciprocal %350 {approx = true} : vector<8x64xf32> -> vector<8x64xf32>
    %352 = vector.extract_strided_slice %344 {offsets = [0, 64], sizes = [8, 64], strides = [1, 1]} : vector<8x256xf32> to vector<8x64xf32>
    %cst_101 = arith.constant 0.000000e+00 : f32
    %353 = vector.broadcast %cst_101 : f32 to vector<8x64xf32>
    %354 = arith.subf %353, %352 : vector<8x64xf32>
    %355 = math.exp %354 : vector<8x64xf32>
    %cst_102 = arith.constant 1.000000e+00 : f32
    %356 = vector.broadcast %cst_102 : f32 to vector<8x64xf32>
    %357 = arith.addf %356, %355 : vector<8x64xf32>
    %358 = tpu.reciprocal %357 {approx = true} : vector<8x64xf32> -> vector<8x64xf32>
    %359 = vector.extract_strided_slice %344 {offsets = [0, 128], sizes = [8, 64], strides = [1, 1]} : vector<8x256xf32> to vector<8x64xf32>
    %360 = math.tanh %359 : vector<8x64xf32>
    %361 = vector.extract_strided_slice %344 {offsets = [0, 192], sizes = [8, 64], strides = [1, 1]} : vector<8x256xf32> to vector<8x64xf32>
    %cst_103 = arith.constant 0.000000e+00 : f32
    %362 = vector.broadcast %cst_103 : f32 to vector<8x64xf32>
    %363 = arith.subf %362, %361 : vector<8x64xf32>
    %364 = math.exp %363 : vector<8x64xf32>
    %cst_104 = arith.constant 1.000000e+00 : f32
    %365 = vector.broadcast %cst_104 : f32 to vector<8x64xf32>
    %366 = arith.addf %365, %364 : vector<8x64xf32>
    %367 = tpu.reciprocal %366 {approx = true} : vector<8x64xf32> -> vector<8x64xf32>
    %368 = arith.mulf %358, %335 : vector<8x64xf32>
    %369 = arith.mulf %351, %360 : vector<8x64xf32>
    %370 = arith.addf %368, %369 : vector<8x64xf32>
    %371 = math.tanh %370 : vector<8x64xf32>
    %372 = arith.mulf %367, %371 : vector<8x64xf32>
    %c10_i32 = arith.constant 10 : i32
    %c8_i32_105 = arith.constant 8 : i32
    %373 = arith.muli %c10_i32, %c8_i32_105 : i32
    %374 = tpu.assume_multiple %373, 8 : i32
    %375 = arith.truncf %372 : vector<8x64xf32> to vector<8x64xbf16>
    %cst_106 = arith.constant dense<0.000000e+00> : vector<8x256xf32>
    %376 = tpu.matmul %375, %1, %cst_106 {dimension_numbers = #tpu.dot_dimension_numbers<[1], [0], [0], [1], [0, 0, 1, 1], [], []>} : vector<8x64xbf16>, vector<64x256xbf16>, vector<8x256xf32> -> vector<8x256xf32>
    %377 = arith.index_cast %374 : i32 to index
    %c0_107 = arith.constant 0 : index
    %378 = vector.load %arg8[%377, %c0_107] : memref<264x256xf32, #tpu.memory_space<vmem>>, vector<8x256xf32>
    %379 = arith.addf %378, %376 : vector<8x256xf32>
    %380 = vector.extract_strided_slice %379 {offsets = [0, 0], sizes = [8, 64], strides = [1, 1]} : vector<8x256xf32> to vector<8x64xf32>
    %cst_108 = arith.constant 0.000000e+00 : f32
    %381 = vector.broadcast %cst_108 : f32 to vector<8x64xf32>
    %382 = arith.subf %381, %380 : vector<8x64xf32>
    %383 = math.exp %382 : vector<8x64xf32>
    %cst_109 = arith.constant 1.000000e+00 : f32
    %384 = vector.broadcast %cst_109 : f32 to vector<8x64xf32>
    %385 = arith.addf %384, %383 : vector<8x64xf32>
    %386 = tpu.reciprocal %385 {approx = true} : vector<8x64xf32> -> vector<8x64xf32>
    %387 = vector.extract_strided_slice %379 {offsets = [0, 64], sizes = [8, 64], strides = [1, 1]} : vector<8x256xf32> to vector<8x64xf32>
    %cst_110 = arith.constant 0.000000e+00 : f32
    %388 = vector.broadcast %cst_110 : f32 to vector<8x64xf32>
    %389 = arith.subf %388, %387 : vector<8x64xf32>
    %390 = math.exp %389 : vector<8x64xf32>
    %cst_111 = arith.constant 1.000000e+00 : f32
    %391 = vector.broadcast %cst_111 : f32 to vector<8x64xf32>
    %392 = arith.addf %391, %390 : vector<8x64xf32>
    %393 = tpu.reciprocal %392 {approx = true} : vector<8x64xf32> -> vector<8x64xf32>
    %394 = vector.extract_strided_slice %379 {offsets = [0, 128], sizes = [8, 64], strides = [1, 1]} : vector<8x256xf32> to vector<8x64xf32>
    %395 = math.tanh %394 : vector<8x64xf32>
    %396 = vector.extract_strided_slice %379 {offsets = [0, 192], sizes = [8, 64], strides = [1, 1]} : vector<8x256xf32> to vector<8x64xf32>
    %cst_112 = arith.constant 0.000000e+00 : f32
    %397 = vector.broadcast %cst_112 : f32 to vector<8x64xf32>
    %398 = arith.subf %397, %396 : vector<8x64xf32>
    %399 = math.exp %398 : vector<8x64xf32>
    %cst_113 = arith.constant 1.000000e+00 : f32
    %400 = vector.broadcast %cst_113 : f32 to vector<8x64xf32>
    %401 = arith.addf %400, %399 : vector<8x64xf32>
    %402 = tpu.reciprocal %401 {approx = true} : vector<8x64xf32> -> vector<8x64xf32>
    %403 = arith.mulf %393, %370 : vector<8x64xf32>
    %404 = arith.mulf %386, %395 : vector<8x64xf32>
    %405 = arith.addf %403, %404 : vector<8x64xf32>
    %406 = math.tanh %405 : vector<8x64xf32>
    %407 = arith.mulf %402, %406 : vector<8x64xf32>
    %c11_i32 = arith.constant 11 : i32
    %c8_i32_114 = arith.constant 8 : i32
    %408 = arith.muli %c11_i32, %c8_i32_114 : i32
    %409 = tpu.assume_multiple %408, 8 : i32
    %410 = arith.truncf %407 : vector<8x64xf32> to vector<8x64xbf16>
    %cst_115 = arith.constant dense<0.000000e+00> : vector<8x256xf32>
    %411 = tpu.matmul %410, %1, %cst_115 {dimension_numbers = #tpu.dot_dimension_numbers<[1], [0], [0], [1], [0, 0, 1, 1], [], []>} : vector<8x64xbf16>, vector<64x256xbf16>, vector<8x256xf32> -> vector<8x256xf32>
    %412 = arith.index_cast %409 : i32 to index
    %c0_116 = arith.constant 0 : index
    %413 = vector.load %arg8[%412, %c0_116] : memref<264x256xf32, #tpu.memory_space<vmem>>, vector<8x256xf32>
    %414 = arith.addf %413, %411 : vector<8x256xf32>
    %415 = vector.extract_strided_slice %414 {offsets = [0, 0], sizes = [8, 64], strides = [1, 1]} : vector<8x256xf32> to vector<8x64xf32>
    %cst_117 = arith.constant 0.000000e+00 : f32
    %416 = vector.broadcast %cst_117 : f32 to vector<8x64xf32>
    %417 = arith.subf %416, %415 : vector<8x64xf32>
    %418 = math.exp %417 : vector<8x64xf32>
    %cst_118 = arith.constant 1.000000e+00 : f32
    %419 = vector.broadcast %cst_118 : f32 to vector<8x64xf32>
    %420 = arith.addf %419, %418 : vector<8x64xf32>
    %421 = tpu.reciprocal %420 {approx = true} : vector<8x64xf32> -> vector<8x64xf32>
    %422 = vector.extract_strided_slice %414 {offsets = [0, 64], sizes = [8, 64], strides = [1, 1]} : vector<8x256xf32> to vector<8x64xf32>
    %cst_119 = arith.constant 0.000000e+00 : f32
    %423 = vector.broadcast %cst_119 : f32 to vector<8x64xf32>
    %424 = arith.subf %423, %422 : vector<8x64xf32>
    %425 = math.exp %424 : vector<8x64xf32>
    %cst_120 = arith.constant 1.000000e+00 : f32
    %426 = vector.broadcast %cst_120 : f32 to vector<8x64xf32>
    %427 = arith.addf %426, %425 : vector<8x64xf32>
    %428 = tpu.reciprocal %427 {approx = true} : vector<8x64xf32> -> vector<8x64xf32>
    %429 = vector.extract_strided_slice %414 {offsets = [0, 128], sizes = [8, 64], strides = [1, 1]} : vector<8x256xf32> to vector<8x64xf32>
    %430 = math.tanh %429 : vector<8x64xf32>
    %431 = vector.extract_strided_slice %414 {offsets = [0, 192], sizes = [8, 64], strides = [1, 1]} : vector<8x256xf32> to vector<8x64xf32>
    %cst_121 = arith.constant 0.000000e+00 : f32
    %432 = vector.broadcast %cst_121 : f32 to vector<8x64xf32>
    %433 = arith.subf %432, %431 : vector<8x64xf32>
    %434 = math.exp %433 : vector<8x64xf32>
    %cst_122 = arith.constant 1.000000e+00 : f32
    %435 = vector.broadcast %cst_122 : f32 to vector<8x64xf32>
    %436 = arith.addf %435, %434 : vector<8x64xf32>
    %437 = tpu.reciprocal %436 {approx = true} : vector<8x64xf32> -> vector<8x64xf32>
    %438 = arith.mulf %428, %405 : vector<8x64xf32>
    %439 = arith.mulf %421, %430 : vector<8x64xf32>
    %440 = arith.addf %438, %439 : vector<8x64xf32>
    %441 = math.tanh %440 : vector<8x64xf32>
    %442 = arith.mulf %437, %441 : vector<8x64xf32>
    %c12_i32 = arith.constant 12 : i32
    %c8_i32_123 = arith.constant 8 : i32
    %443 = arith.muli %c12_i32, %c8_i32_123 : i32
    %444 = tpu.assume_multiple %443, 8 : i32
    %445 = arith.truncf %442 : vector<8x64xf32> to vector<8x64xbf16>
    %cst_124 = arith.constant dense<0.000000e+00> : vector<8x256xf32>
    %446 = tpu.matmul %445, %1, %cst_124 {dimension_numbers = #tpu.dot_dimension_numbers<[1], [0], [0], [1], [0, 0, 1, 1], [], []>} : vector<8x64xbf16>, vector<64x256xbf16>, vector<8x256xf32> -> vector<8x256xf32>
    %447 = arith.index_cast %444 : i32 to index
    %c0_125 = arith.constant 0 : index
    %448 = vector.load %arg8[%447, %c0_125] : memref<264x256xf32, #tpu.memory_space<vmem>>, vector<8x256xf32>
    %449 = arith.addf %448, %446 : vector<8x256xf32>
    %450 = vector.extract_strided_slice %449 {offsets = [0, 0], sizes = [8, 64], strides = [1, 1]} : vector<8x256xf32> to vector<8x64xf32>
    %cst_126 = arith.constant 0.000000e+00 : f32
    %451 = vector.broadcast %cst_126 : f32 to vector<8x64xf32>
    %452 = arith.subf %451, %450 : vector<8x64xf32>
    %453 = math.exp %452 : vector<8x64xf32>
    %cst_127 = arith.constant 1.000000e+00 : f32
    %454 = vector.broadcast %cst_127 : f32 to vector<8x64xf32>
    %455 = arith.addf %454, %453 : vector<8x64xf32>
    %456 = tpu.reciprocal %455 {approx = true} : vector<8x64xf32> -> vector<8x64xf32>
    %457 = vector.extract_strided_slice %449 {offsets = [0, 64], sizes = [8, 64], strides = [1, 1]} : vector<8x256xf32> to vector<8x64xf32>
    %cst_128 = arith.constant 0.000000e+00 : f32
    %458 = vector.broadcast %cst_128 : f32 to vector<8x64xf32>
    %459 = arith.subf %458, %457 : vector<8x64xf32>
    %460 = math.exp %459 : vector<8x64xf32>
    %cst_129 = arith.constant 1.000000e+00 : f32
    %461 = vector.broadcast %cst_129 : f32 to vector<8x64xf32>
    %462 = arith.addf %461, %460 : vector<8x64xf32>
    %463 = tpu.reciprocal %462 {approx = true} : vector<8x64xf32> -> vector<8x64xf32>
    %464 = vector.extract_strided_slice %449 {offsets = [0, 128], sizes = [8, 64], strides = [1, 1]} : vector<8x256xf32> to vector<8x64xf32>
    %465 = math.tanh %464 : vector<8x64xf32>
    %466 = vector.extract_strided_slice %449 {offsets = [0, 192], sizes = [8, 64], strides = [1, 1]} : vector<8x256xf32> to vector<8x64xf32>
    %cst_130 = arith.constant 0.000000e+00 : f32
    %467 = vector.broadcast %cst_130 : f32 to vector<8x64xf32>
    %468 = arith.subf %467, %466 : vector<8x64xf32>
    %469 = math.exp %468 : vector<8x64xf32>
    %cst_131 = arith.constant 1.000000e+00 : f32
    %470 = vector.broadcast %cst_131 : f32 to vector<8x64xf32>
    %471 = arith.addf %470, %469 : vector<8x64xf32>
    %472 = tpu.reciprocal %471 {approx = true} : vector<8x64xf32> -> vector<8x64xf32>
    %473 = arith.mulf %463, %440 : vector<8x64xf32>
    %474 = arith.mulf %456, %465 : vector<8x64xf32>
    %475 = arith.addf %473, %474 : vector<8x64xf32>
    %476 = math.tanh %475 : vector<8x64xf32>
    %477 = arith.mulf %472, %476 : vector<8x64xf32>
    %c13_i32 = arith.constant 13 : i32
    %c8_i32_132 = arith.constant 8 : i32
    %478 = arith.muli %c13_i32, %c8_i32_132 : i32
    %479 = tpu.assume_multiple %478, 8 : i32
    %480 = arith.truncf %477 : vector<8x64xf32> to vector<8x64xbf16>
    %cst_133 = arith.constant dense<0.000000e+00> : vector<8x256xf32>
    %481 = tpu.matmul %480, %1, %cst_133 {dimension_numbers = #tpu.dot_dimension_numbers<[1], [0], [0], [1], [0, 0, 1, 1], [], []>} : vector<8x64xbf16>, vector<64x256xbf16>, vector<8x256xf32> -> vector<8x256xf32>
    %482 = arith.index_cast %479 : i32 to index
    %c0_134 = arith.constant 0 : index
    %483 = vector.load %arg8[%482, %c0_134] : memref<264x256xf32, #tpu.memory_space<vmem>>, vector<8x256xf32>
    %484 = arith.addf %483, %481 : vector<8x256xf32>
    %485 = vector.extract_strided_slice %484 {offsets = [0, 0], sizes = [8, 64], strides = [1, 1]} : vector<8x256xf32> to vector<8x64xf32>
    %cst_135 = arith.constant 0.000000e+00 : f32
    %486 = vector.broadcast %cst_135 : f32 to vector<8x64xf32>
    %487 = arith.subf %486, %485 : vector<8x64xf32>
    %488 = math.exp %487 : vector<8x64xf32>
    %cst_136 = arith.constant 1.000000e+00 : f32
    %489 = vector.broadcast %cst_136 : f32 to vector<8x64xf32>
    %490 = arith.addf %489, %488 : vector<8x64xf32>
    %491 = tpu.reciprocal %490 {approx = true} : vector<8x64xf32> -> vector<8x64xf32>
    %492 = vector.extract_strided_slice %484 {offsets = [0, 64], sizes = [8, 64], strides = [1, 1]} : vector<8x256xf32> to vector<8x64xf32>
    %cst_137 = arith.constant 0.000000e+00 : f32
    %493 = vector.broadcast %cst_137 : f32 to vector<8x64xf32>
    %494 = arith.subf %493, %492 : vector<8x64xf32>
    %495 = math.exp %494 : vector<8x64xf32>
    %cst_138 = arith.constant 1.000000e+00 : f32
    %496 = vector.broadcast %cst_138 : f32 to vector<8x64xf32>
    %497 = arith.addf %496, %495 : vector<8x64xf32>
    %498 = tpu.reciprocal %497 {approx = true} : vector<8x64xf32> -> vector<8x64xf32>
    %499 = vector.extract_strided_slice %484 {offsets = [0, 128], sizes = [8, 64], strides = [1, 1]} : vector<8x256xf32> to vector<8x64xf32>
    %500 = math.tanh %499 : vector<8x64xf32>
    %501 = vector.extract_strided_slice %484 {offsets = [0, 192], sizes = [8, 64], strides = [1, 1]} : vector<8x256xf32> to vector<8x64xf32>
    %cst_139 = arith.constant 0.000000e+00 : f32
    %502 = vector.broadcast %cst_139 : f32 to vector<8x64xf32>
    %503 = arith.subf %502, %501 : vector<8x64xf32>
    %504 = math.exp %503 : vector<8x64xf32>
    %cst_140 = arith.constant 1.000000e+00 : f32
    %505 = vector.broadcast %cst_140 : f32 to vector<8x64xf32>
    %506 = arith.addf %505, %504 : vector<8x64xf32>
    %507 = tpu.reciprocal %506 {approx = true} : vector<8x64xf32> -> vector<8x64xf32>
    %508 = arith.mulf %498, %475 : vector<8x64xf32>
    %509 = arith.mulf %491, %500 : vector<8x64xf32>
    %510 = arith.addf %508, %509 : vector<8x64xf32>
    %511 = math.tanh %510 : vector<8x64xf32>
    %512 = arith.mulf %507, %511 : vector<8x64xf32>
    %c14_i32 = arith.constant 14 : i32
    %c8_i32_141 = arith.constant 8 : i32
    %513 = arith.muli %c14_i32, %c8_i32_141 : i32
    %514 = tpu.assume_multiple %513, 8 : i32
    %515 = arith.truncf %512 : vector<8x64xf32> to vector<8x64xbf16>
    %cst_142 = arith.constant dense<0.000000e+00> : vector<8x256xf32>
    %516 = tpu.matmul %515, %1, %cst_142 {dimension_numbers = #tpu.dot_dimension_numbers<[1], [0], [0], [1], [0, 0, 1, 1], [], []>} : vector<8x64xbf16>, vector<64x256xbf16>, vector<8x256xf32> -> vector<8x256xf32>
    %517 = arith.index_cast %514 : i32 to index
    %c0_143 = arith.constant 0 : index
    %518 = vector.load %arg8[%517, %c0_143] : memref<264x256xf32, #tpu.memory_space<vmem>>, vector<8x256xf32>
    %519 = arith.addf %518, %516 : vector<8x256xf32>
    %520 = vector.extract_strided_slice %519 {offsets = [0, 0], sizes = [8, 64], strides = [1, 1]} : vector<8x256xf32> to vector<8x64xf32>
    %cst_144 = arith.constant 0.000000e+00 : f32
    %521 = vector.broadcast %cst_144 : f32 to vector<8x64xf32>
    %522 = arith.subf %521, %520 : vector<8x64xf32>
    %523 = math.exp %522 : vector<8x64xf32>
    %cst_145 = arith.constant 1.000000e+00 : f32
    %524 = vector.broadcast %cst_145 : f32 to vector<8x64xf32>
    %525 = arith.addf %524, %523 : vector<8x64xf32>
    %526 = tpu.reciprocal %525 {approx = true} : vector<8x64xf32> -> vector<8x64xf32>
    %527 = vector.extract_strided_slice %519 {offsets = [0, 64], sizes = [8, 64], strides = [1, 1]} : vector<8x256xf32> to vector<8x64xf32>
    %cst_146 = arith.constant 0.000000e+00 : f32
    %528 = vector.broadcast %cst_146 : f32 to vector<8x64xf32>
    %529 = arith.subf %528, %527 : vector<8x64xf32>
    %530 = math.exp %529 : vector<8x64xf32>
    %cst_147 = arith.constant 1.000000e+00 : f32
    %531 = vector.broadcast %cst_147 : f32 to vector<8x64xf32>
    %532 = arith.addf %531, %530 : vector<8x64xf32>
    %533 = tpu.reciprocal %532 {approx = true} : vector<8x64xf32> -> vector<8x64xf32>
    %534 = vector.extract_strided_slice %519 {offsets = [0, 128], sizes = [8, 64], strides = [1, 1]} : vector<8x256xf32> to vector<8x64xf32>
    %535 = math.tanh %534 : vector<8x64xf32>
    %536 = vector.extract_strided_slice %519 {offsets = [0, 192], sizes = [8, 64], strides = [1, 1]} : vector<8x256xf32> to vector<8x64xf32>
    %cst_148 = arith.constant 0.000000e+00 : f32
    %537 = vector.broadcast %cst_148 : f32 to vector<8x64xf32>
    %538 = arith.subf %537, %536 : vector<8x64xf32>
    %539 = math.exp %538 : vector<8x64xf32>
    %cst_149 = arith.constant 1.000000e+00 : f32
    %540 = vector.broadcast %cst_149 : f32 to vector<8x64xf32>
    %541 = arith.addf %540, %539 : vector<8x64xf32>
    %542 = tpu.reciprocal %541 {approx = true} : vector<8x64xf32> -> vector<8x64xf32>
    %543 = arith.mulf %533, %510 : vector<8x64xf32>
    %544 = arith.mulf %526, %535 : vector<8x64xf32>
    %545 = arith.addf %543, %544 : vector<8x64xf32>
    %546 = math.tanh %545 : vector<8x64xf32>
    %547 = arith.mulf %542, %546 : vector<8x64xf32>
    %c15_i32 = arith.constant 15 : i32
    %c8_i32_150 = arith.constant 8 : i32
    %548 = arith.muli %c15_i32, %c8_i32_150 : i32
    %549 = tpu.assume_multiple %548, 8 : i32
    %550 = arith.truncf %547 : vector<8x64xf32> to vector<8x64xbf16>
    %cst_151 = arith.constant dense<0.000000e+00> : vector<8x256xf32>
    %551 = tpu.matmul %550, %1, %cst_151 {dimension_numbers = #tpu.dot_dimension_numbers<[1], [0], [0], [1], [0, 0, 1, 1], [], []>} : vector<8x64xbf16>, vector<64x256xbf16>, vector<8x256xf32> -> vector<8x256xf32>
    %552 = arith.index_cast %549 : i32 to index
    %c0_152 = arith.constant 0 : index
    %553 = vector.load %arg8[%552, %c0_152] : memref<264x256xf32, #tpu.memory_space<vmem>>, vector<8x256xf32>
    %554 = arith.addf %553, %551 : vector<8x256xf32>
    %555 = vector.extract_strided_slice %554 {offsets = [0, 0], sizes = [8, 64], strides = [1, 1]} : vector<8x256xf32> to vector<8x64xf32>
    %cst_153 = arith.constant 0.000000e+00 : f32
    %556 = vector.broadcast %cst_153 : f32 to vector<8x64xf32>
    %557 = arith.subf %556, %555 : vector<8x64xf32>
    %558 = math.exp %557 : vector<8x64xf32>
    %cst_154 = arith.constant 1.000000e+00 : f32
    %559 = vector.broadcast %cst_154 : f32 to vector<8x64xf32>
    %560 = arith.addf %559, %558 : vector<8x64xf32>
    %561 = tpu.reciprocal %560 {approx = true} : vector<8x64xf32> -> vector<8x64xf32>
    %562 = vector.extract_strided_slice %554 {offsets = [0, 64], sizes = [8, 64], strides = [1, 1]} : vector<8x256xf32> to vector<8x64xf32>
    %cst_155 = arith.constant 0.000000e+00 : f32
    %563 = vector.broadcast %cst_155 : f32 to vector<8x64xf32>
    %564 = arith.subf %563, %562 : vector<8x64xf32>
    %565 = math.exp %564 : vector<8x64xf32>
    %cst_156 = arith.constant 1.000000e+00 : f32
    %566 = vector.broadcast %cst_156 : f32 to vector<8x64xf32>
    %567 = arith.addf %566, %565 : vector<8x64xf32>
    %568 = tpu.reciprocal %567 {approx = true} : vector<8x64xf32> -> vector<8x64xf32>
    %569 = vector.extract_strided_slice %554 {offsets = [0, 128], sizes = [8, 64], strides = [1, 1]} : vector<8x256xf32> to vector<8x64xf32>
    %570 = math.tanh %569 : vector<8x64xf32>
    %571 = vector.extract_strided_slice %554 {offsets = [0, 192], sizes = [8, 64], strides = [1, 1]} : vector<8x256xf32> to vector<8x64xf32>
    %cst_157 = arith.constant 0.000000e+00 : f32
    %572 = vector.broadcast %cst_157 : f32 to vector<8x64xf32>
    %573 = arith.subf %572, %571 : vector<8x64xf32>
    %574 = math.exp %573 : vector<8x64xf32>
    %cst_158 = arith.constant 1.000000e+00 : f32
    %575 = vector.broadcast %cst_158 : f32 to vector<8x64xf32>
    %576 = arith.addf %575, %574 : vector<8x64xf32>
    %577 = tpu.reciprocal %576 {approx = true} : vector<8x64xf32> -> vector<8x64xf32>
    %578 = arith.mulf %568, %545 : vector<8x64xf32>
    %579 = arith.mulf %561, %570 : vector<8x64xf32>
    %580 = arith.addf %578, %579 : vector<8x64xf32>
    %581 = math.tanh %580 : vector<8x64xf32>
    %582 = arith.mulf %577, %581 : vector<8x64xf32>
    %c16_i32 = arith.constant 16 : i32
    %c8_i32_159 = arith.constant 8 : i32
    %583 = arith.muli %c16_i32, %c8_i32_159 : i32
    %584 = tpu.assume_multiple %583, 8 : i32
    %585 = arith.truncf %582 : vector<8x64xf32> to vector<8x64xbf16>
    %cst_160 = arith.constant dense<0.000000e+00> : vector<8x256xf32>
    %586 = tpu.matmul %585, %1, %cst_160 {dimension_numbers = #tpu.dot_dimension_numbers<[1], [0], [0], [1], [0, 0, 1, 1], [], []>} : vector<8x64xbf16>, vector<64x256xbf16>, vector<8x256xf32> -> vector<8x256xf32>
    %587 = arith.index_cast %584 : i32 to index
    %c0_161 = arith.constant 0 : index
    %588 = vector.load %arg8[%587, %c0_161] : memref<264x256xf32, #tpu.memory_space<vmem>>, vector<8x256xf32>
    %589 = arith.addf %588, %586 : vector<8x256xf32>
    %590 = vector.extract_strided_slice %589 {offsets = [0, 0], sizes = [8, 64], strides = [1, 1]} : vector<8x256xf32> to vector<8x64xf32>
    %cst_162 = arith.constant 0.000000e+00 : f32
    %591 = vector.broadcast %cst_162 : f32 to vector<8x64xf32>
    %592 = arith.subf %591, %590 : vector<8x64xf32>
    %593 = math.exp %592 : vector<8x64xf32>
    %cst_163 = arith.constant 1.000000e+00 : f32
    %594 = vector.broadcast %cst_163 : f32 to vector<8x64xf32>
    %595 = arith.addf %594, %593 : vector<8x64xf32>
    %596 = tpu.reciprocal %595 {approx = true} : vector<8x64xf32> -> vector<8x64xf32>
    %597 = vector.extract_strided_slice %589 {offsets = [0, 64], sizes = [8, 64], strides = [1, 1]} : vector<8x256xf32> to vector<8x64xf32>
    %cst_164 = arith.constant 0.000000e+00 : f32
    %598 = vector.broadcast %cst_164 : f32 to vector<8x64xf32>
    %599 = arith.subf %598, %597 : vector<8x64xf32>
    %600 = math.exp %599 : vector<8x64xf32>
    %cst_165 = arith.constant 1.000000e+00 : f32
    %601 = vector.broadcast %cst_165 : f32 to vector<8x64xf32>
    %602 = arith.addf %601, %600 : vector<8x64xf32>
    %603 = tpu.reciprocal %602 {approx = true} : vector<8x64xf32> -> vector<8x64xf32>
    %604 = vector.extract_strided_slice %589 {offsets = [0, 128], sizes = [8, 64], strides = [1, 1]} : vector<8x256xf32> to vector<8x64xf32>
    %605 = math.tanh %604 : vector<8x64xf32>
    %606 = vector.extract_strided_slice %589 {offsets = [0, 192], sizes = [8, 64], strides = [1, 1]} : vector<8x256xf32> to vector<8x64xf32>
    %cst_166 = arith.constant 0.000000e+00 : f32
    %607 = vector.broadcast %cst_166 : f32 to vector<8x64xf32>
    %608 = arith.subf %607, %606 : vector<8x64xf32>
    %609 = math.exp %608 : vector<8x64xf32>
    %cst_167 = arith.constant 1.000000e+00 : f32
    %610 = vector.broadcast %cst_167 : f32 to vector<8x64xf32>
    %611 = arith.addf %610, %609 : vector<8x64xf32>
    %612 = tpu.reciprocal %611 {approx = true} : vector<8x64xf32> -> vector<8x64xf32>
    %613 = arith.mulf %603, %580 : vector<8x64xf32>
    %614 = arith.mulf %596, %605 : vector<8x64xf32>
    %615 = arith.addf %613, %614 : vector<8x64xf32>
    %616 = math.tanh %615 : vector<8x64xf32>
    %617 = arith.mulf %612, %616 : vector<8x64xf32>
    %c16_i32_168 = arith.constant 16 : i32
    %c17_i32 = arith.constant 17 : i32
    %c8_i32_169 = arith.constant 8 : i32
    %618 = arith.muli %c17_i32, %c8_i32_169 : i32
    %619 = tpu.assume_multiple %618, 8 : i32
    %620 = arith.truncf %617 : vector<8x64xf32> to vector<8x64xbf16>
    %cst_170 = arith.constant dense<0.000000e+00> : vector<8x256xf32>
    %621 = tpu.matmul %620, %1, %cst_170 {dimension_numbers = #tpu.dot_dimension_numbers<[1], [0], [0], [1], [0, 0, 1, 1], [], []>} : vector<8x64xbf16>, vector<64x256xbf16>, vector<8x256xf32> -> vector<8x256xf32>
    %622 = arith.index_cast %619 : i32 to index
    %c0_171 = arith.constant 0 : index
    %623 = vector.load %arg8[%622, %c0_171] : memref<264x256xf32, #tpu.memory_space<vmem>>, vector<8x256xf32>
    %624 = arith.addf %623, %621 : vector<8x256xf32>
    %625 = vector.extract_strided_slice %624 {offsets = [0, 0], sizes = [8, 64], strides = [1, 1]} : vector<8x256xf32> to vector<8x64xf32>
    %cst_172 = arith.constant 0.000000e+00 : f32
    %626 = vector.broadcast %cst_172 : f32 to vector<8x64xf32>
    %627 = arith.subf %626, %625 : vector<8x64xf32>
    %628 = math.exp %627 : vector<8x64xf32>
    %cst_173 = arith.constant 1.000000e+00 : f32
    %629 = vector.broadcast %cst_173 : f32 to vector<8x64xf32>
    %630 = arith.addf %629, %628 : vector<8x64xf32>
    %631 = tpu.reciprocal %630 {approx = true} : vector<8x64xf32> -> vector<8x64xf32>
    %632 = vector.extract_strided_slice %624 {offsets = [0, 64], sizes = [8, 64], strides = [1, 1]} : vector<8x256xf32> to vector<8x64xf32>
    %cst_174 = arith.constant 0.000000e+00 : f32
    %633 = vector.broadcast %cst_174 : f32 to vector<8x64xf32>
    %634 = arith.subf %633, %632 : vector<8x64xf32>
    %635 = math.exp %634 : vector<8x64xf32>
    %cst_175 = arith.constant 1.000000e+00 : f32
    %636 = vector.broadcast %cst_175 : f32 to vector<8x64xf32>
    %637 = arith.addf %636, %635 : vector<8x64xf32>
    %638 = tpu.reciprocal %637 {approx = true} : vector<8x64xf32> -> vector<8x64xf32>
    %639 = vector.extract_strided_slice %624 {offsets = [0, 128], sizes = [8, 64], strides = [1, 1]} : vector<8x256xf32> to vector<8x64xf32>
    %640 = math.tanh %639 : vector<8x64xf32>
    %641 = vector.extract_strided_slice %624 {offsets = [0, 192], sizes = [8, 64], strides = [1, 1]} : vector<8x256xf32> to vector<8x64xf32>
    %cst_176 = arith.constant 0.000000e+00 : f32
    %642 = vector.broadcast %cst_176 : f32 to vector<8x64xf32>
    %643 = arith.subf %642, %641 : vector<8x64xf32>
    %644 = math.exp %643 : vector<8x64xf32>
    %cst_177 = arith.constant 1.000000e+00 : f32
    %645 = vector.broadcast %cst_177 : f32 to vector<8x64xf32>
    %646 = arith.addf %645, %644 : vector<8x64xf32>
    %647 = tpu.reciprocal %646 {approx = true} : vector<8x64xf32> -> vector<8x64xf32>
    %648 = arith.mulf %638, %615 : vector<8x64xf32>
    %649 = arith.mulf %631, %640 : vector<8x64xf32>
    %650 = arith.addf %648, %649 : vector<8x64xf32>
    %651 = math.tanh %650 : vector<8x64xf32>
    %652 = arith.mulf %647, %651 : vector<8x64xf32>
    %c17_i32_178 = arith.constant 17 : i32
    %653 = arith.subi %c17_i32, %c17_i32_178 : i32
    %c8_i32_179 = arith.constant 8 : i32
    %654 = arith.muli %653, %c8_i32_179 : i32
    %655 = tpu.assume_multiple %654, 8 : i32
    %cst_180 = arith.constant dense<0.000000e+00> : vector<8x128xf32>
    %656 = tpu.matmul %652, %2, %cst_180 {dimension_numbers = #tpu.dot_dimension_numbers<[1], [0], [0], [1], [0, 0, 1, 1], [], []>} : vector<8x64xf32>, vector<64x128xf32>, vector<8x128xf32> -> vector<8x128xf32>
    %657 = arith.addf %656, %5 : vector<8x128xf32>
    %658 = arith.index_cast %655 : i32 to index
    %c0_181 = arith.constant 0 : index
    %659 = vector.load %arg7[%658, %c0_181] : memref<128x128xf32, #tpu.memory_space<vmem>>, vector<8x128xf32>
    tpu.vector_store %arg7[%658, %c0_181], %657 {strides = array<i32>} : memref<128x128xf32, #tpu.memory_space<vmem>>, vector<8x128xf32>,
    %c18_i32 = arith.constant 18 : i32
    %c8_i32_182 = arith.constant 8 : i32
    %660 = arith.muli %c18_i32, %c8_i32_182 : i32
    %661 = tpu.assume_multiple %660, 8 : i32
    %662 = arith.truncf %652 : vector<8x64xf32> to vector<8x64xbf16>
    %cst_183 = arith.constant dense<0.000000e+00> : vector<8x256xf32>
    %663 = tpu.matmul %662, %1, %cst_183 {dimension_numbers = #tpu.dot_dimension_numbers<[1], [0], [0], [1], [0, 0, 1, 1], [], []>} : vector<8x64xbf16>, vector<64x256xbf16>, vector<8x256xf32> -> vector<8x256xf32>
    %664 = arith.index_cast %661 : i32 to index
    %c0_184 = arith.constant 0 : index
    %665 = vector.load %arg8[%664, %c0_184] : memref<264x256xf32, #tpu.memory_space<vmem>>, vector<8x256xf32>
    %666 = arith.addf %665, %663 : vector<8x256xf32>
    %667 = vector.extract_strided_slice %666 {offsets = [0, 0], sizes = [8, 64], strides = [1, 1]} : vector<8x256xf32> to vector<8x64xf32>
    %cst_185 = arith.constant 0.000000e+00 : f32
    %668 = vector.broadcast %cst_185 : f32 to vector<8x64xf32>
    %669 = arith.subf %668, %667 : vector<8x64xf32>
    %670 = math.exp %669 : vector<8x64xf32>
    %cst_186 = arith.constant 1.000000e+00 : f32
    %671 = vector.broadcast %cst_186 : f32 to vector<8x64xf32>
    %672 = arith.addf %671, %670 : vector<8x64xf32>
    %673 = tpu.reciprocal %672 {approx = true} : vector<8x64xf32> -> vector<8x64xf32>
    %674 = vector.extract_strided_slice %666 {offsets = [0, 64], sizes = [8, 64], strides = [1, 1]} : vector<8x256xf32> to vector<8x64xf32>
    %cst_187 = arith.constant 0.000000e+00 : f32
    %675 = vector.broadcast %cst_187 : f32 to vector<8x64xf32>
    %676 = arith.subf %675, %674 : vector<8x64xf32>
    %677 = math.exp %676 : vector<8x64xf32>
    %cst_188 = arith.constant 1.000000e+00 : f32
    %678 = vector.broadcast %cst_188 : f32 to vector<8x64xf32>
    %679 = arith.addf %678, %677 : vector<8x64xf32>
    %680 = tpu.reciprocal %679 {approx = true} : vector<8x64xf32> -> vector<8x64xf32>
    %681 = vector.extract_strided_slice %666 {offsets = [0, 128], sizes = [8, 64], strides = [1, 1]} : vector<8x256xf32> to vector<8x64xf32>
    %682 = math.tanh %681 : vector<8x64xf32>
    %683 = vector.extract_strided_slice %666 {offsets = [0, 192], sizes = [8, 64], strides = [1, 1]} : vector<8x256xf32> to vector<8x64xf32>
    %cst_189 = arith.constant 0.000000e+00 : f32
    %684 = vector.broadcast %cst_189 : f32 to vector<8x64xf32>
    %685 = arith.subf %684, %683 : vector<8x64xf32>
    %686 = math.exp %685 : vector<8x64xf32>
    %cst_190 = arith.constant 1.000000e+00 : f32
    %687 = vector.broadcast %cst_190 : f32 to vector<8x64xf32>
    %688 = arith.addf %687, %686 : vector<8x64xf32>
    %689 = tpu.reciprocal %688 {approx = true} : vector<8x64xf32> -> vector<8x64xf32>
    %690 = arith.mulf %680, %650 : vector<8x64xf32>
    %691 = arith.mulf %673, %682 : vector<8x64xf32>
    %692 = arith.addf %690, %691 : vector<8x64xf32>
    %693 = math.tanh %692 : vector<8x64xf32>
    %694 = arith.mulf %689, %693 : vector<8x64xf32>
    %c17_i32_191 = arith.constant 17 : i32
    %695 = arith.subi %c18_i32, %c17_i32_191 : i32
    %c8_i32_192 = arith.constant 8 : i32
    %696 = arith.muli %695, %c8_i32_192 : i32
    %697 = tpu.assume_multiple %696, 8 : i32
    %cst_193 = arith.constant dense<0.000000e+00> : vector<8x128xf32>
    %698 = tpu.matmul %694, %2, %cst_193 {dimension_numbers = #tpu.dot_dimension_numbers<[1], [0], [0], [1], [0, 0, 1, 1], [], []>} : vector<8x64xf32>, vector<64x128xf32>, vector<8x128xf32> -> vector<8x128xf32>
    %699 = arith.addf %698, %5 : vector<8x128xf32>
    %700 = arith.index_cast %697 : i32 to index
    %c0_194 = arith.constant 0 : index
    %701 = vector.load %arg7[%700, %c0_194] : memref<128x128xf32, #tpu.memory_space<vmem>>, vector<8x128xf32>
    tpu.vector_store %arg7[%700, %c0_194], %699 {strides = array<i32>} : memref<128x128xf32, #tpu.memory_space<vmem>>, vector<8x128xf32>,
    %c19_i32 = arith.constant 19 : i32
    %c8_i32_195 = arith.constant 8 : i32
    %702 = arith.muli %c19_i32, %c8_i32_195 : i32
    %703 = tpu.assume_multiple %702, 8 : i32
    %704 = arith.truncf %694 : vector<8x64xf32> to vector<8x64xbf16>
    %cst_196 = arith.constant dense<0.000000e+00> : vector<8x256xf32>
    %705 = tpu.matmul %704, %1, %cst_196 {dimension_numbers = #tpu.dot_dimension_numbers<[1], [0], [0], [1], [0, 0, 1, 1], [], []>} : vector<8x64xbf16>, vector<64x256xbf16>, vector<8x256xf32> -> vector<8x256xf32>
    %706 = arith.index_cast %703 : i32 to index
    %c0_197 = arith.constant 0 : index
    %707 = vector.load %arg8[%706, %c0_197] : memref<264x256xf32, #tpu.memory_space<vmem>>, vector<8x256xf32>
    %708 = arith.addf %707, %705 : vector<8x256xf32>
    %709 = vector.extract_strided_slice %708 {offsets = [0, 0], sizes = [8, 64], strides = [1, 1]} : vector<8x256xf32> to vector<8x64xf32>
    %cst_198 = arith.constant 0.000000e+00 : f32
    %710 = vector.broadcast %cst_198 : f32 to vector<8x64xf32>
    %711 = arith.subf %710, %709 : vector<8x64xf32>
    %712 = math.exp %711 : vector<8x64xf32>
    %cst_199 = arith.constant 1.000000e+00 : f32
    %713 = vector.broadcast %cst_199 : f32 to vector<8x64xf32>
    %714 = arith.addf %713, %712 : vector<8x64xf32>
    %715 = tpu.reciprocal %714 {approx = true} : vector<8x64xf32> -> vector<8x64xf32>
    %716 = vector.extract_strided_slice %708 {offsets = [0, 64], sizes = [8, 64], strides = [1, 1]} : vector<8x256xf32> to vector<8x64xf32>
    %cst_200 = arith.constant 0.000000e+00 : f32
    %717 = vector.broadcast %cst_200 : f32 to vector<8x64xf32>
    %718 = arith.subf %717, %716 : vector<8x64xf32>
    %719 = math.exp %718 : vector<8x64xf32>
    %cst_201 = arith.constant 1.000000e+00 : f32
    %720 = vector.broadcast %cst_201 : f32 to vector<8x64xf32>
    %721 = arith.addf %720, %719 : vector<8x64xf32>
    %722 = tpu.reciprocal %721 {approx = true} : vector<8x64xf32> -> vector<8x64xf32>
    %723 = vector.extract_strided_slice %708 {offsets = [0, 128], sizes = [8, 64], strides = [1, 1]} : vector<8x256xf32> to vector<8x64xf32>
    %724 = math.tanh %723 : vector<8x64xf32>
    %725 = vector.extract_strided_slice %708 {offsets = [0, 192], sizes = [8, 64], strides = [1, 1]} : vector<8x256xf32> to vector<8x64xf32>
    %cst_202 = arith.constant 0.000000e+00 : f32
    %726 = vector.broadcast %cst_202 : f32 to vector<8x64xf32>
    %727 = arith.subf %726, %725 : vector<8x64xf32>
    %728 = math.exp %727 : vector<8x64xf32>
    %cst_203 = arith.constant 1.000000e+00 : f32
    %729 = vector.broadcast %cst_203 : f32 to vector<8x64xf32>
    %730 = arith.addf %729, %728 : vector<8x64xf32>
    %731 = tpu.reciprocal %730 {approx = true} : vector<8x64xf32> -> vector<8x64xf32>
    %732 = arith.mulf %722, %692 : vector<8x64xf32>
    %733 = arith.mulf %715, %724 : vector<8x64xf32>
    %734 = arith.addf %732, %733 : vector<8x64xf32>
    %735 = math.tanh %734 : vector<8x64xf32>
    %736 = arith.mulf %731, %735 : vector<8x64xf32>
    %c17_i32_204 = arith.constant 17 : i32
    %737 = arith.subi %c19_i32, %c17_i32_204 : i32
    %c8_i32_205 = arith.constant 8 : i32
    %738 = arith.muli %737, %c8_i32_205 : i32
    %739 = tpu.assume_multiple %738, 8 : i32
    %cst_206 = arith.constant dense<0.000000e+00> : vector<8x128xf32>
    %740 = tpu.matmul %736, %2, %cst_206 {dimension_numbers = #tpu.dot_dimension_numbers<[1], [0], [0], [1], [0, 0, 1, 1], [], []>} : vector<8x64xf32>, vector<64x128xf32>, vector<8x128xf32> -> vector<8x128xf32>
    %741 = arith.addf %740, %5 : vector<8x128xf32>
    %742 = arith.index_cast %739 : i32 to index
    %c0_207 = arith.constant 0 : index
    %743 = vector.load %arg7[%742, %c0_207] : memref<128x128xf32, #tpu.memory_space<vmem>>, vector<8x128xf32>
    tpu.vector_store %arg7[%742, %c0_207], %741 {strides = array<i32>} : memref<128x128xf32, #tpu.memory_space<vmem>>, vector<8x128xf32>,
    %c20_i32 = arith.constant 20 : i32
    %c8_i32_208 = arith.constant 8 : i32
    %744 = arith.muli %c20_i32, %c8_i32_208 : i32
    %745 = tpu.assume_multiple %744, 8 : i32
    %746 = arith.truncf %736 : vector<8x64xf32> to vector<8x64xbf16>
    %cst_209 = arith.constant dense<0.000000e+00> : vector<8x256xf32>
    %747 = tpu.matmul %746, %1, %cst_209 {dimension_numbers = #tpu.dot_dimension_numbers<[1], [0], [0], [1], [0, 0, 1, 1], [], []>} : vector<8x64xbf16>, vector<64x256xbf16>, vector<8x256xf32> -> vector<8x256xf32>
    %748 = arith.index_cast %745 : i32 to index
    %c0_210 = arith.constant 0 : index
    %749 = vector.load %arg8[%748, %c0_210] : memref<264x256xf32, #tpu.memory_space<vmem>>, vector<8x256xf32>
    %750 = arith.addf %749, %747 : vector<8x256xf32>
    %751 = vector.extract_strided_slice %750 {offsets = [0, 0], sizes = [8, 64], strides = [1, 1]} : vector<8x256xf32> to vector<8x64xf32>
    %cst_211 = arith.constant 0.000000e+00 : f32
    %752 = vector.broadcast %cst_211 : f32 to vector<8x64xf32>
    %753 = arith.subf %752, %751 : vector<8x64xf32>
    %754 = math.exp %753 : vector<8x64xf32>
    %cst_212 = arith.constant 1.000000e+00 : f32
    %755 = vector.broadcast %cst_212 : f32 to vector<8x64xf32>
    %756 = arith.addf %755, %754 : vector<8x64xf32>
    %757 = tpu.reciprocal %756 {approx = true} : vector<8x64xf32> -> vector<8x64xf32>
    %758 = vector.extract_strided_slice %750 {offsets = [0, 64], sizes = [8, 64], strides = [1, 1]} : vector<8x256xf32> to vector<8x64xf32>
    %cst_213 = arith.constant 0.000000e+00 : f32
    %759 = vector.broadcast %cst_213 : f32 to vector<8x64xf32>
    %760 = arith.subf %759, %758 : vector<8x64xf32>
    %761 = math.exp %760 : vector<8x64xf32>
    %cst_214 = arith.constant 1.000000e+00 : f32
    %762 = vector.broadcast %cst_214 : f32 to vector<8x64xf32>
    %763 = arith.addf %762, %761 : vector<8x64xf32>
    %764 = tpu.reciprocal %763 {approx = true} : vector<8x64xf32> -> vector<8x64xf32>
    %765 = vector.extract_strided_slice %750 {offsets = [0, 128], sizes = [8, 64], strides = [1, 1]} : vector<8x256xf32> to vector<8x64xf32>
    %766 = math.tanh %765 : vector<8x64xf32>
    %767 = vector.extract_strided_slice %750 {offsets = [0, 192], sizes = [8, 64], strides = [1, 1]} : vector<8x256xf32> to vector<8x64xf32>
    %cst_215 = arith.constant 0.000000e+00 : f32
    %768 = vector.broadcast %cst_215 : f32 to vector<8x64xf32>
    %769 = arith.subf %768, %767 : vector<8x64xf32>
    %770 = math.exp %769 : vector<8x64xf32>
    %cst_216 = arith.constant 1.000000e+00 : f32
    %771 = vector.broadcast %cst_216 : f32 to vector<8x64xf32>
    %772 = arith.addf %771, %770 : vector<8x64xf32>
    %773 = tpu.reciprocal %772 {approx = true} : vector<8x64xf32> -> vector<8x64xf32>
    %774 = arith.mulf %764, %734 : vector<8x64xf32>
    %775 = arith.mulf %757, %766 : vector<8x64xf32>
    %776 = arith.addf %774, %775 : vector<8x64xf32>
    %777 = math.tanh %776 : vector<8x64xf32>
    %778 = arith.mulf %773, %777 : vector<8x64xf32>
    %c17_i32_217 = arith.constant 17 : i32
    %779 = arith.subi %c20_i32, %c17_i32_217 : i32
    %c8_i32_218 = arith.constant 8 : i32
    %780 = arith.muli %779, %c8_i32_218 : i32
    %781 = tpu.assume_multiple %780, 8 : i32
    %cst_219 = arith.constant dense<0.000000e+00> : vector<8x128xf32>
    %782 = tpu.matmul %778, %2, %cst_219 {dimension_numbers = #tpu.dot_dimension_numbers<[1], [0], [0], [1], [0, 0, 1, 1], [], []>} : vector<8x64xf32>, vector<64x128xf32>, vector<8x128xf32> -> vector<8x128xf32>
    %783 = arith.addf %782, %5 : vector<8x128xf32>
    %784 = arith.index_cast %781 : i32 to index
    %c0_220 = arith.constant 0 : index
    %785 = vector.load %arg7[%784, %c0_220] : memref<128x128xf32, #tpu.memory_space<vmem>>, vector<8x128xf32>
    tpu.vector_store %arg7[%784, %c0_220], %783 {strides = array<i32>} : memref<128x128xf32, #tpu.memory_space<vmem>>, vector<8x128xf32>,
    %c21_i32 = arith.constant 21 : i32
    %c8_i32_221 = arith.constant 8 : i32
    %786 = arith.muli %c21_i32, %c8_i32_221 : i32
    %787 = tpu.assume_multiple %786, 8 : i32
    %788 = arith.truncf %778 : vector<8x64xf32> to vector<8x64xbf16>
    %cst_222 = arith.constant dense<0.000000e+00> : vector<8x256xf32>
    %789 = tpu.matmul %788, %1, %cst_222 {dimension_numbers = #tpu.dot_dimension_numbers<[1], [0], [0], [1], [0, 0, 1, 1], [], []>} : vector<8x64xbf16>, vector<64x256xbf16>, vector<8x256xf32> -> vector<8x256xf32>
    %790 = arith.index_cast %787 : i32 to index
    %c0_223 = arith.constant 0 : index
    %791 = vector.load %arg8[%790, %c0_223] : memref<264x256xf32, #tpu.memory_space<vmem>>, vector<8x256xf32>
    %792 = arith.addf %791, %789 : vector<8x256xf32>
    %793 = vector.extract_strided_slice %792 {offsets = [0, 0], sizes = [8, 64], strides = [1, 1]} : vector<8x256xf32> to vector<8x64xf32>
    %cst_224 = arith.constant 0.000000e+00 : f32
    %794 = vector.broadcast %cst_224 : f32 to vector<8x64xf32>
    %795 = arith.subf %794, %793 : vector<8x64xf32>
    %796 = math.exp %795 : vector<8x64xf32>
    %cst_225 = arith.constant 1.000000e+00 : f32
    %797 = vector.broadcast %cst_225 : f32 to vector<8x64xf32>
    %798 = arith.addf %797, %796 : vector<8x64xf32>
    %799 = tpu.reciprocal %798 {approx = true} : vector<8x64xf32> -> vector<8x64xf32>
    %800 = vector.extract_strided_slice %792 {offsets = [0, 64], sizes = [8, 64], strides = [1, 1]} : vector<8x256xf32> to vector<8x64xf32>
    %cst_226 = arith.constant 0.000000e+00 : f32
    %801 = vector.broadcast %cst_226 : f32 to vector<8x64xf32>
    %802 = arith.subf %801, %800 : vector<8x64xf32>
    %803 = math.exp %802 : vector<8x64xf32>
    %cst_227 = arith.constant 1.000000e+00 : f32
    %804 = vector.broadcast %cst_227 : f32 to vector<8x64xf32>
    %805 = arith.addf %804, %803 : vector<8x64xf32>
    %806 = tpu.reciprocal %805 {approx = true} : vector<8x64xf32> -> vector<8x64xf32>
    %807 = vector.extract_strided_slice %792 {offsets = [0, 128], sizes = [8, 64], strides = [1, 1]} : vector<8x256xf32> to vector<8x64xf32>
    %808 = math.tanh %807 : vector<8x64xf32>
    %809 = vector.extract_strided_slice %792 {offsets = [0, 192], sizes = [8, 64], strides = [1, 1]} : vector<8x256xf32> to vector<8x64xf32>
    %cst_228 = arith.constant 0.000000e+00 : f32
    %810 = vector.broadcast %cst_228 : f32 to vector<8x64xf32>
    %811 = arith.subf %810, %809 : vector<8x64xf32>
    %812 = math.exp %811 : vector<8x64xf32>
    %cst_229 = arith.constant 1.000000e+00 : f32
    %813 = vector.broadcast %cst_229 : f32 to vector<8x64xf32>
    %814 = arith.addf %813, %812 : vector<8x64xf32>
    %815 = tpu.reciprocal %814 {approx = true} : vector<8x64xf32> -> vector<8x64xf32>
    %816 = arith.mulf %806, %776 : vector<8x64xf32>
    %817 = arith.mulf %799, %808 : vector<8x64xf32>
    %818 = arith.addf %816, %817 : vector<8x64xf32>
    %819 = math.tanh %818 : vector<8x64xf32>
    %820 = arith.mulf %815, %819 : vector<8x64xf32>
    %c17_i32_230 = arith.constant 17 : i32
    %821 = arith.subi %c21_i32, %c17_i32_230 : i32
    %c8_i32_231 = arith.constant 8 : i32
    %822 = arith.muli %821, %c8_i32_231 : i32
    %823 = tpu.assume_multiple %822, 8 : i32
    %cst_232 = arith.constant dense<0.000000e+00> : vector<8x128xf32>
    %824 = tpu.matmul %820, %2, %cst_232 {dimension_numbers = #tpu.dot_dimension_numbers<[1], [0], [0], [1], [0, 0, 1, 1], [], []>} : vector<8x64xf32>, vector<64x128xf32>, vector<8x128xf32> -> vector<8x128xf32>
    %825 = arith.addf %824, %5 : vector<8x128xf32>
    %826 = arith.index_cast %823 : i32 to index
    %c0_233 = arith.constant 0 : index
    %827 = vector.load %arg7[%826, %c0_233] : memref<128x128xf32, #tpu.memory_space<vmem>>, vector<8x128xf32>
    tpu.vector_store %arg7[%826, %c0_233], %825 {strides = array<i32>} : memref<128x128xf32, #tpu.memory_space<vmem>>, vector<8x128xf32>,
    %c22_i32 = arith.constant 22 : i32
    %c8_i32_234 = arith.constant 8 : i32
    %828 = arith.muli %c22_i32, %c8_i32_234 : i32
    %829 = tpu.assume_multiple %828, 8 : i32
    %830 = arith.truncf %820 : vector<8x64xf32> to vector<8x64xbf16>
    %cst_235 = arith.constant dense<0.000000e+00> : vector<8x256xf32>
    %831 = tpu.matmul %830, %1, %cst_235 {dimension_numbers = #tpu.dot_dimension_numbers<[1], [0], [0], [1], [0, 0, 1, 1], [], []>} : vector<8x64xbf16>, vector<64x256xbf16>, vector<8x256xf32> -> vector<8x256xf32>
    %832 = arith.index_cast %829 : i32 to index
    %c0_236 = arith.constant 0 : index
    %833 = vector.load %arg8[%832, %c0_236] : memref<264x256xf32, #tpu.memory_space<vmem>>, vector<8x256xf32>
    %834 = arith.addf %833, %831 : vector<8x256xf32>
    %835 = vector.extract_strided_slice %834 {offsets = [0, 0], sizes = [8, 64], strides = [1, 1]} : vector<8x256xf32> to vector<8x64xf32>
    %cst_237 = arith.constant 0.000000e+00 : f32
    %836 = vector.broadcast %cst_237 : f32 to vector<8x64xf32>
    %837 = arith.subf %836, %835 : vector<8x64xf32>
    %838 = math.exp %837 : vector<8x64xf32>
    %cst_238 = arith.constant 1.000000e+00 : f32
    %839 = vector.broadcast %cst_238 : f32 to vector<8x64xf32>
    %840 = arith.addf %839, %838 : vector<8x64xf32>
    %841 = tpu.reciprocal %840 {approx = true} : vector<8x64xf32> -> vector<8x64xf32>
    %842 = vector.extract_strided_slice %834 {offsets = [0, 64], sizes = [8, 64], strides = [1, 1]} : vector<8x256xf32> to vector<8x64xf32>
    %cst_239 = arith.constant 0.000000e+00 : f32
    %843 = vector.broadcast %cst_239 : f32 to vector<8x64xf32>
    %844 = arith.subf %843, %842 : vector<8x64xf32>
    %845 = math.exp %844 : vector<8x64xf32>
    %cst_240 = arith.constant 1.000000e+00 : f32
    %846 = vector.broadcast %cst_240 : f32 to vector<8x64xf32>
    %847 = arith.addf %846, %845 : vector<8x64xf32>
    %848 = tpu.reciprocal %847 {approx = true} : vector<8x64xf32> -> vector<8x64xf32>
    %849 = vector.extract_strided_slice %834 {offsets = [0, 128], sizes = [8, 64], strides = [1, 1]} : vector<8x256xf32> to vector<8x64xf32>
    %850 = math.tanh %849 : vector<8x64xf32>
    %851 = vector.extract_strided_slice %834 {offsets = [0, 192], sizes = [8, 64], strides = [1, 1]} : vector<8x256xf32> to vector<8x64xf32>
    %cst_241 = arith.constant 0.000000e+00 : f32
    %852 = vector.broadcast %cst_241 : f32 to vector<8x64xf32>
    %853 = arith.subf %852, %851 : vector<8x64xf32>
    %854 = math.exp %853 : vector<8x64xf32>
    %cst_242 = arith.constant 1.000000e+00 : f32
    %855 = vector.broadcast %cst_242 : f32 to vector<8x64xf32>
    %856 = arith.addf %855, %854 : vector<8x64xf32>
    %857 = tpu.reciprocal %856 {approx = true} : vector<8x64xf32> -> vector<8x64xf32>
    %858 = arith.mulf %848, %818 : vector<8x64xf32>
    %859 = arith.mulf %841, %850 : vector<8x64xf32>
    %860 = arith.addf %858, %859 : vector<8x64xf32>
    %861 = math.tanh %860 : vector<8x64xf32>
    %862 = arith.mulf %857, %861 : vector<8x64xf32>
    %c17_i32_243 = arith.constant 17 : i32
    %863 = arith.subi %c22_i32, %c17_i32_243 : i32
    %c8_i32_244 = arith.constant 8 : i32
    %864 = arith.muli %863, %c8_i32_244 : i32
    %865 = tpu.assume_multiple %864, 8 : i32
    %cst_245 = arith.constant dense<0.000000e+00> : vector<8x128xf32>
    %866 = tpu.matmul %862, %2, %cst_245 {dimension_numbers = #tpu.dot_dimension_numbers<[1], [0], [0], [1], [0, 0, 1, 1], [], []>} : vector<8x64xf32>, vector<64x128xf32>, vector<8x128xf32> -> vector<8x128xf32>
    %867 = arith.addf %866, %5 : vector<8x128xf32>
    %868 = arith.index_cast %865 : i32 to index
    %c0_246 = arith.constant 0 : index
    %869 = vector.load %arg7[%868, %c0_246] : memref<128x128xf32, #tpu.memory_space<vmem>>, vector<8x128xf32>
    tpu.vector_store %arg7[%868, %c0_246], %867 {strides = array<i32>} : memref<128x128xf32, #tpu.memory_space<vmem>>, vector<8x128xf32>,
    %c23_i32 = arith.constant 23 : i32
    %c8_i32_247 = arith.constant 8 : i32
    %870 = arith.muli %c23_i32, %c8_i32_247 : i32
    %871 = tpu.assume_multiple %870, 8 : i32
    %872 = arith.truncf %862 : vector<8x64xf32> to vector<8x64xbf16>
    %cst_248 = arith.constant dense<0.000000e+00> : vector<8x256xf32>
    %873 = tpu.matmul %872, %1, %cst_248 {dimension_numbers = #tpu.dot_dimension_numbers<[1], [0], [0], [1], [0, 0, 1, 1], [], []>} : vector<8x64xbf16>, vector<64x256xbf16>, vector<8x256xf32> -> vector<8x256xf32>
    %874 = arith.index_cast %871 : i32 to index
    %c0_249 = arith.constant 0 : index
    %875 = vector.load %arg8[%874, %c0_249] : memref<264x256xf32, #tpu.memory_space<vmem>>, vector<8x256xf32>
    %876 = arith.addf %875, %873 : vector<8x256xf32>
    %877 = vector.extract_strided_slice %876 {offsets = [0, 0], sizes = [8, 64], strides = [1, 1]} : vector<8x256xf32> to vector<8x64xf32>
    %cst_250 = arith.constant 0.000000e+00 : f32
    %878 = vector.broadcast %cst_250 : f32 to vector<8x64xf32>
    %879 = arith.subf %878, %877 : vector<8x64xf32>
    %880 = math.exp %879 : vector<8x64xf32>
    %cst_251 = arith.constant 1.000000e+00 : f32
    %881 = vector.broadcast %cst_251 : f32 to vector<8x64xf32>
    %882 = arith.addf %881, %880 : vector<8x64xf32>
    %883 = tpu.reciprocal %882 {approx = true} : vector<8x64xf32> -> vector<8x64xf32>
    %884 = vector.extract_strided_slice %876 {offsets = [0, 64], sizes = [8, 64], strides = [1, 1]} : vector<8x256xf32> to vector<8x64xf32>
    %cst_252 = arith.constant 0.000000e+00 : f32
    %885 = vector.broadcast %cst_252 : f32 to vector<8x64xf32>
    %886 = arith.subf %885, %884 : vector<8x64xf32>
    %887 = math.exp %886 : vector<8x64xf32>
    %cst_253 = arith.constant 1.000000e+00 : f32
    %888 = vector.broadcast %cst_253 : f32 to vector<8x64xf32>
    %889 = arith.addf %888, %887 : vector<8x64xf32>
    %890 = tpu.reciprocal %889 {approx = true} : vector<8x64xf32> -> vector<8x64xf32>
    %891 = vector.extract_strided_slice %876 {offsets = [0, 128], sizes = [8, 64], strides = [1, 1]} : vector<8x256xf32> to vector<8x64xf32>
    %892 = math.tanh %891 : vector<8x64xf32>
    %893 = vector.extract_strided_slice %876 {offsets = [0, 192], sizes = [8, 64], strides = [1, 1]} : vector<8x256xf32> to vector<8x64xf32>
    %cst_254 = arith.constant 0.000000e+00 : f32
    %894 = vector.broadcast %cst_254 : f32 to vector<8x64xf32>
    %895 = arith.subf %894, %893 : vector<8x64xf32>
    %896 = math.exp %895 : vector<8x64xf32>
    %cst_255 = arith.constant 1.000000e+00 : f32
    %897 = vector.broadcast %cst_255 : f32 to vector<8x64xf32>
    %898 = arith.addf %897, %896 : vector<8x64xf32>
    %899 = tpu.reciprocal %898 {approx = true} : vector<8x64xf32> -> vector<8x64xf32>
    %900 = arith.mulf %890, %860 : vector<8x64xf32>
    %901 = arith.mulf %883, %892 : vector<8x64xf32>
    %902 = arith.addf %900, %901 : vector<8x64xf32>
    %903 = math.tanh %902 : vector<8x64xf32>
    %904 = arith.mulf %899, %903 : vector<8x64xf32>
    %c17_i32_256 = arith.constant 17 : i32
    %905 = arith.subi %c23_i32, %c17_i32_256 : i32
    %c8_i32_257 = arith.constant 8 : i32
    %906 = arith.muli %905, %c8_i32_257 : i32
    %907 = tpu.assume_multiple %906, 8 : i32
    %cst_258 = arith.constant dense<0.000000e+00> : vector<8x128xf32>
    %908 = tpu.matmul %904, %2, %cst_258 {dimension_numbers = #tpu.dot_dimension_numbers<[1], [0], [0], [1], [0, 0, 1, 1], [], []>} : vector<8x64xf32>, vector<64x128xf32>, vector<8x128xf32> -> vector<8x128xf32>
    %909 = arith.addf %908, %5 : vector<8x128xf32>
    %910 = arith.index_cast %907 : i32 to index
    %c0_259 = arith.constant 0 : index
    %911 = vector.load %arg7[%910, %c0_259] : memref<128x128xf32, #tpu.memory_space<vmem>>, vector<8x128xf32>
    tpu.vector_store %arg7[%910, %c0_259], %909 {strides = array<i32>} : memref<128x128xf32, #tpu.memory_space<vmem>>, vector<8x128xf32>,
    %c24_i32 = arith.constant 24 : i32
    %c8_i32_260 = arith.constant 8 : i32
    %912 = arith.muli %c24_i32, %c8_i32_260 : i32
    %913 = tpu.assume_multiple %912, 8 : i32
    %914 = arith.truncf %904 : vector<8x64xf32> to vector<8x64xbf16>
    %cst_261 = arith.constant dense<0.000000e+00> : vector<8x256xf32>
    %915 = tpu.matmul %914, %1, %cst_261 {dimension_numbers = #tpu.dot_dimension_numbers<[1], [0], [0], [1], [0, 0, 1, 1], [], []>} : vector<8x64xbf16>, vector<64x256xbf16>, vector<8x256xf32> -> vector<8x256xf32>
    %916 = arith.index_cast %913 : i32 to index
    %c0_262 = arith.constant 0 : index
    %917 = vector.load %arg8[%916, %c0_262] : memref<264x256xf32, #tpu.memory_space<vmem>>, vector<8x256xf32>
    %918 = arith.addf %917, %915 : vector<8x256xf32>
    %919 = vector.extract_strided_slice %918 {offsets = [0, 0], sizes = [8, 64], strides = [1, 1]} : vector<8x256xf32> to vector<8x64xf32>
    %cst_263 = arith.constant 0.000000e+00 : f32
    %920 = vector.broadcast %cst_263 : f32 to vector<8x64xf32>
    %921 = arith.subf %920, %919 : vector<8x64xf32>
    %922 = math.exp %921 : vector<8x64xf32>
    %cst_264 = arith.constant 1.000000e+00 : f32
    %923 = vector.broadcast %cst_264 : f32 to vector<8x64xf32>
    %924 = arith.addf %923, %922 : vector<8x64xf32>
    %925 = tpu.reciprocal %924 {approx = true} : vector<8x64xf32> -> vector<8x64xf32>
    %926 = vector.extract_strided_slice %918 {offsets = [0, 64], sizes = [8, 64], strides = [1, 1]} : vector<8x256xf32> to vector<8x64xf32>
    %cst_265 = arith.constant 0.000000e+00 : f32
    %927 = vector.broadcast %cst_265 : f32 to vector<8x64xf32>
    %928 = arith.subf %927, %926 : vector<8x64xf32>
    %929 = math.exp %928 : vector<8x64xf32>
    %cst_266 = arith.constant 1.000000e+00 : f32
    %930 = vector.broadcast %cst_266 : f32 to vector<8x64xf32>
    %931 = arith.addf %930, %929 : vector<8x64xf32>
    %932 = tpu.reciprocal %931 {approx = true} : vector<8x64xf32> -> vector<8x64xf32>
    %933 = vector.extract_strided_slice %918 {offsets = [0, 128], sizes = [8, 64], strides = [1, 1]} : vector<8x256xf32> to vector<8x64xf32>
    %934 = math.tanh %933 : vector<8x64xf32>
    %935 = vector.extract_strided_slice %918 {offsets = [0, 192], sizes = [8, 64], strides = [1, 1]} : vector<8x256xf32> to vector<8x64xf32>
    %cst_267 = arith.constant 0.000000e+00 : f32
    %936 = vector.broadcast %cst_267 : f32 to vector<8x64xf32>
    %937 = arith.subf %936, %935 : vector<8x64xf32>
    %938 = math.exp %937 : vector<8x64xf32>
    %cst_268 = arith.constant 1.000000e+00 : f32
    %939 = vector.broadcast %cst_268 : f32 to vector<8x64xf32>
    %940 = arith.addf %939, %938 : vector<8x64xf32>
    %941 = tpu.reciprocal %940 {approx = true} : vector<8x64xf32> -> vector<8x64xf32>
    %942 = arith.mulf %932, %902 : vector<8x64xf32>
    %943 = arith.mulf %925, %934 : vector<8x64xf32>
    %944 = arith.addf %942, %943 : vector<8x64xf32>
    %945 = math.tanh %944 : vector<8x64xf32>
    %946 = arith.mulf %941, %945 : vector<8x64xf32>
    %c17_i32_269 = arith.constant 17 : i32
    %947 = arith.subi %c24_i32, %c17_i32_269 : i32
    %c8_i32_270 = arith.constant 8 : i32
    %948 = arith.muli %947, %c8_i32_270 : i32
    %949 = tpu.assume_multiple %948, 8 : i32
    %cst_271 = arith.constant dense<0.000000e+00> : vector<8x128xf32>
    %950 = tpu.matmul %946, %2, %cst_271 {dimension_numbers = #tpu.dot_dimension_numbers<[1], [0], [0], [1], [0, 0, 1, 1], [], []>} : vector<8x64xf32>, vector<64x128xf32>, vector<8x128xf32> -> vector<8x128xf32>
    %951 = arith.addf %950, %5 : vector<8x128xf32>
    %952 = arith.index_cast %949 : i32 to index
    %c0_272 = arith.constant 0 : index
    %953 = vector.load %arg7[%952, %c0_272] : memref<128x128xf32, #tpu.memory_space<vmem>>, vector<8x128xf32>
    tpu.vector_store %arg7[%952, %c0_272], %951 {strides = array<i32>} : memref<128x128xf32, #tpu.memory_space<vmem>>, vector<8x128xf32>,
    %c25_i32 = arith.constant 25 : i32
    %c8_i32_273 = arith.constant 8 : i32
    %954 = arith.muli %c25_i32, %c8_i32_273 : i32
    %955 = tpu.assume_multiple %954, 8 : i32
    %956 = arith.truncf %946 : vector<8x64xf32> to vector<8x64xbf16>
    %cst_274 = arith.constant dense<0.000000e+00> : vector<8x256xf32>
    %957 = tpu.matmul %956, %1, %cst_274 {dimension_numbers = #tpu.dot_dimension_numbers<[1], [0], [0], [1], [0, 0, 1, 1], [], []>} : vector<8x64xbf16>, vector<64x256xbf16>, vector<8x256xf32> -> vector<8x256xf32>
    %958 = arith.index_cast %955 : i32 to index
    %c0_275 = arith.constant 0 : index
    %959 = vector.load %arg8[%958, %c0_275] : memref<264x256xf32, #tpu.memory_space<vmem>>, vector<8x256xf32>
    %960 = arith.addf %959, %957 : vector<8x256xf32>
    %961 = vector.extract_strided_slice %960 {offsets = [0, 0], sizes = [8, 64], strides = [1, 1]} : vector<8x256xf32> to vector<8x64xf32>
    %cst_276 = arith.constant 0.000000e+00 : f32
    %962 = vector.broadcast %cst_276 : f32 to vector<8x64xf32>
    %963 = arith.subf %962, %961 : vector<8x64xf32>
    %964 = math.exp %963 : vector<8x64xf32>
    %cst_277 = arith.constant 1.000000e+00 : f32
    %965 = vector.broadcast %cst_277 : f32 to vector<8x64xf32>
    %966 = arith.addf %965, %964 : vector<8x64xf32>
    %967 = tpu.reciprocal %966 {approx = true} : vector<8x64xf32> -> vector<8x64xf32>
    %968 = vector.extract_strided_slice %960 {offsets = [0, 64], sizes = [8, 64], strides = [1, 1]} : vector<8x256xf32> to vector<8x64xf32>
    %cst_278 = arith.constant 0.000000e+00 : f32
    %969 = vector.broadcast %cst_278 : f32 to vector<8x64xf32>
    %970 = arith.subf %969, %968 : vector<8x64xf32>
    %971 = math.exp %970 : vector<8x64xf32>
    %cst_279 = arith.constant 1.000000e+00 : f32
    %972 = vector.broadcast %cst_279 : f32 to vector<8x64xf32>
    %973 = arith.addf %972, %971 : vector<8x64xf32>
    %974 = tpu.reciprocal %973 {approx = true} : vector<8x64xf32> -> vector<8x64xf32>
    %975 = vector.extract_strided_slice %960 {offsets = [0, 128], sizes = [8, 64], strides = [1, 1]} : vector<8x256xf32> to vector<8x64xf32>
    %976 = math.tanh %975 : vector<8x64xf32>
    %977 = vector.extract_strided_slice %960 {offsets = [0, 192], sizes = [8, 64], strides = [1, 1]} : vector<8x256xf32> to vector<8x64xf32>
    %cst_280 = arith.constant 0.000000e+00 : f32
    %978 = vector.broadcast %cst_280 : f32 to vector<8x64xf32>
    %979 = arith.subf %978, %977 : vector<8x64xf32>
    %980 = math.exp %979 : vector<8x64xf32>
    %cst_281 = arith.constant 1.000000e+00 : f32
    %981 = vector.broadcast %cst_281 : f32 to vector<8x64xf32>
    %982 = arith.addf %981, %980 : vector<8x64xf32>
    %983 = tpu.reciprocal %982 {approx = true} : vector<8x64xf32> -> vector<8x64xf32>
    %984 = arith.mulf %974, %944 : vector<8x64xf32>
    %985 = arith.mulf %967, %976 : vector<8x64xf32>
    %986 = arith.addf %984, %985 : vector<8x64xf32>
    %987 = math.tanh %986 : vector<8x64xf32>
    %988 = arith.mulf %983, %987 : vector<8x64xf32>
    %c17_i32_282 = arith.constant 17 : i32
    %989 = arith.subi %c25_i32, %c17_i32_282 : i32
    %c8_i32_283 = arith.constant 8 : i32
    %990 = arith.muli %989, %c8_i32_283 : i32
    %991 = tpu.assume_multiple %990, 8 : i32
    %cst_284 = arith.constant dense<0.000000e+00> : vector<8x128xf32>
    %992 = tpu.matmul %988, %2, %cst_284 {dimension_numbers = #tpu.dot_dimension_numbers<[1], [0], [0], [1], [0, 0, 1, 1], [], []>} : vector<8x64xf32>, vector<64x128xf32>, vector<8x128xf32> -> vector<8x128xf32>
    %993 = arith.addf %992, %5 : vector<8x128xf32>
    %994 = arith.index_cast %991 : i32 to index
    %c0_285 = arith.constant 0 : index
    %995 = vector.load %arg7[%994, %c0_285] : memref<128x128xf32, #tpu.memory_space<vmem>>, vector<8x128xf32>
    tpu.vector_store %arg7[%994, %c0_285], %993 {strides = array<i32>} : memref<128x128xf32, #tpu.memory_space<vmem>>, vector<8x128xf32>,
    %c26_i32 = arith.constant 26 : i32
    %c8_i32_286 = arith.constant 8 : i32
    %996 = arith.muli %c26_i32, %c8_i32_286 : i32
    %997 = tpu.assume_multiple %996, 8 : i32
    %998 = arith.truncf %988 : vector<8x64xf32> to vector<8x64xbf16>
    %cst_287 = arith.constant dense<0.000000e+00> : vector<8x256xf32>
    %999 = tpu.matmul %998, %1, %cst_287 {dimension_numbers = #tpu.dot_dimension_numbers<[1], [0], [0], [1], [0, 0, 1, 1], [], []>} : vector<8x64xbf16>, vector<64x256xbf16>, vector<8x256xf32> -> vector<8x256xf32>
    %1000 = arith.index_cast %997 : i32 to index
    %c0_288 = arith.constant 0 : index
    %1001 = vector.load %arg8[%1000, %c0_288] : memref<264x256xf32, #tpu.memory_space<vmem>>, vector<8x256xf32>
    %1002 = arith.addf %1001, %999 : vector<8x256xf32>
    %1003 = vector.extract_strided_slice %1002 {offsets = [0, 0], sizes = [8, 64], strides = [1, 1]} : vector<8x256xf32> to vector<8x64xf32>
    %cst_289 = arith.constant 0.000000e+00 : f32
    %1004 = vector.broadcast %cst_289 : f32 to vector<8x64xf32>
    %1005 = arith.subf %1004, %1003 : vector<8x64xf32>
    %1006 = math.exp %1005 : vector<8x64xf32>
    %cst_290 = arith.constant 1.000000e+00 : f32
    %1007 = vector.broadcast %cst_290 : f32 to vector<8x64xf32>
    %1008 = arith.addf %1007, %1006 : vector<8x64xf32>
    %1009 = tpu.reciprocal %1008 {approx = true} : vector<8x64xf32> -> vector<8x64xf32>
    %1010 = vector.extract_strided_slice %1002 {offsets = [0, 64], sizes = [8, 64], strides = [1, 1]} : vector<8x256xf32> to vector<8x64xf32>
    %cst_291 = arith.constant 0.000000e+00 : f32
    %1011 = vector.broadcast %cst_291 : f32 to vector<8x64xf32>
    %1012 = arith.subf %1011, %1010 : vector<8x64xf32>
    %1013 = math.exp %1012 : vector<8x64xf32>
    %cst_292 = arith.constant 1.000000e+00 : f32
    %1014 = vector.broadcast %cst_292 : f32 to vector<8x64xf32>
    %1015 = arith.addf %1014, %1013 : vector<8x64xf32>
    %1016 = tpu.reciprocal %1015 {approx = true} : vector<8x64xf32> -> vector<8x64xf32>
    %1017 = vector.extract_strided_slice %1002 {offsets = [0, 128], sizes = [8, 64], strides = [1, 1]} : vector<8x256xf32> to vector<8x64xf32>
    %1018 = math.tanh %1017 : vector<8x64xf32>
    %1019 = vector.extract_strided_slice %1002 {offsets = [0, 192], sizes = [8, 64], strides = [1, 1]} : vector<8x256xf32> to vector<8x64xf32>
    %cst_293 = arith.constant 0.000000e+00 : f32
    %1020 = vector.broadcast %cst_293 : f32 to vector<8x64xf32>
    %1021 = arith.subf %1020, %1019 : vector<8x64xf32>
    %1022 = math.exp %1021 : vector<8x64xf32>
    %cst_294 = arith.constant 1.000000e+00 : f32
    %1023 = vector.broadcast %cst_294 : f32 to vector<8x64xf32>
    %1024 = arith.addf %1023, %1022 : vector<8x64xf32>
    %1025 = tpu.reciprocal %1024 {approx = true} : vector<8x64xf32> -> vector<8x64xf32>
    %1026 = arith.mulf %1016, %986 : vector<8x64xf32>
    %1027 = arith.mulf %1009, %1018 : vector<8x64xf32>
    %1028 = arith.addf %1026, %1027 : vector<8x64xf32>
    %1029 = math.tanh %1028 : vector<8x64xf32>
    %1030 = arith.mulf %1025, %1029 : vector<8x64xf32>
    %c17_i32_295 = arith.constant 17 : i32
    %1031 = arith.subi %c26_i32, %c17_i32_295 : i32
    %c8_i32_296 = arith.constant 8 : i32
    %1032 = arith.muli %1031, %c8_i32_296 : i32
    %1033 = tpu.assume_multiple %1032, 8 : i32
    %cst_297 = arith.constant dense<0.000000e+00> : vector<8x128xf32>
    %1034 = tpu.matmul %1030, %2, %cst_297 {dimension_numbers = #tpu.dot_dimension_numbers<[1], [0], [0], [1], [0, 0, 1, 1], [], []>} : vector<8x64xf32>, vector<64x128xf32>, vector<8x128xf32> -> vector<8x128xf32>
    %1035 = arith.addf %1034, %5 : vector<8x128xf32>
    %1036 = arith.index_cast %1033 : i32 to index
    %c0_298 = arith.constant 0 : index
    %1037 = vector.load %arg7[%1036, %c0_298] : memref<128x128xf32, #tpu.memory_space<vmem>>, vector<8x128xf32>
    tpu.vector_store %arg7[%1036, %c0_298], %1035 {strides = array<i32>} : memref<128x128xf32, #tpu.memory_space<vmem>>, vector<8x128xf32>,
    %c27_i32 = arith.constant 27 : i32
    %c8_i32_299 = arith.constant 8 : i32
    %1038 = arith.muli %c27_i32, %c8_i32_299 : i32
    %1039 = tpu.assume_multiple %1038, 8 : i32
    %1040 = arith.truncf %1030 : vector<8x64xf32> to vector<8x64xbf16>
    %cst_300 = arith.constant dense<0.000000e+00> : vector<8x256xf32>
    %1041 = tpu.matmul %1040, %1, %cst_300 {dimension_numbers = #tpu.dot_dimension_numbers<[1], [0], [0], [1], [0, 0, 1, 1], [], []>} : vector<8x64xbf16>, vector<64x256xbf16>, vector<8x256xf32> -> vector<8x256xf32>
    %1042 = arith.index_cast %1039 : i32 to index
    %c0_301 = arith.constant 0 : index
    %1043 = vector.load %arg8[%1042, %c0_301] : memref<264x256xf32, #tpu.memory_space<vmem>>, vector<8x256xf32>
    %1044 = arith.addf %1043, %1041 : vector<8x256xf32>
    %1045 = vector.extract_strided_slice %1044 {offsets = [0, 0], sizes = [8, 64], strides = [1, 1]} : vector<8x256xf32> to vector<8x64xf32>
    %cst_302 = arith.constant 0.000000e+00 : f32
    %1046 = vector.broadcast %cst_302 : f32 to vector<8x64xf32>
    %1047 = arith.subf %1046, %1045 : vector<8x64xf32>
    %1048 = math.exp %1047 : vector<8x64xf32>
    %cst_303 = arith.constant 1.000000e+00 : f32
    %1049 = vector.broadcast %cst_303 : f32 to vector<8x64xf32>
    %1050 = arith.addf %1049, %1048 : vector<8x64xf32>
    %1051 = tpu.reciprocal %1050 {approx = true} : vector<8x64xf32> -> vector<8x64xf32>
    %1052 = vector.extract_strided_slice %1044 {offsets = [0, 64], sizes = [8, 64], strides = [1, 1]} : vector<8x256xf32> to vector<8x64xf32>
    %cst_304 = arith.constant 0.000000e+00 : f32
    %1053 = vector.broadcast %cst_304 : f32 to vector<8x64xf32>
    %1054 = arith.subf %1053, %1052 : vector<8x64xf32>
    %1055 = math.exp %1054 : vector<8x64xf32>
    %cst_305 = arith.constant 1.000000e+00 : f32
    %1056 = vector.broadcast %cst_305 : f32 to vector<8x64xf32>
    %1057 = arith.addf %1056, %1055 : vector<8x64xf32>
    %1058 = tpu.reciprocal %1057 {approx = true} : vector<8x64xf32> -> vector<8x64xf32>
    %1059 = vector.extract_strided_slice %1044 {offsets = [0, 128], sizes = [8, 64], strides = [1, 1]} : vector<8x256xf32> to vector<8x64xf32>
    %1060 = math.tanh %1059 : vector<8x64xf32>
    %1061 = vector.extract_strided_slice %1044 {offsets = [0, 192], sizes = [8, 64], strides = [1, 1]} : vector<8x256xf32> to vector<8x64xf32>
    %cst_306 = arith.constant 0.000000e+00 : f32
    %1062 = vector.broadcast %cst_306 : f32 to vector<8x64xf32>
    %1063 = arith.subf %1062, %1061 : vector<8x64xf32>
    %1064 = math.exp %1063 : vector<8x64xf32>
    %cst_307 = arith.constant 1.000000e+00 : f32
    %1065 = vector.broadcast %cst_307 : f32 to vector<8x64xf32>
    %1066 = arith.addf %1065, %1064 : vector<8x64xf32>
    %1067 = tpu.reciprocal %1066 {approx = true} : vector<8x64xf32> -> vector<8x64xf32>
    %1068 = arith.mulf %1058, %1028 : vector<8x64xf32>
    %1069 = arith.mulf %1051, %1060 : vector<8x64xf32>
    %1070 = arith.addf %1068, %1069 : vector<8x64xf32>
    %1071 = math.tanh %1070 : vector<8x64xf32>
    %1072 = arith.mulf %1067, %1071 : vector<8x64xf32>
    %c17_i32_308 = arith.constant 17 : i32
    %1073 = arith.subi %c27_i32, %c17_i32_308 : i32
    %c8_i32_309 = arith.constant 8 : i32
    %1074 = arith.muli %1073, %c8_i32_309 : i32
    %1075 = tpu.assume_multiple %1074, 8 : i32
    %cst_310 = arith.constant dense<0.000000e+00> : vector<8x128xf32>
    %1076 = tpu.matmul %1072, %2, %cst_310 {dimension_numbers = #tpu.dot_dimension_numbers<[1], [0], [0], [1], [0, 0, 1, 1], [], []>} : vector<8x64xf32>, vector<64x128xf32>, vector<8x128xf32> -> vector<8x128xf32>
    %1077 = arith.addf %1076, %5 : vector<8x128xf32>
    %1078 = arith.index_cast %1075 : i32 to index
    %c0_311 = arith.constant 0 : index
    %1079 = vector.load %arg7[%1078, %c0_311] : memref<128x128xf32, #tpu.memory_space<vmem>>, vector<8x128xf32>
    tpu.vector_store %arg7[%1078, %c0_311], %1077 {strides = array<i32>} : memref<128x128xf32, #tpu.memory_space<vmem>>, vector<8x128xf32>,
    %c28_i32 = arith.constant 28 : i32
    %c8_i32_312 = arith.constant 8 : i32
    %1080 = arith.muli %c28_i32, %c8_i32_312 : i32
    %1081 = tpu.assume_multiple %1080, 8 : i32
    %1082 = arith.truncf %1072 : vector<8x64xf32> to vector<8x64xbf16>
    %cst_313 = arith.constant dense<0.000000e+00> : vector<8x256xf32>
    %1083 = tpu.matmul %1082, %1, %cst_313 {dimension_numbers = #tpu.dot_dimension_numbers<[1], [0], [0], [1], [0, 0, 1, 1], [], []>} : vector<8x64xbf16>, vector<64x256xbf16>, vector<8x256xf32> -> vector<8x256xf32>
    %1084 = arith.index_cast %1081 : i32 to index
    %c0_314 = arith.constant 0 : index
    %1085 = vector.load %arg8[%1084, %c0_314] : memref<264x256xf32, #tpu.memory_space<vmem>>, vector<8x256xf32>
    %1086 = arith.addf %1085, %1083 : vector<8x256xf32>
    %1087 = vector.extract_strided_slice %1086 {offsets = [0, 0], sizes = [8, 64], strides = [1, 1]} : vector<8x256xf32> to vector<8x64xf32>
    %cst_315 = arith.constant 0.000000e+00 : f32
    %1088 = vector.broadcast %cst_315 : f32 to vector<8x64xf32>
    %1089 = arith.subf %1088, %1087 : vector<8x64xf32>
    %1090 = math.exp %1089 : vector<8x64xf32>
    %cst_316 = arith.constant 1.000000e+00 : f32
    %1091 = vector.broadcast %cst_316 : f32 to vector<8x64xf32>
    %1092 = arith.addf %1091, %1090 : vector<8x64xf32>
    %1093 = tpu.reciprocal %1092 {approx = true} : vector<8x64xf32> -> vector<8x64xf32>
    %1094 = vector.extract_strided_slice %1086 {offsets = [0, 64], sizes = [8, 64], strides = [1, 1]} : vector<8x256xf32> to vector<8x64xf32>
    %cst_317 = arith.constant 0.000000e+00 : f32
    %1095 = vector.broadcast %cst_317 : f32 to vector<8x64xf32>
    %1096 = arith.subf %1095, %1094 : vector<8x64xf32>
    %1097 = math.exp %1096 : vector<8x64xf32>
    %cst_318 = arith.constant 1.000000e+00 : f32
    %1098 = vector.broadcast %cst_318 : f32 to vector<8x64xf32>
    %1099 = arith.addf %1098, %1097 : vector<8x64xf32>
    %1100 = tpu.reciprocal %1099 {approx = true} : vector<8x64xf32> -> vector<8x64xf32>
    %1101 = vector.extract_strided_slice %1086 {offsets = [0, 128], sizes = [8, 64], strides = [1, 1]} : vector<8x256xf32> to vector<8x64xf32>
    %1102 = math.tanh %1101 : vector<8x64xf32>
    %1103 = vector.extract_strided_slice %1086 {offsets = [0, 192], sizes = [8, 64], strides = [1, 1]} : vector<8x256xf32> to vector<8x64xf32>
    %cst_319 = arith.constant 0.000000e+00 : f32
    %1104 = vector.broadcast %cst_319 : f32 to vector<8x64xf32>
    %1105 = arith.subf %1104, %1103 : vector<8x64xf32>
    %1106 = math.exp %1105 : vector<8x64xf32>
    %cst_320 = arith.constant 1.000000e+00 : f32
    %1107 = vector.broadcast %cst_320 : f32 to vector<8x64xf32>
    %1108 = arith.addf %1107, %1106 : vector<8x64xf32>
    %1109 = tpu.reciprocal %1108 {approx = true} : vector<8x64xf32> -> vector<8x64xf32>
    %1110 = arith.mulf %1100, %1070 : vector<8x64xf32>
    %1111 = arith.mulf %1093, %1102 : vector<8x64xf32>
    %1112 = arith.addf %1110, %1111 : vector<8x64xf32>
    %1113 = math.tanh %1112 : vector<8x64xf32>
    %1114 = arith.mulf %1109, %1113 : vector<8x64xf32>
    %c17_i32_321 = arith.constant 17 : i32
    %1115 = arith.subi %c28_i32, %c17_i32_321 : i32
    %c8_i32_322 = arith.constant 8 : i32
    %1116 = arith.muli %1115, %c8_i32_322 : i32
    %1117 = tpu.assume_multiple %1116, 8 : i32
    %cst_323 = arith.constant dense<0.000000e+00> : vector<8x128xf32>
    %1118 = tpu.matmul %1114, %2, %cst_323 {dimension_numbers = #tpu.dot_dimension_numbers<[1], [0], [0], [1], [0, 0, 1, 1], [], []>} : vector<8x64xf32>, vector<64x128xf32>, vector<8x128xf32> -> vector<8x128xf32>
    %1119 = arith.addf %1118, %5 : vector<8x128xf32>
    %1120 = arith.index_cast %1117 : i32 to index
    %c0_324 = arith.constant 0 : index
    %1121 = vector.load %arg7[%1120, %c0_324] : memref<128x128xf32, #tpu.memory_space<vmem>>, vector<8x128xf32>
    tpu.vector_store %arg7[%1120, %c0_324], %1119 {strides = array<i32>} : memref<128x128xf32, #tpu.memory_space<vmem>>, vector<8x128xf32>,
    %c29_i32 = arith.constant 29 : i32
    %c8_i32_325 = arith.constant 8 : i32
    %1122 = arith.muli %c29_i32, %c8_i32_325 : i32
    %1123 = tpu.assume_multiple %1122, 8 : i32
    %1124 = arith.truncf %1114 : vector<8x64xf32> to vector<8x64xbf16>
    %cst_326 = arith.constant dense<0.000000e+00> : vector<8x256xf32>
    %1125 = tpu.matmul %1124, %1, %cst_326 {dimension_numbers = #tpu.dot_dimension_numbers<[1], [0], [0], [1], [0, 0, 1, 1], [], []>} : vector<8x64xbf16>, vector<64x256xbf16>, vector<8x256xf32> -> vector<8x256xf32>
    %1126 = arith.index_cast %1123 : i32 to index
    %c0_327 = arith.constant 0 : index
    %1127 = vector.load %arg8[%1126, %c0_327] : memref<264x256xf32, #tpu.memory_space<vmem>>, vector<8x256xf32>
    %1128 = arith.addf %1127, %1125 : vector<8x256xf32>
    %1129 = vector.extract_strided_slice %1128 {offsets = [0, 0], sizes = [8, 64], strides = [1, 1]} : vector<8x256xf32> to vector<8x64xf32>
    %cst_328 = arith.constant 0.000000e+00 : f32
    %1130 = vector.broadcast %cst_328 : f32 to vector<8x64xf32>
    %1131 = arith.subf %1130, %1129 : vector<8x64xf32>
    %1132 = math.exp %1131 : vector<8x64xf32>
    %cst_329 = arith.constant 1.000000e+00 : f32
    %1133 = vector.broadcast %cst_329 : f32 to vector<8x64xf32>
    %1134 = arith.addf %1133, %1132 : vector<8x64xf32>
    %1135 = tpu.reciprocal %1134 {approx = true} : vector<8x64xf32> -> vector<8x64xf32>
    %1136 = vector.extract_strided_slice %1128 {offsets = [0, 64], sizes = [8, 64], strides = [1, 1]} : vector<8x256xf32> to vector<8x64xf32>
    %cst_330 = arith.constant 0.000000e+00 : f32
    %1137 = vector.broadcast %cst_330 : f32 to vector<8x64xf32>
    %1138 = arith.subf %1137, %1136 : vector<8x64xf32>
    %1139 = math.exp %1138 : vector<8x64xf32>
    %cst_331 = arith.constant 1.000000e+00 : f32
    %1140 = vector.broadcast %cst_331 : f32 to vector<8x64xf32>
    %1141 = arith.addf %1140, %1139 : vector<8x64xf32>
    %1142 = tpu.reciprocal %1141 {approx = true} : vector<8x64xf32> -> vector<8x64xf32>
    %1143 = vector.extract_strided_slice %1128 {offsets = [0, 128], sizes = [8, 64], strides = [1, 1]} : vector<8x256xf32> to vector<8x64xf32>
    %1144 = math.tanh %1143 : vector<8x64xf32>
    %1145 = vector.extract_strided_slice %1128 {offsets = [0, 192], sizes = [8, 64], strides = [1, 1]} : vector<8x256xf32> to vector<8x64xf32>
    %cst_332 = arith.constant 0.000000e+00 : f32
    %1146 = vector.broadcast %cst_332 : f32 to vector<8x64xf32>
    %1147 = arith.subf %1146, %1145 : vector<8x64xf32>
    %1148 = math.exp %1147 : vector<8x64xf32>
    %cst_333 = arith.constant 1.000000e+00 : f32
    %1149 = vector.broadcast %cst_333 : f32 to vector<8x64xf32>
    %1150 = arith.addf %1149, %1148 : vector<8x64xf32>
    %1151 = tpu.reciprocal %1150 {approx = true} : vector<8x64xf32> -> vector<8x64xf32>
    %1152 = arith.mulf %1142, %1112 : vector<8x64xf32>
    %1153 = arith.mulf %1135, %1144 : vector<8x64xf32>
    %1154 = arith.addf %1152, %1153 : vector<8x64xf32>
    %1155 = math.tanh %1154 : vector<8x64xf32>
    %1156 = arith.mulf %1151, %1155 : vector<8x64xf32>
    %c17_i32_334 = arith.constant 17 : i32
    %1157 = arith.subi %c29_i32, %c17_i32_334 : i32
    %c8_i32_335 = arith.constant 8 : i32
    %1158 = arith.muli %1157, %c8_i32_335 : i32
    %1159 = tpu.assume_multiple %1158, 8 : i32
    %cst_336 = arith.constant dense<0.000000e+00> : vector<8x128xf32>
    %1160 = tpu.matmul %1156, %2, %cst_336 {dimension_numbers = #tpu.dot_dimension_numbers<[1], [0], [0], [1], [0, 0, 1, 1], [], []>} : vector<8x64xf32>, vector<64x128xf32>, vector<8x128xf32> -> vector<8x128xf32>
    %1161 = arith.addf %1160, %5 : vector<8x128xf32>
    %1162 = arith.index_cast %1159 : i32 to index
    %c0_337 = arith.constant 0 : index
    %1163 = vector.load %arg7[%1162, %c0_337] : memref<128x128xf32, #tpu.memory_space<vmem>>, vector<8x128xf32>
    tpu.vector_store %arg7[%1162, %c0_337], %1161 {strides = array<i32>} : memref<128x128xf32, #tpu.memory_space<vmem>>, vector<8x128xf32>,
    %c30_i32 = arith.constant 30 : i32
    %c8_i32_338 = arith.constant 8 : i32
    %1164 = arith.muli %c30_i32, %c8_i32_338 : i32
    %1165 = tpu.assume_multiple %1164, 8 : i32
    %1166 = arith.truncf %1156 : vector<8x64xf32> to vector<8x64xbf16>
    %cst_339 = arith.constant dense<0.000000e+00> : vector<8x256xf32>
    %1167 = tpu.matmul %1166, %1, %cst_339 {dimension_numbers = #tpu.dot_dimension_numbers<[1], [0], [0], [1], [0, 0, 1, 1], [], []>} : vector<8x64xbf16>, vector<64x256xbf16>, vector<8x256xf32> -> vector<8x256xf32>
    %1168 = arith.index_cast %1165 : i32 to index
    %c0_340 = arith.constant 0 : index
    %1169 = vector.load %arg8[%1168, %c0_340] : memref<264x256xf32, #tpu.memory_space<vmem>>, vector<8x256xf32>
    %1170 = arith.addf %1169, %1167 : vector<8x256xf32>
    %1171 = vector.extract_strided_slice %1170 {offsets = [0, 0], sizes = [8, 64], strides = [1, 1]} : vector<8x256xf32> to vector<8x64xf32>
    %cst_341 = arith.constant 0.000000e+00 : f32
    %1172 = vector.broadcast %cst_341 : f32 to vector<8x64xf32>
    %1173 = arith.subf %1172, %1171 : vector<8x64xf32>
    %1174 = math.exp %1173 : vector<8x64xf32>
    %cst_342 = arith.constant 1.000000e+00 : f32
    %1175 = vector.broadcast %cst_342 : f32 to vector<8x64xf32>
    %1176 = arith.addf %1175, %1174 : vector<8x64xf32>
    %1177 = tpu.reciprocal %1176 {approx = true} : vector<8x64xf32> -> vector<8x64xf32>
    %1178 = vector.extract_strided_slice %1170 {offsets = [0, 64], sizes = [8, 64], strides = [1, 1]} : vector<8x256xf32> to vector<8x64xf32>
    %cst_343 = arith.constant 0.000000e+00 : f32
    %1179 = vector.broadcast %cst_343 : f32 to vector<8x64xf32>
    %1180 = arith.subf %1179, %1178 : vector<8x64xf32>
    %1181 = math.exp %1180 : vector<8x64xf32>
    %cst_344 = arith.constant 1.000000e+00 : f32
    %1182 = vector.broadcast %cst_344 : f32 to vector<8x64xf32>
    %1183 = arith.addf %1182, %1181 : vector<8x64xf32>
    %1184 = tpu.reciprocal %1183 {approx = true} : vector<8x64xf32> -> vector<8x64xf32>
    %1185 = vector.extract_strided_slice %1170 {offsets = [0, 128], sizes = [8, 64], strides = [1, 1]} : vector<8x256xf32> to vector<8x64xf32>
    %1186 = math.tanh %1185 : vector<8x64xf32>
    %1187 = vector.extract_strided_slice %1170 {offsets = [0, 192], sizes = [8, 64], strides = [1, 1]} : vector<8x256xf32> to vector<8x64xf32>
    %cst_345 = arith.constant 0.000000e+00 : f32
    %1188 = vector.broadcast %cst_345 : f32 to vector<8x64xf32>
    %1189 = arith.subf %1188, %1187 : vector<8x64xf32>
    %1190 = math.exp %1189 : vector<8x64xf32>
    %cst_346 = arith.constant 1.000000e+00 : f32
    %1191 = vector.broadcast %cst_346 : f32 to vector<8x64xf32>
    %1192 = arith.addf %1191, %1190 : vector<8x64xf32>
    %1193 = tpu.reciprocal %1192 {approx = true} : vector<8x64xf32> -> vector<8x64xf32>
    %1194 = arith.mulf %1184, %1154 : vector<8x64xf32>
    %1195 = arith.mulf %1177, %1186 : vector<8x64xf32>
    %1196 = arith.addf %1194, %1195 : vector<8x64xf32>
    %1197 = math.tanh %1196 : vector<8x64xf32>
    %1198 = arith.mulf %1193, %1197 : vector<8x64xf32>
    %c17_i32_347 = arith.constant 17 : i32
    %1199 = arith.subi %c30_i32, %c17_i32_347 : i32
    %c8_i32_348 = arith.constant 8 : i32
    %1200 = arith.muli %1199, %c8_i32_348 : i32
    %1201 = tpu.assume_multiple %1200, 8 : i32
    %cst_349 = arith.constant dense<0.000000e+00> : vector<8x128xf32>
    %1202 = tpu.matmul %1198, %2, %cst_349 {dimension_numbers = #tpu.dot_dimension_numbers<[1], [0], [0], [1], [0, 0, 1, 1], [], []>} : vector<8x64xf32>, vector<64x128xf32>, vector<8x128xf32> -> vector<8x128xf32>
    %1203 = arith.addf %1202, %5 : vector<8x128xf32>
    %1204 = arith.index_cast %1201 : i32 to index
    %c0_350 = arith.constant 0 : index
    %1205 = vector.load %arg7[%1204, %c0_350] : memref<128x128xf32, #tpu.memory_space<vmem>>, vector<8x128xf32>
    tpu.vector_store %arg7[%1204, %c0_350], %1203 {strides = array<i32>} : memref<128x128xf32, #tpu.memory_space<vmem>>, vector<8x128xf32>,
    %c31_i32 = arith.constant 31 : i32
    %c8_i32_351 = arith.constant 8 : i32
    %1206 = arith.muli %c31_i32, %c8_i32_351 : i32
    %1207 = tpu.assume_multiple %1206, 8 : i32
    %1208 = arith.truncf %1198 : vector<8x64xf32> to vector<8x64xbf16>
    %cst_352 = arith.constant dense<0.000000e+00> : vector<8x256xf32>
    %1209 = tpu.matmul %1208, %1, %cst_352 {dimension_numbers = #tpu.dot_dimension_numbers<[1], [0], [0], [1], [0, 0, 1, 1], [], []>} : vector<8x64xbf16>, vector<64x256xbf16>, vector<8x256xf32> -> vector<8x256xf32>
    %1210 = arith.index_cast %1207 : i32 to index
    %c0_353 = arith.constant 0 : index
    %1211 = vector.load %arg8[%1210, %c0_353] : memref<264x256xf32, #tpu.memory_space<vmem>>, vector<8x256xf32>
    %1212 = arith.addf %1211, %1209 : vector<8x256xf32>
    %1213 = vector.extract_strided_slice %1212 {offsets = [0, 0], sizes = [8, 64], strides = [1, 1]} : vector<8x256xf32> to vector<8x64xf32>
    %cst_354 = arith.constant 0.000000e+00 : f32
    %1214 = vector.broadcast %cst_354 : f32 to vector<8x64xf32>
    %1215 = arith.subf %1214, %1213 : vector<8x64xf32>
    %1216 = math.exp %1215 : vector<8x64xf32>
    %cst_355 = arith.constant 1.000000e+00 : f32
    %1217 = vector.broadcast %cst_355 : f32 to vector<8x64xf32>
    %1218 = arith.addf %1217, %1216 : vector<8x64xf32>
    %1219 = tpu.reciprocal %1218 {approx = true} : vector<8x64xf32> -> vector<8x64xf32>
    %1220 = vector.extract_strided_slice %1212 {offsets = [0, 64], sizes = [8, 64], strides = [1, 1]} : vector<8x256xf32> to vector<8x64xf32>
    %cst_356 = arith.constant 0.000000e+00 : f32
    %1221 = vector.broadcast %cst_356 : f32 to vector<8x64xf32>
    %1222 = arith.subf %1221, %1220 : vector<8x64xf32>
    %1223 = math.exp %1222 : vector<8x64xf32>
    %cst_357 = arith.constant 1.000000e+00 : f32
    %1224 = vector.broadcast %cst_357 : f32 to vector<8x64xf32>
    %1225 = arith.addf %1224, %1223 : vector<8x64xf32>
    %1226 = tpu.reciprocal %1225 {approx = true} : vector<8x64xf32> -> vector<8x64xf32>
    %1227 = vector.extract_strided_slice %1212 {offsets = [0, 128], sizes = [8, 64], strides = [1, 1]} : vector<8x256xf32> to vector<8x64xf32>
    %1228 = math.tanh %1227 : vector<8x64xf32>
    %1229 = vector.extract_strided_slice %1212 {offsets = [0, 192], sizes = [8, 64], strides = [1, 1]} : vector<8x256xf32> to vector<8x64xf32>
    %cst_358 = arith.constant 0.000000e+00 : f32
    %1230 = vector.broadcast %cst_358 : f32 to vector<8x64xf32>
    %1231 = arith.subf %1230, %1229 : vector<8x64xf32>
    %1232 = math.exp %1231 : vector<8x64xf32>
    %cst_359 = arith.constant 1.000000e+00 : f32
    %1233 = vector.broadcast %cst_359 : f32 to vector<8x64xf32>
    %1234 = arith.addf %1233, %1232 : vector<8x64xf32>
    %1235 = tpu.reciprocal %1234 {approx = true} : vector<8x64xf32> -> vector<8x64xf32>
    %1236 = arith.mulf %1226, %1196 : vector<8x64xf32>
    %1237 = arith.mulf %1219, %1228 : vector<8x64xf32>
    %1238 = arith.addf %1236, %1237 : vector<8x64xf32>
    %1239 = math.tanh %1238 : vector<8x64xf32>
    %1240 = arith.mulf %1235, %1239 : vector<8x64xf32>
    %c17_i32_360 = arith.constant 17 : i32
    %1241 = arith.subi %c31_i32, %c17_i32_360 : i32
    %c8_i32_361 = arith.constant 8 : i32
    %1242 = arith.muli %1241, %c8_i32_361 : i32
    %1243 = tpu.assume_multiple %1242, 8 : i32
    %cst_362 = arith.constant dense<0.000000e+00> : vector<8x128xf32>
    %1244 = tpu.matmul %1240, %2, %cst_362 {dimension_numbers = #tpu.dot_dimension_numbers<[1], [0], [0], [1], [0, 0, 1, 1], [], []>} : vector<8x64xf32>, vector<64x128xf32>, vector<8x128xf32> -> vector<8x128xf32>
    %1245 = arith.addf %1244, %5 : vector<8x128xf32>
    %1246 = arith.index_cast %1243 : i32 to index
    %c0_363 = arith.constant 0 : index
    %1247 = vector.load %arg7[%1246, %c0_363] : memref<128x128xf32, #tpu.memory_space<vmem>>, vector<8x128xf32>
    tpu.vector_store %arg7[%1246, %c0_363], %1245 {strides = array<i32>} : memref<128x128xf32, #tpu.memory_space<vmem>>, vector<8x128xf32>,
    %c32_i32_364 = arith.constant 32 : i32
    %c8_i32_365 = arith.constant 8 : i32
    %1248 = arith.muli %c32_i32_364, %c8_i32_365 : i32
    %1249 = tpu.assume_multiple %1248, 8 : i32
    %1250 = arith.truncf %1240 : vector<8x64xf32> to vector<8x64xbf16>
    %cst_366 = arith.constant dense<0.000000e+00> : vector<8x256xf32>
    %1251 = tpu.matmul %1250, %1, %cst_366 {dimension_numbers = #tpu.dot_dimension_numbers<[1], [0], [0], [1], [0, 0, 1, 1], [], []>} : vector<8x64xbf16>, vector<64x256xbf16>, vector<8x256xf32> -> vector<8x256xf32>
    %1252 = arith.index_cast %1249 : i32 to index
    %c0_367 = arith.constant 0 : index
    %1253 = vector.load %arg8[%1252, %c0_367] : memref<264x256xf32, #tpu.memory_space<vmem>>, vector<8x256xf32>
    %1254 = arith.addf %1253, %1251 : vector<8x256xf32>
    %1255 = vector.extract_strided_slice %1254 {offsets = [0, 0], sizes = [8, 64], strides = [1, 1]} : vector<8x256xf32> to vector<8x64xf32>
    %cst_368 = arith.constant 0.000000e+00 : f32
    %1256 = vector.broadcast %cst_368 : f32 to vector<8x64xf32>
    %1257 = arith.subf %1256, %1255 : vector<8x64xf32>
    %1258 = math.exp %1257 : vector<8x64xf32>
    %cst_369 = arith.constant 1.000000e+00 : f32
    %1259 = vector.broadcast %cst_369 : f32 to vector<8x64xf32>
    %1260 = arith.addf %1259, %1258 : vector<8x64xf32>
    %1261 = tpu.reciprocal %1260 {approx = true} : vector<8x64xf32> -> vector<8x64xf32>
    %1262 = vector.extract_strided_slice %1254 {offsets = [0, 64], sizes = [8, 64], strides = [1, 1]} : vector<8x256xf32> to vector<8x64xf32>
    %cst_370 = arith.constant 0.000000e+00 : f32
    %1263 = vector.broadcast %cst_370 : f32 to vector<8x64xf32>
    %1264 = arith.subf %1263, %1262 : vector<8x64xf32>
    %1265 = math.exp %1264 : vector<8x64xf32>
    %cst_371 = arith.constant 1.000000e+00 : f32
    %1266 = vector.broadcast %cst_371 : f32 to vector<8x64xf32>
    %1267 = arith.addf %1266, %1265 : vector<8x64xf32>
    %1268 = tpu.reciprocal %1267 {approx = true} : vector<8x64xf32> -> vector<8x64xf32>
    %1269 = vector.extract_strided_slice %1254 {offsets = [0, 128], sizes = [8, 64], strides = [1, 1]} : vector<8x256xf32> to vector<8x64xf32>
    %1270 = math.tanh %1269 : vector<8x64xf32>
    %1271 = vector.extract_strided_slice %1254 {offsets = [0, 192], sizes = [8, 64], strides = [1, 1]} : vector<8x256xf32> to vector<8x64xf32>
    %cst_372 = arith.constant 0.000000e+00 : f32
    %1272 = vector.broadcast %cst_372 : f32 to vector<8x64xf32>
    %1273 = arith.subf %1272, %1271 : vector<8x64xf32>
    %1274 = math.exp %1273 : vector<8x64xf32>
    %cst_373 = arith.constant 1.000000e+00 : f32
    %1275 = vector.broadcast %cst_373 : f32 to vector<8x64xf32>
    %1276 = arith.addf %1275, %1274 : vector<8x64xf32>
    %1277 = tpu.reciprocal %1276 {approx = true} : vector<8x64xf32> -> vector<8x64xf32>
    %1278 = arith.mulf %1268, %1238 : vector<8x64xf32>
    %1279 = arith.mulf %1261, %1270 : vector<8x64xf32>
    %1280 = arith.addf %1278, %1279 : vector<8x64xf32>
    %1281 = math.tanh %1280 : vector<8x64xf32>
    %1282 = arith.mulf %1277, %1281 : vector<8x64xf32>
    %c17_i32_374 = arith.constant 17 : i32
    %1283 = arith.subi %c32_i32_364, %c17_i32_374 : i32
    %c8_i32_375 = arith.constant 8 : i32
    %1284 = arith.muli %1283, %c8_i32_375 : i32
    %1285 = tpu.assume_multiple %1284, 8 : i32
    %cst_376 = arith.constant dense<0.000000e+00> : vector<8x128xf32>
    %1286 = tpu.matmul %1282, %2, %cst_376 {dimension_numbers = #tpu.dot_dimension_numbers<[1], [0], [0], [1], [0, 0, 1, 1], [], []>} : vector<8x64xf32>, vector<64x128xf32>, vector<8x128xf32> -> vector<8x128xf32>
    %1287 = arith.addf %1286, %5 : vector<8x128xf32>
    %1288 = arith.index_cast %1285 : i32 to index
    %c0_377 = arith.constant 0 : index
    %1289 = vector.load %arg7[%1288, %c0_377] : memref<128x128xf32, #tpu.memory_space<vmem>>, vector<8x128xf32>
    tpu.vector_store %arg7[%1288, %c0_377], %1287 {strides = array<i32>} : memref<128x128xf32, #tpu.memory_space<vmem>>, vector<8x128xf32>,
    %c16_i32_378 = arith.constant 16 : i32
    return
  }
  func.func @transform_0(%arg0: i32) -> (i32, i32) {
    %c0_i32 = arith.constant 0 : i32
    %c0_i32_0 = arith.constant 0 : i32
    %c0_i32_1 = arith.constant 0 : i32
    return %c0_i32, %c0_i32_0 : i32, i32
  }
  func.func @transform_1(%arg0: i32) -> (i32, i32) {
    %c0_i32 = arith.constant 0 : i32
    %c0_i32_0 = arith.constant 0 : i32
    %c0_i32_1 = arith.constant 0 : i32
    return %c0_i32, %c0_i32_0 : i32, i32
  }
  func.func @transform_2(%arg0: i32) -> (i32, i32) {
    %c0_i32 = arith.constant 0 : i32
    %c0_i32_0 = arith.constant 0 : i32
    %c0_i32_1 = arith.constant 0 : i32
    return %c0_i32, %c0_i32_0 : i32, i32
  }
  func.func @transform_3(%arg0: i32) -> (i32, i32) {
    %c0_i32 = arith.constant 0 : i32
    %c0_i32_0 = arith.constant 0 : i32
    %c0_i32_1 = arith.constant 0 : i32
    return %c0_i32, %c0_i32_0 : i32, i32
  }
  func.func @transform_4(%arg0: i32) -> (i32, i32) {
    %c0_i32 = arith.constant 0 : i32
    %c0_i32_0 = arith.constant 0 : i32
    %c0_i32_1 = arith.constant 0 : i32
    return %c0_i32, %c0_i32_0 : i32, i32
  }
  func.func @transform_5(%arg0: i32) -> (i32, i32) {
    %c0_i32 = arith.constant 0 : i32
    %c0_i32_0 = arith.constant 0 : i32
    %c0_i32_1 = arith.constant 0 : i32
    return %c0_i32, %c0_i32_0 : i32, i32
  }
  func.func @transform_6(%arg0: i32) -> (i32, i32) {
    %c0_i32 = arith.constant 0 : i32
    %c0_i32_0 = arith.constant 0 : i32
    %c0_i32_1 = arith.constant 0 : i32
    return %c0_i32, %c0_i32_0 : i32, i32
  }
}

</mosaic_0001>

<llo_original>
// kernel: circular_mesh_lstm_forward.1
$region0: #{circular_mesh_lstm_forward.1}
  #allocation0 [shape = 'u32[]', space=smem, size = 0x4, offset = 0x4, fixed_abs, tag = 'smem constant byte address 0x4 - core index']
  #allocation1 [shape = 'u32[144,128]{1,0:T(1,128)}', space=vmem, size = 0x12000, scoped, tag = 'internal scratch']
  #allocation2 [shape = 'f32[264,256]{1,0:T(8,128)}', space=vmem, size = 0x42000, scoped, tag = 'scratch operand']
  %s0 = inlined_call_operand.vmem [shape: f32[128,4], index: 0, kind: input, shape index: {}]
  %s1 = inlined_call_operand.vmem [shape: f32[4,256], index: 1, kind: input, shape index: {}]
  %s2 = inlined_call_operand.vmem [shape: f32[1,256], index: 2, kind: input, shape index: {}]
  %s3 = inlined_call_operand.vmem [shape: bf16[64,256], index: 3, kind: input, shape index: {}]
  %s4 = inlined_call_operand.vmem [shape: f32[64,128], index: 4, kind: input, shape index: {}]
  %s5 = inlined_call_operand.vmem [shape: f32[1,128], index: 5, kind: input, shape index: {}]
  %s6 = inlined_call_operand.vmem [shape: f32[128,128], index: 6, kind: output, shape index: {}]
  %s7 = sld [smem:[#allocation0]]
  $region34: #{circular_mesh_lstm_forward.1} parent=0
    _
  %s9 = ssub.s32 1, %s7
  %s10 = scalar_select 0, %s9, %s7
  // Predicated region
  $region2: #{circular_mesh_lstm_forward.1} parent=0 // pred_check
    _
  $region3: #{circular_mesh_lstm_forward.1} parent=0 // pred_check_branch
    %12 = sbr.rel (0) target = $region5
  $region4: #{circular_mesh_lstm_forward.1} parent=0 // pred_region
    _
  $region5: #{circular_mesh_lstm_forward.1} parent=0 // pred_fallthru
    _
  // Predicated region
  $region6: #{circular_mesh_lstm_forward.1} parent=0 // pred_check
    _
  $region7: #{circular_mesh_lstm_forward.1} parent=0 // pred_check_branch
    %14 = sbr.rel (0) target = $region9
  $region8: #{circular_mesh_lstm_forward.1} parent=0 // pred_region
    _
  $region9: #{circular_mesh_lstm_forward.1} parent=0 // pred_fallthru
    _
  // Predicated region
  $region10: #{circular_mesh_lstm_forward.1} parent=0 // pred_check
    _
  $region11: #{circular_mesh_lstm_forward.1} parent=0 // pred_check_branch
    %16 = sbr.rel (0) target = $region13
  $region12: #{circular_mesh_lstm_forward.1} parent=0 // pred_region
    _
  $region13: #{circular_mesh_lstm_forward.1} parent=0 // pred_fallthru
    _
  // Predicated region
  $region14: #{circular_mesh_lstm_forward.1} parent=0 // pred_check
    _
  $region15: #{circular_mesh_lstm_forward.1} parent=0 // pred_check_branch
    %18 = sbr.rel (0) target = $region17
  $region16: #{circular_mesh_lstm_forward.1} parent=0 // pred_region
    _
  $region17: #{circular_mesh_lstm_forward.1} parent=0 // pred_fallthru
    _
  // Predicated region
  $region18: #{circular_mesh_lstm_forward.1} parent=0 // pred_check
    _
  $region19: #{circular_mesh_lstm_forward.1} parent=0 // pred_check_branch
    %20 = sbr.rel (0) target = $region21
  $region20: #{circular_mesh_lstm_forward.1} parent=0 // pred_region
    _
  $region21: #{circular_mesh_lstm_forward.1} parent=0 // pred_fallthru
    _
  // Predicated region
  $region22: #{circular_mesh_lstm_forward.1} parent=0 // pred_check
    _
  $region23: #{circular_mesh_lstm_forward.1} parent=0 // pred_check_branch
    %22 = sbr.rel (0) target = $region25
  $region24: #{circular_mesh_lstm_forward.1} parent=0 // pred_region
    _
  $region25: #{circular_mesh_lstm_forward.1} parent=0 // pred_fallthru
    _
  %v24 = vld [vmem:[%s2] sm:$0x3]
  %v25 = vld [vmem:[%s3] sm:$0xff]
  %v26 = vld [vmem:[%s3 + $0x8] sm:$0xff]
  %v27 = vld [vmem:[%s3 + $0x10] sm:$0xff]
  %v28 = vld [vmem:[%s3 + $0x18] sm:$0xff]
  %v29 = vld [vmem:[%s3 + $0x20] sm:$0xff]
  %v30 = vld [vmem:[%s3 + $0x28] sm:$0xff]
  %v31 = vld [vmem:[%s3 + $0x30] sm:$0xff]
  %v32 = vld [vmem:[%s3 + $0x38] sm:$0xff]
  %v33 = vld [vmem:[%s4] sm:$0xff]
  %v34 = vld [vmem:[%s4 + $0x8] sm:$0xff]
  %v35 = vld [vmem:[%s4 + $0x10] sm:$0xff]
  %v36 = vld [vmem:[%s4 + $0x18] sm:$0xff]
  %v37 = vld [vmem:[%s4 + $0x20] sm:$0xff]
  %v38 = vld [vmem:[%s4 + $0x28] sm:$0xff]
  %v39 = vld [vmem:[%s4 + $0x30] sm:$0xff]
  %v40 = vld [vmem:[%s4 + $0x38] sm:$0xff]
  %v41 = vld [vmem:[%s5] sm:$0x1]
  %v43 = vlaneseq
  %v44 = vshrl.u32 %v43, 7
  %v45 = vsub.s32 0, %v44
  %v46 = vrot.slane %v41, %v45
  %v48 = vld [vmem:[%s0] sm:$0xff]
  %v49 = vld [vmem:[%s0 + $0x8] sm:$0xff]
  %v50 = vld [vmem:[%s0 + $0x10] sm:$0xff]
  %v51 = vld [vmem:[%s0 + $0x18] sm:$0xff]
  %v52 = vld [vmem:[%s0 + $0x20] sm:$0xff]
  %v53 = vld [vmem:[%s0 + $0x28] sm:$0xff]
  %v54 = vld [vmem:[%s0 + $0x30] sm:$0xff]
  %v55 = vld [vmem:[%s0 + $0x38] sm:$0xff]
  %v56 = vld [vmem:[%s0 + $0x40] sm:$0xff]
  %v57 = vld [vmem:[%s0 + $0x48] sm:$0xff]
  %v58 = vld [vmem:[%s0 + $0x50] sm:$0xff]
  %v59 = vld [vmem:[%s0 + $0x58] sm:$0xff]
  %v60 = vld [vmem:[%s0 + $0x60] sm:$0xff]
  %v61 = vld [vmem:[%s0 + $0x68] sm:$0xff]
  %v62 = vld [vmem:[%s0 + $0x70] sm:$0xff]
  %v63 = vld [vmem:[%s0 + $0x78] sm:$0xff]
  %v64 = vld [vmem:[%s1] sm:$0xff]
  %v66 = vlaneseq
  %v67 = vshrl.u32 %v66, 7
  %v68 = vsub.s32 0, %v67
  %v69 = vrot.slane %v24, %v68
  %v70 = vlaneseq
  %v71 = vshrl.u32 %v70, 7
  %v72 = vsub.s32 1, %v71
  %v73 = vrot.slane %v24, %v72
  %v77 = vcombine.high %v64, %v64
  %vm78 = vcmask 31744
  %v80 = vsel %vm78, %v48, 0
  %v83 = vsel %vm78, %v49, 0
  %v86 = vsel %vm78, %v50, 0
  %v89 = vsel %vm78, %v51, 0
  %v92 = vsel %vm78, %v52, 0
  %v95 = vsel %vm78, %v53, 0
  %v98 = vsel %vm78, %v54, 0
  %v101 = vsel %vm78, %v55, 0
  %v104 = vsel %vm78, %v56, 0
  %v107 = vsel %vm78, %v57, 0
  %v110 = vsel %vm78, %v58, 0
  %v113 = vsel %vm78, %v59, 0
  %v116 = vsel %vm78, %v60, 0
  %v119 = vsel %vm78, %v61, 0
  %v122 = vsel %vm78, %v62, 0
  %v125 = vsel %vm78, %v63, 0
  %vm127 = vcmask 1043456
  %v128 = vsel %vm127, %v64, 0
  %v130 = vsel %vm127, %v77, 0
  %132 = vmatprep.subr.mxu0 0.0
  %133 = vmatpush1.msra.mxu0 0.0
  %134 = vmatprep.subr.mxu0 0.0
  %135 = vmatpush1.msra.mxu0 0.0
  %136 = vmatprep.subr.mxu0 0.0
  %137 = vmatpush1.msra.mxu0 0.0
  %138 = vmatprep.subr.mxu0 0.0
  %139 = vmatpush1.msra.mxu0 0.0
  %140 = vmatprep.subr.mxu0 0.0
  %141 = vmatpush1.msra.mxu0 0.0
  %142 = vmatprep.subr.mxu0 0.0
  %143 = vmatpush1.msra.mxu0 0.0
  %144 = vmatprep.subr.mxu0 0.0
  %145 = vmatpush1.msra.mxu0 0.0
  %146 = vmatprep.subr.mxu0 0.0
  %147 = vmatpush1.msra.mxu0 0.0
  %148 = vmatprep.subr.mxu0 0.0
  %149 = vmatpush1.msra.mxu0 0.0
  %150 = vmatprep.subr.mxu0 0.0
  %151 = vmatpush1.msra.mxu0 0.0
  %152 = vmatprep.subr.mxu0 0.0
  %153 = vmatpush1.msra.mxu0 0.0
  %154 = vmatprep.subr.mxu0 0.0
  %155 = vmatpush1.msra.mxu0 0.0
  %156 = vmatprep.subr.mxu0 0.0
  %157 = vmatpush1.msra.mxu0 0.0
  %158 = vmatprep.subr.mxu0 0.0
  %159 = vmatpush1.msra.mxu0 0.0
  %160 = vmatprep.subr.mxu0 0.0
  %161 = vmatpush1.msra.mxu0 0.0
  %162 = vmatprep.subr.mxu0 %v130
  %163 = vmatpush1.msra.mxu0 %v128
  %164 = vmatprep.subr.mxu0 0.0
  %165 = vmatpush2.msra.mxu0 0.0
  %166 = vmatprep.subr.mxu0 0.0
  %167 = vmatpush2.msra.mxu0 0.0
  %168 = vmatprep.subr.mxu0 0.0
  %169 = vmatpush2.msra.mxu0 0.0
  %170 = vmatprep.subr.mxu0 0.0
  %171 = vmatpush2.msra.mxu0 0.0
  %172 = vmatprep.subr.mxu0 0.0
  %173 = vmatpush2.msra.mxu0 0.0
  %174 = vmatprep.subr.mxu0 0.0
  %175 = vmatpush2.msra.mxu0 0.0
  %176 = vmatprep.subr.mxu0 0.0
  %177 = vmatpush2.msra.mxu0 0.0
  %178 = vmatprep.subr.mxu0 0.0
  %179 = vmatpush2.msra.mxu0 0.0
  %180 = vmatprep.subr.mxu0 0.0
  %181 = vmatpush2.msra.mxu0 0.0
  %182 = vmatprep.subr.mxu0 0.0
  %183 = vmatpush2.msra.mxu0 0.0
  %184 = vmatprep.subr.mxu0 0.0
  %185 = vmatpush2.msra.mxu0 0.0
  %186 = vmatprep.subr.mxu0 0.0
  %187 = vmatpush2.msra.mxu0 0.0
  %188 = vmatprep.subr.mxu0 0.0
  %189 = vmatpush2.msra.mxu0 0.0
  %190 = vmatprep.subr.mxu0 0.0
  %191 = vmatpush2.msra.mxu0 0.0
  %192 = vmatprep.subr.mxu0 0.0
  %193 = vmatpush2.msra.mxu0 0.0
  %194 = vmatprep.subr.mxu0 0.0
  %195 = vmatpush2.msra.mxu0 0.0
  %196 = vmatprep.mubr.f32.mxu0 0.0
  %197 = vmatmul.mubr.f32.gmra.mxu0 %v80
  %v198 = vpop.f32.mrf.mxu0
  %v199 = vadd.f32 %v69, %v198
  %v200 = vpop.f32.mrf.mxu0
  %v201 = vadd.f32 %v73, %v200
  %202 = vmatprep.mubr.f32.mxu0 0.0
  %203 = vmatmul.mubr.f32.gmra.mxu0 %v83
  %v204 = vpop.f32.mrf.mxu0
  %v205 = vadd.f32 %v69, %v204
  %v206 = vpop.f32.mrf.mxu0
  %v207 = vadd.f32 %v73, %v206
  %208 = vmatprep.mubr.f32.mxu0 0.0
  %209 = vmatmul.mubr.f32.gmra.mxu0 %v86
  %v210 = vpop.f32.mrf.mxu0
  %v211 = vadd.f32 %v69, %v210
  %v212 = vpop.f32.mrf.mxu0
  %v213 = vadd.f32 %v73, %v212
  %214 = vmatprep.mubr.f32.mxu0 0.0
  %215 = vmatmul.mubr.f32.gmra.mxu0 %v89
  %v216 = vpop.f32.mrf.mxu0
  %v217 = vadd.f32 %v69, %v216
  %v218 = vpop.f32.mrf.mxu0
  %v219 = vadd.f32 %v73, %v218
  %220 = vmatprep.mubr.f32.mxu0 0.0
  %221 = vmatmul.mubr.f32.gmra.mxu0 %v92
  %v222 = vpop.f32.mrf.mxu0
  %v223 = vadd.f32 %v69, %v222
  %v224 = vpop.f32.mrf.mxu0
  %v225 = vadd.f32 %v73, %v224
  %226 = vmatprep.mubr.f32.mxu0 0.0
  %227 = vmatmul.mubr.f32.gmra.mxu0 %v95
  %v228 = vpop.f32.mrf.mxu0
  %v229 = vadd.f32 %v69, %v228
  %v230 = vpop.f32.mrf.mxu0
  %v231 = vadd.f32 %v73, %v230
  %232 = vmatprep.mubr.f32.mxu0 0.0
  %233 = vmatmul.mubr.f32.gmra.mxu0 %v98
  %v234 = vpop.f32.mrf.mxu0
  %v235 = vadd.f32 %v69, %v234
  %v236 = vpop.f32.mrf.mxu0
  %v237 = vadd.f32 %v73, %v236
  %238 = vmatprep.mubr.f32.mxu0 0.0
  %239 = vmatmul.mubr.f32.gmra.mxu0 %v101
  %v240 = vpop.f32.mrf.mxu0
  %v241 = vadd.f32 %v69, %v240
  %v242 = vpop.f32.mrf.mxu0
  %v243 = vadd.f32 %v73, %v242
  %244 = vmatprep.mubr.f32.mxu0 0.0
  %245 = vmatmul.mubr.f32.gmra.mxu0 %v104
  %v246 = vpop.f32.mrf.mxu0
  %v247 = vadd.f32 %v69, %v246
  %v248 = vpop.f32.mrf.mxu0
  %v249 = vadd.f32 %v73, %v248
  %250 = vmatprep.mubr.f32.mxu0 0.0
  %251 = vmatmul.mubr.f32.gmra.mxu0 %v107
  %v252 = vpop.f32.mrf.mxu0
  %v253 = vadd.f32 %v69, %v252
  %v254 = vpop.f32.mrf.mxu0
  %v255 = vadd.f32 %v73, %v254
  %256 = vmatprep.mubr.f32.mxu0 0.0
  %257 = vmatmul.mubr.f32.gmra.mxu0 %v110
  %v258 = vpop.f32.mrf.mxu0
  %v259 = vadd.f32 %v69, %v258
  %v260 = vpop.f32.mrf.mxu0
  %v261 = vadd.f32 %v73, %v260
  %262 = vmatprep.mubr.f32.mxu0 0.0
  %263 = vmatmul.mubr.f32.gmra.mxu0 %v113
  %v264 = vpop.f32.mrf.mxu0
  %v265 = vadd.f32 %v69, %v264
  %v266 = vpop.f32.mrf.mxu0
  %v267 = vadd.f32 %v73, %v266
  %268 = vmatprep.mubr.f32.mxu0 0.0
  %269 = vmatmul.mubr.f32.gmra.mxu0 %v116
  %v270 = vpop.f32.mrf.mxu0
  %v271 = vadd.f32 %v69, %v270
  %v272 = vpop.f32.mrf.mxu0
  %v273 = vadd.f32 %v73, %v272
  %274 = vmatprep.mubr.f32.mxu0 0.0
  %275 = vmatmul.mubr.f32.gmra.mxu0 %v119
  %v276 = vpop.f32.mrf.mxu0
  %v277 = vadd.f32 %v69, %v276
  %v278 = vpop.f32.mrf.mxu0
  %v279 = vadd.f32 %v73, %v278
  %280 = vmatprep.mubr.f32.mxu0 0.0
  %281 = vmatmul.mubr.f32.gmra.mxu0 %v122
  %v282 = vpop.f32.mrf.mxu0
  %v283 = vadd.f32 %v69, %v282
  %v284 = vpop.f32.mrf.mxu0
  %v285 = vadd.f32 %v73, %v284
  %286 = vmatprep.mubr.f32.mxu0 0.0
  %287 = vmatmul.mubr.f32.gmra.mxu0 %v125
  %v288 = vpop.f32.mrf.mxu0
  %v289 = vadd.f32 %v69, %v288
  %v290 = vpop.f32.mrf.mxu0
  %v291 = vadd.f32 %v73, %v290
  %292 = vdwg.mxu0
  %293 = vst [vmem:[#allocation2] sm:$0xff] %v199
  %294 = vst [vmem:[#allocation2 + $0x8] sm:$0xff] %v201
  %295 = vst [vmem:[#allocation2 + $0x10] sm:$0xff] %v205
  %296 = vst [vmem:[#allocation2 + $0x18] sm:$0xff] %v207
  %297 = vst [vmem:[#allocation2 + $0x20] sm:$0xff] %v211
  %298 = vst [vmem:[#allocation2 + $0x28] sm:$0xff] %v213
  %299 = vst [vmem:[#allocation2 + $0x30] sm:$0xff] %v217
  %300 = vst [vmem:[#allocation2 + $0x38] sm:$0xff] %v219
  %301 = vst [vmem:[#allocation2 + $0x40] sm:$0xff] %v223
  %302 = vst [vmem:[#allocation2 + $0x48] sm:$0xff] %v225
  %303 = vst [vmem:[#allocation2 + $0x50] sm:$0xff] %v229
  %304 = vst [vmem:[#allocation2 + $0x58] sm:$0xff] %v231
  %305 = vst [vmem:[#allocation2 + $0x60] sm:$0xff] %v235
  %306 = vst [vmem:[#allocation2 + $0x68] sm:$0xff] %v237
  %307 = vst [vmem:[#allocation2 + $0x70] sm:$0xff] %v241
  %308 = vst [vmem:[#allocation2 + $0x78] sm:$0xff] %v243
  %309 = vst [vmem:[#allocation2 + $0x80] sm:$0xff] %v247
  %310 = vst [vmem:[#allocation2 + $0x88] sm:$0xff] %v249
  %311 = vst [vmem:[#allocation2 + $0x90] sm:$0xff] %v253
  %312 = vst [vmem:[#allocation2 + $0x98] sm:$0xff] %v255
  %313 = vst [vmem:[#allocation2 + $0xa0] sm:$0xff] %v259
  %314 = vst [vmem:[#allocation2 + $0xa8] sm:$0xff] %v261
  %315 = vst [vmem:[#allocation2 + $0xb0] sm:$0xff] %v265
  %316 = vst [vmem:[#allocation2 + $0xb8] sm:$0xff] %v267
  %317 = vst [vmem:[#allocation2 + $0xc0] sm:$0xff] %v271
  %318 = vst [vmem:[#allocation2 + $0xc8] sm:$0xff] %v273
  %319 = vst [vmem:[#allocation2 + $0xd0] sm:$0xff] %v277
  %320 = vst [vmem:[#allocation2 + $0xd8] sm:$0xff] %v279
  %321 = vst [vmem:[#allocation2 + $0xe0] sm:$0xff] %v283
  %322 = vst [vmem:[#allocation2 + $0xe8] sm:$0xff] %v285
  %323 = vst [vmem:[#allocation2 + $0xf0] sm:$0xff] %v289
  %324 = vst [vmem:[#allocation2 + $0xf8] sm:$0xff] %v291
  %325 = vst [vmem:[#allocation2 + $0x100] sm:$0xff] %v199
  %326 = vst [vmem:[#allocation2 + $0x108] sm:$0xff] %v201
  %327 = vst [vmem:[#allocation2 + $0x110] sm:$0xff] %v205
  %328 = vst [vmem:[#allocation2 + $0x118] sm:$0xff] %v207
  %329 = vst [vmem:[#allocation2 + $0x120] sm:$0xff] %v211
  %330 = vst [vmem:[#allocation2 + $0x128] sm:$0xff] %v213
  %331 = vst [vmem:[#allocation2 + $0x130] sm:$0xff] %v217
  %332 = vst [vmem:[#allocation2 + $0x138] sm:$0xff] %v219
  %333 = vst [vmem:[#allocation2 + $0x140] sm:$0xff] %v223
  %334 = vst [vmem:[#allocation2 + $0x148] sm:$0xff] %v225
  %335 = vst [vmem:[#allocation2 + $0x150] sm:$0xff] %v229
  %336 = vst [vmem:[#allocation2 + $0x158] sm:$0xff] %v231
  %337 = vst [vmem:[#allocation2 + $0x160] sm:$0xff] %v235
  %338 = vst [vmem:[#allocation2 + $0x168] sm:$0xff] %v237
  %339 = vst [vmem:[#allocation2 + $0x170] sm:$0xff] %v241
  %340 = vst [vmem:[#allocation2 + $0x178] sm:$0xff] %v243
  %341 = vst [vmem:[#allocation2 + $0x180] sm:$0xff] %v247
  %342 = vst [vmem:[#allocation2 + $0x188] sm:$0xff] %v249
  %343 = vst [vmem:[#allocation2 + $0x190] sm:$0xff] %v253
  %344 = vst [vmem:[#allocation2 + $0x198] sm:$0xff] %v255
  %345 = vst [vmem:[#allocation2 + $0x1a0] sm:$0xff] %v259
  %346 = vst [vmem:[#allocation2 + $0x1a8] sm:$0xff] %v261
  %347 = vst [vmem:[#allocation2 + $0x1b0] sm:$0xff] %v265
  %348 = vst [vmem:[#allocation2 + $0x1b8] sm:$0xff] %v267
  %349 = vst [vmem:[#allocation2 + $0x1c0] sm:$0xff] %v271
  %350 = vst [vmem:[#allocation2 + $0x1c8] sm:$0xff] %v273
  %351 = vst [vmem:[#allocation2 + $0x1d0] sm:$0xff] %v277
  %352 = vst [vmem:[#allocation2 + $0x1d8] sm:$0xff] %v279
  %353 = vst [vmem:[#allocation2 + $0x1e0] sm:$0xff] %v283
  %354 = vst [vmem:[#allocation2 + $0x1e8] sm:$0xff] %v285
  %355 = vst [vmem:[#allocation2 + $0x1f0] sm:$0xff] %v289
  %356 = vst [vmem:[#allocation2 + $0x1f8] sm:$0xff] %v291
  %357 = vst [vmem:[#allocation2 + $0x200] sm:$0xff] %v69
  %358 = vst [vmem:[#allocation2 + $0x208] sm:$0xff] %v73
  %v367 = vunpack.c.l.b16 %v25
  %v368 = vunpack.c.h.b16 %v25
  %v369 = vunpack.c.l.b16 %v26
  %v370 = vunpack.c.h.b16 %v26
  %v371 = vunpack.c.l.b16 %v27
  %v372 = vunpack.c.h.b16 %v27
  %v373 = vunpack.c.l.b16 %v28
  %v374 = vunpack.c.h.b16 %v28
  %v375 = vunpack.c.l.b16 %v29
  %v376 = vunpack.c.h.b16 %v29
  %v377 = vunpack.c.l.b16 %v30
  %v378 = vunpack.c.h.b16 %v30
  %v379 = vunpack.c.l.b16 %v31
  %v380 = vunpack.c.h.b16 %v31
  %v381 = vunpack.c.l.b16 %v32
  %v382 = vunpack.c.h.b16 %v32
  %v383 = vpack.c.b16 %v369, %v367
  %v384 = vpack.c.b16 %v370, %v368
  %v385 = vpack.c.b16 %v373, %v371
  %v386 = vpack.c.b16 %v374, %v372
  %v387 = vpack.c.b16 %v377, %v375
  %v388 = vpack.c.b16 %v378, %v376
  %v389 = vpack.c.b16 %v381, %v379
  %v390 = vpack.c.b16 %v382, %v380
  %vm399 = vcmask 523264
  %v401 = vsel %vm399, 0, 0
  %403 = vmatprep.subr.bf16.mxu0 0
  %404 = vmatpush1.bf16.msra.mxu0 0
  %405 = vmatprep.subr.bf16.mxu0 0
  %406 = vmatpush1.bf16.msra.mxu0 0
  %407 = vmatprep.subr.bf16.mxu0 0
  %408 = vmatpush1.bf16.msra.mxu0 0
  %409 = vmatprep.subr.bf16.mxu0 0
  %410 = vmatpush1.bf16.msra.mxu0 0
  %411 = vmatprep.subr.bf16.mxu0 %v390
  %412 = vmatpush1.bf16.msra.mxu0 %v389
  %413 = vmatprep.subr.bf16.mxu0 %v388
  %414 = vmatpush1.bf16.msra.mxu0 %v387
  %415 = vmatprep.subr.bf16.mxu0 %v386
  %416 = vmatpush1.bf16.msra.mxu0 %v385
  %417 = vmatprep.subr.bf16.mxu0 %v384
  %418 = vmatpush1.bf16.msra.mxu0 %v383
  %419 = vmatprep.subr.bf16.mxu0 0
  %420 = vmatpush2.bf16.msra.mxu0 0
  %421 = vmatprep.subr.bf16.mxu0 0
  %422 = vmatpush2.bf16.msra.mxu0 0
  %423 = vmatprep.subr.bf16.mxu0 0
  %424 = vmatpush2.bf16.msra.mxu0 0
  %425 = vmatprep.subr.bf16.mxu0 0
  %426 = vmatpush2.bf16.msra.mxu0 0
  %427 = vmatprep.subr.bf16.mxu0 0
  %428 = vmatpush2.bf16.msra.mxu0 0
  %429 = vmatprep.subr.bf16.mxu0 0
  %430 = vmatpush2.bf16.msra.mxu0 0
  %431 = vmatprep.subr.bf16.mxu0 0
  %432 = vmatpush2.bf16.msra.mxu0 0
  %433 = vmatprep.subr.bf16.mxu0 0
  %434 = vmatpush2.bf16.msra.mxu0 0
  %435 = vmatprep.mubr.bf16.mxu0 0
  %436 = vmatmul.mubr.bf16.gmra.mxu0 %v401
  %v437 = vpop.f32.mrf.mxu0
  %v438 = vadd.f32 0.0, %v437
  %v439 = vpop.f32.mrf.mxu0
  %v440 = vadd.f32 0.0, %v439
  %v441 = vpop.f32.mrf.mxu0
  %v442 = vpop.f32.mrf.mxu0
  %443 = vdwg.mxu0
  %s444 = smul.u32 0, 2
  %s445 = smul.addr %s444, 8
  %s446 = scalar_lea.vmem [#allocation2], %s445
  %v447 = vld [vmem:[%s446] sm:$0xff]
  %v448 = vld [vmem:[%s446 + $0x8] sm:$0xff]
  %v449 = vadd.f32 %v447, %v438
  %v450 = vadd.f32 %v448, %v440
  %v451 = vsub.f32 0.0, %v449
  %v452 = vmul.f32 %v451, 1.442695
  %v453 = vpow.pop %v452
  %v454 = vadd.f32 %v453, 1.0
  %v455 = vrcp.pop %v454
  %v456 = vtanh.pop %v450
  %v457 = vsub.f32 0.0, %v450
  %v458 = vmul.f32 %v457, 1.442695
  %v459 = vpow.pop %v458
  %v460 = vadd.f32 %v459, 1.0
  %v461 = vrcp.pop %v460
  %v462 = vmul.f32 %v455, 0.0
  %v463 = vmul.f32 %v455, %v456
  %465 = vrot.lane.b32.xlu0 %v463, 64
  %v466 = vpop.permute.xlu0 %465
  %v468 = vadd.f32 %v462, %v466
  %v469 = vtanh.pop %v468
  %v470 = vmul.f32 %v461, %v469
  %v471 = vlaneseq
  %v472 = vand.u32 %v471, 127
  %vm473 = vcmp.lt.s32.totalorder %v472, 32
  %v474 = vsel %vm473, 1, 0
  %v475 = vcvt.s32.f32 %v474
  %477 = vrot.lane.b32.xlu0 %v475, 64
  %v478 = vpop.permute.xlu0 %477
  %v480 = vmul.f32 %v470, %v478
  %v481 = vmul.f32 %v468, %v478
  %v482 = vpack.c.bf16 %v480, %v480
  %484 = vrot.lane.b32.xlu0 %v482, 64
  %v485 = vpop.permute.xlu0 %484
  %v487 = vsel %vm399, %v485, 0
  %489 = vmatprep.subr.bf16.mxu0 0
  %490 = vmatpush1.bf16.msra.mxu0 0
  %491 = vmatprep.subr.bf16.mxu0 0
  %492 = vmatpush1.bf16.msra.mxu0 0
  %493 = vmatprep.subr.bf16.mxu0 0
  %494 = vmatpush1.bf16.msra.mxu0 0
  %495 = vmatprep.subr.bf16.mxu0 0
  %496 = vmatpush1.bf16.msra.mxu0 0
  %497 = vmatprep.subr.bf16.mxu0 %v390
  %498 = vmatpush1.bf16.msra.mxu0 %v389
  %499 = vmatprep.subr.bf16.mxu0 %v388
  %500 = vmatpush1.bf16.msra.mxu0 %v387
  %501 = vmatprep.subr.bf16.mxu0 %v386
  %502 = vmatpush1.bf16.msra.mxu0 %v385
  %503 = vmatprep.subr.bf16.mxu0 %v384
  %504 = vmatpush1.bf16.msra.mxu0 %v383
  %505 = vmatprep.subr.bf16.mxu0 0
  %506 = vmatpush2.bf16.msra.mxu0 0
  %507 = vmatprep.subr.bf16.mxu0 0
  %508 = vmatpush2.bf16.msra.mxu0 0
  %509 = vmatprep.subr.bf16.mxu0 0
  %510 = vmatpush2.bf16.msra.mxu0 0
  %511 = vmatprep.subr.bf16.mxu0 0
  %512 = vmatpush2.bf16.msra.mxu0 0
  %513 = vmatprep.subr.bf16.mxu0 0
  %514 = vmatpush2.bf16.msra.mxu0 0
  %515 = vmatprep.subr.bf16.mxu0 0
  %516 = vmatpush2.bf16.msra.mxu0 0
  %517 = vmatprep.subr.bf16.mxu0 0
  %518 = vmatpush2.bf16.msra.mxu0 0
  %519 = vmatprep.subr.bf16.mxu0 0
  %520 = vmatpush2.bf16.msra.mxu0 0
  %521 = vmatprep.mubr.bf16.mxu0 0
  %522 = vmatmul.mubr.bf16.gmra.mxu0 %v487
  %v523 = vpop.f32.mrf.mxu0
  %v524 = vadd.f32 0.0, %v523
  %v525 = vpop.f32.mrf.mxu0
  %v526 = vadd.f32 0.0, %v525
  %v527 = vpop.f32.mrf.mxu0
  %v528 = vpop.f32.mrf.mxu0
  %529 = vdwg.mxu0
  %s530 = smul.u32 1, 2
  %s531 = smul.addr %s530, 8
  %s532 = scalar_lea.vmem [#allocation2], %s531
  %v533 = vld [vmem:[%s532] sm:$0xff]
  %v534 = vld [vmem:[%s532 + $0x8] sm:$0xff]
  %v535 = vadd.f32 %v533, %v524
  %v536 = vadd.f32 %v534, %v526
  %v537 = vsub.f32 0.0, %v535
  %v538 = vmul.f32 %v537, 1.442695
  %v539 = vpow.pop %v538
  %v540 = vadd.f32 %v539, 1.0
  %v541 = vrcp.pop %v540
  %v542 = vtanh.pop %v536
  %v543 = vsub.f32 0.0, %v536
  %v544 = vmul.f32 %v543, 1.442695
  %v545 = vpow.pop %v544
  %v546 = vadd.f32 %v545, 1.0
  %v547 = vrcp.pop %v546
  %v548 = vmul.f32 %v541, %v481
  %v549 = vmul.f32 %v541, %v542
  %551 = vrot.lane.b32.xlu0 %v549, 64
  %v552 = vpop.permute.xlu0 %551
  %v554 = vadd.f32 %v548, %v552
  %v555 = vtanh.pop %v554
  %v556 = vmul.f32 %v547, %v555
  %v557 = vpack.c.bf16 %v556, %v556
  %559 = vrot.lane.b32.xlu0 %v557, 64
  %v560 = vpop.permute.xlu0 %559
  %v562 = vsel %vm399, %v560, 0
  %564 = vmatprep.subr.bf16.mxu0 0
  %565 = vmatpush1.bf16.msra.mxu0 0
  %566 = vmatprep.subr.bf16.mxu0 0
  %567 = vmatpush1.bf16.msra.mxu0 0
  %568 = vmatprep.subr.bf16.mxu0 0
  %569 = vmatpush1.bf16.msra.mxu0 0
  %570 = vmatprep.subr.bf16.mxu0 0
  %571 = vmatpush1.bf16.msra.mxu0 0
  %572 = vmatprep.subr.bf16.mxu0 %v390
  %573 = vmatpush1.bf16.msra.mxu0 %v389
  %574 = vmatprep.subr.bf16.mxu0 %v388
  %575 = vmatpush1.bf16.msra.mxu0 %v387
  %576 = vmatprep.subr.bf16.mxu0 %v386
  %577 = vmatpush1.bf16.msra.mxu0 %v385
  %578 = vmatprep.subr.bf16.mxu0 %v384
  %579 = vmatpush1.bf16.msra.mxu0 %v383
  %580 = vmatprep.subr.bf16.mxu0 0
  %581 = vmatpush2.bf16.msra.mxu0 0
  %582 = vmatprep.subr.bf16.mxu0 0
  %583 = vmatpush2.bf16.msra.mxu0 0
  %584 = vmatprep.subr.bf16.mxu0 0
  %585 = vmatpush2.bf16.msra.mxu0 0
  %586 = vmatprep.subr.bf16.mxu0 0
  %587 = vmatpush2.bf16.msra.mxu0 0
  %588 = vmatprep.subr.bf16.mxu0 0
  %589 = vmatpush2.bf16.msra.mxu0 0
  %590 = vmatprep.subr.bf16.mxu0 0
  %591 = vmatpush2.bf16.msra.mxu0 0
  %592 = vmatprep.subr.bf16.mxu0 0
  %593 = vmatpush2.bf16.msra.mxu0 0
  %594 = vmatprep.subr.bf16.mxu0 0
  %595 = vmatpush2.bf16.msra.mxu0 0
  %596 = vmatprep.mubr.bf16.mxu0 0
  %597 = vmatmul.mubr.bf16.gmra.mxu0 %v562
  %v598 = vpop.f32.mrf.mxu0
  %v599 = vadd.f32 0.0, %v598
  %v600 = vpop.f32.mrf.mxu0
  %v601 = vadd.f32 0.0, %v600
  %v602 = vpop.f32.mrf.mxu0
  %v603 = vpop.f32.mrf.mxu0
  %604 = vdwg.mxu0
  %s605 = smul.u32 2, 2
  %s606 = smul.addr %s605, 8
  %s607 = scalar_lea.vmem [#allocation2], %s606
  %v608 = vld [vmem:[%s607] sm:$0xff]
  %v609 = vld [vmem:[%s607 + $0x8] sm:$0xff]
  %v610 = vadd.f32 %v608, %v599
  %v611 = vadd.f32 %v609, %v601
  %v612 = vsub.f32 0.0, %v610
  %v613 = vmul.f32 %v612, 1.442695
  %v614 = vpow.pop %v613
  %v615 = vadd.f32 %v614, 1.0
  %v616 = vrcp.pop %v615
  %v617 = vtanh.pop %v611
  %v618 = vsub.f32 0.0, %v611
  %v619 = vmul.f32 %v618, 1.442695
  %v620 = vpow.pop %v619
  %v621 = vadd.f32 %v620, 1.0
  %v622 = vrcp.pop %v621
  %v623 = vmul.f32 %v616, %v554
  %v624 = vmul.f32 %v616, %v617
  %626 = vrot.lane.b32.xlu0 %v624, 64
  %v627 = vpop.permute.xlu0 %626
  %v629 = vadd.f32 %v623, %v627
  %v630 = vtanh.pop %v629
  %v631 = vmul.f32 %v622, %v630
  %v632 = vpack.c.bf16 %v631, %v631
  %634 = vrot.lane.b32.xlu0 %v632, 64
  %v635 = vpop.permute.xlu0 %634
  %v637 = vsel %vm399, %v635, 0
  %639 = vmatprep.subr.bf16.mxu0 0
  %640 = vmatpush1.bf16.msra.mxu0 0
  %641 = vmatprep.subr.bf16.mxu0 0
  %642 = vmatpush1.bf16.msra.mxu0 0
  %643 = vmatprep.subr.bf16.mxu0 0
  %644 = vmatpush1.bf16.msra.mxu0 0
  %645 = vmatprep.subr.bf16.mxu0 0
  %646 = vmatpush1.bf16.msra.mxu0 0
  %647 = vmatprep.subr.bf16.mxu0 %v390
  %648 = vmatpush1.bf16.msra.mxu0 %v389
  %649 = vmatprep.subr.bf16.mxu0 %v388
  %650 = vmatpush1.bf16.msra.mxu0 %v387
  %651 = vmatprep.subr.bf16.mxu0 %v386
  %652 = vmatpush1.bf16.msra.mxu0 %v385
  %653 = vmatprep.subr.bf16.mxu0 %v384
  %654 = vmatpush1.bf16.msra.mxu0 %v383
  %655 = vmatprep.subr.bf16.mxu0 0
  %656 = vmatpush2.bf16.msra.mxu0 0
  %657 = vmatprep.subr.bf16.mxu0 0
  %658 = vmatpush2.bf16.msra.mxu0 0
  %659 = vmatprep.subr.bf16.mxu0 0
  %660 = vmatpush2.bf16.msra.mxu0 0
  %661 = vmatprep.subr.bf16.mxu0 0
  %662 = vmatpush2.bf16.msra.mxu0 0
  %663 = vmatprep.subr.bf16.mxu0 0
  %664 = vmatpush2.bf16.msra.mxu0 0
  %665 = vmatprep.subr.bf16.mxu0 0
  %666 = vmatpush2.bf16.msra.mxu0 0
  %667 = vmatprep.subr.bf16.mxu0 0
  %668 = vmatpush2.bf16.msra.mxu0 0
  %669 = vmatprep.subr.bf16.mxu0 0
  %670 = vmatpush2.bf16.msra.mxu0 0
  %671 = vmatprep.mubr.bf16.mxu0 0
  %672 = vmatmul.mubr.bf16.gmra.mxu0 %v637
  %v673 = vpop.f32.mrf.mxu0
  %v674 = vadd.f32 0.0, %v673
  %v675 = vpop.f32.mrf.mxu0
  %v676 = vadd.f32 0.0, %v675
  %v677 = vpop.f32.mrf.mxu0
  %v678 = vpop.f32.mrf.mxu0
  %679 = vdwg.mxu0
  %s680 = smul.u32 3, 2
  %s681 = smul.addr %s680, 8
  %s682 = scalar_lea.vmem [#allocation2], %s681
  %v683 = vld [vmem:[%s682] sm:$0xff]
  %v684 = vld [vmem:[%s682 + $0x8] sm:$0xff]
  %v685 = vadd.f32 %v683, %v674
  %v686 = vadd.f32 %v684, %v676
  %v687 = vsub.f32 0.0, %v685
  %v688 = vmul.f32 %v687, 1.442695
  %v689 = vpow.pop %v688
  %v690 = vadd.f32 %v689, 1.0
  %v691 = vrcp.pop %v690
  %v692 = vtanh.pop %v686
  %v693 = vsub.f32 0.0, %v686
  %v694 = vmul.f32 %v693, 1.442695
  %v695 = vpow.pop %v694
  %v696 = vadd.f32 %v695, 1.0
  %v697 = vrcp.pop %v696
  %v698 = vmul.f32 %v691, %v629
  %v699 = vmul.f32 %v691, %v692
  %701 = vrot.lane.b32.xlu0 %v699, 64
  %v702 = vpop.permute.xlu0 %701
  %v704 = vadd.f32 %v698, %v702
  %v705 = vtanh.pop %v704
  %v706 = vmul.f32 %v697, %v705
  %v707 = vpack.c.bf16 %v706, %v706
  %709 = vrot.lane.b32.xlu0 %v707, 64
  %v710 = vpop.permute.xlu0 %709
  %v712 = vsel %vm399, %v710, 0
  %714 = vmatprep.subr.bf16.mxu0 0
  %715 = vmatpush1.bf16.msra.mxu0 0
  %716 = vmatprep.subr.bf16.mxu0 0
  %717 = vmatpush1.bf16.msra.mxu0 0
  %718 = vmatprep.subr.bf16.mxu0 0
  %719 = vmatpush1.bf16.msra.mxu0 0
  %720 = vmatprep.subr.bf16.mxu0 0
  %721 = vmatpush1.bf16.msra.mxu0 0
  %722 = vmatprep.subr.bf16.mxu0 %v390
  %723 = vmatpush1.bf16.msra.mxu0 %v389
  %724 = vmatprep.subr.bf16.mxu0 %v388
  %725 = vmatpush1.bf16.msra.mxu0 %v387
  %726 = vmatprep.subr.bf16.mxu0 %v386
  %727 = vmatpush1.bf16.msra.mxu0 %v385
  %728 = vmatprep.subr.bf16.mxu0 %v384
  %729 = vmatpush1.bf16.msra.mxu0 %v383
  %730 = vmatprep.subr.bf16.mxu0 0
  %731 = vmatpush2.bf16.msra.mxu0 0
  %732 = vmatprep.subr.bf16.mxu0 0
  %733 = vmatpush2.bf16.msra.mxu0 0
  %734 = vmatprep.subr.bf16.mxu0 0
  %735 = vmatpush2.bf16.msra.mxu0 0
  %736 = vmatprep.subr.bf16.mxu0 0
  %737 = vmatpush2.bf16.msra.mxu0 0
  %738 = vmatprep.subr.bf16.mxu0 0
  %739 = vmatpush2.bf16.msra.mxu0 0
  %740 = vmatprep.subr.bf16.mxu0 0
  %741 = vmatpush2.bf16.msra.mxu0 0
  %742 = vmatprep.subr.bf16.mxu0 0
  %743 = vmatpush2.bf16.msra.mxu0 0
  %744 = vmatprep.subr.bf16.mxu0 0
  %745 = vmatpush2.bf16.msra.mxu0 0
  %746 = vmatprep.mubr.bf16.mxu0 0
  %747 = vmatmul.mubr.bf16.gmra.mxu0 %v712
  %v748 = vpop.f32.mrf.mxu0
  %v749 = vadd.f32 0.0, %v748
  %v750 = vpop.f32.mrf.mxu0
  %v751 = vadd.f32 0.0, %v750
  %v752 = vpop.f32.mrf.mxu0
  %v753 = vpop.f32.mrf.mxu0
  %754 = vdwg.mxu0
  %s755 = smul.u32 4, 2
  %s756 = smul.addr %s755, 8
  %s757 = scalar_lea.vmem [#allocation2], %s756
  %v758 = vld [vmem:[%s757] sm:$0xff]
  %v759 = vld [vmem:[%s757 + $0x8] sm:$0xff]
  %v760 = vadd.f32 %v758, %v749
  %v761 = vadd.f32 %v759, %v751
  %v762 = vsub.f32 0.0, %v760
  %v763 = vmul.f32 %v762, 1.442695
  %v764 = vpow.pop %v763
  %v765 = vadd.f32 %v764, 1.0
  %v766 = vrcp.pop %v765
  %v767 = vtanh.pop %v761
  %v768 = vsub.f32 0.0, %v761
  %v769 = vmul.f32 %v768, 1.442695
  %v770 = vpow.pop %v769
  %v771 = vadd.f32 %v770, 1.0
  %v772 = vrcp.pop %v771
  %v773 = vmul.f32 %v766, %v704
  %v774 = vmul.f32 %v766, %v767
  %776 = vrot.lane.b32.xlu0 %v774, 64
  %v777 = vpop.permute.xlu0 %776
  %v779 = vadd.f32 %v773, %v777
  %v780 = vtanh.pop %v779
  %v781 = vmul.f32 %v772, %v780
  %v782 = vpack.c.bf16 %v781, %v781
  %784 = vrot.lane.b32.xlu0 %v782, 64
  %v785 = vpop.permute.xlu0 %784
  %v787 = vsel %vm399, %v785, 0
  %789 = vmatprep.subr.bf16.mxu0 0
  %790 = vmatpush1.bf16.msra.mxu0 0
  %791 = vmatprep.subr.bf16.mxu0 0
  %792 = vmatpush1.bf16.msra.mxu0 0
  %793 = vmatprep.subr.bf16.mxu0 0
  %794 = vmatpush1.bf16.msra.mxu0 0
  %795 = vmatprep.subr.bf16.mxu0 0
  %796 = vmatpush1.bf16.msra.mxu0 0
  %797 = vmatprep.subr.bf16.mxu0 %v390
  %798 = vmatpush1.bf16.msra.mxu0 %v389
  %799 = vmatprep.subr.bf16.mxu0 %v388
  %800 = vmatpush1.bf16.msra.mxu0 %v387
  %801 = vmatprep.subr.bf16.mxu0 %v386
  %802 = vmatpush1.bf16.msra.mxu0 %v385
  %803 = vmatprep.subr.bf16.mxu0 %v384
  %804 = vmatpush1.bf16.msra.mxu0 %v383
  %805 = vmatprep.subr.bf16.mxu0 0
  %806 = vmatpush2.bf16.msra.mxu0 0
  %807 = vmatprep.subr.bf16.mxu0 0
  %808 = vmatpush2.bf16.msra.mxu0 0
  %809 = vmatprep.subr.bf16.mxu0 0
  %810 = vmatpush2.bf16.msra.mxu0 0
  %811 = vmatprep.subr.bf16.mxu0 0
  %812 = vmatpush2.bf16.msra.mxu0 0
  %813 = vmatprep.subr.bf16.mxu0 0
  %814 = vmatpush2.bf16.msra.mxu0 0
  %815 = vmatprep.subr.bf16.mxu0 0
  %816 = vmatpush2.bf16.msra.mxu0 0
  %817 = vmatprep.subr.bf16.mxu0 0
  %818 = vmatpush2.bf16.msra.mxu0 0
  %819 = vmatprep.subr.bf16.mxu0 0
  %820 = vmatpush2.bf16.msra.mxu0 0
  %821 = vmatprep.mubr.bf16.mxu0 0
  %822 = vmatmul.mubr.bf16.gmra.mxu0 %v787
  %v823 = vpop.f32.mrf.mxu0
  %v824 = vadd.f32 0.0, %v823
  %v825 = vpop.f32.mrf.mxu0
  %v826 = vadd.f32 0.0, %v825
  %v827 = vpop.f32.mrf.mxu0
  %v828 = vpop.f32.mrf.mxu0
  %829 = vdwg.mxu0
  %s830 = smul.u32 5, 2
  %s831 = smul.addr %s830, 8
  %s832 = scalar_lea.vmem [#allocation2], %s831
  %v833 = vld [vmem:[%s832] sm:$0xff]
  %v834 = vld [vmem:[%s832 + $0x8] sm:$0xff]
  %v835 = vadd.f32 %v833, %v824
  %v836 = vadd.f32 %v834, %v826
  %v837 = vsub.f32 0.0, %v835
  %v838 = vmul.f32 %v837, 1.442695
  %v839 = vpow.pop %v838
  %v840 = vadd.f32 %v839, 1.0
  %v841 = vrcp.pop %v840
  %v842 = vtanh.pop %v836
  %v843 = vsub.f32 0.0, %v836
  %v844 = vmul.f32 %v843, 1.442695
  %v845 = vpow.pop %v844
  %v846 = vadd.f32 %v845, 1.0
  %v847 = vrcp.pop %v846
  %v848 = vmul.f32 %v841, %v779
  %v849 = vmul.f32 %v841, %v842
  %851 = vrot.lane.b32.xlu0 %v849, 64
  %v852 = vpop.permute.xlu0 %851
  %v854 = vadd.f32 %v848, %v852
  %v855 = vtanh.pop %v854
  %v856 = vmul.f32 %v847, %v855
  %v857 = vpack.c.bf16 %v856, %v856
  %859 = vrot.lane.b32.xlu0 %v857, 64
  %v860 = vpop.permute.xlu0 %859
  %v862 = vsel %vm399, %v860, 0
  %864 = vmatprep.subr.bf16.mxu0 0
  %865 = vmatpush1.bf16.msra.mxu0 0
  %866 = vmatprep.subr.bf16.mxu0 0
  %867 = vmatpush1.bf16.msra.mxu0 0
  %868 = vmatprep.subr.bf16.mxu0 0
  %869 = vmatpush1.bf16.msra.mxu0 0
  %870 = vmatprep.subr.bf16.mxu0 0
  %871 = vmatpush1.bf16.msra.mxu0 0
  %872 = vmatprep.subr.bf16.mxu0 %v390
  %873 = vmatpush1.bf16.msra.mxu0 %v389
  %874 = vmatprep.subr.bf16.mxu0 %v388
  %875 = vmatpush1.bf16.msra.mxu0 %v387
  %876 = vmatprep.subr.bf16.mxu0 %v386
  %877 = vmatpush1.bf16.msra.mxu0 %v385
  %878 = vmatprep.subr.bf16.mxu0 %v384
  %879 = vmatpush1.bf16.msra.mxu0 %v383
  %880 = vmatprep.subr.bf16.mxu0 0
  %881 = vmatpush2.bf16.msra.mxu0 0
  %882 = vmatprep.subr.bf16.mxu0 0
  %883 = vmatpush2.bf16.msra.mxu0 0
  %884 = vmatprep.subr.bf16.mxu0 0
  %885 = vmatpush2.bf16.msra.mxu0 0
  %886 = vmatprep.subr.bf16.mxu0 0
  %887 = vmatpush2.bf16.msra.mxu0 0
  %888 = vmatprep.subr.bf16.mxu0 0
  %889 = vmatpush2.bf16.msra.mxu0 0
  %890 = vmatprep.subr.bf16.mxu0 0
  %891 = vmatpush2.bf16.msra.mxu0 0
  %892 = vmatprep.subr.bf16.mxu0 0
  %893 = vmatpush2.bf16.msra.mxu0 0
  %894 = vmatprep.subr.bf16.mxu0 0
  %895 = vmatpush2.bf16.msra.mxu0 0
  %896 = vmatprep.mubr.bf16.mxu0 0
  %897 = vmatmul.mubr.bf16.gmra.mxu0 %v862
  %v898 = vpop.f32.mrf.mxu0
  %v899 = vadd.f32 0.0, %v898
  %v900 = vpop.f32.mrf.mxu0
  %v901 = vadd.f32 0.0, %v900
  %v902 = vpop.f32.mrf.mxu0
  %v903 = vpop.f32.mrf.mxu0
  %904 = vdwg.mxu0
  %s905 = smul.u32 6, 2
  %s906 = smul.addr %s905, 8
  %s907 = scalar_lea.vmem [#allocation2], %s906
  %v908 = vld [vmem:[%s907] sm:$0xff]
  %v909 = vld [vmem:[%s907 + $0x8] sm:$0xff]
  %v910 = vadd.f32 %v908, %v899
  %v911 = vadd.f32 %v909, %v901
  %v912 = vsub.f32 0.0, %v910
  %v913 = vmul.f32 %v912, 1.442695
  %v914 = vpow.pop %v913
  %v915 = vadd.f32 %v914, 1.0
  %v916 = vrcp.pop %v915
  %v917 = vtanh.pop %v911
  %v918 = vsub.f32 0.0, %v911
  %v919 = vmul.f32 %v918, 1.442695
  %v920 = vpow.pop %v919
  %v921 = vadd.f32 %v920, 1.0
  %v922 = vrcp.pop %v921
  %v923 = vmul.f32 %v916, %v854
  %v924 = vmul.f32 %v916, %v917
  %926 = vrot.lane.b32.xlu0 %v924, 64
  %v927 = vpop.permute.xlu0 %926
  %v929 = vadd.f32 %v923, %v927
  %v930 = vtanh.pop %v929
  %v931 = vmul.f32 %v922, %v930
  %v932 = vpack.c.bf16 %v931, %v931
  %934 = vrot.lane.b32.xlu0 %v932, 64
  %v935 = vpop.permute.xlu0 %934
  %v937 = vsel %vm399, %v935, 0
  %939 = vmatprep.subr.bf16.mxu0 0
  %940 = vmatpush1.bf16.msra.mxu0 0
  %941 = vmatprep.subr.bf16.mxu0 0
  %942 = vmatpush1.bf16.msra.mxu0 0
  %943 = vmatprep.subr.bf16.mxu0 0
  %944 = vmatpush1.bf16.msra.mxu0 0
  %945 = vmatprep.subr.bf16.mxu0 0
  %946 = vmatpush1.bf16.msra.mxu0 0
  %947 = vmatprep.subr.bf16.mxu0 %v390
  %948 = vmatpush1.bf16.msra.mxu0 %v389
  %949 = vmatprep.subr.bf16.mxu0 %v388
  %950 = vmatpush1.bf16.msra.mxu0 %v387
  %951 = vmatprep.subr.bf16.mxu0 %v386
  %952 = vmatpush1.bf16.msra.mxu0 %v385
  %953 = vmatprep.subr.bf16.mxu0 %v384
  %954 = vmatpush1.bf16.msra.mxu0 %v383
  %955 = vmatprep.subr.bf16.mxu0 0
  %956 = vmatpush2.bf16.msra.mxu0 0
  %957 = vmatprep.subr.bf16.mxu0 0
  %958 = vmatpush2.bf16.msra.mxu0 0
  %959 = vmatprep.subr.bf16.mxu0 0
  %960 = vmatpush2.bf16.msra.mxu0 0
  %961 = vmatprep.subr.bf16.mxu0 0
  %962 = vmatpush2.bf16.msra.mxu0 0
  %963 = vmatprep.subr.bf16.mxu0 0
  %964 = vmatpush2.bf16.msra.mxu0 0
  %965 = vmatprep.subr.bf16.mxu0 0
  %966 = vmatpush2.bf16.msra.mxu0 0
  %967 = vmatprep.subr.bf16.mxu0 0
  %968 = vmatpush2.bf16.msra.mxu0 0
  %969 = vmatprep.subr.bf16.mxu0 0
  %970 = vmatpush2.bf16.msra.mxu0 0
  %971 = vmatprep.mubr.bf16.mxu0 0
  %972 = vmatmul.mubr.bf16.gmra.mxu0 %v937
  %v973 = vpop.f32.mrf.mxu0
  %v974 = vadd.f32 0.0, %v973
  %v975 = vpop.f32.mrf.mxu0
  %v976 = vadd.f32 0.0, %v975
  %v977 = vpop.f32.mrf.mxu0
  %v978 = vpop.f32.mrf.mxu0
  %979 = vdwg.mxu0
  %s980 = smul.u32 7, 2
  %s981 = smul.addr %s980, 8
  %s982 = scalar_lea.vmem [#allocation2], %s981
  %v983 = vld [vmem:[%s982] sm:$0xff]
  %v984 = vld [vmem:[%s982 + $0x8] sm:$0xff]
  %v985 = vadd.f32 %v983, %v974
  %v986 = vadd.f32 %v984, %v976
  %v987 = vsub.f32 0.0, %v985
  %v988 = vmul.f32 %v987, 1.442695
  %v989 = vpow.pop %v988
  %v990 = vadd.f32 %v989, 1.0
  %v991 = vrcp.pop %v990
  %v992 = vtanh.pop %v986
  %v993 = vsub.f32 0.0, %v986
  %v994 = vmul.f32 %v993, 1.442695
  %v995 = vpow.pop %v994
  %v996 = vadd.f32 %v995, 1.0
  %v997 = vrcp.pop %v996
  %v998 = vmul.f32 %v991, %v929
  %v999 = vmul.f32 %v991, %v992
  %1001 = vrot.lane.b32.xlu0 %v999, 64
  %v1002 = vpop.permute.xlu0 %1001
  %v1004 = vadd.f32 %v998, %v1002
  %v1005 = vtanh.pop %v1004
  %v1006 = vmul.f32 %v997, %v1005
  %v1007 = vpack.c.bf16 %v1006, %v1006
  %1009 = vrot.lane.b32.xlu0 %v1007, 64
  %v1010 = vpop.permute.xlu0 %1009
  %v1012 = vsel %vm399, %v1010, 0
  %1014 = vmatprep.subr.bf16.mxu0 0
  %1015 = vmatpush1.bf16.msra.mxu0 0
  %1016 = vmatprep.subr.bf16.mxu0 0
  %1017 = vmatpush1.bf16.msra.mxu0 0
  %1018 = vmatprep.subr.bf16.mxu0 0
  %1019 = vmatpush1.bf16.msra.mxu0 0
  %1020 = vmatprep.subr.bf16.mxu0 0
  %1021 = vmatpush1.bf16.msra.mxu0 0
  %1022 = vmatprep.subr.bf16.mxu0 %v390
  %1023 = vmatpush1.bf16.msra.mxu0 %v389
  %1024 = vmatprep.subr.bf16.mxu0 %v388
  %1025 = vmatpush1.bf16.msra.mxu0 %v387
  %1026 = vmatprep.subr.bf16.mxu0 %v386
  %1027 = vmatpush1.bf16.msra.mxu0 %v385
  %1028 = vmatprep.subr.bf16.mxu0 %v384
  %1029 = vmatpush1.bf16.msra.mxu0 %v383
  %1030 = vmatprep.subr.bf16.mxu0 0
  %1031 = vmatpush2.bf16.msra.mxu0 0
  %1032 = vmatprep.subr.bf16.mxu0 0
  %1033 = vmatpush2.bf16.msra.mxu0 0
  %1034 = vmatprep.subr.bf16.mxu0 0
  %1035 = vmatpush2.bf16.msra.mxu0 0
  %1036 = vmatprep.subr.bf16.mxu0 0
  %1037 = vmatpush2.bf16.msra.mxu0 0
  %1038 = vmatprep.subr.bf16.mxu0 0
  %1039 = vmatpush2.bf16.msra.mxu0 0
  %1040 = vmatprep.subr.bf16.mxu0 0
  %1041 = vmatpush2.bf16.msra.mxu0 0
  %1042 = vmatprep.subr.bf16.mxu0 0
  %1043 = vmatpush2.bf16.msra.mxu0 0
  %1044 = vmatprep.subr.bf16.mxu0 0
  %1045 = vmatpush2.bf16.msra.mxu0 0
  %1046 = vmatprep.mubr.bf16.mxu0 0
  %1047 = vmatmul.mubr.bf16.gmra.mxu0 %v1012
  %v1048 = vpop.f32.mrf.mxu0
  %v1049 = vadd.f32 0.0, %v1048
  %v1050 = vpop.f32.mrf.mxu0
  %v1051 = vadd.f32 0.0, %v1050
  %v1052 = vpop.f32.mrf.mxu0
  %v1053 = vpop.f32.mrf.mxu0
  %1054 = vdwg.mxu0
  %s1055 = smul.u32 8, 2
  %s1056 = smul.addr %s1055, 8
  %s1057 = scalar_lea.vmem [#allocation2], %s1056
  %v1058 = vld [vmem:[%s1057] sm:$0xff]
  %v1059 = vld [vmem:[%s1057 + $0x8] sm:$0xff]
  %v1060 = vadd.f32 %v1058, %v1049
  %v1061 = vadd.f32 %v1059, %v1051
  %v1062 = vsub.f32 0.0, %v1060
  %v1063 = vmul.f32 %v1062, 1.442695
  %v1064 = vpow.pop %v1063
  %v1065 = vadd.f32 %v1064, 1.0
  %v1066 = vrcp.pop %v1065
  %v1067 = vtanh.pop %v1061
  %v1068 = vsub.f32 0.0, %v1061
  %v1069 = vmul.f32 %v1068, 1.442695
  %v1070 = vpow.pop %v1069
  %v1071 = vadd.f32 %v1070, 1.0
  %v1072 = vrcp.pop %v1071
  %v1073 = vmul.f32 %v1066, %v1004
  %v1074 = vmul.f32 %v1066, %v1067
  %1076 = vrot.lane.b32.xlu0 %v1074, 64
  %v1077 = vpop.permute.xlu0 %1076
  %v1079 = vadd.f32 %v1073, %v1077
  %v1080 = vtanh.pop %v1079
  %v1081 = vmul.f32 %v1072, %v1080
  %v1082 = vpack.c.bf16 %v1081, %v1081
  %1084 = vrot.lane.b32.xlu0 %v1082, 64
  %v1085 = vpop.permute.xlu0 %1084
  %v1087 = vsel %vm399, %v1085, 0
  %1089 = vmatprep.subr.bf16.mxu0 0
  %1090 = vmatpush1.bf16.msra.mxu0 0
  %1091 = vmatprep.subr.bf16.mxu0 0
  %1092 = vmatpush1.bf16.msra.mxu0 0
  %1093 = vmatprep.subr.bf16.mxu0 0
  %1094 = vmatpush1.bf16.msra.mxu0 0
  %1095 = vmatprep.subr.bf16.mxu0 0
  %1096 = vmatpush1.bf16.msra.mxu0 0
  %1097 = vmatprep.subr.bf16.mxu0 %v390
  %1098 = vmatpush1.bf16.msra.mxu0 %v389
  %1099 = vmatprep.subr.bf16.mxu0 %v388
  %1100 = vmatpush1.bf16.msra.mxu0 %v387
  %1101 = vmatprep.subr.bf16.mxu0 %v386
  %1102 = vmatpush1.bf16.msra.mxu0 %v385
  %1103 = vmatprep.subr.bf16.mxu0 %v384
  %1104 = vmatpush1.bf16.msra.mxu0 %v383
  %1105 = vmatprep.subr.bf16.mxu0 0
  %1106 = vmatpush2.bf16.msra.mxu0 0
  %1107 = vmatprep.subr.bf16.mxu0 0
  %1108 = vmatpush2.bf16.msra.mxu0 0
  %1109 = vmatprep.subr.bf16.mxu0 0
  %1110 = vmatpush2.bf16.msra.mxu0 0
  %1111 = vmatprep.subr.bf16.mxu0 0
  %1112 = vmatpush2.bf16.msra.mxu0 0
  %1113 = vmatprep.subr.bf16.mxu0 0
  %1114 = vmatpush2.bf16.msra.mxu0 0
  %1115 = vmatprep.subr.bf16.mxu0 0
  %1116 = vmatpush2.bf16.msra.mxu0 0
  %1117 = vmatprep.subr.bf16.mxu0 0
  %1118 = vmatpush2.bf16.msra.mxu0 0
  %1119 = vmatprep.subr.bf16.mxu0 0
  %1120 = vmatpush2.bf16.msra.mxu0 0
  %1121 = vmatprep.mubr.bf16.mxu0 0
  %1122 = vmatmul.mubr.bf16.gmra.mxu0 %v1087
  %v1123 = vpop.f32.mrf.mxu0
  %v1124 = vadd.f32 0.0, %v1123
  %v1125 = vpop.f32.mrf.mxu0
  %v1126 = vadd.f32 0.0, %v1125
  %v1127 = vpop.f32.mrf.mxu0
  %v1128 = vpop.f32.mrf.mxu0
  %1129 = vdwg.mxu0
  %s1130 = smul.u32 9, 2
  %s1131 = smul.addr %s1130, 8
  %s1132 = scalar_lea.vmem [#allocation2], %s1131
  %v1133 = vld [vmem:[%s1132] sm:$0xff]
  %v1134 = vld [vmem:[%s1132 + $0x8] sm:$0xff]
  %v1135 = vadd.f32 %v1133, %v1124
  %v1136 = vadd.f32 %v1134, %v1126
  %v1137 = vsub.f32 0.0, %v1135
  %v1138 = vmul.f32 %v1137, 1.442695
  %v1139 = vpow.pop %v1138
  %v1140 = vadd.f32 %v1139, 1.0
  %v1141 = vrcp.pop %v1140
  %v1142 = vtanh.pop %v1136
  %v1143 = vsub.f32 0.0, %v1136
  %v1144 = vmul.f32 %v1143, 1.442695
  %v1145 = vpow.pop %v1144
  %v1146 = vadd.f32 %v1145, 1.0
  %v1147 = vrcp.pop %v1146
  %v1148 = vmul.f32 %v1141, %v1079
  %v1149 = vmul.f32 %v1141, %v1142
  %1151 = vrot.lane.b32.xlu0 %v1149, 64
  %v1152 = vpop.permute.xlu0 %1151
  %v1154 = vadd.f32 %v1148, %v1152
  %v1155 = vtanh.pop %v1154
  %v1156 = vmul.f32 %v1147, %v1155
  %v1157 = vpack.c.bf16 %v1156, %v1156
  %1159 = vrot.lane.b32.xlu0 %v1157, 64
  %v1160 = vpop.permute.xlu0 %1159
  %v1162 = vsel %vm399, %v1160, 0
  %1164 = vmatprep.subr.bf16.mxu0 0
  %1165 = vmatpush1.bf16.msra.mxu0 0
  %1166 = vmatprep.subr.bf16.mxu0 0
  %1167 = vmatpush1.bf16.msra.mxu0 0
  %1168 = vmatprep.subr.bf16.mxu0 0
  %1169 = vmatpush1.bf16.msra.mxu0 0
  %1170 = vmatprep.subr.bf16.mxu0 0
  %1171 = vmatpush1.bf16.msra.mxu0 0
  %1172 = vmatprep.subr.bf16.mxu0 %v390
  %1173 = vmatpush1.bf16.msra.mxu0 %v389
  %1174 = vmatprep.subr.bf16.mxu0 %v388
  %1175 = vmatpush1.bf16.msra.mxu0 %v387
  %1176 = vmatprep.subr.bf16.mxu0 %v386
  %1177 = vmatpush1.bf16.msra.mxu0 %v385
  %1178 = vmatprep.subr.bf16.mxu0 %v384
  %1179 = vmatpush1.bf16.msra.mxu0 %v383
  %1180 = vmatprep.subr.bf16.mxu0 0
  %1181 = vmatpush2.bf16.msra.mxu0 0
  %1182 = vmatprep.subr.bf16.mxu0 0
  %1183 = vmatpush2.bf16.msra.mxu0 0
  %1184 = vmatprep.subr.bf16.mxu0 0
  %1185 = vmatpush2.bf16.msra.mxu0 0
  %1186 = vmatprep.subr.bf16.mxu0 0
  %1187 = vmatpush2.bf16.msra.mxu0 0
  %1188 = vmatprep.subr.bf16.mxu0 0
  %1189 = vmatpush2.bf16.msra.mxu0 0
  %1190 = vmatprep.subr.bf16.mxu0 0
  %1191 = vmatpush2.bf16.msra.mxu0 0
  %1192 = vmatprep.subr.bf16.mxu0 0
  %1193 = vmatpush2.bf16.msra.mxu0 0
  %1194 = vmatprep.subr.bf16.mxu0 0
  %1195 = vmatpush2.bf16.msra.mxu0 0
  %1196 = vmatprep.mubr.bf16.mxu0 0
  %1197 = vmatmul.mubr.bf16.gmra.mxu0 %v1162
  %v1198 = vpop.f32.mrf.mxu0
  %v1199 = vadd.f32 0.0, %v1198
  %v1200 = vpop.f32.mrf.mxu0
  %v1201 = vadd.f32 0.0, %v1200
  %v1202 = vpop.f32.mrf.mxu0
  %v1203 = vpop.f32.mrf.mxu0
  %1204 = vdwg.mxu0
  %s1205 = smul.u32 10, 2
  %s1206 = smul.addr %s1205, 8
  %s1207 = scalar_lea.vmem [#allocation2], %s1206
  %v1208 = vld [vmem:[%s1207] sm:$0xff]
  %v1209 = vld [vmem:[%s1207 + $0x8] sm:$0xff]
  %v1210 = vadd.f32 %v1208, %v1199
  %v1211 = vadd.f32 %v1209, %v1201
  %v1212 = vsub.f32 0.0, %v1210
  %v1213 = vmul.f32 %v1212, 1.442695
  %v1214 = vpow.pop %v1213
  %v1215 = vadd.f32 %v1214, 1.0
  %v1216 = vrcp.pop %v1215
  %v1217 = vtanh.pop %v1211
  %v1218 = vsub.f32 0.0, %v1211
  %v1219 = vmul.f32 %v1218, 1.442695
  %v1220 = vpow.pop %v1219
  %v1221 = vadd.f32 %v1220, 1.0
  %v1222 = vrcp.pop %v1221
  %v1223 = vmul.f32 %v1216, %v1154
  %v1224 = vmul.f32 %v1216, %v1217
  %1226 = vrot.lane.b32.xlu0 %v1224, 64
  %v1227 = vpop.permute.xlu0 %1226
  %v1229 = vadd.f32 %v1223, %v1227
  %v1230 = vtanh.pop %v1229
  %v1231 = vmul.f32 %v1222, %v1230
  %v1232 = vpack.c.bf16 %v1231, %v1231
  %1234 = vrot.lane.b32.xlu0 %v1232, 64
  %v1235 = vpop.permute.xlu0 %1234
  %v1237 = vsel %vm399, %v1235, 0
  %1239 = vmatprep.subr.bf16.mxu0 0
  %1240 = vmatpush1.bf16.msra.mxu0 0
  %1241 = vmatprep.subr.bf16.mxu0 0
  %1242 = vmatpush1.bf16.msra.mxu0 0
  %1243 = vmatprep.subr.bf16.mxu0 0
  %1244 = vmatpush1.bf16.msra.mxu0 0
  %1245 = vmatprep.subr.bf16.mxu0 0
  %1246 = vmatpush1.bf16.msra.mxu0 0
  %1247 = vmatprep.subr.bf16.mxu0 %v390
  %1248 = vmatpush1.bf16.msra.mxu0 %v389
  %1249 = vmatprep.subr.bf16.mxu0 %v388
  %1250 = vmatpush1.bf16.msra.mxu0 %v387
  %1251 = vmatprep.subr.bf16.mxu0 %v386
  %1252 = vmatpush1.bf16.msra.mxu0 %v385
  %1253 = vmatprep.subr.bf16.mxu0 %v384
  %1254 = vmatpush1.bf16.msra.mxu0 %v383
  %1255 = vmatprep.subr.bf16.mxu0 0
  %1256 = vmatpush2.bf16.msra.mxu0 0
  %1257 = vmatprep.subr.bf16.mxu0 0
  %1258 = vmatpush2.bf16.msra.mxu0 0
  %1259 = vmatprep.subr.bf16.mxu0 0
  %1260 = vmatpush2.bf16.msra.mxu0 0
  %1261 = vmatprep.subr.bf16.mxu0 0
  %1262 = vmatpush2.bf16.msra.mxu0 0
  %1263 = vmatprep.subr.bf16.mxu0 0
  %1264 = vmatpush2.bf16.msra.mxu0 0
  %1265 = vmatprep.subr.bf16.mxu0 0
  %1266 = vmatpush2.bf16.msra.mxu0 0
  %1267 = vmatprep.subr.bf16.mxu0 0
  %1268 = vmatpush2.bf16.msra.mxu0 0
  %1269 = vmatprep.subr.bf16.mxu0 0
  %1270 = vmatpush2.bf16.msra.mxu0 0
  %1271 = vmatprep.mubr.bf16.mxu0 0
  %1272 = vmatmul.mubr.bf16.gmra.mxu0 %v1237
  %v1273 = vpop.f32.mrf.mxu0
  %v1274 = vadd.f32 0.0, %v1273
  %v1275 = vpop.f32.mrf.mxu0
  %v1276 = vadd.f32 0.0, %v1275
  %v1277 = vpop.f32.mrf.mxu0
  %v1278 = vpop.f32.mrf.mxu0
  %1279 = vdwg.mxu0
  %s1280 = smul.u32 11, 2
  %s1281 = smul.addr %s1280, 8
  %s1282 = scalar_lea.vmem [#allocation2], %s1281
  %v1283 = vld [vmem:[%s1282] sm:$0xff]
  %v1284 = vld [vmem:[%s1282 + $0x8] sm:$0xff]
  %v1285 = vadd.f32 %v1283, %v1274
  %v1286 = vadd.f32 %v1284, %v1276
  %v1287 = vsub.f32 0.0, %v1285
  %v1288 = vmul.f32 %v1287, 1.442695
  %v1289 = vpow.pop %v1288
  %v1290 = vadd.f32 %v1289, 1.0
  %v1291 = vrcp.pop %v1290
  %v1292 = vtanh.pop %v1286
  %v1293 = vsub.f32 0.0, %v1286
  %v1294 = vmul.f32 %v1293, 1.442695
  %v1295 = vpow.pop %v1294
  %v1296 = vadd.f32 %v1295, 1.0
  %v1297 = vrcp.pop %v1296
  %v1298 = vmul.f32 %v1291, %v1229
  %v1299 = vmul.f32 %v1291, %v1292
  %1301 = vrot.lane.b32.xlu0 %v1299, 64
  %v1302 = vpop.permute.xlu0 %1301
  %v1304 = vadd.f32 %v1298, %v1302
  %v1305 = vtanh.pop %v1304
  %v1306 = vmul.f32 %v1297, %v1305
  %v1307 = vpack.c.bf16 %v1306, %v1306
  %1309 = vrot.lane.b32.xlu0 %v1307, 64
  %v1310 = vpop.permute.xlu0 %1309
  %v1312 = vsel %vm399, %v1310, 0
  %1314 = vmatprep.subr.bf16.mxu0 0
  %1315 = vmatpush1.bf16.msra.mxu0 0
  %1316 = vmatprep.subr.bf16.mxu0 0
  %1317 = vmatpush1.bf16.msra.mxu0 0
  %1318 = vmatprep.subr.bf16.mxu0 0
  %1319 = vmatpush1.bf16.msra.mxu0 0
  %1320 = vmatprep.subr.bf16.mxu0 0
  %1321 = vmatpush1.bf16.msra.mxu0 0
  %1322 = vmatprep.subr.bf16.mxu0 %v390
  %1323 = vmatpush1.bf16.msra.mxu0 %v389
  %1324 = vmatprep.subr.bf16.mxu0 %v388
  %1325 = vmatpush1.bf16.msra.mxu0 %v387
  %1326 = vmatprep.subr.bf16.mxu0 %v386
  %1327 = vmatpush1.bf16.msra.mxu0 %v385
  %1328 = vmatprep.subr.bf16.mxu0 %v384
  %1329 = vmatpush1.bf16.msra.mxu0 %v383
  %1330 = vmatprep.subr.bf16.mxu0 0
  %1331 = vmatpush2.bf16.msra.mxu0 0
  %1332 = vmatprep.subr.bf16.mxu0 0
  %1333 = vmatpush2.bf16.msra.mxu0 0
  %1334 = vmatprep.subr.bf16.mxu0 0
  %1335 = vmatpush2.bf16.msra.mxu0 0
  %1336 = vmatprep.subr.bf16.mxu0 0
  %1337 = vmatpush2.bf16.msra.mxu0 0
  %1338 = vmatprep.subr.bf16.mxu0 0
  %1339 = vmatpush2.bf16.msra.mxu0 0
  %1340 = vmatprep.subr.bf16.mxu0 0
  %1341 = vmatpush2.bf16.msra.mxu0 0
  %1342 = vmatprep.subr.bf16.mxu0 0
  %1343 = vmatpush2.bf16.msra.mxu0 0
  %1344 = vmatprep.subr.bf16.mxu0 0
  %1345 = vmatpush2.bf16.msra.mxu0 0
  %1346 = vmatprep.mubr.bf16.mxu0 0
  %1347 = vmatmul.mubr.bf16.gmra.mxu0 %v1312
  %v1348 = vpop.f32.mrf.mxu0
  %v1349 = vadd.f32 0.0, %v1348
  %v1350 = vpop.f32.mrf.mxu0
  %v1351 = vadd.f32 0.0, %v1350
  %v1352 = vpop.f32.mrf.mxu0
  %v1353 = vpop.f32.mrf.mxu0
  %1354 = vdwg.mxu0
  %s1355 = smul.u32 12, 2
  %s1356 = smul.addr %s1355, 8
  %s1357 = scalar_lea.vmem [#allocation2], %s1356
  %v1358 = vld [vmem:[%s1357] sm:$0xff]
  %v1359 = vld [vmem:[%s1357 + $0x8] sm:$0xff]
  %v1360 = vadd.f32 %v1358, %v1349
  %v1361 = vadd.f32 %v1359, %v1351
  %v1362 = vsub.f32 0.0, %v1360
  %v1363 = vmul.f32 %v1362, 1.442695
  %v1364 = vpow.pop %v1363
  %v1365 = vadd.f32 %v1364, 1.0
  %v1366 = vrcp.pop %v1365
  %v1367 = vtanh.pop %v1361
  %v1368 = vsub.f32 0.0, %v1361
  %v1369 = vmul.f32 %v1368, 1.442695
  %v1370 = vpow.pop %v1369
  %v1371 = vadd.f32 %v1370, 1.0
  %v1372 = vrcp.pop %v1371
  %v1373 = vmul.f32 %v1366, %v1304
  %v1374 = vmul.f32 %v1366, %v1367
  %1376 = vrot.lane.b32.xlu0 %v1374, 64
  %v1377 = vpop.permute.xlu0 %1376
  %v1379 = vadd.f32 %v1373, %v1377
  %v1380 = vtanh.pop %v1379
  %v1381 = vmul.f32 %v1372, %v1380
  %v1382 = vpack.c.bf16 %v1381, %v1381
  %1384 = vrot.lane.b32.xlu0 %v1382, 64
  %v1385 = vpop.permute.xlu0 %1384
  %v1387 = vsel %vm399, %v1385, 0
  %1389 = vmatprep.subr.bf16.mxu0 0
  %1390 = vmatpush1.bf16.msra.mxu0 0
  %1391 = vmatprep.subr.bf16.mxu0 0
  %1392 = vmatpush1.bf16.msra.mxu0 0
  %1393 = vmatprep.subr.bf16.mxu0 0
  %1394 = vmatpush1.bf16.msra.mxu0 0
  %1395 = vmatprep.subr.bf16.mxu0 0
  %1396 = vmatpush1.bf16.msra.mxu0 0
  %1397 = vmatprep.subr.bf16.mxu0 %v390
  %1398 = vmatpush1.bf16.msra.mxu0 %v389
  %1399 = vmatprep.subr.bf16.mxu0 %v388
  %1400 = vmatpush1.bf16.msra.mxu0 %v387
  %1401 = vmatprep.subr.bf16.mxu0 %v386
  %1402 = vmatpush1.bf16.msra.mxu0 %v385
  %1403 = vmatprep.subr.bf16.mxu0 %v384
  %1404 = vmatpush1.bf16.msra.mxu0 %v383
  %1405 = vmatprep.subr.bf16.mxu0 0
  %1406 = vmatpush2.bf16.msra.mxu0 0
  %1407 = vmatprep.subr.bf16.mxu0 0
  %1408 = vmatpush2.bf16.msra.mxu0 0
  %1409 = vmatprep.subr.bf16.mxu0 0
  %1410 = vmatpush2.bf16.msra.mxu0 0
  %1411 = vmatprep.subr.bf16.mxu0 0
  %1412 = vmatpush2.bf16.msra.mxu0 0
  %1413 = vmatprep.subr.bf16.mxu0 0
  %1414 = vmatpush2.bf16.msra.mxu0 0
  %1415 = vmatprep.subr.bf16.mxu0 0
  %1416 = vmatpush2.bf16.msra.mxu0 0
  %1417 = vmatprep.subr.bf16.mxu0 0
  %1418 = vmatpush2.bf16.msra.mxu0 0
  %1419 = vmatprep.subr.bf16.mxu0 0
  %1420 = vmatpush2.bf16.msra.mxu0 0
  %1421 = vmatprep.mubr.bf16.mxu0 0
  %1422 = vmatmul.mubr.bf16.gmra.mxu0 %v1387
  %v1423 = vpop.f32.mrf.mxu0
  %v1424 = vadd.f32 0.0, %v1423
  %v1425 = vpop.f32.mrf.mxu0
  %v1426 = vadd.f32 0.0, %v1425
  %v1427 = vpop.f32.mrf.mxu0
  %v1428 = vpop.f32.mrf.mxu0
  %1429 = vdwg.mxu0
  %s1430 = smul.u32 13, 2
  %s1431 = smul.addr %s1430, 8
  %s1432 = scalar_lea.vmem [#allocation2], %s1431
  %v1433 = vld [vmem:[%s1432] sm:$0xff]
  %v1434 = vld [vmem:[%s1432 + $0x8] sm:$0xff]
  %v1435 = vadd.f32 %v1433, %v1424
  %v1436 = vadd.f32 %v1434, %v1426
  %v1437 = vsub.f32 0.0, %v1435
  %v1438 = vmul.f32 %v1437, 1.442695
  %v1439 = vpow.pop %v1438
  %v1440 = vadd.f32 %v1439, 1.0
  %v1441 = vrcp.pop %v1440
  %v1442 = vtanh.pop %v1436
  %v1443 = vsub.f32 0.0, %v1436
  %v1444 = vmul.f32 %v1443, 1.442695
  %v1445 = vpow.pop %v1444
  %v1446 = vadd.f32 %v1445, 1.0
  %v1447 = vrcp.pop %v1446
  %v1448 = vmul.f32 %v1441, %v1379
  %v1449 = vmul.f32 %v1441, %v1442
  %1451 = vrot.lane.b32.xlu0 %v1449, 64
  %v1452 = vpop.permute.xlu0 %1451
  %v1454 = vadd.f32 %v1448, %v1452
  %v1455 = vtanh.pop %v1454
  %v1456 = vmul.f32 %v1447, %v1455
  %v1457 = vpack.c.bf16 %v1456, %v1456
  %1459 = vrot.lane.b32.xlu0 %v1457, 64
  %v1460 = vpop.permute.xlu0 %1459
  %v1462 = vsel %vm399, %v1460, 0
  %1464 = vmatprep.subr.bf16.mxu0 0
  %1465 = vmatpush1.bf16.msra.mxu0 0
  %1466 = vmatprep.subr.bf16.mxu0 0
  %1467 = vmatpush1.bf16.msra.mxu0 0
  %1468 = vmatprep.subr.bf16.mxu0 0
  %1469 = vmatpush1.bf16.msra.mxu0 0
  %1470 = vmatprep.subr.bf16.mxu0 0
  %1471 = vmatpush1.bf16.msra.mxu0 0
  %1472 = vmatprep.subr.bf16.mxu0 %v390
  %1473 = vmatpush1.bf16.msra.mxu0 %v389
  %1474 = vmatprep.subr.bf16.mxu0 %v388
  %1475 = vmatpush1.bf16.msra.mxu0 %v387
  %1476 = vmatprep.subr.bf16.mxu0 %v386
  %1477 = vmatpush1.bf16.msra.mxu0 %v385
  %1478 = vmatprep.subr.bf16.mxu0 %v384
  %1479 = vmatpush1.bf16.msra.mxu0 %v383
  %1480 = vmatprep.subr.bf16.mxu0 0
  %1481 = vmatpush2.bf16.msra.mxu0 0
  %1482 = vmatprep.subr.bf16.mxu0 0
  %1483 = vmatpush2.bf16.msra.mxu0 0
  %1484 = vmatprep.subr.bf16.mxu0 0
  %1485 = vmatpush2.bf16.msra.mxu0 0
  %1486 = vmatprep.subr.bf16.mxu0 0
  %1487 = vmatpush2.bf16.msra.mxu0 0
  %1488 = vmatprep.subr.bf16.mxu0 0
  %1489 = vmatpush2.bf16.msra.mxu0 0
  %1490 = vmatprep.subr.bf16.mxu0 0
  %1491 = vmatpush2.bf16.msra.mxu0 0
  %1492 = vmatprep.subr.bf16.mxu0 0
  %1493 = vmatpush2.bf16.msra.mxu0 0
  %1494 = vmatprep.subr.bf16.mxu0 0
  %1495 = vmatpush2.bf16.msra.mxu0 0
  %1496 = vmatprep.mubr.bf16.mxu0 0
  %1497 = vmatmul.mubr.bf16.gmra.mxu0 %v1462
  %v1498 = vpop.f32.mrf.mxu0
  %v1499 = vadd.f32 0.0, %v1498
  %v1500 = vpop.f32.mrf.mxu0
  %v1501 = vadd.f32 0.0, %v1500
  %v1502 = vpop.f32.mrf.mxu0
  %v1503 = vpop.f32.mrf.mxu0
  %1504 = vdwg.mxu0
  %s1505 = smul.u32 14, 2
  %s1506 = smul.addr %s1505, 8
  %s1507 = scalar_lea.vmem [#allocation2], %s1506
  %v1508 = vld [vmem:[%s1507] sm:$0xff]
  %v1509 = vld [vmem:[%s1507 + $0x8] sm:$0xff]
  %v1510 = vadd.f32 %v1508, %v1499
  %v1511 = vadd.f32 %v1509, %v1501
  %v1512 = vsub.f32 0.0, %v1510
  %v1513 = vmul.f32 %v1512, 1.442695
  %v1514 = vpow.pop %v1513
  %v1515 = vadd.f32 %v1514, 1.0
  %v1516 = vrcp.pop %v1515
  %v1517 = vtanh.pop %v1511
  %v1518 = vsub.f32 0.0, %v1511
  %v1519 = vmul.f32 %v1518, 1.442695
  %v1520 = vpow.pop %v1519
  %v1521 = vadd.f32 %v1520, 1.0
  %v1522 = vrcp.pop %v1521
  %v1523 = vmul.f32 %v1516, %v1454
  %v1524 = vmul.f32 %v1516, %v1517
  %1526 = vrot.lane.b32.xlu0 %v1524, 64
  %v1527 = vpop.permute.xlu0 %1526
  %v1529 = vadd.f32 %v1523, %v1527
  %v1530 = vtanh.pop %v1529
  %v1531 = vmul.f32 %v1522, %v1530
  %v1532 = vpack.c.bf16 %v1531, %v1531
  %1534 = vrot.lane.b32.xlu0 %v1532, 64
  %v1535 = vpop.permute.xlu0 %1534
  %v1537 = vsel %vm399, %v1535, 0
  %1539 = vmatprep.subr.bf16.mxu0 0
  %1540 = vmatpush1.bf16.msra.mxu0 0
  %1541 = vmatprep.subr.bf16.mxu0 0
  %1542 = vmatpush1.bf16.msra.mxu0 0
  %1543 = vmatprep.subr.bf16.mxu0 0
  %1544 = vmatpush1.bf16.msra.mxu0 0
  %1545 = vmatprep.subr.bf16.mxu0 0
  %1546 = vmatpush1.bf16.msra.mxu0 0
  %1547 = vmatprep.subr.bf16.mxu0 %v390
  %1548 = vmatpush1.bf16.msra.mxu0 %v389
  %1549 = vmatprep.subr.bf16.mxu0 %v388
  %1550 = vmatpush1.bf16.msra.mxu0 %v387
  %1551 = vmatprep.subr.bf16.mxu0 %v386
  %1552 = vmatpush1.bf16.msra.mxu0 %v385
  %1553 = vmatprep.subr.bf16.mxu0 %v384
  %1554 = vmatpush1.bf16.msra.mxu0 %v383
  %1555 = vmatprep.subr.bf16.mxu0 0
  %1556 = vmatpush2.bf16.msra.mxu0 0
  %1557 = vmatprep.subr.bf16.mxu0 0
  %1558 = vmatpush2.bf16.msra.mxu0 0
  %1559 = vmatprep.subr.bf16.mxu0 0
  %1560 = vmatpush2.bf16.msra.mxu0 0
  %1561 = vmatprep.subr.bf16.mxu0 0
  %1562 = vmatpush2.bf16.msra.mxu0 0
  %1563 = vmatprep.subr.bf16.mxu0 0
  %1564 = vmatpush2.bf16.msra.mxu0 0
  %1565 = vmatprep.subr.bf16.mxu0 0
  %1566 = vmatpush2.bf16.msra.mxu0 0
  %1567 = vmatprep.subr.bf16.mxu0 0
  %1568 = vmatpush2.bf16.msra.mxu0 0
  %1569 = vmatprep.subr.bf16.mxu0 0
  %1570 = vmatpush2.bf16.msra.mxu0 0
  %1571 = vmatprep.mubr.bf16.mxu0 0
  %1572 = vmatmul.mubr.bf16.gmra.mxu0 %v1537
  %v1573 = vpop.f32.mrf.mxu0
  %v1574 = vadd.f32 0.0, %v1573
  %v1575 = vpop.f32.mrf.mxu0
  %v1576 = vadd.f32 0.0, %v1575
  %v1577 = vpop.f32.mrf.mxu0
  %v1578 = vpop.f32.mrf.mxu0
  %1579 = vdwg.mxu0
  %s1580 = smul.u32 15, 2
  %s1581 = smul.addr %s1580, 8
  %s1582 = scalar_lea.vmem [#allocation2], %s1581
  %v1583 = vld [vmem:[%s1582] sm:$0xff]
  %v1584 = vld [vmem:[%s1582 + $0x8] sm:$0xff]
  %v1585 = vadd.f32 %v1583, %v1574
  %v1586 = vadd.f32 %v1584, %v1576
  %v1587 = vsub.f32 0.0, %v1585
  %v1588 = vmul.f32 %v1587, 1.442695
  %v1589 = vpow.pop %v1588
  %v1590 = vadd.f32 %v1589, 1.0
  %v1591 = vrcp.pop %v1590
  %v1592 = vtanh.pop %v1586
  %v1593 = vsub.f32 0.0, %v1586
  %v1594 = vmul.f32 %v1593, 1.442695
  %v1595 = vpow.pop %v1594
  %v1596 = vadd.f32 %v1595, 1.0
  %v1597 = vrcp.pop %v1596
  %v1598 = vmul.f32 %v1591, %v1529
  %v1599 = vmul.f32 %v1591, %v1592
  %1601 = vrot.lane.b32.xlu0 %v1599, 64
  %v1602 = vpop.permute.xlu0 %1601
  %v1604 = vadd.f32 %v1598, %v1602
  %v1605 = vtanh.pop %v1604
  %v1606 = vmul.f32 %v1597, %v1605
  %v1607 = vpack.c.bf16 %v1606, %v1606
  %1609 = vrot.lane.b32.xlu0 %v1607, 64
  %v1610 = vpop.permute.xlu0 %1609
  %v1612 = vsel %vm399, %v1610, 0
  %1614 = vmatprep.subr.bf16.mxu0 0
  %1615 = vmatpush1.bf16.msra.mxu0 0
  %1616 = vmatprep.subr.bf16.mxu0 0
  %1617 = vmatpush1.bf16.msra.mxu0 0
  %1618 = vmatprep.subr.bf16.mxu0 0
  %1619 = vmatpush1.bf16.msra.mxu0 0
  %1620 = vmatprep.subr.bf16.mxu0 0
  %1621 = vmatpush1.bf16.msra.mxu0 0
  %1622 = vmatprep.subr.bf16.mxu0 %v390
  %1623 = vmatpush1.bf16.msra.mxu0 %v389
  %1624 = vmatprep.subr.bf16.mxu0 %v388
  %1625 = vmatpush1.bf16.msra.mxu0 %v387
  %1626 = vmatprep.subr.bf16.mxu0 %v386
  %1627 = vmatpush1.bf16.msra.mxu0 %v385
  %1628 = vmatprep.subr.bf16.mxu0 %v384
  %1629 = vmatpush1.bf16.msra.mxu0 %v383
  %1630 = vmatprep.subr.bf16.mxu0 0
  %1631 = vmatpush2.bf16.msra.mxu0 0
  %1632 = vmatprep.subr.bf16.mxu0 0
  %1633 = vmatpush2.bf16.msra.mxu0 0
  %1634 = vmatprep.subr.bf16.mxu0 0
  %1635 = vmatpush2.bf16.msra.mxu0 0
  %1636 = vmatprep.subr.bf16.mxu0 0
  %1637 = vmatpush2.bf16.msra.mxu0 0
  %1638 = vmatprep.subr.bf16.mxu0 0
  %1639 = vmatpush2.bf16.msra.mxu0 0
  %1640 = vmatprep.subr.bf16.mxu0 0
  %1641 = vmatpush2.bf16.msra.mxu0 0
  %1642 = vmatprep.subr.bf16.mxu0 0
  %1643 = vmatpush2.bf16.msra.mxu0 0
  %1644 = vmatprep.subr.bf16.mxu0 0
  %1645 = vmatpush2.bf16.msra.mxu0 0
  %1646 = vmatprep.mubr.bf16.mxu0 0
  %1647 = vmatmul.mubr.bf16.gmra.mxu0 %v1612
  %v1648 = vpop.f32.mrf.mxu0
  %v1649 = vadd.f32 0.0, %v1648
  %v1650 = vpop.f32.mrf.mxu0
  %v1651 = vadd.f32 0.0, %v1650
  %v1652 = vpop.f32.mrf.mxu0
  %v1653 = vpop.f32.mrf.mxu0
  %1654 = vdwg.mxu0
  %s1655 = smul.u32 16, 2
  %s1656 = smul.addr %s1655, 8
  %s1657 = scalar_lea.vmem [#allocation2], %s1656
  %v1658 = vld [vmem:[%s1657] sm:$0xff]
  %v1659 = vld [vmem:[%s1657 + $0x8] sm:$0xff]
  %v1660 = vadd.f32 %v1658, %v1649
  %v1661 = vadd.f32 %v1659, %v1651
  %v1662 = vsub.f32 0.0, %v1660
  %v1663 = vmul.f32 %v1662, 1.442695
  %v1664 = vpow.pop %v1663
  %v1665 = vadd.f32 %v1664, 1.0
  %v1666 = vrcp.pop %v1665
  %v1667 = vtanh.pop %v1661
  %v1668 = vsub.f32 0.0, %v1661
  %v1669 = vmul.f32 %v1668, 1.442695
  %v1670 = vpow.pop %v1669
  %v1671 = vadd.f32 %v1670, 1.0
  %v1672 = vrcp.pop %v1671
  %v1673 = vmul.f32 %v1666, %v1604
  %v1674 = vmul.f32 %v1666, %v1667
  %1676 = vrot.lane.b32.xlu0 %v1674, 64
  %v1677 = vpop.permute.xlu0 %1676
  %v1679 = vadd.f32 %v1673, %v1677
  %v1680 = vtanh.pop %v1679
  %v1681 = vmul.f32 %v1672, %v1680
  %v1682 = vpack.c.bf16 %v1681, %v1681
  %1684 = vrot.lane.b32.xlu0 %v1682, 64
  %v1685 = vpop.permute.xlu0 %1684
  %v1687 = vsel %vm399, %v1685, 0
  %1689 = vmatprep.subr.bf16.mxu0 0
  %1690 = vmatpush1.bf16.msra.mxu0 0
  %1691 = vmatprep.subr.bf16.mxu0 0
  %1692 = vmatpush1.bf16.msra.mxu0 0
  %1693 = vmatprep.subr.bf16.mxu0 0
  %1694 = vmatpush1.bf16.msra.mxu0 0
  %1695 = vmatprep.subr.bf16.mxu0 0
  %1696 = vmatpush1.bf16.msra.mxu0 0
  %1697 = vmatprep.subr.bf16.mxu0 %v390
  %1698 = vmatpush1.bf16.msra.mxu0 %v389
  %1699 = vmatprep.subr.bf16.mxu0 %v388
  %1700 = vmatpush1.bf16.msra.mxu0 %v387
  %1701 = vmatprep.subr.bf16.mxu0 %v386
  %1702 = vmatpush1.bf16.msra.mxu0 %v385
  %1703 = vmatprep.subr.bf16.mxu0 %v384
  %1704 = vmatpush1.bf16.msra.mxu0 %v383
  %1705 = vmatprep.subr.bf16.mxu0 0
  %1706 = vmatpush2.bf16.msra.mxu0 0
  %1707 = vmatprep.subr.bf16.mxu0 0
  %1708 = vmatpush2.bf16.msra.mxu0 0
  %1709 = vmatprep.subr.bf16.mxu0 0
  %1710 = vmatpush2.bf16.msra.mxu0 0
  %1711 = vmatprep.subr.bf16.mxu0 0
  %1712 = vmatpush2.bf16.msra.mxu0 0
  %1713 = vmatprep.subr.bf16.mxu0 0
  %1714 = vmatpush2.bf16.msra.mxu0 0
  %1715 = vmatprep.subr.bf16.mxu0 0
  %1716 = vmatpush2.bf16.msra.mxu0 0
  %1717 = vmatprep.subr.bf16.mxu0 0
  %1718 = vmatpush2.bf16.msra.mxu0 0
  %1719 = vmatprep.subr.bf16.mxu0 0
  %1720 = vmatpush2.bf16.msra.mxu0 0
  %1721 = vmatprep.mubr.bf16.mxu0 0
  %1722 = vmatmul.mubr.bf16.gmra.mxu0 %v1687
  %v1723 = vpop.f32.mrf.mxu0
  %v1724 = vadd.f32 0.0, %v1723
  %v1725 = vpop.f32.mrf.mxu0
  %v1726 = vadd.f32 0.0, %v1725
  %v1727 = vpop.f32.mrf.mxu0
  %v1728 = vpop.f32.mrf.mxu0
  %1729 = vdwg.mxu0
  %s1730 = smul.u32 17, 2
  %s1731 = smul.addr %s1730, 8
  %s1732 = scalar_lea.vmem [#allocation2], %s1731
  %v1733 = vld [vmem:[%s1732] sm:$0xff]
  %v1734 = vld [vmem:[%s1732 + $0x8] sm:$0xff]
  %v1735 = vadd.f32 %v1733, %v1724
  %v1736 = vadd.f32 %v1734, %v1726
  %v1737 = vsub.f32 0.0, %v1735
  %v1738 = vmul.f32 %v1737, 1.442695
  %v1739 = vpow.pop %v1738
  %v1740 = vadd.f32 %v1739, 1.0
  %v1741 = vrcp.pop %v1740
  %v1742 = vtanh.pop %v1736
  %v1743 = vsub.f32 0.0, %v1736
  %v1744 = vmul.f32 %v1743, 1.442695
  %v1745 = vpow.pop %v1744
  %v1746 = vadd.f32 %v1745, 1.0
  %v1747 = vrcp.pop %v1746
  %v1748 = vmul.f32 %v1741, %v1679
  %v1749 = vmul.f32 %v1741, %v1742
  %1751 = vrot.lane.b32.xlu0 %v1749, 64
  %v1752 = vpop.permute.xlu0 %1751
  %v1754 = vadd.f32 %v1748, %v1752
  %v1755 = vtanh.pop %v1754
  %v1756 = vmul.f32 %v1747, %v1755
  %1758 = vrot.lane.b32.xlu0 %v1756, 64
  %v1759 = vpop.permute.xlu0 %1758
  %v1760 = vsel %vm399, %v1759, 0
  %1762 = vmatprep.subr.mxu0 0.0
  %1763 = vmatpush1.msra.mxu0 0.0
  %1764 = vmatprep.subr.mxu0 0.0
  %1765 = vmatpush1.msra.mxu0 0.0
  %1766 = vmatprep.subr.mxu0 0.0
  %1767 = vmatpush1.msra.mxu0 0.0
  %1768 = vmatprep.subr.mxu0 0.0
  %1769 = vmatpush1.msra.mxu0 0.0
  %1770 = vmatprep.subr.mxu0 0.0
  %1771 = vmatpush1.msra.mxu0 0.0
  %1772 = vmatprep.subr.mxu0 0.0
  %1773 = vmatpush1.msra.mxu0 0.0
  %1774 = vmatprep.subr.mxu0 0.0
  %1775 = vmatpush1.msra.mxu0 0.0
  %1776 = vmatprep.subr.mxu0 0.0
  %1777 = vmatpush1.msra.mxu0 0.0
  %1778 = vmatprep.subr.mxu0 0.0
  %1779 = vmatpush1.msra.mxu0 %v40
  %1780 = vmatprep.subr.mxu0 0.0
  %1781 = vmatpush1.msra.mxu0 %v39
  %1782 = vmatprep.subr.mxu0 0.0
  %1783 = vmatpush1.msra.mxu0 %v38
  %1784 = vmatprep.subr.mxu0 0.0
  %1785 = vmatpush1.msra.mxu0 %v37
  %1786 = vmatprep.subr.mxu0 0.0
  %1787 = vmatpush1.msra.mxu0 %v36
  %1788 = vmatprep.subr.mxu0 0.0
  %1789 = vmatpush1.msra.mxu0 %v35
  %1790 = vmatprep.subr.mxu0 0.0
  %1791 = vmatpush1.msra.mxu0 %v34
  %1792 = vmatprep.subr.mxu0 0.0
  %1793 = vmatpush1.msra.mxu0 %v33
  %1794 = vmatprep.subr.mxu0 0.0
  %1795 = vmatpush2.msra.mxu0 0.0
  %1796 = vmatprep.subr.mxu0 0.0
  %1797 = vmatpush2.msra.mxu0 0.0
  %1798 = vmatprep.subr.mxu0 0.0
  %1799 = vmatpush2.msra.mxu0 0.0
  %1800 = vmatprep.subr.mxu0 0.0
  %1801 = vmatpush2.msra.mxu0 0.0
  %1802 = vmatprep.subr.mxu0 0.0
  %1803 = vmatpush2.msra.mxu0 0.0
  %1804 = vmatprep.subr.mxu0 0.0
  %1805 = vmatpush2.msra.mxu0 0.0
  %1806 = vmatprep.subr.mxu0 0.0
  %1807 = vmatpush2.msra.mxu0 0.0
  %1808 = vmatprep.subr.mxu0 0.0
  %1809 = vmatpush2.msra.mxu0 0.0
  %1810 = vmatprep.subr.mxu0 0.0
  %1811 = vmatpush2.msra.mxu0 0.0
  %1812 = vmatprep.subr.mxu0 0.0
  %1813 = vmatpush2.msra.mxu0 0.0
  %1814 = vmatprep.subr.mxu0 0.0
  %1815 = vmatpush2.msra.mxu0 0.0
  %1816 = vmatprep.subr.mxu0 0.0
  %1817 = vmatpush2.msra.mxu0 0.0
  %1818 = vmatprep.subr.mxu0 0.0
  %1819 = vmatpush2.msra.mxu0 0.0
  %1820 = vmatprep.subr.mxu0 0.0
  %1821 = vmatpush2.msra.mxu0 0.0
  %1822 = vmatprep.subr.mxu0 0.0
  %1823 = vmatpush2.msra.mxu0 0.0
  %1824 = vmatprep.subr.mxu0 0.0
  %1825 = vmatpush2.msra.mxu0 0.0
  %1826 = vmatprep.mubr.f32.mxu0 0.0
  %1827 = vmatmul.mubr.f32.gmra.mxu0 %v1760
  %v1828 = vpop.f32.mrf.mxu0
  %v1829 = vadd.f32 %v46, %v1828
  %v1830 = vpop.f32.mrf.mxu0
  %1831 = vdwg.mxu0
  %1832 = vst [vmem:[%s6] sm:$0xff] %v1829
  %v1833 = vpack.c.bf16 %v1756, %v1756
  %1835 = vrot.lane.b32.xlu0 %v1833, 64
  %v1836 = vpop.permute.xlu0 %1835
  %v1838 = vsel %vm399, %v1836, 0
  %1840 = vmatprep.subr.bf16.mxu0 0
  %1841 = vmatpush1.bf16.msra.mxu0 0
  %1842 = vmatprep.subr.bf16.mxu0 0
  %1843 = vmatpush1.bf16.msra.mxu0 0
  %1844 = vmatprep.subr.bf16.mxu0 0
  %1845 = vmatpush1.bf16.msra.mxu0 0
  %1846 = vmatprep.subr.bf16.mxu0 0
  %1847 = vmatpush1.bf16.msra.mxu0 0
  %1848 = vmatprep.subr.bf16.mxu0 %v390
  %1849 = vmatpush1.bf16.msra.mxu0 %v389
  %1850 = vmatprep.subr.bf16.mxu0 %v388
  %1851 = vmatpush1.bf16.msra.mxu0 %v387
  %1852 = vmatprep.subr.bf16.mxu0 %v386
  %1853 = vmatpush1.bf16.msra.mxu0 %v385
  %1854 = vmatprep.subr.bf16.mxu0 %v384
  %1855 = vmatpush1.bf16.msra.mxu0 %v383
  %1856 = vmatprep.subr.bf16.mxu0 0
  %1857 = vmatpush2.bf16.msra.mxu0 0
  %1858 = vmatprep.subr.bf16.mxu0 0
  %1859 = vmatpush2.bf16.msra.mxu0 0
  %1860 = vmatprep.subr.bf16.mxu0 0
  %1861 = vmatpush2.bf16.msra.mxu0 0
  %1862 = vmatprep.subr.bf16.mxu0 0
  %1863 = vmatpush2.bf16.msra.mxu0 0
  %1864 = vmatprep.subr.bf16.mxu0 0
  %1865 = vmatpush2.bf16.msra.mxu0 0
  %1866 = vmatprep.subr.bf16.mxu0 0
  %1867 = vmatpush2.bf16.msra.mxu0 0
  %1868 = vmatprep.subr.bf16.mxu0 0
  %1869 = vmatpush2.bf16.msra.mxu0 0
  %1870 = vmatprep.subr.bf16.mxu0 0
  %1871 = vmatpush2.bf16.msra.mxu0 0
  %1872 = vmatprep.mubr.bf16.mxu0 0
  %1873 = vmatmul.mubr.bf16.gmra.mxu0 %v1838
  %v1874 = vpop.f32.mrf.mxu0
  %v1875 = vadd.f32 0.0, %v1874
  %v1876 = vpop.f32.mrf.mxu0
  %v1877 = vadd.f32 0.0, %v1876
  %v1878 = vpop.f32.mrf.mxu0
  %v1879 = vpop.f32.mrf.mxu0
  %1880 = vdwg.mxu0
  %s1881 = smul.u32 18, 2
  %s1882 = smul.addr %s1881, 8
  %s1883 = scalar_lea.vmem [#allocation2], %s1882
  %v1884 = vld [vmem:[%s1883] sm:$0xff]
  %v1885 = vld [vmem:[%s1883 + $0x8] sm:$0xff]
  %v1886 = vadd.f32 %v1884, %v1875
  %v1887 = vadd.f32 %v1885, %v1877
  %v1888 = vsub.f32 0.0, %v1886
  %v1889 = vmul.f32 %v1888, 1.442695
  %v1890 = vpow.pop %v1889
  %v1891 = vadd.f32 %v1890, 1.0
  %v1892 = vrcp.pop %v1891
  %v1893 = vtanh.pop %v1887
  %v1894 = vsub.f32 0.0, %v1887
  %v1895 = vmul.f32 %v1894, 1.442695
  %v1896 = vpow.pop %v1895
  %v1897 = vadd.f32 %v1896, 1.0
  %v1898 = vrcp.pop %v1897
  %v1899 = vmul.f32 %v1892, %v1754
  %v1900 = vmul.f32 %v1892, %v1893
  %1902 = vrot.lane.b32.xlu0 %v1900, 64
  %v1903 = vpop.permute.xlu0 %1902
  %v1905 = vadd.f32 %v1899, %v1903
  %v1906 = vtanh.pop %v1905
  %v1907 = vmul.f32 %v1898, %v1906
  %1909 = vrot.lane.b32.xlu0 %v1907, 64
  %v1910 = vpop.permute.xlu0 %1909
  %v1911 = vsel %vm399, %v1910, 0
  %1913 = vmatprep.subr.mxu0 0.0
  %1914 = vmatpush1.msra.mxu0 0.0
  %1915 = vmatprep.subr.mxu0 0.0
  %1916 = vmatpush1.msra.mxu0 0.0
  %1917 = vmatprep.subr.mxu0 0.0
  %1918 = vmatpush1.msra.mxu0 0.0
  %1919 = vmatprep.subr.mxu0 0.0
  %1920 = vmatpush1.msra.mxu0 0.0
  %1921 = vmatprep.subr.mxu0 0.0
  %1922 = vmatpush1.msra.mxu0 0.0
  %1923 = vmatprep.subr.mxu0 0.0
  %1924 = vmatpush1.msra.mxu0 0.0
  %1925 = vmatprep.subr.mxu0 0.0
  %1926 = vmatpush1.msra.mxu0 0.0
  %1927 = vmatprep.subr.mxu0 0.0
  %1928 = vmatpush1.msra.mxu0 0.0
  %1929 = vmatprep.subr.mxu0 0.0
  %1930 = vmatpush1.msra.mxu0 %v40
  %1931 = vmatprep.subr.mxu0 0.0
  %1932 = vmatpush1.msra.mxu0 %v39
  %1933 = vmatprep.subr.mxu0 0.0
  %1934 = vmatpush1.msra.mxu0 %v38
  %1935 = vmatprep.subr.mxu0 0.0
  %1936 = vmatpush1.msra.mxu0 %v37
  %1937 = vmatprep.subr.mxu0 0.0
  %1938 = vmatpush1.msra.mxu0 %v36
  %1939 = vmatprep.subr.mxu0 0.0
  %1940 = vmatpush1.msra.mxu0 %v35
  %1941 = vmatprep.subr.mxu0 0.0
  %1942 = vmatpush1.msra.mxu0 %v34
  %1943 = vmatprep.subr.mxu0 0.0
  %1944 = vmatpush1.msra.mxu0 %v33
  %1945 = vmatprep.subr.mxu0 0.0
  %1946 = vmatpush2.msra.mxu0 0.0
  %1947 = vmatprep.subr.mxu0 0.0
  %1948 = vmatpush2.msra.mxu0 0.0
  %1949 = vmatprep.subr.mxu0 0.0
  %1950 = vmatpush2.msra.mxu0 0.0
  %1951 = vmatprep.subr.mxu0 0.0
  %1952 = vmatpush2.msra.mxu0 0.0
  %1953 = vmatprep.subr.mxu0 0.0
  %1954 = vmatpush2.msra.mxu0 0.0
  %1955 = vmatprep.subr.mxu0 0.0
  %1956 = vmatpush2.msra.mxu0 0.0
  %1957 = vmatprep.subr.mxu0 0.0
  %1958 = vmatpush2.msra.mxu0 0.0
  %1959 = vmatprep.subr.mxu0 0.0
  %1960 = vmatpush2.msra.mxu0 0.0
  %1961 = vmatprep.subr.mxu0 0.0
  %1962 = vmatpush2.msra.mxu0 0.0
  %1963 = vmatprep.subr.mxu0 0.0
  %1964 = vmatpush2.msra.mxu0 0.0
  %1965 = vmatprep.subr.mxu0 0.0
  %1966 = vmatpush2.msra.mxu0 0.0
  %1967 = vmatprep.subr.mxu0 0.0
  %1968 = vmatpush2.msra.mxu0 0.0
  %1969 = vmatprep.subr.mxu0 0.0
  %1970 = vmatpush2.msra.mxu0 0.0
  %1971 = vmatprep.subr.mxu0 0.0
  %1972 = vmatpush2.msra.mxu0 0.0
  %1973 = vmatprep.subr.mxu0 0.0
  %1974 = vmatpush2.msra.mxu0 0.0
  %1975 = vmatprep.subr.mxu0 0.0
  %1976 = vmatpush2.msra.mxu0 0.0
  %1977 = vmatprep.mubr.f32.mxu0 0.0
  %1978 = vmatmul.mubr.f32.gmra.mxu0 %v1911
  %v1979 = vpop.f32.mrf.mxu0
  %v1980 = vadd.f32 %v46, %v1979
  %v1981 = vpop.f32.mrf.mxu0
  %1982 = vdwg.mxu0
  %s1983 = scalar_lea.vmem %s6, 8
  %1984 = vst [vmem:[%s1983] sm:$0xff] %v1980
  %v1985 = vpack.c.bf16 %v1907, %v1907
  %1987 = vrot.lane.b32.xlu0 %v1985, 64
  %v1988 = vpop.permute.xlu0 %1987
  %v1990 = vsel %vm399, %v1988, 0
  %1992 = vmatprep.subr.bf16.mxu0 0
  %1993 = vmatpush1.bf16.msra.mxu0 0
  %1994 = vmatprep.subr.bf16.mxu0 0
  %1995 = vmatpush1.bf16.msra.mxu0 0
  %1996 = vmatprep.subr.bf16.mxu0 0
  %1997 = vmatpush1.bf16.msra.mxu0 0
  %1998 = vmatprep.subr.bf16.mxu0 0
  %1999 = vmatpush1.bf16.msra.mxu0 0
  %2000 = vmatprep.subr.bf16.mxu0 %v390
  %2001 = vmatpush1.bf16.msra.mxu0 %v389
  %2002 = vmatprep.subr.bf16.mxu0 %v388
  %2003 = vmatpush1.bf16.msra.mxu0 %v387
  %2004 = vmatprep.subr.bf16.mxu0 %v386
  %2005 = vmatpush1.bf16.msra.mxu0 %v385
  %2006 = vmatprep.subr.bf16.mxu0 %v384
  %2007 = vmatpush1.bf16.msra.mxu0 %v383
  %2008 = vmatprep.subr.bf16.mxu0 0
  %2009 = vmatpush2.bf16.msra.mxu0 0
  %2010 = vmatprep.subr.bf16.mxu0 0
  %2011 = vmatpush2.bf16.msra.mxu0 0
  %2012 = vmatprep.subr.bf16.mxu0 0
  %2013 = vmatpush2.bf16.msra.mxu0 0
  %2014 = vmatprep.subr.bf16.mxu0 0
  %2015 = vmatpush2.bf16.msra.mxu0 0
  %2016 = vmatprep.subr.bf16.mxu0 0
  %2017 = vmatpush2.bf16.msra.mxu0 0
  %2018 = vmatprep.subr.bf16.mxu0 0
  %2019 = vmatpush2.bf16.msra.mxu0 0
  %2020 = vmatprep.subr.bf16.mxu0 0
  %2021 = vmatpush2.bf16.msra.mxu0 0
  %2022 = vmatprep.subr.bf16.mxu0 0
  %2023 = vmatpush2.bf16.msra.mxu0 0
  %2024 = vmatprep.mubr.bf16.mxu0 0
  %2025 = vmatmul.mubr.bf16.gmra.mxu0 %v1990
  %v2026 = vpop.f32.mrf.mxu0
  %v2027 = vadd.f32 0.0, %v2026
  %v2028 = vpop.f32.mrf.mxu0
  %v2029 = vadd.f32 0.0, %v2028
  %v2030 = vpop.f32.mrf.mxu0
  %v2031 = vpop.f32.mrf.mxu0
  %2032 = vdwg.mxu0
  %s2033 = smul.u32 19, 2
  %s2034 = smul.addr %s2033, 8
  %s2035 = scalar_lea.vmem [#allocation2], %s2034
  %v2036 = vld [vmem:[%s2035] sm:$0xff]
  %v2037 = vld [vmem:[%s2035 + $0x8] sm:$0xff]
  %v2038 = vadd.f32 %v2036, %v2027
  %v2039 = vadd.f32 %v2037, %v2029
  %v2040 = vsub.f32 0.0, %v2038
  %v2041 = vmul.f32 %v2040, 1.442695
  %v2042 = vpow.pop %v2041
  %v2043 = vadd.f32 %v2042, 1.0
  %v2044 = vrcp.pop %v2043
  %v2045 = vtanh.pop %v2039
  %v2046 = vsub.f32 0.0, %v2039
  %v2047 = vmul.f32 %v2046, 1.442695
  %v2048 = vpow.pop %v2047
  %v2049 = vadd.f32 %v2048, 1.0
  %v2050 = vrcp.pop %v2049
  %v2051 = vmul.f32 %v2044, %v1905
  %v2052 = vmul.f32 %v2044, %v2045
  %2054 = vrot.lane.b32.xlu0 %v2052, 64
  %v2055 = vpop.permute.xlu0 %2054
  %v2057 = vadd.f32 %v2051, %v2055
  %v2058 = vtanh.pop %v2057
  %v2059 = vmul.f32 %v2050, %v2058
  %2061 = vrot.lane.b32.xlu0 %v2059, 64
  %v2062 = vpop.permute.xlu0 %2061
  %v2063 = vsel %vm399, %v2062, 0
  %2065 = vmatprep.subr.mxu0 0.0
  %2066 = vmatpush1.msra.mxu0 0.0
  %2067 = vmatprep.subr.mxu0 0.0
  %2068 = vmatpush1.msra.mxu0 0.0
  %2069 = vmatprep.subr.mxu0 0.0
  %2070 = vmatpush1.msra.mxu0 0.0
  %2071 = vmatprep.subr.mxu0 0.0
  %2072 = vmatpush1.msra.mxu0 0.0
  %2073 = vmatprep.subr.mxu0 0.0
  %2074 = vmatpush1.msra.mxu0 0.0
  %2075 = vmatprep.subr.mxu0 0.0
  %2076 = vmatpush1.msra.mxu0 0.0
  %2077 = vmatprep.subr.mxu0 0.0
  %2078 = vmatpush1.msra.mxu0 0.0
  %2079 = vmatprep.subr.mxu0 0.0
  %2080 = vmatpush1.msra.mxu0 0.0
  %2081 = vmatprep.subr.mxu0 0.0
  %2082 = vmatpush1.msra.mxu0 %v40
  %2083 = vmatprep.subr.mxu0 0.0
  %2084 = vmatpush1.msra.mxu0 %v39
  %2085 = vmatprep.subr.mxu0 0.0
  %2086 = vmatpush1.msra.mxu0 %v38
  %2087 = vmatprep.subr.mxu0 0.0
  %2088 = vmatpush1.msra.mxu0 %v37
  %2089 = vmatprep.subr.mxu0 0.0
  %2090 = vmatpush1.msra.mxu0 %v36
  %2091 = vmatprep.subr.mxu0 0.0
  %2092 = vmatpush1.msra.mxu0 %v35
  %2093 = vmatprep.subr.mxu0 0.0
  %2094 = vmatpush1.msra.mxu0 %v34
  %2095 = vmatprep.subr.mxu0 0.0
  %2096 = vmatpush1.msra.mxu0 %v33
  %2097 = vmatprep.subr.mxu0 0.0
  %2098 = vmatpush2.msra.mxu0 0.0
  %2099 = vmatprep.subr.mxu0 0.0
  %2100 = vmatpush2.msra.mxu0 0.0
  %2101 = vmatprep.subr.mxu0 0.0
  %2102 = vmatpush2.msra.mxu0 0.0
  %2103 = vmatprep.subr.mxu0 0.0
  %2104 = vmatpush2.msra.mxu0 0.0
  %2105 = vmatprep.subr.mxu0 0.0
  %2106 = vmatpush2.msra.mxu0 0.0
  %2107 = vmatprep.subr.mxu0 0.0
  %2108 = vmatpush2.msra.mxu0 0.0
  %2109 = vmatprep.subr.mxu0 0.0
  %2110 = vmatpush2.msra.mxu0 0.0
  %2111 = vmatprep.subr.mxu0 0.0
  %2112 = vmatpush2.msra.mxu0 0.0
  %2113 = vmatprep.subr.mxu0 0.0
  %2114 = vmatpush2.msra.mxu0 0.0
  %2115 = vmatprep.subr.mxu0 0.0
  %2116 = vmatpush2.msra.mxu0 0.0
  %2117 = vmatprep.subr.mxu0 0.0
  %2118 = vmatpush2.msra.mxu0 0.0
  %2119 = vmatprep.subr.mxu0 0.0
  %2120 = vmatpush2.msra.mxu0 0.0
  %2121 = vmatprep.subr.mxu0 0.0
  %2122 = vmatpush2.msra.mxu0 0.0
  %2123 = vmatprep.subr.mxu0 0.0
  %2124 = vmatpush2.msra.mxu0 0.0
  %2125 = vmatprep.subr.mxu0 0.0
  %2126 = vmatpush2.msra.mxu0 0.0
  %2127 = vmatprep.subr.mxu0 0.0
  %2128 = vmatpush2.msra.mxu0 0.0
  %2129 = vmatprep.mubr.f32.mxu0 0.0
  %2130 = vmatmul.mubr.f32.gmra.mxu0 %v2063
  %v2131 = vpop.f32.mrf.mxu0
  %v2132 = vadd.f32 %v46, %v2131
  %v2133 = vpop.f32.mrf.mxu0
  %2134 = vdwg.mxu0
  %s2135 = scalar_lea.vmem %s6, 16
  %2136 = vst [vmem:[%s2135] sm:$0xff] %v2132
  %v2137 = vpack.c.bf16 %v2059, %v2059
  %2139 = vrot.lane.b32.xlu0 %v2137, 64
  %v2140 = vpop.permute.xlu0 %2139
  %v2142 = vsel %vm399, %v2140, 0
  %2144 = vmatprep.subr.bf16.mxu0 0
  %2145 = vmatpush1.bf16.msra.mxu0 0
  %2146 = vmatprep.subr.bf16.mxu0 0
  %2147 = vmatpush1.bf16.msra.mxu0 0
  %2148 = vmatprep.subr.bf16.mxu0 0
  %2149 = vmatpush1.bf16.msra.mxu0 0
  %2150 = vmatprep.subr.bf16.mxu0 0
  %2151 = vmatpush1.bf16.msra.mxu0 0
  %2152 = vmatprep.subr.bf16.mxu0 %v390
  %2153 = vmatpush1.bf16.msra.mxu0 %v389
  %2154 = vmatprep.subr.bf16.mxu0 %v388
  %2155 = vmatpush1.bf16.msra.mxu0 %v387
  %2156 = vmatprep.subr.bf16.mxu0 %v386
  %2157 = vmatpush1.bf16.msra.mxu0 %v385
  %2158 = vmatprep.subr.bf16.mxu0 %v384
  %2159 = vmatpush1.bf16.msra.mxu0 %v383
  %2160 = vmatprep.subr.bf16.mxu0 0
  %2161 = vmatpush2.bf16.msra.mxu0 0
  %2162 = vmatprep.subr.bf16.mxu0 0
  %2163 = vmatpush2.bf16.msra.mxu0 0
  %2164 = vmatprep.subr.bf16.mxu0 0
  %2165 = vmatpush2.bf16.msra.mxu0 0
  %2166 = vmatprep.subr.bf16.mxu0 0
  %2167 = vmatpush2.bf16.msra.mxu0 0
  %2168 = vmatprep.subr.bf16.mxu0 0
  %2169 = vmatpush2.bf16.msra.mxu0 0
  %2170 = vmatprep.subr.bf16.mxu0 0
  %2171 = vmatpush2.bf16.msra.mxu0 0
  %2172 = vmatprep.subr.bf16.mxu0 0
  %2173 = vmatpush2.bf16.msra.mxu0 0
  %2174 = vmatprep.subr.bf16.mxu0 0
  %2175 = vmatpush2.bf16.msra.mxu0 0
  %2176 = vmatprep.mubr.bf16.mxu0 0
  %2177 = vmatmul.mubr.bf16.gmra.mxu0 %v2142
  %v2178 = vpop.f32.mrf.mxu0
  %v2179 = vadd.f32 0.0, %v2178
  %v2180 = vpop.f32.mrf.mxu0
  %v2181 = vadd.f32 0.0, %v2180
  %v2182 = vpop.f32.mrf.mxu0
  %v2183 = vpop.f32.mrf.mxu0
  %2184 = vdwg.mxu0
  %s2185 = smul.u32 20, 2
  %s2186 = smul.addr %s2185, 8
  %s2187 = scalar_lea.vmem [#allocation2], %s2186
  %v2188 = vld [vmem:[%s2187] sm:$0xff]
  %v2189 = vld [vmem:[%s2187 + $0x8] sm:$0xff]
  %v2190 = vadd.f32 %v2188, %v2179
  %v2191 = vadd.f32 %v2189, %v2181
  %v2192 = vsub.f32 0.0, %v2190
  %v2193 = vmul.f32 %v2192, 1.442695
  %v2194 = vpow.pop %v2193
  %v2195 = vadd.f32 %v2194, 1.0
  %v2196 = vrcp.pop %v2195
  %v2197 = vtanh.pop %v2191
  %v2198 = vsub.f32 0.0, %v2191
  %v2199 = vmul.f32 %v2198, 1.442695
  %v2200 = vpow.pop %v2199
  %v2201 = vadd.f32 %v2200, 1.0
  %v2202 = vrcp.pop %v2201
  %v2203 = vmul.f32 %v2196, %v2057
  %v2204 = vmul.f32 %v2196, %v2197
  %2206 = vrot.lane.b32.xlu0 %v2204, 64
  %v2207 = vpop.permute.xlu0 %2206
  %v2209 = vadd.f32 %v2203, %v2207
  %v2210 = vtanh.pop %v2209
  %v2211 = vmul.f32 %v2202, %v2210
  %2213 = vrot.lane.b32.xlu0 %v2211, 64
  %v2214 = vpop.permute.xlu0 %2213
  %v2215 = vsel %vm399, %v2214, 0
  %2217 = vmatprep.subr.mxu0 0.0
  %2218 = vmatpush1.msra.mxu0 0.0
  %2219 = vmatprep.subr.mxu0 0.0
  %2220 = vmatpush1.msra.mxu0 0.0
  %2221 = vmatprep.subr.mxu0 0.0
  %2222 = vmatpush1.msra.mxu0 0.0
  %2223 = vmatprep.subr.mxu0 0.0
  %2224 = vmatpush1.msra.mxu0 0.0
  %2225 = vmatprep.subr.mxu0 0.0
  %2226 = vmatpush1.msra.mxu0 0.0
  %2227 = vmatprep.subr.mxu0 0.0
  %2228 = vmatpush1.msra.mxu0 0.0
  %2229 = vmatprep.subr.mxu0 0.0
  %2230 = vmatpush1.msra.mxu0 0.0
  %2231 = vmatprep.subr.mxu0 0.0
  %2232 = vmatpush1.msra.mxu0 0.0
  %2233 = vmatprep.subr.mxu0 0.0
  %2234 = vmatpush1.msra.mxu0 %v40
  %2235 = vmatprep.subr.mxu0 0.0
  %2236 = vmatpush1.msra.mxu0 %v39
  %2237 = vmatprep.subr.mxu0 0.0
  %2238 = vmatpush1.msra.mxu0 %v38
  %2239 = vmatprep.subr.mxu0 0.0
  %2240 = vmatpush1.msra.mxu0 %v37
  %2241 = vmatprep.subr.mxu0 0.0
  %2242 = vmatpush1.msra.mxu0 %v36
  %2243 = vmatprep.subr.mxu0 0.0
  %2244 = vmatpush1.msra.mxu0 %v35
  %2245 = vmatprep.subr.mxu0 0.0
  %2246 = vmatpush1.msra.mxu0 %v34
  %2247 = vmatprep.subr.mxu0 0.0
  %2248 = vmatpush1.msra.mxu0 %v33
  %2249 = vmatprep.subr.mxu0 0.0
  %2250 = vmatpush2.msra.mxu0 0.0
  %2251 = vmatprep.subr.mxu0 0.0
  %2252 = vmatpush2.msra.mxu0 0.0
  %2253 = vmatprep.subr.mxu0 0.0
  %2254 = vmatpush2.msra.mxu0 0.0
  %2255 = vmatprep.subr.mxu0 0.0
  %2256 = vmatpush2.msra.mxu0 0.0
  %2257 = vmatprep.subr.mxu0 0.0
  %2258 = vmatpush2.msra.mxu0 0.0
  %2259 = vmatprep.subr.mxu0 0.0
  %2260 = vmatpush2.msra.mxu0 0.0
  %2261 = vmatprep.subr.mxu0 0.0
  %2262 = vmatpush2.msra.mxu0 0.0
  %2263 = vmatprep.subr.mxu0 0.0
  %2264 = vmatpush2.msra.mxu0 0.0
  %2265 = vmatprep.subr.mxu0 0.0
  %2266 = vmatpush2.msra.mxu0 0.0
  %2267 = vmatprep.subr.mxu0 0.0
  %2268 = vmatpush2.msra.mxu0 0.0
  %2269 = vmatprep.subr.mxu0 0.0
  %2270 = vmatpush2.msra.mxu0 0.0
  %2271 = vmatprep.subr.mxu0 0.0
  %2272 = vmatpush2.msra.mxu0 0.0
  %2273 = vmatprep.subr.mxu0 0.0
  %2274 = vmatpush2.msra.mxu0 0.0
  %2275 = vmatprep.subr.mxu0 0.0
  %2276 = vmatpush2.msra.mxu0 0.0
  %2277 = vmatprep.subr.mxu0 0.0
  %2278 = vmatpush2.msra.mxu0 0.0
  %2279 = vmatprep.subr.mxu0 0.0
  %2280 = vmatpush2.msra.mxu0 0.0
  %2281 = vmatprep.mubr.f32.mxu0 0.0
  %2282 = vmatmul.mubr.f32.gmra.mxu0 %v2215
  %v2283 = vpop.f32.mrf.mxu0
  %v2284 = vadd.f32 %v46, %v2283
  %v2285 = vpop.f32.mrf.mxu0
  %2286 = vdwg.mxu0
  %s2287 = scalar_lea.vmem %s6, 24
  %2288 = vst [vmem:[%s2287] sm:$0xff] %v2284
  %v2289 = vpack.c.bf16 %v2211, %v2211
  %2291 = vrot.lane.b32.xlu0 %v2289, 64
  %v2292 = vpop.permute.xlu0 %2291
  %v2294 = vsel %vm399, %v2292, 0
  %2296 = vmatprep.subr.bf16.mxu0 0
  %2297 = vmatpush1.bf16.msra.mxu0 0
  %2298 = vmatprep.subr.bf16.mxu0 0
  %2299 = vmatpush1.bf16.msra.mxu0 0
  %2300 = vmatprep.subr.bf16.mxu0 0
  %2301 = vmatpush1.bf16.msra.mxu0 0
  %2302 = vmatprep.subr.bf16.mxu0 0
  %2303 = vmatpush1.bf16.msra.mxu0 0
  %2304 = vmatprep.subr.bf16.mxu0 %v390
  %2305 = vmatpush1.bf16.msra.mxu0 %v389
  %2306 = vmatprep.subr.bf16.mxu0 %v388
  %2307 = vmatpush1.bf16.msra.mxu0 %v387
  %2308 = vmatprep.subr.bf16.mxu0 %v386
  %2309 = vmatpush1.bf16.msra.mxu0 %v385
  %2310 = vmatprep.subr.bf16.mxu0 %v384
  %2311 = vmatpush1.bf16.msra.mxu0 %v383
  %2312 = vmatprep.subr.bf16.mxu0 0
  %2313 = vmatpush2.bf16.msra.mxu0 0
  %2314 = vmatprep.subr.bf16.mxu0 0
  %2315 = vmatpush2.bf16.msra.mxu0 0
  %2316 = vmatprep.subr.bf16.mxu0 0
  %2317 = vmatpush2.bf16.msra.mxu0 0
  %2318 = vmatprep.subr.bf16.mxu0 0
  %2319 = vmatpush2.bf16.msra.mxu0 0
  %2320 = vmatprep.subr.bf16.mxu0 0
  %2321 = vmatpush2.bf16.msra.mxu0 0
  %2322 = vmatprep.subr.bf16.mxu0 0
  %2323 = vmatpush2.bf16.msra.mxu0 0
  %2324 = vmatprep.subr.bf16.mxu0 0
  %2325 = vmatpush2.bf16.msra.mxu0 0
  %2326 = vmatprep.subr.bf16.mxu0 0
  %2327 = vmatpush2.bf16.msra.mxu0 0
  %2328 = vmatprep.mubr.bf16.mxu0 0
  %2329 = vmatmul.mubr.bf16.gmra.mxu0 %v2294
  %v2330 = vpop.f32.mrf.mxu0
  %v2331 = vadd.f32 0.0, %v2330
  %v2332 = vpop.f32.mrf.mxu0
  %v2333 = vadd.f32 0.0, %v2332
  %v2334 = vpop.f32.mrf.mxu0
  %v2335 = vpop.f32.mrf.mxu0
  %2336 = vdwg.mxu0
  %s2337 = smul.u32 21, 2
  %s2338 = smul.addr %s2337, 8
  %s2339 = scalar_lea.vmem [#allocation2], %s2338
  %v2340 = vld [vmem:[%s2339] sm:$0xff]
  %v2341 = vld [vmem:[%s2339 + $0x8] sm:$0xff]
  %v2342 = vadd.f32 %v2340, %v2331
  %v2343 = vadd.f32 %v2341, %v2333
  %v2344 = vsub.f32 0.0, %v2342
  %v2345 = vmul.f32 %v2344, 1.442695
  %v2346 = vpow.pop %v2345
  %v2347 = vadd.f32 %v2346, 1.0
  %v2348 = vrcp.pop %v2347
  %v2349 = vtanh.pop %v2343
  %v2350 = vsub.f32 0.0, %v2343
  %v2351 = vmul.f32 %v2350, 1.442695
  %v2352 = vpow.pop %v2351
  %v2353 = vadd.f32 %v2352, 1.0
  %v2354 = vrcp.pop %v2353
  %v2355 = vmul.f32 %v2348, %v2209
  %v2356 = vmul.f32 %v2348, %v2349
  %2358 = vrot.lane.b32.xlu0 %v2356, 64
  %v2359 = vpop.permute.xlu0 %2358
  %v2361 = vadd.f32 %v2355, %v2359
  %v2362 = vtanh.pop %v2361
  %v2363 = vmul.f32 %v2354, %v2362
  %2365 = vrot.lane.b32.xlu0 %v2363, 64
  %v2366 = vpop.permute.xlu0 %2365
  %v2367 = vsel %vm399, %v2366, 0
  %2369 = vmatprep.subr.mxu0 0.0
  %2370 = vmatpush1.msra.mxu0 0.0
  %2371 = vmatprep.subr.mxu0 0.0
  %2372 = vmatpush1.msra.mxu0 0.0
  %2373 = vmatprep.subr.mxu0 0.0
  %2374 = vmatpush1.msra.mxu0 0.0
  %2375 = vmatprep.subr.mxu0 0.0
  %2376 = vmatpush1.msra.mxu0 0.0
  %2377 = vmatprep.subr.mxu0 0.0
  %2378 = vmatpush1.msra.mxu0 0.0
  %2379 = vmatprep.subr.mxu0 0.0
  %2380 = vmatpush1.msra.mxu0 0.0
  %2381 = vmatprep.subr.mxu0 0.0
  %2382 = vmatpush1.msra.mxu0 0.0
  %2383 = vmatprep.subr.mxu0 0.0
  %2384 = vmatpush1.msra.mxu0 0.0
  %2385 = vmatprep.subr.mxu0 0.0
  %2386 = vmatpush1.msra.mxu0 %v40
  %2387 = vmatprep.subr.mxu0 0.0
  %2388 = vmatpush1.msra.mxu0 %v39
  %2389 = vmatprep.subr.mxu0 0.0
  %2390 = vmatpush1.msra.mxu0 %v38
  %2391 = vmatprep.subr.mxu0 0.0
  %2392 = vmatpush1.msra.mxu0 %v37
  %2393 = vmatprep.subr.mxu0 0.0
  %2394 = vmatpush1.msra.mxu0 %v36
  %2395 = vmatprep.subr.mxu0 0.0
  %2396 = vmatpush1.msra.mxu0 %v35
  %2397 = vmatprep.subr.mxu0 0.0
  %2398 = vmatpush1.msra.mxu0 %v34
  %2399 = vmatprep.subr.mxu0 0.0
  %2400 = vmatpush1.msra.mxu0 %v33
  %2401 = vmatprep.subr.mxu0 0.0
  %2402 = vmatpush2.msra.mxu0 0.0
  %2403 = vmatprep.subr.mxu0 0.0
  %2404 = vmatpush2.msra.mxu0 0.0
  %2405 = vmatprep.subr.mxu0 0.0
  %2406 = vmatpush2.msra.mxu0 0.0
  %2407 = vmatprep.subr.mxu0 0.0
  %2408 = vmatpush2.msra.mxu0 0.0
  %2409 = vmatprep.subr.mxu0 0.0
  %2410 = vmatpush2.msra.mxu0 0.0
  %2411 = vmatprep.subr.mxu0 0.0
  %2412 = vmatpush2.msra.mxu0 0.0
  %2413 = vmatprep.subr.mxu0 0.0
  %2414 = vmatpush2.msra.mxu0 0.0
  %2415 = vmatprep.subr.mxu0 0.0
  %2416 = vmatpush2.msra.mxu0 0.0
  %2417 = vmatprep.subr.mxu0 0.0
  %2418 = vmatpush2.msra.mxu0 0.0
  %2419 = vmatprep.subr.mxu0 0.0
  %2420 = vmatpush2.msra.mxu0 0.0
  %2421 = vmatprep.subr.mxu0 0.0
  %2422 = vmatpush2.msra.mxu0 0.0
  %2423 = vmatprep.subr.mxu0 0.0
  %2424 = vmatpush2.msra.mxu0 0.0
  %2425 = vmatprep.subr.mxu0 0.0
  %2426 = vmatpush2.msra.mxu0 0.0
  %2427 = vmatprep.subr.mxu0 0.0
  %2428 = vmatpush2.msra.mxu0 0.0
  %2429 = vmatprep.subr.mxu0 0.0
  %2430 = vmatpush2.msra.mxu0 0.0
  %2431 = vmatprep.subr.mxu0 0.0
  %2432 = vmatpush2.msra.mxu0 0.0
  %2433 = vmatprep.mubr.f32.mxu0 0.0
  %2434 = vmatmul.mubr.f32.gmra.mxu0 %v2367
  %v2435 = vpop.f32.mrf.mxu0
  %v2436 = vadd.f32 %v46, %v2435
  %v2437 = vpop.f32.mrf.mxu0
  %2438 = vdwg.mxu0
  %s2439 = scalar_lea.vmem %s6, 32
  %2440 = vst [vmem:[%s2439] sm:$0xff] %v2436
  %v2441 = vpack.c.bf16 %v2363, %v2363
  %2443 = vrot.lane.b32.xlu0 %v2441, 64
  %v2444 = vpop.permute.xlu0 %2443
  %v2446 = vsel %vm399, %v2444, 0
  %2448 = vmatprep.subr.bf16.mxu0 0
  %2449 = vmatpush1.bf16.msra.mxu0 0
  %2450 = vmatprep.subr.bf16.mxu0 0
  %2451 = vmatpush1.bf16.msra.mxu0 0
  %2452 = vmatprep.subr.bf16.mxu0 0
  %2453 = vmatpush1.bf16.msra.mxu0 0
  %2454 = vmatprep.subr.bf16.mxu0 0
  %2455 = vmatpush1.bf16.msra.mxu0 0
  %2456 = vmatprep.subr.bf16.mxu0 %v390
  %2457 = vmatpush1.bf16.msra.mxu0 %v389
  %2458 = vmatprep.subr.bf16.mxu0 %v388
  %2459 = vmatpush1.bf16.msra.mxu0 %v387
  %2460 = vmatprep.subr.bf16.mxu0 %v386
  %2461 = vmatpush1.bf16.msra.mxu0 %v385
  %2462 = vmatprep.subr.bf16.mxu0 %v384
  %2463 = vmatpush1.bf16.msra.mxu0 %v383
  %2464 = vmatprep.subr.bf16.mxu0 0
  %2465 = vmatpush2.bf16.msra.mxu0 0
  %2466 = vmatprep.subr.bf16.mxu0 0
  %2467 = vmatpush2.bf16.msra.mxu0 0
  %2468 = vmatprep.subr.bf16.mxu0 0
  %2469 = vmatpush2.bf16.msra.mxu0 0
  %2470 = vmatprep.subr.bf16.mxu0 0
  %2471 = vmatpush2.bf16.msra.mxu0 0
  %2472 = vmatprep.subr.bf16.mxu0 0
  %2473 = vmatpush2.bf16.msra.mxu0 0
  %2474 = vmatprep.subr.bf16.mxu0 0
  %2475 = vmatpush2.bf16.msra.mxu0 0
  %2476 = vmatprep.subr.bf16.mxu0 0
  %2477 = vmatpush2.bf16.msra.mxu0 0
  %2478 = vmatprep.subr.bf16.mxu0 0
  %2479 = vmatpush2.bf16.msra.mxu0 0
  %2480 = vmatprep.mubr.bf16.mxu0 0
  %2481 = vmatmul.mubr.bf16.gmra.mxu0 %v2446
  %v2482 = vpop.f32.mrf.mxu0
  %v2483 = vadd.f32 0.0, %v2482
  %v2484 = vpop.f32.mrf.mxu0
  %v2485 = vadd.f32 0.0, %v2484
  %v2486 = vpop.f32.mrf.mxu0
  %v2487 = vpop.f32.mrf.mxu0
  %2488 = vdwg.mxu0
  %s2489 = smul.u32 22, 2
  %s2490 = smul.addr %s2489, 8
  %s2491 = scalar_lea.vmem [#allocation2], %s2490
  %v2492 = vld [vmem:[%s2491] sm:$0xff]
  %v2493 = vld [vmem:[%s2491 + $0x8] sm:$0xff]
  %v2494 = vadd.f32 %v2492, %v2483
  %v2495 = vadd.f32 %v2493, %v2485
  %v2496 = vsub.f32 0.0, %v2494
  %v2497 = vmul.f32 %v2496, 1.442695
  %v2498 = vpow.pop %v2497
  %v2499 = vadd.f32 %v2498, 1.0
  %v2500 = vrcp.pop %v2499
  %v2501 = vtanh.pop %v2495
  %v2502 = vsub.f32 0.0, %v2495
  %v2503 = vmul.f32 %v2502, 1.442695
  %v2504 = vpow.pop %v2503
  %v2505 = vadd.f32 %v2504, 1.0
  %v2506 = vrcp.pop %v2505
  %v2507 = vmul.f32 %v2500, %v2361
  %v2508 = vmul.f32 %v2500, %v2501
  %2510 = vrot.lane.b32.xlu0 %v2508, 64
  %v2511 = vpop.permute.xlu0 %2510
  %v2513 = vadd.f32 %v2507, %v2511
  %v2514 = vtanh.pop %v2513
  %v2515 = vmul.f32 %v2506, %v2514
  %2517 = vrot.lane.b32.xlu0 %v2515, 64
  %v2518 = vpop.permute.xlu0 %2517
  %v2519 = vsel %vm399, %v2518, 0
  %2521 = vmatprep.subr.mxu0 0.0
  %2522 = vmatpush1.msra.mxu0 0.0
  %2523 = vmatprep.subr.mxu0 0.0
  %2524 = vmatpush1.msra.mxu0 0.0
  %2525 = vmatprep.subr.mxu0 0.0
  %2526 = vmatpush1.msra.mxu0 0.0
  %2527 = vmatprep.subr.mxu0 0.0
  %2528 = vmatpush1.msra.mxu0 0.0
  %2529 = vmatprep.subr.mxu0 0.0
  %2530 = vmatpush1.msra.mxu0 0.0
  %2531 = vmatprep.subr.mxu0 0.0
  %2532 = vmatpush1.msra.mxu0 0.0
  %2533 = vmatprep.subr.mxu0 0.0
  %2534 = vmatpush1.msra.mxu0 0.0
  %2535 = vmatprep.subr.mxu0 0.0
  %2536 = vmatpush1.msra.mxu0 0.0
  %2537 = vmatprep.subr.mxu0 0.0
  %2538 = vmatpush1.msra.mxu0 %v40
  %2539 = vmatprep.subr.mxu0 0.0
  %2540 = vmatpush1.msra.mxu0 %v39
  %2541 = vmatprep.subr.mxu0 0.0
  %2542 = vmatpush1.msra.mxu0 %v38
  %2543 = vmatprep.subr.mxu0 0.0
  %2544 = vmatpush1.msra.mxu0 %v37
  %2545 = vmatprep.subr.mxu0 0.0
  %2546 = vmatpush1.msra.mxu0 %v36
  %2547 = vmatprep.subr.mxu0 0.0
  %2548 = vmatpush1.msra.mxu0 %v35
  %2549 = vmatprep.subr.mxu0 0.0
  %2550 = vmatpush1.msra.mxu0 %v34
  %2551 = vmatprep.subr.mxu0 0.0
  %2552 = vmatpush1.msra.mxu0 %v33
  %2553 = vmatprep.subr.mxu0 0.0
  %2554 = vmatpush2.msra.mxu0 0.0
  %2555 = vmatprep.subr.mxu0 0.0
  %2556 = vmatpush2.msra.mxu0 0.0
  %2557 = vmatprep.subr.mxu0 0.0
  %2558 = vmatpush2.msra.mxu0 0.0
  %2559 = vmatprep.subr.mxu0 0.0
  %2560 = vmatpush2.msra.mxu0 0.0
  %2561 = vmatprep.subr.mxu0 0.0
  %2562 = vmatpush2.msra.mxu0 0.0
  %2563 = vmatprep.subr.mxu0 0.0
  %2564 = vmatpush2.msra.mxu0 0.0
  %2565 = vmatprep.subr.mxu0 0.0
  %2566 = vmatpush2.msra.mxu0 0.0
  %2567 = vmatprep.subr.mxu0 0.0
  %2568 = vmatpush2.msra.mxu0 0.0
  %2569 = vmatprep.subr.mxu0 0.0
  %2570 = vmatpush2.msra.mxu0 0.0
  %2571 = vmatprep.subr.mxu0 0.0
  %2572 = vmatpush2.msra.mxu0 0.0
  %2573 = vmatprep.subr.mxu0 0.0
  %2574 = vmatpush2.msra.mxu0 0.0
  %2575 = vmatprep.subr.mxu0 0.0
  %2576 = vmatpush2.msra.mxu0 0.0
  %2577 = vmatprep.subr.mxu0 0.0
  %2578 = vmatpush2.msra.mxu0 0.0
  %2579 = vmatprep.subr.mxu0 0.0
  %2580 = vmatpush2.msra.mxu0 0.0
  %2581 = vmatprep.subr.mxu0 0.0
  %2582 = vmatpush2.msra.mxu0 0.0
  %2583 = vmatprep.subr.mxu0 0.0
  %2584 = vmatpush2.msra.mxu0 0.0
  %2585 = vmatprep.mubr.f32.mxu0 0.0
  %2586 = vmatmul.mubr.f32.gmra.mxu0 %v2519
  %v2587 = vpop.f32.mrf.mxu0
  %v2588 = vadd.f32 %v46, %v2587
  %v2589 = vpop.f32.mrf.mxu0
  %2590 = vdwg.mxu0
  %s2591 = scalar_lea.vmem %s6, 40
  %2592 = vst [vmem:[%s2591] sm:$0xff] %v2588
  %v2593 = vpack.c.bf16 %v2515, %v2515
  %2595 = vrot.lane.b32.xlu0 %v2593, 64
  %v2596 = vpop.permute.xlu0 %2595
  %v2598 = vsel %vm399, %v2596, 0
  %2600 = vmatprep.subr.bf16.mxu0 0
  %2601 = vmatpush1.bf16.msra.mxu0 0
  %2602 = vmatprep.subr.bf16.mxu0 0
  %2603 = vmatpush1.bf16.msra.mxu0 0
  %2604 = vmatprep.subr.bf16.mxu0 0
  %2605 = vmatpush1.bf16.msra.mxu0 0
  %2606 = vmatprep.subr.bf16.mxu0 0
  %2607 = vmatpush1.bf16.msra.mxu0 0
  %2608 = vmatprep.subr.bf16.mxu0 %v390
  %2609 = vmatpush1.bf16.msra.mxu0 %v389
  %2610 = vmatprep.subr.bf16.mxu0 %v388
  %2611 = vmatpush1.bf16.msra.mxu0 %v387
  %2612 = vmatprep.subr.bf16.mxu0 %v386
  %2613 = vmatpush1.bf16.msra.mxu0 %v385
  %2614 = vmatprep.subr.bf16.mxu0 %v384
  %2615 = vmatpush1.bf16.msra.mxu0 %v383
  %2616 = vmatprep.subr.bf16.mxu0 0
  %2617 = vmatpush2.bf16.msra.mxu0 0
  %2618 = vmatprep.subr.bf16.mxu0 0
  %2619 = vmatpush2.bf16.msra.mxu0 0
  %2620 = vmatprep.subr.bf16.mxu0 0
  %2621 = vmatpush2.bf16.msra.mxu0 0
  %2622 = vmatprep.subr.bf16.mxu0 0
  %2623 = vmatpush2.bf16.msra.mxu0 0
  %2624 = vmatprep.subr.bf16.mxu0 0
  %2625 = vmatpush2.bf16.msra.mxu0 0
  %2626 = vmatprep.subr.bf16.mxu0 0
  %2627 = vmatpush2.bf16.msra.mxu0 0
  %2628 = vmatprep.subr.bf16.mxu0 0
  %2629 = vmatpush2.bf16.msra.mxu0 0
  %2630 = vmatprep.subr.bf16.mxu0 0
  %2631 = vmatpush2.bf16.msra.mxu0 0
  %2632 = vmatprep.mubr.bf16.mxu0 0
  %2633 = vmatmul.mubr.bf16.gmra.mxu0 %v2598
  %v2634 = vpop.f32.mrf.mxu0
  %v2635 = vadd.f32 0.0, %v2634
  %v2636 = vpop.f32.mrf.mxu0
  %v2637 = vadd.f32 0.0, %v2636
  %v2638 = vpop.f32.mrf.mxu0
  %v2639 = vpop.f32.mrf.mxu0
  %2640 = vdwg.mxu0
  %s2641 = smul.u32 23, 2
  %s2642 = smul.addr %s2641, 8
  %s2643 = scalar_lea.vmem [#allocation2], %s2642
  %v2644 = vld [vmem:[%s2643] sm:$0xff]
  %v2645 = vld [vmem:[%s2643 + $0x8] sm:$0xff]
  %v2646 = vadd.f32 %v2644, %v2635
  %v2647 = vadd.f32 %v2645, %v2637
  %v2648 = vsub.f32 0.0, %v2646
  %v2649 = vmul.f32 %v2648, 1.442695
  %v2650 = vpow.pop %v2649
  %v2651 = vadd.f32 %v2650, 1.0
  %v2652 = vrcp.pop %v2651
  %v2653 = vtanh.pop %v2647
  %v2654 = vsub.f32 0.0, %v2647
  %v2655 = vmul.f32 %v2654, 1.442695
  %v2656 = vpow.pop %v2655
  %v2657 = vadd.f32 %v2656, 1.0
  %v2658 = vrcp.pop %v2657
  %v2659 = vmul.f32 %v2652, %v2513
  %v2660 = vmul.f32 %v2652, %v2653
  %2662 = vrot.lane.b32.xlu0 %v2660, 64
  %v2663 = vpop.permute.xlu0 %2662
  %v2665 = vadd.f32 %v2659, %v2663
  %v2666 = vtanh.pop %v2665
  %v2667 = vmul.f32 %v2658, %v2666
  %2669 = vrot.lane.b32.xlu0 %v2667, 64
  %v2670 = vpop.permute.xlu0 %2669
  %v2671 = vsel %vm399, %v2670, 0
  %2673 = vmatprep.subr.mxu0 0.0
  %2674 = vmatpush1.msra.mxu0 0.0
  %2675 = vmatprep.subr.mxu0 0.0
  %2676 = vmatpush1.msra.mxu0 0.0
  %2677 = vmatprep.subr.mxu0 0.0
  %2678 = vmatpush1.msra.mxu0 0.0
  %2679 = vmatprep.subr.mxu0 0.0
  %2680 = vmatpush1.msra.mxu0 0.0
  %2681 = vmatprep.subr.mxu0 0.0
  %2682 = vmatpush1.msra.mxu0 0.0
  %2683 = vmatprep.subr.mxu0 0.0
  %2684 = vmatpush1.msra.mxu0 0.0
  %2685 = vmatprep.subr.mxu0 0.0
  %2686 = vmatpush1.msra.mxu0 0.0
  %2687 = vmatprep.subr.mxu0 0.0
  %2688 = vmatpush1.msra.mxu0 0.0
  %2689 = vmatprep.subr.mxu0 0.0
  %2690 = vmatpush1.msra.mxu0 %v40
  %2691 = vmatprep.subr.mxu0 0.0
  %2692 = vmatpush1.msra.mxu0 %v39
  %2693 = vmatprep.subr.mxu0 0.0
  %2694 = vmatpush1.msra.mxu0 %v38
  %2695 = vmatprep.subr.mxu0 0.0
  %2696 = vmatpush1.msra.mxu0 %v37
  %2697 = vmatprep.subr.mxu0 0.0
  %2698 = vmatpush1.msra.mxu0 %v36
  %2699 = vmatprep.subr.mxu0 0.0
  %2700 = vmatpush1.msra.mxu0 %v35
  %2701 = vmatprep.subr.mxu0 0.0
  %2702 = vmatpush1.msra.mxu0 %v34
  %2703 = vmatprep.subr.mxu0 0.0
  %2704 = vmatpush1.msra.mxu0 %v33
  %2705 = vmatprep.subr.mxu0 0.0
  %2706 = vmatpush2.msra.mxu0 0.0
  %2707 = vmatprep.subr.mxu0 0.0
  %2708 = vmatpush2.msra.mxu0 0.0
  %2709 = vmatprep.subr.mxu0 0.0
  %2710 = vmatpush2.msra.mxu0 0.0
  %2711 = vmatprep.subr.mxu0 0.0
  %2712 = vmatpush2.msra.mxu0 0.0
  %2713 = vmatprep.subr.mxu0 0.0
  %2714 = vmatpush2.msra.mxu0 0.0
  %2715 = vmatprep.subr.mxu0 0.0
  %2716 = vmatpush2.msra.mxu0 0.0
  %2717 = vmatprep.subr.mxu0 0.0
  %2718 = vmatpush2.msra.mxu0 0.0
  %2719 = vmatprep.subr.mxu0 0.0
  %2720 = vmatpush2.msra.mxu0 0.0
  %2721 = vmatprep.subr.mxu0 0.0
  %2722 = vmatpush2.msra.mxu0 0.0
  %2723 = vmatprep.subr.mxu0 0.0
  %2724 = vmatpush2.msra.mxu0 0.0
  %2725 = vmatprep.subr.mxu0 0.0
  %2726 = vmatpush2.msra.mxu0 0.0
  %2727 = vmatprep.subr.mxu0 0.0
  %2728 = vmatpush2.msra.mxu0 0.0
  %2729 = vmatprep.subr.mxu0 0.0
  %2730 = vmatpush2.msra.mxu0 0.0
  %2731 = vmatprep.subr.mxu0 0.0
  %2732 = vmatpush2.msra.mxu0 0.0
  %2733 = vmatprep.subr.mxu0 0.0
  %2734 = vmatpush2.msra.mxu0 0.0
  %2735 = vmatprep.subr.mxu0 0.0
  %2736 = vmatpush2.msra.mxu0 0.0
  %2737 = vmatprep.mubr.f32.mxu0 0.0
  %2738 = vmatmul.mubr.f32.gmra.mxu0 %v2671
  %v2739 = vpop.f32.mrf.mxu0
  %v2740 = vadd.f32 %v46, %v2739
  %v2741 = vpop.f32.mrf.mxu0
  %2742 = vdwg.mxu0
  %s2743 = scalar_lea.vmem %s6, 48
  %2744 = vst [vmem:[%s2743] sm:$0xff] %v2740
  %v2745 = vpack.c.bf16 %v2667, %v2667
  %2747 = vrot.lane.b32.xlu0 %v2745, 64
  %v2748 = vpop.permute.xlu0 %2747
  %v2750 = vsel %vm399, %v2748, 0
  %2752 = vmatprep.subr.bf16.mxu0 0
  %2753 = vmatpush1.bf16.msra.mxu0 0
  %2754 = vmatprep.subr.bf16.mxu0 0
  %2755 = vmatpush1.bf16.msra.mxu0 0
  %2756 = vmatprep.subr.bf16.mxu0 0
  %2757 = vmatpush1.bf16.msra.mxu0 0
  %2758 = vmatprep.subr.bf16.mxu0 0
  %2759 = vmatpush1.bf16.msra.mxu0 0
  %2760 = vmatprep.subr.bf16.mxu0 %v390
  %2761 = vmatpush1.bf16.msra.mxu0 %v389
  %2762 = vmatprep.subr.bf16.mxu0 %v388
  %2763 = vmatpush1.bf16.msra.mxu0 %v387
  %2764 = vmatprep.subr.bf16.mxu0 %v386
  %2765 = vmatpush1.bf16.msra.mxu0 %v385
  %2766 = vmatprep.subr.bf16.mxu0 %v384
  %2767 = vmatpush1.bf16.msra.mxu0 %v383
  %2768 = vmatprep.subr.bf16.mxu0 0
  %2769 = vmatpush2.bf16.msra.mxu0 0
  %2770 = vmatprep.subr.bf16.mxu0 0
  %2771 = vmatpush2.bf16.msra.mxu0 0
  %2772 = vmatprep.subr.bf16.mxu0 0
  %2773 = vmatpush2.bf16.msra.mxu0 0
  %2774 = vmatprep.subr.bf16.mxu0 0
  %2775 = vmatpush2.bf16.msra.mxu0 0
  %2776 = vmatprep.subr.bf16.mxu0 0
  %2777 = vmatpush2.bf16.msra.mxu0 0
  %2778 = vmatprep.subr.bf16.mxu0 0
  %2779 = vmatpush2.bf16.msra.mxu0 0
  %2780 = vmatprep.subr.bf16.mxu0 0
  %2781 = vmatpush2.bf16.msra.mxu0 0
  %2782 = vmatprep.subr.bf16.mxu0 0
  %2783 = vmatpush2.bf16.msra.mxu0 0
  %2784 = vmatprep.mubr.bf16.mxu0 0
  %2785 = vmatmul.mubr.bf16.gmra.mxu0 %v2750
  %v2786 = vpop.f32.mrf.mxu0
  %v2787 = vadd.f32 0.0, %v2786
  %v2788 = vpop.f32.mrf.mxu0
  %v2789 = vadd.f32 0.0, %v2788
  %v2790 = vpop.f32.mrf.mxu0
  %v2791 = vpop.f32.mrf.mxu0
  %2792 = vdwg.mxu0
  %s2793 = smul.u32 24, 2
  %s2794 = smul.addr %s2793, 8
  %s2795 = scalar_lea.vmem [#allocation2], %s2794
  %v2796 = vld [vmem:[%s2795] sm:$0xff]
  %v2797 = vld [vmem:[%s2795 + $0x8] sm:$0xff]
  %v2798 = vadd.f32 %v2796, %v2787
  %v2799 = vadd.f32 %v2797, %v2789
  %v2800 = vsub.f32 0.0, %v2798
  %v2801 = vmul.f32 %v2800, 1.442695
  %v2802 = vpow.pop %v2801
  %v2803 = vadd.f32 %v2802, 1.0
  %v2804 = vrcp.pop %v2803
  %v2805 = vtanh.pop %v2799
  %v2806 = vsub.f32 0.0, %v2799
  %v2807 = vmul.f32 %v2806, 1.442695
  %v2808 = vpow.pop %v2807
  %v2809 = vadd.f32 %v2808, 1.0
  %v2810 = vrcp.pop %v2809
  %v2811 = vmul.f32 %v2804, %v2665
  %v2812 = vmul.f32 %v2804, %v2805
  %2814 = vrot.lane.b32.xlu0 %v2812, 64
  %v2815 = vpop.permute.xlu0 %2814
  %v2817 = vadd.f32 %v2811, %v2815
  %v2818 = vtanh.pop %v2817
  %v2819 = vmul.f32 %v2810, %v2818
  %2821 = vrot.lane.b32.xlu0 %v2819, 64
  %v2822 = vpop.permute.xlu0 %2821
  %v2823 = vsel %vm399, %v2822, 0
  %2825 = vmatprep.subr.mxu0 0.0
  %2826 = vmatpush1.msra.mxu0 0.0
  %2827 = vmatprep.subr.mxu0 0.0
  %2828 = vmatpush1.msra.mxu0 0.0
  %2829 = vmatprep.subr.mxu0 0.0
  %2830 = vmatpush1.msra.mxu0 0.0
  %2831 = vmatprep.subr.mxu0 0.0
  %2832 = vmatpush1.msra.mxu0 0.0
  %2833 = vmatprep.subr.mxu0 0.0
  %2834 = vmatpush1.msra.mxu0 0.0
  %2835 = vmatprep.subr.mxu0 0.0
  %2836 = vmatpush1.msra.mxu0 0.0
  %2837 = vmatprep.subr.mxu0 0.0
  %2838 = vmatpush1.msra.mxu0 0.0
  %2839 = vmatprep.subr.mxu0 0.0
  %2840 = vmatpush1.msra.mxu0 0.0
  %2841 = vmatprep.subr.mxu0 0.0
  %2842 = vmatpush1.msra.mxu0 %v40
  %2843 = vmatprep.subr.mxu0 0.0
  %2844 = vmatpush1.msra.mxu0 %v39
  %2845 = vmatprep.subr.mxu0 0.0
  %2846 = vmatpush1.msra.mxu0 %v38
  %2847 = vmatprep.subr.mxu0 0.0
  %2848 = vmatpush1.msra.mxu0 %v37
  %2849 = vmatprep.subr.mxu0 0.0
  %2850 = vmatpush1.msra.mxu0 %v36
  %2851 = vmatprep.subr.mxu0 0.0
  %2852 = vmatpush1.msra.mxu0 %v35
  %2853 = vmatprep.subr.mxu0 0.0
  %2854 = vmatpush1.msra.mxu0 %v34
  %2855 = vmatprep.subr.mxu0 0.0
  %2856 = vmatpush1.msra.mxu0 %v33
  %2857 = vmatprep.subr.mxu0 0.0
  %2858 = vmatpush2.msra.mxu0 0.0
  %2859 = vmatprep.subr.mxu0 0.0
  %2860 = vmatpush2.msra.mxu0 0.0
  %2861 = vmatprep.subr.mxu0 0.0
  %2862 = vmatpush2.msra.mxu0 0.0
  %2863 = vmatprep.subr.mxu0 0.0
  %2864 = vmatpush2.msra.mxu0 0.0
  %2865 = vmatprep.subr.mxu0 0.0
  %2866 = vmatpush2.msra.mxu0 0.0
  %2867 = vmatprep.subr.mxu0 0.0
  %2868 = vmatpush2.msra.mxu0 0.0
  %2869 = vmatprep.subr.mxu0 0.0
  %2870 = vmatpush2.msra.mxu0 0.0
  %2871 = vmatprep.subr.mxu0 0.0
  %2872 = vmatpush2.msra.mxu0 0.0
  %2873 = vmatprep.subr.mxu0 0.0
  %2874 = vmatpush2.msra.mxu0 0.0
  %2875 = vmatprep.subr.mxu0 0.0
  %2876 = vmatpush2.msra.mxu0 0.0
  %2877 = vmatprep.subr.mxu0 0.0
  %2878 = vmatpush2.msra.mxu0 0.0
  %2879 = vmatprep.subr.mxu0 0.0
  %2880 = vmatpush2.msra.mxu0 0.0
  %2881 = vmatprep.subr.mxu0 0.0
  %2882 = vmatpush2.msra.mxu0 0.0
  %2883 = vmatprep.subr.mxu0 0.0
  %2884 = vmatpush2.msra.mxu0 0.0
  %2885 = vmatprep.subr.mxu0 0.0
  %2886 = vmatpush2.msra.mxu0 0.0
  %2887 = vmatprep.subr.mxu0 0.0
  %2888 = vmatpush2.msra.mxu0 0.0
  %2889 = vmatprep.mubr.f32.mxu0 0.0
  %2890 = vmatmul.mubr.f32.gmra.mxu0 %v2823
  %v2891 = vpop.f32.mrf.mxu0
  %v2892 = vadd.f32 %v46, %v2891
  %v2893 = vpop.f32.mrf.mxu0
  %2894 = vdwg.mxu0
  %s2895 = scalar_lea.vmem %s6, 56
  %2896 = vst [vmem:[%s2895] sm:$0xff] %v2892
  %v2897 = vpack.c.bf16 %v2819, %v2819
  %2899 = vrot.lane.b32.xlu0 %v2897, 64
  %v2900 = vpop.permute.xlu0 %2899
  %v2902 = vsel %vm399, %v2900, 0
  %2904 = vmatprep.subr.bf16.mxu0 0
  %2905 = vmatpush1.bf16.msra.mxu0 0
  %2906 = vmatprep.subr.bf16.mxu0 0
  %2907 = vmatpush1.bf16.msra.mxu0 0
  %2908 = vmatprep.subr.bf16.mxu0 0
  %2909 = vmatpush1.bf16.msra.mxu0 0
  %2910 = vmatprep.subr.bf16.mxu0 0
  %2911 = vmatpush1.bf16.msra.mxu0 0
  %2912 = vmatprep.subr.bf16.mxu0 %v390
  %2913 = vmatpush1.bf16.msra.mxu0 %v389
  %2914 = vmatprep.subr.bf16.mxu0 %v388
  %2915 = vmatpush1.bf16.msra.mxu0 %v387
  %2916 = vmatprep.subr.bf16.mxu0 %v386
  %2917 = vmatpush1.bf16.msra.mxu0 %v385
  %2918 = vmatprep.subr.bf16.mxu0 %v384
  %2919 = vmatpush1.bf16.msra.mxu0 %v383
  %2920 = vmatprep.subr.bf16.mxu0 0
  %2921 = vmatpush2.bf16.msra.mxu0 0
  %2922 = vmatprep.subr.bf16.mxu0 0
  %2923 = vmatpush2.bf16.msra.mxu0 0
  %2924 = vmatprep.subr.bf16.mxu0 0
  %2925 = vmatpush2.bf16.msra.mxu0 0
  %2926 = vmatprep.subr.bf16.mxu0 0
  %2927 = vmatpush2.bf16.msra.mxu0 0
  %2928 = vmatprep.subr.bf16.mxu0 0
  %2929 = vmatpush2.bf16.msra.mxu0 0
  %2930 = vmatprep.subr.bf16.mxu0 0
  %2931 = vmatpush2.bf16.msra.mxu0 0
  %2932 = vmatprep.subr.bf16.mxu0 0
  %2933 = vmatpush2.bf16.msra.mxu0 0
  %2934 = vmatprep.subr.bf16.mxu0 0
  %2935 = vmatpush2.bf16.msra.mxu0 0
  %2936 = vmatprep.mubr.bf16.mxu0 0
  %2937 = vmatmul.mubr.bf16.gmra.mxu0 %v2902
  %v2938 = vpop.f32.mrf.mxu0
  %v2939 = vadd.f32 0.0, %v2938
  %v2940 = vpop.f32.mrf.mxu0
  %v2941 = vadd.f32 0.0, %v2940
  %v2942 = vpop.f32.mrf.mxu0
  %v2943 = vpop.f32.mrf.mxu0
  %2944 = vdwg.mxu0
  %s2945 = smul.u32 25, 2
  %s2946 = smul.addr %s2945, 8
  %s2947 = scalar_lea.vmem [#allocation2], %s2946
  %v2948 = vld [vmem:[%s2947] sm:$0xff]
  %v2949 = vld [vmem:[%s2947 + $0x8] sm:$0xff]
  %v2950 = vadd.f32 %v2948, %v2939
  %v2951 = vadd.f32 %v2949, %v2941
  %v2952 = vsub.f32 0.0, %v2950
  %v2953 = vmul.f32 %v2952, 1.442695
  %v2954 = vpow.pop %v2953
  %v2955 = vadd.f32 %v2954, 1.0
  %v2956 = vrcp.pop %v2955
  %v2957 = vtanh.pop %v2951
  %v2958 = vsub.f32 0.0, %v2951
  %v2959 = vmul.f32 %v2958, 1.442695
  %v2960 = vpow.pop %v2959
  %v2961 = vadd.f32 %v2960, 1.0
  %v2962 = vrcp.pop %v2961
  %v2963 = vmul.f32 %v2956, %v2817
  %v2964 = vmul.f32 %v2956, %v2957
  %2966 = vrot.lane.b32.xlu0 %v2964, 64
  %v2967 = vpop.permute.xlu0 %2966
  %v2969 = vadd.f32 %v2963, %v2967
  %v2970 = vtanh.pop %v2969
  %v2971 = vmul.f32 %v2962, %v2970
  %2973 = vrot.lane.b32.xlu0 %v2971, 64
  %v2974 = vpop.permute.xlu0 %2973
  %v2975 = vsel %vm399, %v2974, 0
  %2977 = vmatprep.subr.mxu0 0.0
  %2978 = vmatpush1.msra.mxu0 0.0
  %2979 = vmatprep.subr.mxu0 0.0
  %2980 = vmatpush1.msra.mxu0 0.0
  %2981 = vmatprep.subr.mxu0 0.0
  %2982 = vmatpush1.msra.mxu0 0.0
  %2983 = vmatprep.subr.mxu0 0.0
  %2984 = vmatpush1.msra.mxu0 0.0
  %2985 = vmatprep.subr.mxu0 0.0
  %2986 = vmatpush1.msra.mxu0 0.0
  %2987 = vmatprep.subr.mxu0 0.0
  %2988 = vmatpush1.msra.mxu0 0.0
  %2989 = vmatprep.subr.mxu0 0.0
  %2990 = vmatpush1.msra.mxu0 0.0
  %2991 = vmatprep.subr.mxu0 0.0
  %2992 = vmatpush1.msra.mxu0 0.0
  %2993 = vmatprep.subr.mxu0 0.0
  %2994 = vmatpush1.msra.mxu0 %v40
  %2995 = vmatprep.subr.mxu0 0.0
  %2996 = vmatpush1.msra.mxu0 %v39
  %2997 = vmatprep.subr.mxu0 0.0
  %2998 = vmatpush1.msra.mxu0 %v38
  %2999 = vmatprep.subr.mxu0 0.0
  %3000 = vmatpush1.msra.mxu0 %v37
  %3001 = vmatprep.subr.mxu0 0.0
  %3002 = vmatpush1.msra.mxu0 %v36
  %3003 = vmatprep.subr.mxu0 0.0
  %3004 = vmatpush1.msra.mxu0 %v35
  %3005 = vmatprep.subr.mxu0 0.0
  %3006 = vmatpush1.msra.mxu0 %v34
  %3007 = vmatprep.subr.mxu0 0.0
  %3008 = vmatpush1.msra.mxu0 %v33
  %3009 = vmatprep.subr.mxu0 0.0
  %3010 = vmatpush2.msra.mxu0 0.0
  %3011 = vmatprep.subr.mxu0 0.0
  %3012 = vmatpush2.msra.mxu0 0.0
  %3013 = vmatprep.subr.mxu0 0.0
  %3014 = vmatpush2.msra.mxu0 0.0
  %3015 = vmatprep.subr.mxu0 0.0
  %3016 = vmatpush2.msra.mxu0 0.0
  %3017 = vmatprep.subr.mxu0 0.0
  %3018 = vmatpush2.msra.mxu0 0.0
  %3019 = vmatprep.subr.mxu0 0.0
  %3020 = vmatpush2.msra.mxu0 0.0
  %3021 = vmatprep.subr.mxu0 0.0
  %3022 = vmatpush2.msra.mxu0 0.0
  %3023 = vmatprep.subr.mxu0 0.0
  %3024 = vmatpush2.msra.mxu0 0.0
  %3025 = vmatprep.subr.mxu0 0.0
  %3026 = vmatpush2.msra.mxu0 0.0
  %3027 = vmatprep.subr.mxu0 0.0
  %3028 = vmatpush2.msra.mxu0 0.0
  %3029 = vmatprep.subr.mxu0 0.0
  %3030 = vmatpush2.msra.mxu0 0.0
  %3031 = vmatprep.subr.mxu0 0.0
  %3032 = vmatpush2.msra.mxu0 0.0
  %3033 = vmatprep.subr.mxu0 0.0
  %3034 = vmatpush2.msra.mxu0 0.0
  %3035 = vmatprep.subr.mxu0 0.0
  %3036 = vmatpush2.msra.mxu0 0.0
  %3037 = vmatprep.subr.mxu0 0.0
  %3038 = vmatpush2.msra.mxu0 0.0
  %3039 = vmatprep.subr.mxu0 0.0
  %3040 = vmatpush2.msra.mxu0 0.0
  %3041 = vmatprep.mubr.f32.mxu0 0.0
  %3042 = vmatmul.mubr.f32.gmra.mxu0 %v2975
  %v3043 = vpop.f32.mrf.mxu0
  %v3044 = vadd.f32 %v46, %v3043
  %v3045 = vpop.f32.mrf.mxu0
  %3046 = vdwg.mxu0
  %s3047 = scalar_lea.vmem %s6, 64
  %3048 = vst [vmem:[%s3047] sm:$0xff] %v3044
  %v3049 = vpack.c.bf16 %v2971, %v2971
  %3051 = vrot.lane.b32.xlu0 %v3049, 64
  %v3052 = vpop.permute.xlu0 %3051
  %v3054 = vsel %vm399, %v3052, 0
  %3056 = vmatprep.subr.bf16.mxu0 0
  %3057 = vmatpush1.bf16.msra.mxu0 0
  %3058 = vmatprep.subr.bf16.mxu0 0
  %3059 = vmatpush1.bf16.msra.mxu0 0
  %3060 = vmatprep.subr.bf16.mxu0 0
  %3061 = vmatpush1.bf16.msra.mxu0 0
  %3062 = vmatprep.subr.bf16.mxu0 0
  %3063 = vmatpush1.bf16.msra.mxu0 0
  %3064 = vmatprep.subr.bf16.mxu0 %v390
  %3065 = vmatpush1.bf16.msra.mxu0 %v389
  %3066 = vmatprep.subr.bf16.mxu0 %v388
  %3067 = vmatpush1.bf16.msra.mxu0 %v387
  %3068 = vmatprep.subr.bf16.mxu0 %v386
  %3069 = vmatpush1.bf16.msra.mxu0 %v385
  %3070 = vmatprep.subr.bf16.mxu0 %v384
  %3071 = vmatpush1.bf16.msra.mxu0 %v383
  %3072 = vmatprep.subr.bf16.mxu0 0
  %3073 = vmatpush2.bf16.msra.mxu0 0
  %3074 = vmatprep.subr.bf16.mxu0 0
  %3075 = vmatpush2.bf16.msra.mxu0 0
  %3076 = vmatprep.subr.bf16.mxu0 0
  %3077 = vmatpush2.bf16.msra.mxu0 0
  %3078 = vmatprep.subr.bf16.mxu0 0
  %3079 = vmatpush2.bf16.msra.mxu0 0
  %3080 = vmatprep.subr.bf16.mxu0 0
  %3081 = vmatpush2.bf16.msra.mxu0 0
  %3082 = vmatprep.subr.bf16.mxu0 0
  %3083 = vmatpush2.bf16.msra.mxu0 0
  %3084 = vmatprep.subr.bf16.mxu0 0
  %3085 = vmatpush2.bf16.msra.mxu0 0
  %3086 = vmatprep.subr.bf16.mxu0 0
  %3087 = vmatpush2.bf16.msra.mxu0 0
  %3088 = vmatprep.mubr.bf16.mxu0 0
  %3089 = vmatmul.mubr.bf16.gmra.mxu0 %v3054
  %v3090 = vpop.f32.mrf.mxu0
  %v3091 = vadd.f32 0.0, %v3090
  %v3092 = vpop.f32.mrf.mxu0
  %v3093 = vadd.f32 0.0, %v3092
  %v3094 = vpop.f32.mrf.mxu0
  %v3095 = vpop.f32.mrf.mxu0
  %3096 = vdwg.mxu0
  %s3097 = smul.u32 26, 2
  %s3098 = smul.addr %s3097, 8
  %s3099 = scalar_lea.vmem [#allocation2], %s3098
  %v3100 = vld [vmem:[%s3099] sm:$0xff]
  %v3101 = vld [vmem:[%s3099 + $0x8] sm:$0xff]
  %v3102 = vadd.f32 %v3100, %v3091
  %v3103 = vadd.f32 %v3101, %v3093
  %v3104 = vsub.f32 0.0, %v3102
  %v3105 = vmul.f32 %v3104, 1.442695
  %v3106 = vpow.pop %v3105
  %v3107 = vadd.f32 %v3106, 1.0
  %v3108 = vrcp.pop %v3107
  %v3109 = vtanh.pop %v3103
  %v3110 = vsub.f32 0.0, %v3103
  %v3111 = vmul.f32 %v3110, 1.442695
  %v3112 = vpow.pop %v3111
  %v3113 = vadd.f32 %v3112, 1.0
  %v3114 = vrcp.pop %v3113
  %v3115 = vmul.f32 %v3108, %v2969
  %v3116 = vmul.f32 %v3108, %v3109
  %3118 = vrot.lane.b32.xlu0 %v3116, 64
  %v3119 = vpop.permute.xlu0 %3118
  %v3121 = vadd.f32 %v3115, %v3119
  %v3122 = vtanh.pop %v3121
  %v3123 = vmul.f32 %v3114, %v3122
  %3125 = vrot.lane.b32.xlu0 %v3123, 64
  %v3126 = vpop.permute.xlu0 %3125
  %v3127 = vsel %vm399, %v3126, 0
  %3129 = vmatprep.subr.mxu0 0.0
  %3130 = vmatpush1.msra.mxu0 0.0
  %3131 = vmatprep.subr.mxu0 0.0
  %3132 = vmatpush1.msra.mxu0 0.0
  %3133 = vmatprep.subr.mxu0 0.0
  %3134 = vmatpush1.msra.mxu0 0.0
  %3135 = vmatprep.subr.mxu0 0.0
  %3136 = vmatpush1.msra.mxu0 0.0
  %3137 = vmatprep.subr.mxu0 0.0
  %3138 = vmatpush1.msra.mxu0 0.0
  %3139 = vmatprep.subr.mxu0 0.0
  %3140 = vmatpush1.msra.mxu0 0.0
  %3141 = vmatprep.subr.mxu0 0.0
  %3142 = vmatpush1.msra.mxu0 0.0
  %3143 = vmatprep.subr.mxu0 0.0
  %3144 = vmatpush1.msra.mxu0 0.0
  %3145 = vmatprep.subr.mxu0 0.0
  %3146 = vmatpush1.msra.mxu0 %v40
  %3147 = vmatprep.subr.mxu0 0.0
  %3148 = vmatpush1.msra.mxu0 %v39
  %3149 = vmatprep.subr.mxu0 0.0
  %3150 = vmatpush1.msra.mxu0 %v38
  %3151 = vmatprep.subr.mxu0 0.0
  %3152 = vmatpush1.msra.mxu0 %v37
  %3153 = vmatprep.subr.mxu0 0.0
  %3154 = vmatpush1.msra.mxu0 %v36
  %3155 = vmatprep.subr.mxu0 0.0
  %3156 = vmatpush1.msra.mxu0 %v35
  %3157 = vmatprep.subr.mxu0 0.0
  %3158 = vmatpush1.msra.mxu0 %v34
  %3159 = vmatprep.subr.mxu0 0.0
  %3160 = vmatpush1.msra.mxu0 %v33
  %3161 = vmatprep.subr.mxu0 0.0
  %3162 = vmatpush2.msra.mxu0 0.0
  %3163 = vmatprep.subr.mxu0 0.0
  %3164 = vmatpush2.msra.mxu0 0.0
  %3165 = vmatprep.subr.mxu0 0.0
  %3166 = vmatpush2.msra.mxu0 0.0
  %3167 = vmatprep.subr.mxu0 0.0
  %3168 = vmatpush2.msra.mxu0 0.0
  %3169 = vmatprep.subr.mxu0 0.0
  %3170 = vmatpush2.msra.mxu0 0.0
  %3171 = vmatprep.subr.mxu0 0.0
  %3172 = vmatpush2.msra.mxu0 0.0
  %3173 = vmatprep.subr.mxu0 0.0
  %3174 = vmatpush2.msra.mxu0 0.0
  %3175 = vmatprep.subr.mxu0 0.0
  %3176 = vmatpush2.msra.mxu0 0.0
  %3177 = vmatprep.subr.mxu0 0.0
  %3178 = vmatpush2.msra.mxu0 0.0
  %3179 = vmatprep.subr.mxu0 0.0
  %3180 = vmatpush2.msra.mxu0 0.0
  %3181 = vmatprep.subr.mxu0 0.0
  %3182 = vmatpush2.msra.mxu0 0.0
  %3183 = vmatprep.subr.mxu0 0.0
  %3184 = vmatpush2.msra.mxu0 0.0
  %3185 = vmatprep.subr.mxu0 0.0
  %3186 = vmatpush2.msra.mxu0 0.0
  %3187 = vmatprep.subr.mxu0 0.0
  %3188 = vmatpush2.msra.mxu0 0.0
  %3189 = vmatprep.subr.mxu0 0.0
  %3190 = vmatpush2.msra.mxu0 0.0
  %3191 = vmatprep.subr.mxu0 0.0
  %3192 = vmatpush2.msra.mxu0 0.0
  %3193 = vmatprep.mubr.f32.mxu0 0.0
  %3194 = vmatmul.mubr.f32.gmra.mxu0 %v3127
  %v3195 = vpop.f32.mrf.mxu0
  %v3196 = vadd.f32 %v46, %v3195
  %v3197 = vpop.f32.mrf.mxu0
  %3198 = vdwg.mxu0
  %s3199 = scalar_lea.vmem %s6, 72
  %3200 = vst [vmem:[%s3199] sm:$0xff] %v3196
  %v3201 = vpack.c.bf16 %v3123, %v3123
  %3203 = vrot.lane.b32.xlu0 %v3201, 64
  %v3204 = vpop.permute.xlu0 %3203
  %v3206 = vsel %vm399, %v3204, 0
  %3208 = vmatprep.subr.bf16.mxu0 0
  %3209 = vmatpush1.bf16.msra.mxu0 0
  %3210 = vmatprep.subr.bf16.mxu0 0
  %3211 = vmatpush1.bf16.msra.mxu0 0
  %3212 = vmatprep.subr.bf16.mxu0 0
  %3213 = vmatpush1.bf16.msra.mxu0 0
  %3214 = vmatprep.subr.bf16.mxu0 0
  %3215 = vmatpush1.bf16.msra.mxu0 0
  %3216 = vmatprep.subr.bf16.mxu0 %v390
  %3217 = vmatpush1.bf16.msra.mxu0 %v389
  %3218 = vmatprep.subr.bf16.mxu0 %v388
  %3219 = vmatpush1.bf16.msra.mxu0 %v387
  %3220 = vmatprep.subr.bf16.mxu0 %v386
  %3221 = vmatpush1.bf16.msra.mxu0 %v385
  %3222 = vmatprep.subr.bf16.mxu0 %v384
  %3223 = vmatpush1.bf16.msra.mxu0 %v383
  %3224 = vmatprep.subr.bf16.mxu0 0
  %3225 = vmatpush2.bf16.msra.mxu0 0
  %3226 = vmatprep.subr.bf16.mxu0 0
  %3227 = vmatpush2.bf16.msra.mxu0 0
  %3228 = vmatprep.subr.bf16.mxu0 0
  %3229 = vmatpush2.bf16.msra.mxu0 0
  %3230 = vmatprep.subr.bf16.mxu0 0
  %3231 = vmatpush2.bf16.msra.mxu0 0
  %3232 = vmatprep.subr.bf16.mxu0 0
  %3233 = vmatpush2.bf16.msra.mxu0 0
  %3234 = vmatprep.subr.bf16.mxu0 0
  %3235 = vmatpush2.bf16.msra.mxu0 0
  %3236 = vmatprep.subr.bf16.mxu0 0
  %3237 = vmatpush2.bf16.msra.mxu0 0
  %3238 = vmatprep.subr.bf16.mxu0 0
  %3239 = vmatpush2.bf16.msra.mxu0 0
  %3240 = vmatprep.mubr.bf16.mxu0 0
  %3241 = vmatmul.mubr.bf16.gmra.mxu0 %v3206
  %v3242 = vpop.f32.mrf.mxu0
  %v3243 = vadd.f32 0.0, %v3242
  %v3244 = vpop.f32.mrf.mxu0
  %v3245 = vadd.f32 0.0, %v3244
  %v3246 = vpop.f32.mrf.mxu0
  %v3247 = vpop.f32.mrf.mxu0
  %3248 = vdwg.mxu0
  %s3249 = smul.u32 27, 2
  %s3250 = smul.addr %s3249, 8
  %s3251 = scalar_lea.vmem [#allocation2], %s3250
  %v3252 = vld [vmem:[%s3251] sm:$0xff]
  %v3253 = vld [vmem:[%s3251 + $0x8] sm:$0xff]
  %v3254 = vadd.f32 %v3252, %v3243
  %v3255 = vadd.f32 %v3253, %v3245
  %v3256 = vsub.f32 0.0, %v3254
  %v3257 = vmul.f32 %v3256, 1.442695
  %v3258 = vpow.pop %v3257
  %v3259 = vadd.f32 %v3258, 1.0
  %v3260 = vrcp.pop %v3259
  %v3261 = vtanh.pop %v3255
  %v3262 = vsub.f32 0.0, %v3255
  %v3263 = vmul.f32 %v3262, 1.442695
  %v3264 = vpow.pop %v3263
  %v3265 = vadd.f32 %v3264, 1.0
  %v3266 = vrcp.pop %v3265
  %v3267 = vmul.f32 %v3260, %v3121
  %v3268 = vmul.f32 %v3260, %v3261
  %3270 = vrot.lane.b32.xlu0 %v3268, 64
  %v3271 = vpop.permute.xlu0 %3270
  %v3273 = vadd.f32 %v3267, %v3271
  %v3274 = vtanh.pop %v3273
  %v3275 = vmul.f32 %v3266, %v3274
  %3277 = vrot.lane.b32.xlu0 %v3275, 64
  %v3278 = vpop.permute.xlu0 %3277
  %v3279 = vsel %vm399, %v3278, 0
  %3281 = vmatprep.subr.mxu0 0.0
  %3282 = vmatpush1.msra.mxu0 0.0
  %3283 = vmatprep.subr.mxu0 0.0
  %3284 = vmatpush1.msra.mxu0 0.0
  %3285 = vmatprep.subr.mxu0 0.0
  %3286 = vmatpush1.msra.mxu0 0.0
  %3287 = vmatprep.subr.mxu0 0.0
  %3288 = vmatpush1.msra.mxu0 0.0
  %3289 = vmatprep.subr.mxu0 0.0
  %3290 = vmatpush1.msra.mxu0 0.0
  %3291 = vmatprep.subr.mxu0 0.0
  %3292 = vmatpush1.msra.mxu0 0.0
  %3293 = vmatprep.subr.mxu0 0.0
  %3294 = vmatpush1.msra.mxu0 0.0
  %3295 = vmatprep.subr.mxu0 0.0
  %3296 = vmatpush1.msra.mxu0 0.0
  %3297 = vmatprep.subr.mxu0 0.0
  %3298 = vmatpush1.msra.mxu0 %v40
  %3299 = vmatprep.subr.mxu0 0.0
  %3300 = vmatpush1.msra.mxu0 %v39
  %3301 = vmatprep.subr.mxu0 0.0
  %3302 = vmatpush1.msra.mxu0 %v38
  %3303 = vmatprep.subr.mxu0 0.0
  %3304 = vmatpush1.msra.mxu0 %v37
  %3305 = vmatprep.subr.mxu0 0.0
  %3306 = vmatpush1.msra.mxu0 %v36
  %3307 = vmatprep.subr.mxu0 0.0
  %3308 = vmatpush1.msra.mxu0 %v35
  %3309 = vmatprep.subr.mxu0 0.0
  %3310 = vmatpush1.msra.mxu0 %v34
  %3311 = vmatprep.subr.mxu0 0.0
  %3312 = vmatpush1.msra.mxu0 %v33
  %3313 = vmatprep.subr.mxu0 0.0
  %3314 = vmatpush2.msra.mxu0 0.0
  %3315 = vmatprep.subr.mxu0 0.0
  %3316 = vmatpush2.msra.mxu0 0.0
  %3317 = vmatprep.subr.mxu0 0.0
  %3318 = vmatpush2.msra.mxu0 0.0
  %3319 = vmatprep.subr.mxu0 0.0
  %3320 = vmatpush2.msra.mxu0 0.0
  %3321 = vmatprep.subr.mxu0 0.0
  %3322 = vmatpush2.msra.mxu0 0.0
  %3323 = vmatprep.subr.mxu0 0.0
  %3324 = vmatpush2.msra.mxu0 0.0
  %3325 = vmatprep.subr.mxu0 0.0
  %3326 = vmatpush2.msra.mxu0 0.0
  %3327 = vmatprep.subr.mxu0 0.0
  %3328 = vmatpush2.msra.mxu0 0.0
  %3329 = vmatprep.subr.mxu0 0.0
  %3330 = vmatpush2.msra.mxu0 0.0
  %3331 = vmatprep.subr.mxu0 0.0
  %3332 = vmatpush2.msra.mxu0 0.0
  %3333 = vmatprep.subr.mxu0 0.0
  %3334 = vmatpush2.msra.mxu0 0.0
  %3335 = vmatprep.subr.mxu0 0.0
  %3336 = vmatpush2.msra.mxu0 0.0
  %3337 = vmatprep.subr.mxu0 0.0
  %3338 = vmatpush2.msra.mxu0 0.0
  %3339 = vmatprep.subr.mxu0 0.0
  %3340 = vmatpush2.msra.mxu0 0.0
  %3341 = vmatprep.subr.mxu0 0.0
  %3342 = vmatpush2.msra.mxu0 0.0
  %3343 = vmatprep.subr.mxu0 0.0
  %3344 = vmatpush2.msra.mxu0 0.0
  %3345 = vmatprep.mubr.f32.mxu0 0.0
  %3346 = vmatmul.mubr.f32.gmra.mxu0 %v3279
  %v3347 = vpop.f32.mrf.mxu0
  %v3348 = vadd.f32 %v46, %v3347
  %v3349 = vpop.f32.mrf.mxu0
  %3350 = vdwg.mxu0
  %s3351 = scalar_lea.vmem %s6, 80
  %3352 = vst [vmem:[%s3351] sm:$0xff] %v3348
  %v3353 = vpack.c.bf16 %v3275, %v3275
  %3355 = vrot.lane.b32.xlu0 %v3353, 64
  %v3356 = vpop.permute.xlu0 %3355
  %v3358 = vsel %vm399, %v3356, 0
  %3360 = vmatprep.subr.bf16.mxu0 0
  %3361 = vmatpush1.bf16.msra.mxu0 0
  %3362 = vmatprep.subr.bf16.mxu0 0
  %3363 = vmatpush1.bf16.msra.mxu0 0
  %3364 = vmatprep.subr.bf16.mxu0 0
  %3365 = vmatpush1.bf16.msra.mxu0 0
  %3366 = vmatprep.subr.bf16.mxu0 0
  %3367 = vmatpush1.bf16.msra.mxu0 0
  %3368 = vmatprep.subr.bf16.mxu0 %v390
  %3369 = vmatpush1.bf16.msra.mxu0 %v389
  %3370 = vmatprep.subr.bf16.mxu0 %v388
  %3371 = vmatpush1.bf16.msra.mxu0 %v387
  %3372 = vmatprep.subr.bf16.mxu0 %v386
  %3373 = vmatpush1.bf16.msra.mxu0 %v385
  %3374 = vmatprep.subr.bf16.mxu0 %v384
  %3375 = vmatpush1.bf16.msra.mxu0 %v383
  %3376 = vmatprep.subr.bf16.mxu0 0
  %3377 = vmatpush2.bf16.msra.mxu0 0
  %3378 = vmatprep.subr.bf16.mxu0 0
  %3379 = vmatpush2.bf16.msra.mxu0 0
  %3380 = vmatprep.subr.bf16.mxu0 0
  %3381 = vmatpush2.bf16.msra.mxu0 0
  %3382 = vmatprep.subr.bf16.mxu0 0
  %3383 = vmatpush2.bf16.msra.mxu0 0
  %3384 = vmatprep.subr.bf16.mxu0 0
  %3385 = vmatpush2.bf16.msra.mxu0 0
  %3386 = vmatprep.subr.bf16.mxu0 0
  %3387 = vmatpush2.bf16.msra.mxu0 0
  %3388 = vmatprep.subr.bf16.mxu0 0
  %3389 = vmatpush2.bf16.msra.mxu0 0
  %3390 = vmatprep.subr.bf16.mxu0 0
  %3391 = vmatpush2.bf16.msra.mxu0 0
  %3392 = vmatprep.mubr.bf16.mxu0 0
  %3393 = vmatmul.mubr.bf16.gmra.mxu0 %v3358
  %v3394 = vpop.f32.mrf.mxu0
  %v3395 = vadd.f32 0.0, %v3394
  %v3396 = vpop.f32.mrf.mxu0
  %v3397 = vadd.f32 0.0, %v3396
  %v3398 = vpop.f32.mrf.mxu0
  %v3399 = vpop.f32.mrf.mxu0
  %3400 = vdwg.mxu0
  %s3401 = smul.u32 28, 2
  %s3402 = smul.addr %s3401, 8
  %s3403 = scalar_lea.vmem [#allocation2], %s3402
  %v3404 = vld [vmem:[%s3403] sm:$0xff]
  %v3405 = vld [vmem:[%s3403 + $0x8] sm:$0xff]
  %v3406 = vadd.f32 %v3404, %v3395
  %v3407 = vadd.f32 %v3405, %v3397
  %v3408 = vsub.f32 0.0, %v3406
  %v3409 = vmul.f32 %v3408, 1.442695
  %v3410 = vpow.pop %v3409
  %v3411 = vadd.f32 %v3410, 1.0
  %v3412 = vrcp.pop %v3411
  %v3413 = vtanh.pop %v3407
  %v3414 = vsub.f32 0.0, %v3407
  %v3415 = vmul.f32 %v3414, 1.442695
  %v3416 = vpow.pop %v3415
  %v3417 = vadd.f32 %v3416, 1.0
  %v3418 = vrcp.pop %v3417
  %v3419 = vmul.f32 %v3412, %v3273
  %v3420 = vmul.f32 %v3412, %v3413
  %3422 = vrot.lane.b32.xlu0 %v3420, 64
  %v3423 = vpop.permute.xlu0 %3422
  %v3425 = vadd.f32 %v3419, %v3423
  %v3426 = vtanh.pop %v3425
  %v3427 = vmul.f32 %v3418, %v3426
  %3429 = vrot.lane.b32.xlu0 %v3427, 64
  %v3430 = vpop.permute.xlu0 %3429
  %v3431 = vsel %vm399, %v3430, 0
  %3433 = vmatprep.subr.mxu0 0.0
  %3434 = vmatpush1.msra.mxu0 0.0
  %3435 = vmatprep.subr.mxu0 0.0
  %3436 = vmatpush1.msra.mxu0 0.0
  %3437 = vmatprep.subr.mxu0 0.0
  %3438 = vmatpush1.msra.mxu0 0.0
  %3439 = vmatprep.subr.mxu0 0.0
  %3440 = vmatpush1.msra.mxu0 0.0
  %3441 = vmatprep.subr.mxu0 0.0
  %3442 = vmatpush1.msra.mxu0 0.0
  %3443 = vmatprep.subr.mxu0 0.0
  %3444 = vmatpush1.msra.mxu0 0.0
  %3445 = vmatprep.subr.mxu0 0.0
  %3446 = vmatpush1.msra.mxu0 0.0
  %3447 = vmatprep.subr.mxu0 0.0
  %3448 = vmatpush1.msra.mxu0 0.0
  %3449 = vmatprep.subr.mxu0 0.0
  %3450 = vmatpush1.msra.mxu0 %v40
  %3451 = vmatprep.subr.mxu0 0.0
  %3452 = vmatpush1.msra.mxu0 %v39
  %3453 = vmatprep.subr.mxu0 0.0
  %3454 = vmatpush1.msra.mxu0 %v38
  %3455 = vmatprep.subr.mxu0 0.0
  %3456 = vmatpush1.msra.mxu0 %v37
  %3457 = vmatprep.subr.mxu0 0.0
  %3458 = vmatpush1.msra.mxu0 %v36
  %3459 = vmatprep.subr.mxu0 0.0
  %3460 = vmatpush1.msra.mxu0 %v35
  %3461 = vmatprep.subr.mxu0 0.0
  %3462 = vmatpush1.msra.mxu0 %v34
  %3463 = vmatprep.subr.mxu0 0.0
  %3464 = vmatpush1.msra.mxu0 %v33
  %3465 = vmatprep.subr.mxu0 0.0
  %3466 = vmatpush2.msra.mxu0 0.0
  %3467 = vmatprep.subr.mxu0 0.0
  %3468 = vmatpush2.msra.mxu0 0.0
  %3469 = vmatprep.subr.mxu0 0.0
  %3470 = vmatpush2.msra.mxu0 0.0
  %3471 = vmatprep.subr.mxu0 0.0
  %3472 = vmatpush2.msra.mxu0 0.0
  %3473 = vmatprep.subr.mxu0 0.0
  %3474 = vmatpush2.msra.mxu0 0.0
  %3475 = vmatprep.subr.mxu0 0.0
  %3476 = vmatpush2.msra.mxu0 0.0
  %3477 = vmatprep.subr.mxu0 0.0
  %3478 = vmatpush2.msra.mxu0 0.0
  %3479 = vmatprep.subr.mxu0 0.0
  %3480 = vmatpush2.msra.mxu0 0.0
  %3481 = vmatprep.subr.mxu0 0.0
  %3482 = vmatpush2.msra.mxu0 0.0
  %3483 = vmatprep.subr.mxu0 0.0
  %3484 = vmatpush2.msra.mxu0 0.0
  %3485 = vmatprep.subr.mxu0 0.0
  %3486 = vmatpush2.msra.mxu0 0.0
  %3487 = vmatprep.subr.mxu0 0.0
  %3488 = vmatpush2.msra.mxu0 0.0
  %3489 = vmatprep.subr.mxu0 0.0
  %3490 = vmatpush2.msra.mxu0 0.0
  %3491 = vmatprep.subr.mxu0 0.0
  %3492 = vmatpush2.msra.mxu0 0.0
  %3493 = vmatprep.subr.mxu0 0.0
  %3494 = vmatpush2.msra.mxu0 0.0
  %3495 = vmatprep.subr.mxu0 0.0
  %3496 = vmatpush2.msra.mxu0 0.0
  %3497 = vmatprep.mubr.f32.mxu0 0.0
  %3498 = vmatmul.mubr.f32.gmra.mxu0 %v3431
  %v3499 = vpop.f32.mrf.mxu0
  %v3500 = vadd.f32 %v46, %v3499
  %v3501 = vpop.f32.mrf.mxu0
  %3502 = vdwg.mxu0
  %s3503 = scalar_lea.vmem %s6, 88
  %3504 = vst [vmem:[%s3503] sm:$0xff] %v3500
  %v3505 = vpack.c.bf16 %v3427, %v3427
  %3507 = vrot.lane.b32.xlu0 %v3505, 64
  %v3508 = vpop.permute.xlu0 %3507
  %v3510 = vsel %vm399, %v3508, 0
  %3512 = vmatprep.subr.bf16.mxu0 0
  %3513 = vmatpush1.bf16.msra.mxu0 0
  %3514 = vmatprep.subr.bf16.mxu0 0
  %3515 = vmatpush1.bf16.msra.mxu0 0
  %3516 = vmatprep.subr.bf16.mxu0 0
  %3517 = vmatpush1.bf16.msra.mxu0 0
  %3518 = vmatprep.subr.bf16.mxu0 0
  %3519 = vmatpush1.bf16.msra.mxu0 0
  %3520 = vmatprep.subr.bf16.mxu0 %v390
  %3521 = vmatpush1.bf16.msra.mxu0 %v389
  %3522 = vmatprep.subr.bf16.mxu0 %v388
  %3523 = vmatpush1.bf16.msra.mxu0 %v387
  %3524 = vmatprep.subr.bf16.mxu0 %v386
  %3525 = vmatpush1.bf16.msra.mxu0 %v385
  %3526 = vmatprep.subr.bf16.mxu0 %v384
  %3527 = vmatpush1.bf16.msra.mxu0 %v383
  %3528 = vmatprep.subr.bf16.mxu0 0
  %3529 = vmatpush2.bf16.msra.mxu0 0
  %3530 = vmatprep.subr.bf16.mxu0 0
  %3531 = vmatpush2.bf16.msra.mxu0 0
  %3532 = vmatprep.subr.bf16.mxu0 0
  %3533 = vmatpush2.bf16.msra.mxu0 0
  %3534 = vmatprep.subr.bf16.mxu0 0
  %3535 = vmatpush2.bf16.msra.mxu0 0
  %3536 = vmatprep.subr.bf16.mxu0 0
  %3537 = vmatpush2.bf16.msra.mxu0 0
  %3538 = vmatprep.subr.bf16.mxu0 0
  %3539 = vmatpush2.bf16.msra.mxu0 0
  %3540 = vmatprep.subr.bf16.mxu0 0
  %3541 = vmatpush2.bf16.msra.mxu0 0
  %3542 = vmatprep.subr.bf16.mxu0 0
  %3543 = vmatpush2.bf16.msra.mxu0 0
  %3544 = vmatprep.mubr.bf16.mxu0 0
  %3545 = vmatmul.mubr.bf16.gmra.mxu0 %v3510
  %v3546 = vpop.f32.mrf.mxu0
  %v3547 = vadd.f32 0.0, %v3546
  %v3548 = vpop.f32.mrf.mxu0
  %v3549 = vadd.f32 0.0, %v3548
  %v3550 = vpop.f32.mrf.mxu0
  %v3551 = vpop.f32.mrf.mxu0
  %3552 = vdwg.mxu0
  %s3553 = smul.u32 29, 2
  %s3554 = smul.addr %s3553, 8
  %s3555 = scalar_lea.vmem [#allocation2], %s3554
  %v3556 = vld [vmem:[%s3555] sm:$0xff]
  %v3557 = vld [vmem:[%s3555 + $0x8] sm:$0xff]
  %v3558 = vadd.f32 %v3556, %v3547
  %v3559 = vadd.f32 %v3557, %v3549
  %v3560 = vsub.f32 0.0, %v3558
  %v3561 = vmul.f32 %v3560, 1.442695
  %v3562 = vpow.pop %v3561
  %v3563 = vadd.f32 %v3562, 1.0
  %v3564 = vrcp.pop %v3563
  %v3565 = vtanh.pop %v3559
  %v3566 = vsub.f32 0.0, %v3559
  %v3567 = vmul.f32 %v3566, 1.442695
  %v3568 = vpow.pop %v3567
  %v3569 = vadd.f32 %v3568, 1.0
  %v3570 = vrcp.pop %v3569
  %v3571 = vmul.f32 %v3564, %v3425
  %v3572 = vmul.f32 %v3564, %v3565
  %3574 = vrot.lane.b32.xlu0 %v3572, 64
  %v3575 = vpop.permute.xlu0 %3574
  %v3577 = vadd.f32 %v3571, %v3575
  %v3578 = vtanh.pop %v3577
  %v3579 = vmul.f32 %v3570, %v3578
  %3581 = vrot.lane.b32.xlu0 %v3579, 64
  %v3582 = vpop.permute.xlu0 %3581
  %v3583 = vsel %vm399, %v3582, 0
  %3585 = vmatprep.subr.mxu0 0.0
  %3586 = vmatpush1.msra.mxu0 0.0
  %3587 = vmatprep.subr.mxu0 0.0
  %3588 = vmatpush1.msra.mxu0 0.0
  %3589 = vmatprep.subr.mxu0 0.0
  %3590 = vmatpush1.msra.mxu0 0.0
  %3591 = vmatprep.subr.mxu0 0.0
  %3592 = vmatpush1.msra.mxu0 0.0
  %3593 = vmatprep.subr.mxu0 0.0
  %3594 = vmatpush1.msra.mxu0 0.0
  %3595 = vmatprep.subr.mxu0 0.0
  %3596 = vmatpush1.msra.mxu0 0.0
  %3597 = vmatprep.subr.mxu0 0.0
  %3598 = vmatpush1.msra.mxu0 0.0
  %3599 = vmatprep.subr.mxu0 0.0
  %3600 = vmatpush1.msra.mxu0 0.0
  %3601 = vmatprep.subr.mxu0 0.0
  %3602 = vmatpush1.msra.mxu0 %v40
  %3603 = vmatprep.subr.mxu0 0.0
  %3604 = vmatpush1.msra.mxu0 %v39
  %3605 = vmatprep.subr.mxu0 0.0
  %3606 = vmatpush1.msra.mxu0 %v38
  %3607 = vmatprep.subr.mxu0 0.0
  %3608 = vmatpush1.msra.mxu0 %v37
  %3609 = vmatprep.subr.mxu0 0.0
  %3610 = vmatpush1.msra.mxu0 %v36
  %3611 = vmatprep.subr.mxu0 0.0
  %3612 = vmatpush1.msra.mxu0 %v35
  %3613 = vmatprep.subr.mxu0 0.0
  %3614 = vmatpush1.msra.mxu0 %v34
  %3615 = vmatprep.subr.mxu0 0.0
  %3616 = vmatpush1.msra.mxu0 %v33
  %3617 = vmatprep.subr.mxu0 0.0
  %3618 = vmatpush2.msra.mxu0 0.0
  %3619 = vmatprep.subr.mxu0 0.0
  %3620 = vmatpush2.msra.mxu0 0.0
  %3621 = vmatprep.subr.mxu0 0.0
  %3622 = vmatpush2.msra.mxu0 0.0
  %3623 = vmatprep.subr.mxu0 0.0
  %3624 = vmatpush2.msra.mxu0 0.0
  %3625 = vmatprep.subr.mxu0 0.0
  %3626 = vmatpush2.msra.mxu0 0.0
  %3627 = vmatprep.subr.mxu0 0.0
  %3628 = vmatpush2.msra.mxu0 0.0
  %3629 = vmatprep.subr.mxu0 0.0
  %3630 = vmatpush2.msra.mxu0 0.0
  %3631 = vmatprep.subr.mxu0 0.0
  %3632 = vmatpush2.msra.mxu0 0.0
  %3633 = vmatprep.subr.mxu0 0.0
  %3634 = vmatpush2.msra.mxu0 0.0
  %3635 = vmatprep.subr.mxu0 0.0
  %3636 = vmatpush2.msra.mxu0 0.0
  %3637 = vmatprep.subr.mxu0 0.0
  %3638 = vmatpush2.msra.mxu0 0.0
  %3639 = vmatprep.subr.mxu0 0.0
  %3640 = vmatpush2.msra.mxu0 0.0
  %3641 = vmatprep.subr.mxu0 0.0
  %3642 = vmatpush2.msra.mxu0 0.0
  %3643 = vmatprep.subr.mxu0 0.0
  %3644 = vmatpush2.msra.mxu0 0.0
  %3645 = vmatprep.subr.mxu0 0.0
  %3646 = vmatpush2.msra.mxu0 0.0
  %3647 = vmatprep.subr.mxu0 0.0
  %3648 = vmatpush2.msra.mxu0 0.0
  %3649 = vmatprep.mubr.f32.mxu0 0.0
  %3650 = vmatmul.mubr.f32.gmra.mxu0 %v3583
  %v3651 = vpop.f32.mrf.mxu0
  %v3652 = vadd.f32 %v46, %v3651
  %v3653 = vpop.f32.mrf.mxu0
  %3654 = vdwg.mxu0
  %s3655 = scalar_lea.vmem %s6, 96
  %3656 = vst [vmem:[%s3655] sm:$0xff] %v3652
  %v3657 = vpack.c.bf16 %v3579, %v3579
  %3659 = vrot.lane.b32.xlu0 %v3657, 64
  %v3660 = vpop.permute.xlu0 %3659
  %v3662 = vsel %vm399, %v3660, 0
  %3664 = vmatprep.subr.bf16.mxu0 0
  %3665 = vmatpush1.bf16.msra.mxu0 0
  %3666 = vmatprep.subr.bf16.mxu0 0
  %3667 = vmatpush1.bf16.msra.mxu0 0
  %3668 = vmatprep.subr.bf16.mxu0 0
  %3669 = vmatpush1.bf16.msra.mxu0 0
  %3670 = vmatprep.subr.bf16.mxu0 0
  %3671 = vmatpush1.bf16.msra.mxu0 0
  %3672 = vmatprep.subr.bf16.mxu0 %v390
  %3673 = vmatpush1.bf16.msra.mxu0 %v389
  %3674 = vmatprep.subr.bf16.mxu0 %v388
  %3675 = vmatpush1.bf16.msra.mxu0 %v387
  %3676 = vmatprep.subr.bf16.mxu0 %v386
  %3677 = vmatpush1.bf16.msra.mxu0 %v385
  %3678 = vmatprep.subr.bf16.mxu0 %v384
  %3679 = vmatpush1.bf16.msra.mxu0 %v383
  %3680 = vmatprep.subr.bf16.mxu0 0
  %3681 = vmatpush2.bf16.msra.mxu0 0
  %3682 = vmatprep.subr.bf16.mxu0 0
  %3683 = vmatpush2.bf16.msra.mxu0 0
  %3684 = vmatprep.subr.bf16.mxu0 0
  %3685 = vmatpush2.bf16.msra.mxu0 0
  %3686 = vmatprep.subr.bf16.mxu0 0
  %3687 = vmatpush2.bf16.msra.mxu0 0
  %3688 = vmatprep.subr.bf16.mxu0 0
  %3689 = vmatpush2.bf16.msra.mxu0 0
  %3690 = vmatprep.subr.bf16.mxu0 0
  %3691 = vmatpush2.bf16.msra.mxu0 0
  %3692 = vmatprep.subr.bf16.mxu0 0
  %3693 = vmatpush2.bf16.msra.mxu0 0
  %3694 = vmatprep.subr.bf16.mxu0 0
  %3695 = vmatpush2.bf16.msra.mxu0 0
  %3696 = vmatprep.mubr.bf16.mxu0 0
  %3697 = vmatmul.mubr.bf16.gmra.mxu0 %v3662
  %v3698 = vpop.f32.mrf.mxu0
  %v3699 = vadd.f32 0.0, %v3698
  %v3700 = vpop.f32.mrf.mxu0
  %v3701 = vadd.f32 0.0, %v3700
  %v3702 = vpop.f32.mrf.mxu0
  %v3703 = vpop.f32.mrf.mxu0
  %3704 = vdwg.mxu0
  %s3705 = smul.u32 30, 2
  %s3706 = smul.addr %s3705, 8
  %s3707 = scalar_lea.vmem [#allocation2], %s3706
  %v3708 = vld [vmem:[%s3707] sm:$0xff]
  %v3709 = vld [vmem:[%s3707 + $0x8] sm:$0xff]
  %v3710 = vadd.f32 %v3708, %v3699
  %v3711 = vadd.f32 %v3709, %v3701
  %v3712 = vsub.f32 0.0, %v3710
  %v3713 = vmul.f32 %v3712, 1.442695
  %v3714 = vpow.pop %v3713
  %v3715 = vadd.f32 %v3714, 1.0
  %v3716 = vrcp.pop %v3715
  %v3717 = vtanh.pop %v3711
  %v3718 = vsub.f32 0.0, %v3711
  %v3719 = vmul.f32 %v3718, 1.442695
  %v3720 = vpow.pop %v3719
  %v3721 = vadd.f32 %v3720, 1.0
  %v3722 = vrcp.pop %v3721
  %v3723 = vmul.f32 %v3716, %v3577
  %v3724 = vmul.f32 %v3716, %v3717
  %3726 = vrot.lane.b32.xlu0 %v3724, 64
  %v3727 = vpop.permute.xlu0 %3726
  %v3729 = vadd.f32 %v3723, %v3727
  %v3730 = vtanh.pop %v3729
  %v3731 = vmul.f32 %v3722, %v3730
  %3733 = vrot.lane.b32.xlu0 %v3731, 64
  %v3734 = vpop.permute.xlu0 %3733
  %v3735 = vsel %vm399, %v3734, 0
  %3737 = vmatprep.subr.mxu0 0.0
  %3738 = vmatpush1.msra.mxu0 0.0
  %3739 = vmatprep.subr.mxu0 0.0
  %3740 = vmatpush1.msra.mxu0 0.0
  %3741 = vmatprep.subr.mxu0 0.0
  %3742 = vmatpush1.msra.mxu0 0.0
  %3743 = vmatprep.subr.mxu0 0.0
  %3744 = vmatpush1.msra.mxu0 0.0
  %3745 = vmatprep.subr.mxu0 0.0
  %3746 = vmatpush1.msra.mxu0 0.0
  %3747 = vmatprep.subr.mxu0 0.0
  %3748 = vmatpush1.msra.mxu0 0.0
  %3749 = vmatprep.subr.mxu0 0.0
  %3750 = vmatpush1.msra.mxu0 0.0
  %3751 = vmatprep.subr.mxu0 0.0
  %3752 = vmatpush1.msra.mxu0 0.0
  %3753 = vmatprep.subr.mxu0 0.0
  %3754 = vmatpush1.msra.mxu0 %v40
  %3755 = vmatprep.subr.mxu0 0.0
  %3756 = vmatpush1.msra.mxu0 %v39
  %3757 = vmatprep.subr.mxu0 0.0
  %3758 = vmatpush1.msra.mxu0 %v38
  %3759 = vmatprep.subr.mxu0 0.0
  %3760 = vmatpush1.msra.mxu0 %v37
  %3761 = vmatprep.subr.mxu0 0.0
  %3762 = vmatpush1.msra.mxu0 %v36
  %3763 = vmatprep.subr.mxu0 0.0
  %3764 = vmatpush1.msra.mxu0 %v35
  %3765 = vmatprep.subr.mxu0 0.0
  %3766 = vmatpush1.msra.mxu0 %v34
  %3767 = vmatprep.subr.mxu0 0.0
  %3768 = vmatpush1.msra.mxu0 %v33
  %3769 = vmatprep.subr.mxu0 0.0
  %3770 = vmatpush2.msra.mxu0 0.0
  %3771 = vmatprep.subr.mxu0 0.0
  %3772 = vmatpush2.msra.mxu0 0.0
  %3773 = vmatprep.subr.mxu0 0.0
  %3774 = vmatpush2.msra.mxu0 0.0
  %3775 = vmatprep.subr.mxu0 0.0
  %3776 = vmatpush2.msra.mxu0 0.0
  %3777 = vmatprep.subr.mxu0 0.0
  %3778 = vmatpush2.msra.mxu0 0.0
  %3779 = vmatprep.subr.mxu0 0.0
  %3780 = vmatpush2.msra.mxu0 0.0
  %3781 = vmatprep.subr.mxu0 0.0
  %3782 = vmatpush2.msra.mxu0 0.0
  %3783 = vmatprep.subr.mxu0 0.0
  %3784 = vmatpush2.msra.mxu0 0.0
  %3785 = vmatprep.subr.mxu0 0.0
  %3786 = vmatpush2.msra.mxu0 0.0
  %3787 = vmatprep.subr.mxu0 0.0
  %3788 = vmatpush2.msra.mxu0 0.0
  %3789 = vmatprep.subr.mxu0 0.0
  %3790 = vmatpush2.msra.mxu0 0.0
  %3791 = vmatprep.subr.mxu0 0.0
  %3792 = vmatpush2.msra.mxu0 0.0
  %3793 = vmatprep.subr.mxu0 0.0
  %3794 = vmatpush2.msra.mxu0 0.0
  %3795 = vmatprep.subr.mxu0 0.0
  %3796 = vmatpush2.msra.mxu0 0.0
  %3797 = vmatprep.subr.mxu0 0.0
  %3798 = vmatpush2.msra.mxu0 0.0
  %3799 = vmatprep.subr.mxu0 0.0
  %3800 = vmatpush2.msra.mxu0 0.0
  %3801 = vmatprep.mubr.f32.mxu0 0.0
  %3802 = vmatmul.mubr.f32.gmra.mxu0 %v3735
  %v3803 = vpop.f32.mrf.mxu0
  %v3804 = vadd.f32 %v46, %v3803
  %v3805 = vpop.f32.mrf.mxu0
  %3806 = vdwg.mxu0
  %s3807 = scalar_lea.vmem %s6, 104
  %3808 = vst [vmem:[%s3807] sm:$0xff] %v3804
  %v3809 = vpack.c.bf16 %v3731, %v3731
  %3811 = vrot.lane.b32.xlu0 %v3809, 64
  %v3812 = vpop.permute.xlu0 %3811
  %v3814 = vsel %vm399, %v3812, 0
  %3816 = vmatprep.subr.bf16.mxu0 0
  %3817 = vmatpush1.bf16.msra.mxu0 0
  %3818 = vmatprep.subr.bf16.mxu0 0
  %3819 = vmatpush1.bf16.msra.mxu0 0
  %3820 = vmatprep.subr.bf16.mxu0 0
  %3821 = vmatpush1.bf16.msra.mxu0 0
  %3822 = vmatprep.subr.bf16.mxu0 0
  %3823 = vmatpush1.bf16.msra.mxu0 0
  %3824 = vmatprep.subr.bf16.mxu0 %v390
  %3825 = vmatpush1.bf16.msra.mxu0 %v389
  %3826 = vmatprep.subr.bf16.mxu0 %v388
  %3827 = vmatpush1.bf16.msra.mxu0 %v387
  %3828 = vmatprep.subr.bf16.mxu0 %v386
  %3829 = vmatpush1.bf16.msra.mxu0 %v385
  %3830 = vmatprep.subr.bf16.mxu0 %v384
  %3831 = vmatpush1.bf16.msra.mxu0 %v383
  %3832 = vmatprep.subr.bf16.mxu0 0
  %3833 = vmatpush2.bf16.msra.mxu0 0
  %3834 = vmatprep.subr.bf16.mxu0 0
  %3835 = vmatpush2.bf16.msra.mxu0 0
  %3836 = vmatprep.subr.bf16.mxu0 0
  %3837 = vmatpush2.bf16.msra.mxu0 0
  %3838 = vmatprep.subr.bf16.mxu0 0
  %3839 = vmatpush2.bf16.msra.mxu0 0
  %3840 = vmatprep.subr.bf16.mxu0 0
  %3841 = vmatpush2.bf16.msra.mxu0 0
  %3842 = vmatprep.subr.bf16.mxu0 0
  %3843 = vmatpush2.bf16.msra.mxu0 0
  %3844 = vmatprep.subr.bf16.mxu0 0
  %3845 = vmatpush2.bf16.msra.mxu0 0
  %3846 = vmatprep.subr.bf16.mxu0 0
  %3847 = vmatpush2.bf16.msra.mxu0 0
  %3848 = vmatprep.mubr.bf16.mxu0 0
  %3849 = vmatmul.mubr.bf16.gmra.mxu0 %v3814
  %v3850 = vpop.f32.mrf.mxu0
  %v3851 = vadd.f32 0.0, %v3850
  %v3852 = vpop.f32.mrf.mxu0
  %v3853 = vadd.f32 0.0, %v3852
  %v3854 = vpop.f32.mrf.mxu0
  %v3855 = vpop.f32.mrf.mxu0
  %3856 = vdwg.mxu0
  %s3857 = smul.u32 31, 2
  %s3858 = smul.addr %s3857, 8
  %s3859 = scalar_lea.vmem [#allocation2], %s3858
  %v3860 = vld [vmem:[%s3859] sm:$0xff]
  %v3861 = vld [vmem:[%s3859 + $0x8] sm:$0xff]
  %v3862 = vadd.f32 %v3860, %v3851
  %v3863 = vadd.f32 %v3861, %v3853
  %v3864 = vsub.f32 0.0, %v3862
  %v3865 = vmul.f32 %v3864, 1.442695
  %v3866 = vpow.pop %v3865
  %v3867 = vadd.f32 %v3866, 1.0
  %v3868 = vrcp.pop %v3867
  %v3869 = vtanh.pop %v3863
  %v3870 = vsub.f32 0.0, %v3863
  %v3871 = vmul.f32 %v3870, 1.442695
  %v3872 = vpow.pop %v3871
  %v3873 = vadd.f32 %v3872, 1.0
  %v3874 = vrcp.pop %v3873
  %v3875 = vmul.f32 %v3868, %v3729
  %v3876 = vmul.f32 %v3868, %v3869
  %3878 = vrot.lane.b32.xlu0 %v3876, 64
  %v3879 = vpop.permute.xlu0 %3878
  %v3881 = vadd.f32 %v3875, %v3879
  %v3882 = vtanh.pop %v3881
  %v3883 = vmul.f32 %v3874, %v3882
  %3885 = vrot.lane.b32.xlu0 %v3883, 64
  %v3886 = vpop.permute.xlu0 %3885
  %v3887 = vsel %vm399, %v3886, 0
  %3889 = vmatprep.subr.mxu0 0.0
  %3890 = vmatpush1.msra.mxu0 0.0
  %3891 = vmatprep.subr.mxu0 0.0
  %3892 = vmatpush1.msra.mxu0 0.0
  %3893 = vmatprep.subr.mxu0 0.0
  %3894 = vmatpush1.msra.mxu0 0.0
  %3895 = vmatprep.subr.mxu0 0.0
  %3896 = vmatpush1.msra.mxu0 0.0
  %3897 = vmatprep.subr.mxu0 0.0
  %3898 = vmatpush1.msra.mxu0 0.0
  %3899 = vmatprep.subr.mxu0 0.0
  %3900 = vmatpush1.msra.mxu0 0.0
  %3901 = vmatprep.subr.mxu0 0.0
  %3902 = vmatpush1.msra.mxu0 0.0
  %3903 = vmatprep.subr.mxu0 0.0
  %3904 = vmatpush1.msra.mxu0 0.0
  %3905 = vmatprep.subr.mxu0 0.0
  %3906 = vmatpush1.msra.mxu0 %v40
  %3907 = vmatprep.subr.mxu0 0.0
  %3908 = vmatpush1.msra.mxu0 %v39
  %3909 = vmatprep.subr.mxu0 0.0
  %3910 = vmatpush1.msra.mxu0 %v38
  %3911 = vmatprep.subr.mxu0 0.0
  %3912 = vmatpush1.msra.mxu0 %v37
  %3913 = vmatprep.subr.mxu0 0.0
  %3914 = vmatpush1.msra.mxu0 %v36
  %3915 = vmatprep.subr.mxu0 0.0
  %3916 = vmatpush1.msra.mxu0 %v35
  %3917 = vmatprep.subr.mxu0 0.0
  %3918 = vmatpush1.msra.mxu0 %v34
  %3919 = vmatprep.subr.mxu0 0.0
  %3920 = vmatpush1.msra.mxu0 %v33
  %3921 = vmatprep.subr.mxu0 0.0
  %3922 = vmatpush2.msra.mxu0 0.0
  %3923 = vmatprep.subr.mxu0 0.0
  %3924 = vmatpush2.msra.mxu0 0.0
  %3925 = vmatprep.subr.mxu0 0.0
  %3926 = vmatpush2.msra.mxu0 0.0
  %3927 = vmatprep.subr.mxu0 0.0
  %3928 = vmatpush2.msra.mxu0 0.0
  %3929 = vmatprep.subr.mxu0 0.0
  %3930 = vmatpush2.msra.mxu0 0.0
  %3931 = vmatprep.subr.mxu0 0.0
  %3932 = vmatpush2.msra.mxu0 0.0
  %3933 = vmatprep.subr.mxu0 0.0
  %3934 = vmatpush2.msra.mxu0 0.0
  %3935 = vmatprep.subr.mxu0 0.0
  %3936 = vmatpush2.msra.mxu0 0.0
  %3937 = vmatprep.subr.mxu0 0.0
  %3938 = vmatpush2.msra.mxu0 0.0
  %3939 = vmatprep.subr.mxu0 0.0
  %3940 = vmatpush2.msra.mxu0 0.0
  %3941 = vmatprep.subr.mxu0 0.0
  %3942 = vmatpush2.msra.mxu0 0.0
  %3943 = vmatprep.subr.mxu0 0.0
  %3944 = vmatpush2.msra.mxu0 0.0
  %3945 = vmatprep.subr.mxu0 0.0
  %3946 = vmatpush2.msra.mxu0 0.0
  %3947 = vmatprep.subr.mxu0 0.0
  %3948 = vmatpush2.msra.mxu0 0.0
  %3949 = vmatprep.subr.mxu0 0.0
  %3950 = vmatpush2.msra.mxu0 0.0
  %3951 = vmatprep.subr.mxu0 0.0
  %3952 = vmatpush2.msra.mxu0 0.0
  %3953 = vmatprep.mubr.f32.mxu0 0.0
  %3954 = vmatmul.mubr.f32.gmra.mxu0 %v3887
  %v3955 = vpop.f32.mrf.mxu0
  %v3956 = vadd.f32 %v46, %v3955
  %v3957 = vpop.f32.mrf.mxu0
  %3958 = vdwg.mxu0
  %s3959 = scalar_lea.vmem %s6, 112
  %3960 = vst [vmem:[%s3959] sm:$0xff] %v3956
  %v3961 = vpack.c.bf16 %v3883, %v3883
  %3963 = vrot.lane.b32.xlu0 %v3961, 64
  %v3964 = vpop.permute.xlu0 %3963
  %v3966 = vsel %vm399, %v3964, 0
  %3968 = vmatprep.subr.bf16.mxu0 0
  %3969 = vmatpush1.bf16.msra.mxu0 0
  %3970 = vmatprep.subr.bf16.mxu0 0
  %3971 = vmatpush1.bf16.msra.mxu0 0
  %3972 = vmatprep.subr.bf16.mxu0 0
  %3973 = vmatpush1.bf16.msra.mxu0 0
  %3974 = vmatprep.subr.bf16.mxu0 0
  %3975 = vmatpush1.bf16.msra.mxu0 0
  %3976 = vmatprep.subr.bf16.mxu0 %v390
  %3977 = vmatpush1.bf16.msra.mxu0 %v389
  %3978 = vmatprep.subr.bf16.mxu0 %v388
  %3979 = vmatpush1.bf16.msra.mxu0 %v387
  %3980 = vmatprep.subr.bf16.mxu0 %v386
  %3981 = vmatpush1.bf16.msra.mxu0 %v385
  %3982 = vmatprep.subr.bf16.mxu0 %v384
  %3983 = vmatpush1.bf16.msra.mxu0 %v383
  %3984 = vmatprep.subr.bf16.mxu0 0
  %3985 = vmatpush2.bf16.msra.mxu0 0
  %3986 = vmatprep.subr.bf16.mxu0 0
  %3987 = vmatpush2.bf16.msra.mxu0 0
  %3988 = vmatprep.subr.bf16.mxu0 0
  %3989 = vmatpush2.bf16.msra.mxu0 0
  %3990 = vmatprep.subr.bf16.mxu0 0
  %3991 = vmatpush2.bf16.msra.mxu0 0
  %3992 = vmatprep.subr.bf16.mxu0 0
  %3993 = vmatpush2.bf16.msra.mxu0 0
  %3994 = vmatprep.subr.bf16.mxu0 0
  %3995 = vmatpush2.bf16.msra.mxu0 0
  %3996 = vmatprep.subr.bf16.mxu0 0
  %3997 = vmatpush2.bf16.msra.mxu0 0
  %3998 = vmatprep.subr.bf16.mxu0 0
  %3999 = vmatpush2.bf16.msra.mxu0 0
  %4000 = vmatprep.mubr.bf16.mxu0 0
  %4001 = vmatmul.mubr.bf16.gmra.mxu0 %v3966
  %v4002 = vpop.f32.mrf.mxu0
  %v4003 = vadd.f32 0.0, %v4002
  %v4004 = vpop.f32.mrf.mxu0
  %v4005 = vadd.f32 0.0, %v4004
  %v4006 = vpop.f32.mrf.mxu0
  %v4007 = vpop.f32.mrf.mxu0
  %4008 = vdwg.mxu0
  %s4009 = smul.u32 32, 2
  %s4010 = smul.addr %s4009, 8
  %s4011 = scalar_lea.vmem [#allocation2], %s4010
  %v4012 = vld [vmem:[%s4011] sm:$0xff]
  %v4013 = vld [vmem:[%s4011 + $0x8] sm:$0xff]
  %v4014 = vadd.f32 %v4012, %v4003
  %v4015 = vadd.f32 %v4013, %v4005
  %v4016 = vsub.f32 0.0, %v4014
  %v4017 = vmul.f32 %v4016, 1.442695
  %v4018 = vpow.pop %v4017
  %v4019 = vadd.f32 %v4018, 1.0
  %v4020 = vrcp.pop %v4019
  %v4021 = vtanh.pop %v4015
  %v4022 = vsub.f32 0.0, %v4015
  %v4023 = vmul.f32 %v4022, 1.442695
  %v4024 = vpow.pop %v4023
  %v4025 = vadd.f32 %v4024, 1.0
  %v4026 = vrcp.pop %v4025
  %v4027 = vmul.f32 %v4020, %v3881
  %v4028 = vmul.f32 %v4020, %v4021
  %4030 = vrot.lane.b32.xlu0 %v4028, 64
  %v4031 = vpop.permute.xlu0 %4030
  %v4033 = vadd.f32 %v4027, %v4031
  %v4034 = vtanh.pop %v4033
  %v4035 = vmul.f32 %v4026, %v4034
  %4037 = vrot.lane.b32.xlu0 %v4035, 64
  %v4038 = vpop.permute.xlu0 %4037
  %v4039 = vsel %vm399, %v4038, 0
  %4041 = vmatprep.subr.mxu0 0.0
  %4042 = vmatpush1.msra.mxu0 0.0
  %4043 = vmatprep.subr.mxu0 0.0
  %4044 = vmatpush1.msra.mxu0 0.0
  %4045 = vmatprep.subr.mxu0 0.0
  %4046 = vmatpush1.msra.mxu0 0.0
  %4047 = vmatprep.subr.mxu0 0.0
  %4048 = vmatpush1.msra.mxu0 0.0
  %4049 = vmatprep.subr.mxu0 0.0
  %4050 = vmatpush1.msra.mxu0 0.0
  %4051 = vmatprep.subr.mxu0 0.0
  %4052 = vmatpush1.msra.mxu0 0.0
  %4053 = vmatprep.subr.mxu0 0.0
  %4054 = vmatpush1.msra.mxu0 0.0
  %4055 = vmatprep.subr.mxu0 0.0
  %4056 = vmatpush1.msra.mxu0 0.0
  %4057 = vmatprep.subr.mxu0 0.0
  %4058 = vmatpush1.msra.mxu0 %v40
  %4059 = vmatprep.subr.mxu0 0.0
  %4060 = vmatpush1.msra.mxu0 %v39
  %4061 = vmatprep.subr.mxu0 0.0
  %4062 = vmatpush1.msra.mxu0 %v38
  %4063 = vmatprep.subr.mxu0 0.0
  %4064 = vmatpush1.msra.mxu0 %v37
  %4065 = vmatprep.subr.mxu0 0.0
  %4066 = vmatpush1.msra.mxu0 %v36
  %4067 = vmatprep.subr.mxu0 0.0
  %4068 = vmatpush1.msra.mxu0 %v35
  %4069 = vmatprep.subr.mxu0 0.0
  %4070 = vmatpush1.msra.mxu0 %v34
  %4071 = vmatprep.subr.mxu0 0.0
  %4072 = vmatpush1.msra.mxu0 %v33
  %4073 = vmatprep.subr.mxu0 0.0
  %4074 = vmatpush2.msra.mxu0 0.0
  %4075 = vmatprep.subr.mxu0 0.0
  %4076 = vmatpush2.msra.mxu0 0.0
  %4077 = vmatprep.subr.mxu0 0.0
  %4078 = vmatpush2.msra.mxu0 0.0
  %4079 = vmatprep.subr.mxu0 0.0
  %4080 = vmatpush2.msra.mxu0 0.0
  %4081 = vmatprep.subr.mxu0 0.0
  %4082 = vmatpush2.msra.mxu0 0.0
  %4083 = vmatprep.subr.mxu0 0.0
  %4084 = vmatpush2.msra.mxu0 0.0
  %4085 = vmatprep.subr.mxu0 0.0
  %4086 = vmatpush2.msra.mxu0 0.0
  %4087 = vmatprep.subr.mxu0 0.0
  %4088 = vmatpush2.msra.mxu0 0.0
  %4089 = vmatprep.subr.mxu0 0.0
  %4090 = vmatpush2.msra.mxu0 0.0
  %4091 = vmatprep.subr.mxu0 0.0
  %4092 = vmatpush2.msra.mxu0 0.0
  %4093 = vmatprep.subr.mxu0 0.0
  %4094 = vmatpush2.msra.mxu0 0.0
  %4095 = vmatprep.subr.mxu0 0.0
  %4096 = vmatpush2.msra.mxu0 0.0
  %4097 = vmatprep.subr.mxu0 0.0
  %4098 = vmatpush2.msra.mxu0 0.0
  %4099 = vmatprep.subr.mxu0 0.0
  %4100 = vmatpush2.msra.mxu0 0.0
  %4101 = vmatprep.subr.mxu0 0.0
  %4102 = vmatpush2.msra.mxu0 0.0
  %4103 = vmatprep.subr.mxu0 0.0
  %4104 = vmatpush2.msra.mxu0 0.0
  %4105 = vmatprep.mubr.f32.mxu0 0.0
  %4106 = vmatmul.mubr.f32.gmra.mxu0 %v4039
  %v4107 = vpop.f32.mrf.mxu0
  %v4108 = vadd.f32 %v46, %v4107
  %v4109 = vpop.f32.mrf.mxu0
  %4110 = vdwg.mxu0
  %s4111 = scalar_lea.vmem %s6, 120
  %4112 = vst [vmem:[%s4111] sm:$0xff] %v4108
  // Predicated region
  $region26: #{circular_mesh_lstm_forward.1} parent=0 // pred_check
    _
  $region27: #{circular_mesh_lstm_forward.1} parent=0 // pred_check_branch
    %4114 = sbr.rel (0) target = $region29
  $region28: #{circular_mesh_lstm_forward.1} parent=0 // pred_region
    _
  $region29: #{circular_mesh_lstm_forward.1} parent=0 // pred_fallthru
    _
  // Predicated region
  $region30: #{circular_mesh_lstm_forward.1} parent=0 // pred_check
    _
  $region31: #{circular_mesh_lstm_forward.1} parent=0 // pred_check_branch
    %4116 = sbr.rel (0) target = $region33
  $region32: #{circular_mesh_lstm_forward.1} parent=0 // pred_region
    _
  $region33: #{circular_mesh_lstm_forward.1} parent=0 // pred_fallthru
    _

</llo_original>
